<compile_context>
chip_gen: v5e
topology: v5e:2x2
jax: 0.10.0
libtpu: 0.0.40
codegen_flags: <defaults>
</compile_context>

<pallas_src>
import functools

import jax
import jax.numpy as jnp
from jax import lax
from jax.experimental import pallas as pl
from jax.experimental.pallas import tpu as pltpu


_VMEM_LIMIT = 32 * 1024 * 1024   # explicit scoped-VMEM budget (safe on v5e/v6e/v7x)
_TILE_M_CAP = 512                # rows per grid step for M-tiled kernels


def _round_up(x, m):
    return (x + m - 1) // m * m


def _tile_m(M, cap=_TILE_M_CAP):
    tm = min(cap, _round_up(M, 8))
    return tm, _round_up(M, tm)


def _apply_act(x, act):
    if act == "leaky_relu":
        return jnp.where(x >= 0, x, 0.01 * x)
    if act == "relu":
        return jnp.maximum(x, 0.0)
    return x


def _compiler_params(sem):
    return pltpu.CompilerParams(dimension_semantics=sem,
                                vmem_limit_bytes=_VMEM_LIMIT)


# ----------------------------------------------------------------------------
# Pallas kernel 1: batched fused matmul + bias + activation, M-tiled
# ----------------------------------------------------------------------------
def _matmul_kernel(a_ref, b_ref, bias_ref, o_ref, *, act):
    acc = jnp.dot(a_ref[0], b_ref[0], preferred_element_type=jnp.float32)
    acc = acc + bias_ref[0]
    o_ref[0] = _apply_act(acc, act).astype(o_ref.dtype)


def matmul_bias_act(a, b, bias, act="none"):
    """a: (G, M, K) @ b: (G, K, N) + bias: (G, N) -> (G, M, N) float32.

    M is tiled over the grid (double-buffered, 'parallel' for megacore);
    MXU operands are cast to bf16, accumulation + activation stay f32.
    """
    G, M, K = a.shape
    N = b.shape[2]
    tm, m_pad = _tile_m(M)
    if m_pad != M:
        a = jnp.pad(a, ((0, 0), (0, m_pad - M), (0, 0)))
    out = pl.pallas_call(
        functools.partial(_matmul_kernel, act=act),
        out_shape=jax.ShapeDtypeStruct((G, m_pad, N), jnp.float32),
        grid=(G, m_pad // tm),
        in_specs=[
            pl.BlockSpec((1, tm, K), lambda g, i: (g, i, 0)),
            pl.BlockSpec((1, K, N), lambda g, i: (g, 0, 0)),
            pl.BlockSpec((1, 1, N), lambda g, i: (g, 0, 0)),
        ],
        out_specs=pl.BlockSpec((1, tm, N), lambda g, i: (g, i, 0)),
        compiler_params=_compiler_params(("parallel", "parallel")),
    )(a.astype(jnp.bfloat16), b.astype(jnp.bfloat16),
      bias.reshape(G, 1, N).astype(jnp.float32))
    return out[:, :M] if m_pad != M else out


# ----------------------------------------------------------------------------
# Pallas kernel 2: grouped Conv1d with in-kernel shifted taps (no HBM im2col)
# ----------------------------------------------------------------------------
def _conv1d_kernel(xp_ref, w_ref, b_ref, o_ref, *, K, dil, act):
    # xp_ref: (1, 1, Lp, Cin) f32 padded input, w_ref: (1, K, Cin, Cout) bf16,
    # b_ref: (1, 1, Cout) f32, o_ref: (1, 1, L, Cout) f32.
    L, Cout = o_ref.shape[2], o_ref.shape[3]
    acc = jnp.zeros((L, Cout), jnp.float32)
    for k in range(K):                                   # static tap loop
        xk = xp_ref[0, 0, k * dil:k * dil + L, :].astype(jnp.bfloat16)
        acc = acc + jnp.dot(xk, w_ref[0, k], preferred_element_type=jnp.float32)
    acc = acc + b_ref[0]
    o_ref[0, 0] = _apply_act(acc, act).astype(o_ref.dtype)


def grouped_conv1d(x, w, b, *, dilation=1, causal=False, act="none"):
    """x: (G, B, L, Cin), w: (G, Cout, Cin, K) torch layout, b: (G, Cout)."""
    G, B, L, Cin = x.shape
    Cout, K = w.shape[1], w.shape[3]
    rf = (K - 1) * dilation
    pad = (rf, 0) if causal else (rf // 2, rf - rf // 2)
    xp = jnp.pad(x, ((0, 0), (0, 0), pad, (0, 0)))
    wt = jnp.transpose(w, (0, 3, 2, 1))                  # (G, K, Cin, Cout)
    Lp = L + rf
    return pl.pallas_call(
        functools.partial(_conv1d_kernel, K=K, dil=dilation, act=act),
        out_shape=jax.ShapeDtypeStruct((G, B, L, Cout), jnp.float32),
        grid=(G, B),
        in_specs=[
            pl.BlockSpec((1, 1, Lp, Cin), lambda g, bb: (g, bb, 0, 0)),
            pl.BlockSpec((1, K, Cin, Cout), lambda g, bb: (g, 0, 0, 0)),
            pl.BlockSpec((1, 1, Cout), lambda g, bb: (g, 0, 0)),
        ],
        out_specs=pl.BlockSpec((1, 1, L, Cout), lambda g, bb: (g, bb, 0, 0)),
        compiler_params=_compiler_params(("parallel", "parallel")),
    )(xp.astype(jnp.float32), wt.astype(jnp.bfloat16),
      b.reshape(G, 1, Cout).astype(jnp.float32))


def conv1d_blc(x, w, b, *, dilation=1, causal=False, act="none"):
    """Single conv in (B, L, C) layout. K==1 convs skip im2col entirely."""
    B, L, Cin = x.shape
    Cout, K = w.shape[0], w.shape[2]
    if K == 1 and dilation == 1:
        y = matmul_bias_act(x.reshape(1, B * L, Cin),
                            jnp.transpose(w[:, :, 0])[None],
                            b.reshape(1, Cout), act=act)
        return y[0].reshape(B, L, Cout)
    return grouped_conv1d(x[None], w[None], b[None],
                          dilation=dilation, causal=causal, act=act)[0]


# ----------------------------------------------------------------------------
# Pallas kernel 3: MMoE combine for BOTH tasks (softmax gates, EUP reciprocal)
# ----------------------------------------------------------------------------
def _moe_combine_kernel(exp_ref, g1_ref, g2_ref, o1_ref, o2_ref, *, E):
    def combine(g_ref, o_ref):
        g = g_ref[...]                                   # (TM, E)
        m = jnp.max(g, axis=1, keepdims=True)
        e = jnp.exp(g - m)
        s = jnp.sum(e, axis=1, keepdims=True)
        w = e * pl.reciprocal(s, approx=True)            # softmax weights
        acc = exp_ref[0] * w[:, 0:1]
        for k in range(1, E):
            acc = acc + exp_ref[k] * w[:, k:k + 1]
        o_ref[...] = acc.astype(o_ref.dtype)
    combine(g1_ref, o1_ref)
    combine(g2_ref, o2_ref)


def moe_combine(expert_stack, gate1, gate2):
    E, M, C = expert_stack.shape
    tm, m_pad = _tile_m(M)
    if m_pad != M:
        expert_stack = jnp.pad(expert_stack, ((0, 0), (0, m_pad - M), (0, 0)))
        gate1 = jnp.pad(gate1, ((0, m_pad - M), (0, 0)))
        gate2 = jnp.pad(gate2, ((0, m_pad - M), (0, 0)))
    o1, o2 = pl.pallas_call(
        functools.partial(_moe_combine_kernel, E=E),
        out_shape=(jax.ShapeDtypeStruct((m_pad, C), jnp.float32),
                   jax.ShapeDtypeStruct((m_pad, C), jnp.float32)),
        grid=(m_pad // tm,),
        in_specs=[
            pl.BlockSpec((E, tm, C), lambda i: (0, i, 0)),
            pl.BlockSpec((tm, E), lambda i: (i, 0)),
            pl.BlockSpec((tm, E), lambda i: (i, 0)),
        ],
        out_specs=(pl.BlockSpec((tm, C), lambda i: (i, 0)),
                   pl.BlockSpec((tm, C), lambda i: (i, 0))),
        compiler_params=_compiler_params(("parallel",)),
    )(expert_stack.astype(jnp.float32), gate1.astype(jnp.float32),
      gate2.astype(jnp.float32))
    return o1[:M], o2[:M]


# ----------------------------------------------------------------------------
# Pallas kernel 4: fused GRU recurrence for ALL (task, direction) sequences
# ----------------------------------------------------------------------------
def _gru_kernel(xr_ref, xz_ref, xn_ref, whr_ref, whz_ref, whn_ref,
                bhr_ref, bhz_ref, bhn_ref, o_ref, h_ref, *, unroll):
    # The (task, direction) group dim is folded into the feature axis with
    # block-diagonal per-gate recurrent weights -> every per-step op is a
    # whole-tile op (no sub-lane gate slicing inside the serial loop).
    L = xr_ref.shape[0]
    h_ref[...] = jnp.zeros(h_ref.shape, jnp.float32)
    whr = whr_ref[...]
    whz = whz_ref[...]
    whn = whn_ref[...]
    bhr = bhr_ref[...]
    bhz = bhz_ref[...]
    bhn = bhn_ref[...]

    def body(t, carry):
        h = h_ref[...]                                           # (B, 4H)
        hr = jnp.dot(h, whr, preferred_element_type=jnp.float32) + bhr
        hz = jnp.dot(h, whz, preferred_element_type=jnp.float32) + bhz
        hn = jnp.dot(h, whn, preferred_element_type=jnp.float32) + bhn
        r = jax.nn.sigmoid(xr_ref[t] + hr)
        z = jax.nn.sigmoid(xz_ref[t] + hz)
        n = jnp.tanh(xn_ref[t] + r * hn)
        h_new = (1.0 - z) * n + z * h
        h_ref[...] = h_new
        o_ref[t] = h_new
        return carry

    lax.fori_loop(0, L, body, 0, unroll=unroll)


def gru_run(xr, xz, xn, whr, whz, whn, bhr, bhz, bhn):
    L, B, GH = xr.shape
    if L <= 64:
        unroll = True
    elif L % 4 == 0:
        unroll = 4
    elif L % 2 == 0:
        unroll = 2
    else:
        unroll = 1
    seq_spec = pl.BlockSpec((L, B, GH), lambda i: (0, 0, 0))
    w_spec = pl.BlockSpec((GH, GH), lambda i: (0, 0))
    b_spec = pl.BlockSpec((1, GH), lambda i: (0, 0))
    return pl.pallas_call(
        functools.partial(_gru_kernel, unroll=unroll),
        out_shape=jax.ShapeDtypeStruct((L, B, GH), jnp.float32),
        grid=(1,),
        in_specs=[seq_spec, seq_spec, seq_spec, w_spec, w_spec, w_spec,
                  b_spec, b_spec, b_spec],
        out_specs=seq_spec,
        scratch_shapes=[pltpu.VMEM((B, GH), jnp.float32)],
        compiler_params=_compiler_params(("arbitrary",)),
    )(xr, xz, xn, whr, whz, whn, bhr, bhz, bhn)


# ----------------------------------------------------------------------------
# Pallas kernel 5: fused FC head (Linear->LeakyReLU->Linear->Linear->LeakyReLU)
# ----------------------------------------------------------------------------
def _head_kernel(x_ref, w1_ref, b1_ref, w2_ref, b2_ref, w3_ref, b3_ref, o_ref):
    h = jnp.dot(x_ref[...], w1_ref[...], preferred_element_type=jnp.float32)
    h = h + b1_ref[...]
    h = jnp.where(h >= 0, h, 0.01 * h)
    h = jnp.dot(h.astype(jnp.bfloat16), w2_ref[...],
                preferred_element_type=jnp.float32) + b2_ref[...]
    # Dropout1d is identity in eval; surrounding transposes cancel.
    h = jnp.dot(h.astype(jnp.bfloat16), w3_ref[...],
                preferred_element_type=jnp.float32) + b3_ref[...]
    o_ref[...] = jnp.where(h >= 0, h, 0.01 * h).astype(o_ref.dtype)


def fused_head(x, hp):
    M, F = x.shape
    D = hp["w1"].shape[1]
    out_dim = hp["w3"].shape[1]
    tm, m_pad = _tile_m(M)
    if m_pad != M:
        x = jnp.pad(x, ((0, m_pad - M), (0, 0)))
    out = pl.pallas_call(
        _head_kernel,
        out_shape=jax.ShapeDtypeStruct((m_pad, out_dim), jnp.float32),
        grid=(m_pad // tm,),
        in_specs=[
            pl.BlockSpec((tm, F), lambda i: (i, 0)),
            pl.BlockSpec((F, D), lambda i: (0, 0)),
            pl.BlockSpec((1, D), lambda i: (0, 0)),
            pl.BlockSpec((D, D), lambda i: (0, 0)),
            pl.BlockSpec((1, D), lambda i: (0, 0)),
            pl.BlockSpec((D, out_dim), lambda i: (0, 0)),
            pl.BlockSpec((1, out_dim), lambda i: (0, 0)),
        ],
        out_specs=pl.BlockSpec((tm, out_dim), lambda i: (i, 0)),
        compiler_params=_compiler_params(("parallel",)),
    )(x.astype(jnp.bfloat16),
      hp["w1"].astype(jnp.bfloat16), hp["b1"].reshape(1, D).astype(jnp.float32),
      hp["w2"].astype(jnp.bfloat16), hp["b2"].reshape(1, D).astype(jnp.float32),
      hp["w3"].astype(jnp.bfloat16), hp["b3"].reshape(1, out_dim).astype(jnp.float32))
    return out[:M] if m_pad != M else out


# ----------------------------------------------------------------------------
# Model pieces (plain-JAX glue around the kernels)
# ----------------------------------------------------------------------------
def bigru_pair(x1, x2, p1, p2):
    """Both tasks' bidirectional GRUs: one input-projection matmul (G=2, N=6H)
    and one recurrence kernel over 4 stacked sequences. x: (B, L, F)."""
    B, L, F = x1.shape
    H = p1["w_hh_f"].shape[0]
    assert x2.shape == (B, L, F) and p2["w_hh_f"].shape[0] == H
    M = B * L

    a = jnp.stack([x1.reshape(M, F), x2.reshape(M, F)], axis=0)

    def ih_w(p):
        return jnp.concatenate([p["w_ih_f"], p["w_ih_b"]], axis=1)   # (F, 6H)

    def ih_b(p):
        return jnp.concatenate([p["b_ih_f"], p["b_ih_b"]], axis=0)   # (6H,)

    proj = matmul_bias_act(a,
                           jnp.stack([ih_w(p1), ih_w(p2)], axis=0),
                           jnp.stack([ih_b(p1), ih_b(p2)], axis=0))   # (2, M, 6H)

    # gate-major inputs; backward direction is time-reversed before the scan
    xp = proj.reshape(2, B, L, 2, 3, H)          # task, B, L, dir, gate, H
    fwd = xp[:, :, :, 0]
    bwd = xp[:, :, ::-1, 1]
    groups = jnp.stack([fwd[0], bwd[0], fwd[1], bwd[1]], axis=0)      # (4,B,L,3,H)
    g = jnp.transpose(groups, (3, 2, 1, 0, 4)).reshape(3, L, B, 4 * H)
    xr, xz, xn = g[0], g[1], g[2]

    # block-diagonal recurrent weights, one (4H, 4H) matrix per gate
    order = [(p1, "f"), (p1, "b"), (p2, "f"), (p2, "b")]

    def build_gate(gidx):
        W = jnp.zeros((4 * H, 4 * H), jnp.float32)
        bs = []
        for i, (p, d) in enumerate(order):
            w = p["w_hh_" + d][:, gidx * H:(gidx + 1) * H]
            W = W.at[i * H:(i + 1) * H, i * H:(i + 1) * H].set(w)
            bs.append(p["b_hh_" + d][gidx * H:(gidx + 1) * H])
        return W, jnp.concatenate(bs).reshape(1, 4 * H)

    whr, bhr = build_gate(0)
    whz, bhz = build_gate(1)
    whn, bhn = build_gate(2)

    out = gru_run(xr, xz, xn, whr, whz, whn, bhr, bhz, bhn)   # (L, B, 4H)
    out = out.reshape(L, B, 4, H)
    o1 = jnp.concatenate([out[:, :, 0], out[::-1, :, 1]], axis=-1)
    o2 = jnp.concatenate([out[:, :, 2], out[::-1, :, 3]], axis=-1)
    return o1.transpose(1, 0, 2), o2.transpose(1, 0, 2)        # (B, L, 2H)


def tcn(x, blocks):
    """TemporalConvNet in (B, L, C): causal dilated residual blocks, dil=2^i."""
    for i, blk in enumerate(blocks):
        d = 2 ** i
        h = conv1d_blc(x, blk["w1"], blk["b1"], dilation=d, causal=True, act="relu")
        h = conv1d_blc(h, blk["w2"], blk["b2"], dilation=d, causal=True, act="relu")
        res = x if blk["down"] is None else conv1d_blc(x, blk["down"][0], blk["down"][1])
        x = jnp.maximum(h + res, 0.0)
    return x


def mmoe(y3, params):
    """Conv1d-expert MMoE: packed expert layer-1, grouped later layers, shared
    1x1 gate matmul for both tasks, single combine kernel for both tasks."""
    B, L, Cin = y3.shape
    experts = params["experts"]
    E = len(experts)
    C = experts[0][0][0].shape[0]

    w1 = jnp.concatenate([ex[0][0] for ex in experts], axis=0)    # (E*C, Cin, K)
    b1 = jnp.concatenate([ex[0][1] for ex in experts], axis=0)    # (E*C,)
    h = conv1d_blc(y3, w1, b1, act="leaky_relu")                  # (B, L, E*C)
    h = h.reshape(B, L, E, C).transpose(2, 0, 1, 3)               # (E, B, L, C)

    for layer in range(1, len(experts[0])):
        wl = jnp.stack([ex[layer][0] for ex in experts], axis=0)  # (E, C, Cl, K)
        bl = jnp.stack([ex[layer][1] for ex in experts], axis=0)  # (E, C)
        h = grouped_conv1d(h, wl, bl, act="leaky_relu")
    expert_stack = h.reshape(E, B * L, C)

    gw = jnp.concatenate([g[0][:, :, 0].T for g in params["gates"]], axis=1)
    gb = jnp.concatenate([g[1] for g in params["gates"]], axis=0)
    gates = matmul_bias_act(y3.reshape(1, B * L, Cin), gw[None],
                            gb.reshape(1, -1))[0]                  # (M, 2E)
    o1, o2 = moe_combine(expert_stack, gates[:, :E], gates[:, E:])
    return o1.reshape(B, L, C), o2.reshape(B, L, C)


def pssp_q8_forward(params, inputs_onehot, inputs_hybrid, inputs_esm2, test=True):
    del test  # Dropout / Dropout1d are identity in eval mode.
    # Single layout change at the boundary: (B, C, L) -> (B, L, C).
    x_onehot = inputs_onehot.transpose(0, 2, 1)
    x_hybrid = inputs_hybrid.transpose(0, 2, 1)
    x_esm2 = inputs_esm2.transpose(0, 2, 1)

    # ---- encoder (TODO(synk): external encoder_model approximated by a Conv1d) ----
    y_enc = conv1d_blc(x_onehot, params["enc_w"], params["enc_b"], act="leaky_relu")
    x_in = jnp.concatenate([x_hybrid, y_enc], axis=-1)

    # ---- CNN: two stacked Conv1d+LeakyReLU branches ----
    y1 = x_in
    for (w, b) in params["cnn1"]:
        y1 = conv1d_blc(y1, w, b, act="leaky_relu")
    y2 = x_esm2
    for (w, b) in params["cnn2"]:
        y2 = conv1d_blc(y2, w, b, act="leaky_relu")
    y3 = jnp.concatenate([y1, y2], axis=-1)

    # ---- MMoE ----
    out1, out2 = mmoe(y3, params)

    # ---- TCNs (already (B, L, C); reference .transpose(1, 2) folded into layout) ----
    out1 = tcn(out1, params["tcn1"])
    out2 = tcn(out2, params["tcn2"])

    # ---- BiGRUs (both tasks + both directions fused) ----
    g1, g2 = bigru_pair(out1, out2, params["gru1"], params["gru2"])

    # ---- fused FC heads; final LeakyReLU matches the reference ----
    B, L, _ = g1.shape
    o1 = fused_head(g1.reshape(B * L, -1), params["fc1"]).reshape(B, L, 8)
    o2 = fused_head(g2.reshape(B * L, -1), params["fc2"]).reshape(B, L, 2)
    return o1.transpose(0, 2, 1), o2.transpose(0, 2, 1)


# ----------------------------------------------------------------------------
# Deterministic parameter init (PyTorch Conv1d weight layout: (Cout, Cin, K))
# ----------------------------------------------------------------------------
def init_params(key):
    keys = iter(jax.random.split(key, 128))

    def nrm(shape):
        return 0.1 * jax.random.normal(next(keys), shape, jnp.float32)

    C_onehot, C_hybrid, C_esm2, C_enc = 8, 6, 16, 10
    CNN_channel, num_layers, K = 16, 2, 3
    E, mmoe_channel, mmoe_layers, mmoe_K = 3, 16, 2, 3
    mmoe_in = 2 * CNN_channel
    H = 16
    fc1_dim, fc2_dim = 16, 16

    p = {}
    p["enc_w"] = nrm((C_enc, C_onehot, K))
    p["enc_b"] = nrm((C_enc,))

    input_c = C_hybrid + C_enc
    cnn1, cin = [], input_c
    for _ in range(num_layers):
        cnn1.append((nrm((CNN_channel, cin, K)), nrm((CNN_channel,))))
        cin = CNN_channel
    p["cnn1"] = cnn1
    cnn2, cin = [], C_esm2
    for _ in range(num_layers):
        cnn2.append((nrm((CNN_channel, cin, K)), nrm((CNN_channel,))))
        cin = CNN_channel
    p["cnn2"] = cnn2

    experts = []
    for _ in range(E):
        layers, cin = [], mmoe_in
        for _ in range(mmoe_layers):
            layers.append((nrm((mmoe_channel, cin, mmoe_K)), nrm((mmoe_channel,))))
            cin = mmoe_channel
        experts.append(layers)
    p["experts"] = experts
    p["gates"] = [(nrm((E, mmoe_in, 1)), nrm((E,))) for _ in range(2)]

    def tcn_blocks(cin, channels, k):
        blocks = []
        for cout in channels:
            blk = {
                "w1": nrm((cout, cin, k)), "b1": nrm((cout,)),
                "w2": nrm((cout, cout, k)), "b2": nrm((cout,)),
                "down": None if cin == cout else (nrm((cout, cin, 1)), nrm((cout,))),
            }
            blocks.append(blk)
            cin = cout
        return blocks

    p["tcn1"] = tcn_blocks(mmoe_channel, [16, 16], 3)
    p["tcn2"] = tcn_blocks(mmoe_channel, [16, 16], 3)

    def gru_params(F, H):
        return {
            "w_ih_f": nrm((F, 3 * H)), "b_ih_f": nrm((3 * H,)),
            "w_hh_f": nrm((H, 3 * H)), "b_hh_f": nrm((3 * H,)),
            "w_ih_b": nrm((F, 3 * H)), "b_ih_b": nrm((3 * H,)),
            "w_hh_b": nrm((H, 3 * H)), "b_hh_b": nrm((3 * H,)),
        }

    p["gru1"] = gru_params(16, H)
    p["gru2"] = gru_params(16, H)

    p["fc1"] = {"w1": nrm((2 * H, fc1_dim)), "b1": nrm((fc1_dim,)),
                "w2": nrm((fc1_dim, fc1_dim)), "b2": nrm((fc1_dim,)),
                "w3": nrm((fc1_dim, 8)), "b3": nrm((8,))}
    p["fc2"] = {"w1": nrm((2 * H, fc2_dim)), "b1": nrm((fc2_dim,)),
                "w2": nrm((fc2_dim, fc2_dim)), "b2": nrm((fc2_dim,)),
                "w3": nrm((fc2_dim, 2)), "b3": nrm((2,))}
    return p


if __name__ == "__main__":
    B, L = 2, 16
    params = init_params(jax.random.PRNGKey(0))
    k1, k2, k3 = jax.random.split(jax.random.PRNGKey(0), 3)
    inputs_onehot = jax.random.normal(k1, (B, 8, L), jnp.float32)
    inputs_hybrid = jax.random.normal(k2, (B, 6, L), jnp.float32)
    inputs_esm2 = jax.random.normal(k3, (B, 16, L), jnp.float32)

    fwd = jax.jit(lambda a, b, c: pssp_q8_forward(params, a, b, c, test=True))
    out1, out2 = fwd(inputs_onehot, inputs_hybrid, inputs_esm2)
    jax.block_until_ready((out1, out2))
    assert out1.shape == (B, 8, L), out1.shape
    assert out2.shape == (B, 2, L), out2.shape
    print("KERNEL_OK")
</pallas_src>

<mosaic_0001>
module attributes {stable_mosaic.version = 11 : i64} {
  func.func @_conv1d_kernel(%arg0: i32, %arg1: i32, %arg2: memref<1x1x18x8xf32, #tpu.memory_space<vmem>>, %arg3: memref<1x3x8x10xbf16, #tpu.memory_space<vmem>>, %arg4: memref<1x1x10xf32, #tpu.memory_space<vmem>>, %arg5: memref<1x1x16x10xf32, #tpu.memory_space<vmem>>) attributes {dimension_semantics = [#tpu.dimension_semantics<parallel>, #tpu.dimension_semantics<parallel>], iteration_bounds = array<i64: 1, 2>, scalar_prefetch = 0 : i64, scratch_operands = 0 : i64, tpu.core_type = #tpu.core_type<tc>, window_params = [{transform_indices = @transform_0, window_bounds = array<i64: 1, 1, 18, 8>}, {transform_indices = @transform_1, window_bounds = array<i64: 1, 3, 8, 10>}, {transform_indices = @transform_2, window_bounds = array<i64: 1, 1, 10>}, {transform_indices = @transform_3, window_bounds = array<i64: 1, 1, 16, 10>}]} {
    %cst = arith.constant 0.000000e+00 : f32
    %0 = vector.broadcast %cst : f32 to vector<16x10xf32>
    %c0 = arith.constant 0 : index
    %c0_0 = arith.constant 0 : index
    %c0_1 = arith.constant 0 : index
    %c0_2 = arith.constant 0 : index
    %1 = vector.load %arg2[%c0, %c0_0, %c0_1, %c0_2] : memref<1x1x18x8xf32, #tpu.memory_space<vmem>>, vector<1x1x16x8xf32>
    %2 = vector.shape_cast %1 : vector<1x1x16x8xf32> to vector<16x8xf32>
    %3 = arith.truncf %2 : vector<16x8xf32> to vector<16x8xbf16>
    %c0_3 = arith.constant 0 : index
    %c0_4 = arith.constant 0 : index
    %c0_5 = arith.constant 0 : index
    %c0_6 = arith.constant 0 : index
    %4 = vector.load %arg3[%c0_3, %c0_4, %c0_5, %c0_6] : memref<1x3x8x10xbf16, #tpu.memory_space<vmem>>, vector<1x1x8x10xbf16>
    %5 = vector.shape_cast %4 : vector<1x1x8x10xbf16> to vector<8x10xbf16>
    %cst_7 = arith.constant dense<0.000000e+00> : vector<16x10xf32>
    %6 = tpu.matmul %3, %5, %cst_7 {dimension_numbers = #tpu.dot_dimension_numbers<[1], [0], [0], [1], [0, 0, 1, 1], [], []>} : vector<16x8xbf16>, vector<8x10xbf16>, vector<16x10xf32> -> vector<16x10xf32>
    %7 = arith.addf %0, %6 : vector<16x10xf32>
    %c0_8 = arith.constant 0 : index
    %c0_9 = arith.constant 0 : index
    %c1 = arith.constant 1 : index
    %c0_10 = arith.constant 0 : index
    %8 = vector.load %arg2[%c0_8, %c0_9, %c1, %c0_10] : memref<1x1x18x8xf32, #tpu.memory_space<vmem>>, vector<1x1x16x8xf32>
    %9 = vector.shape_cast %8 : vector<1x1x16x8xf32> to vector<16x8xf32>
    %10 = arith.truncf %9 : vector<16x8xf32> to vector<16x8xbf16>
    %c0_11 = arith.constant 0 : index
    %c1_12 = arith.constant 1 : index
    %c0_13 = arith.constant 0 : index
    %c0_14 = arith.constant 0 : index
    %11 = vector.load %arg3[%c0_11, %c1_12, %c0_13, %c0_14] : memref<1x3x8x10xbf16, #tpu.memory_space<vmem>>, vector<1x1x8x10xbf16>
    %12 = vector.shape_cast %11 : vector<1x1x8x10xbf16> to vector<8x10xbf16>
    %cst_15 = arith.constant dense<0.000000e+00> : vector<16x10xf32>
    %13 = tpu.matmul %10, %12, %cst_15 {dimension_numbers = #tpu.dot_dimension_numbers<[1], [0], [0], [1], [0, 0, 1, 1], [], []>} : vector<16x8xbf16>, vector<8x10xbf16>, vector<16x10xf32> -> vector<16x10xf32>
    %14 = arith.addf %7, %13 : vector<16x10xf32>
    %c0_16 = arith.constant 0 : index
    %c0_17 = arith.constant 0 : index
    %c2 = arith.constant 2 : index
    %c0_18 = arith.constant 0 : index
    %15 = vector.load %arg2[%c0_16, %c0_17, %c2, %c0_18] : memref<1x1x18x8xf32, #tpu.memory_space<vmem>>, vector<1x1x16x8xf32>
    %16 = vector.shape_cast %15 : vector<1x1x16x8xf32> to vector<16x8xf32>
    %17 = arith.truncf %16 : vector<16x8xf32> to vector<16x8xbf16>
    %c0_19 = arith.constant 0 : index
    %c2_20 = arith.constant 2 : index
    %c0_21 = arith.constant 0 : index
    %c0_22 = arith.constant 0 : index
    %18 = vector.load %arg3[%c0_19, %c2_20, %c0_21, %c0_22] : memref<1x3x8x10xbf16, #tpu.memory_space<vmem>>, vector<1x1x8x10xbf16>
    %19 = vector.shape_cast %18 : vector<1x1x8x10xbf16> to vector<8x10xbf16>
    %cst_23 = arith.constant dense<0.000000e+00> : vector<16x10xf32>
    %20 = tpu.matmul %17, %19, %cst_23 {dimension_numbers = #tpu.dot_dimension_numbers<[1], [0], [0], [1], [0, 0, 1, 1], [], []>} : vector<16x8xbf16>, vector<8x10xbf16>, vector<16x10xf32> -> vector<16x10xf32>
    %21 = arith.addf %14, %20 : vector<16x10xf32>
    %c0_24 = arith.constant 0 : index
    %c0_25 = arith.constant 0 : index
    %c0_26 = arith.constant 0 : index
    %22 = vector.load %arg4[%c0_24, %c0_25, %c0_26] : memref<1x1x10xf32, #tpu.memory_space<vmem>>, vector<1x1x10xf32>
    %23 = vector.shape_cast %22 : vector<1x1x10xf32> to vector<1x10xf32>
    %24 = vector.broadcast %23 : vector<1x10xf32> to vector<16x10xf32>
    %25 = arith.addf %21, %24 : vector<16x10xf32>
    %cst_27 = arith.constant 0.000000e+00 : f32
    %26 = vector.broadcast %cst_27 : f32 to vector<16x10xf32>
    %27 = arith.cmpf oge, %25, %26 : vector<16x10xf32>
    %cst_28 = arith.constant 0.00999999977 : f32
    %28 = vector.broadcast %cst_28 : f32 to vector<16x10xf32>
    %29 = arith.mulf %28, %25 : vector<16x10xf32>
    %30 = arith.select %27, %25, %29 : vector<16x10xi1>, vector<16x10xf32>
    %c0_29 = arith.constant 0 : index
    %c0_30 = arith.constant 0 : index
    %c0_31 = arith.constant 0 : index
    %c0_32 = arith.constant 0 : index
    %31 = vector.load %arg5[%c0_29, %c0_30, %c0_31, %c0_32] : memref<1x1x16x10xf32, #tpu.memory_space<vmem>>, vector<1x1x16x10xf32>
    %32 = vector.shape_cast %31 : vector<1x1x16x10xf32> to vector<16x10xf32>
    %33 = vector.shape_cast %30 : vector<16x10xf32> to vector<1x1x16x10xf32>
    tpu.vector_store %arg5[%c0_29, %c0_30, %c0_31, %c0_32], %33 {strides = array<i32>} : memref<1x1x16x10xf32, #tpu.memory_space<vmem>>, vector<1x1x16x10xf32>,
    return
  }
  func.func @transform_0(%arg0: i32, %arg1: i32) -> (i32, i32, i32, i32) {
    %c0_i32 = arith.constant 0 : i32
    %c0_i32_0 = arith.constant 0 : i32
    %c0_i32_1 = arith.constant 0 : i32
    return %arg0, %arg1, %c0_i32, %c0_i32_0 : i32, i32, i32, i32
  }
  func.func @transform_1(%arg0: i32, %arg1: i32) -> (i32, i32, i32, i32) {
    %c0_i32 = arith.constant 0 : i32
    %c0_i32_0 = arith.constant 0 : i32
    %c0_i32_1 = arith.constant 0 : i32
    %c0_i32_2 = arith.constant 0 : i32
    return %arg0, %c0_i32, %c0_i32_0, %c0_i32_1 : i32, i32, i32, i32
  }
  func.func @transform_2(%arg0: i32, %arg1: i32) -> (i32, i32, i32) {
    %c0_i32 = arith.constant 0 : i32
    %c0_i32_0 = arith.constant 0 : i32
    %c0_i32_1 = arith.constant 0 : i32
    return %arg0, %c0_i32, %c0_i32_0 : i32, i32, i32
  }
  func.func @transform_3(%arg0: i32, %arg1: i32) -> (i32, i32, i32, i32) {
    %c0_i32 = arith.constant 0 : i32
    %c0_i32_0 = arith.constant 0 : i32
    %c0_i32_1 = arith.constant 0 : i32
    return %arg0, %arg1, %c0_i32, %c0_i32_0 : i32, i32, i32, i32
  }
}

module attributes {stable_mosaic.version = 11 : i64} {
  func.func @_conv1d_kernel(%arg0: i32, %arg1: i32, %arg2: memref<1x1x18x16xf32, #tpu.memory_space<vmem>>, %arg3: memref<1x3x16x16xbf16, #tpu.memory_space<vmem>>, %arg4: memref<1x1x16xf32, #tpu.memory_space<vmem>>, %arg5: memref<1x1x16x16xf32, #tpu.memory_space<vmem>>) attributes {dimension_semantics = [#tpu.dimension_semantics<parallel>, #tpu.dimension_semantics<parallel>], iteration_bounds = array<i64: 1, 2>, scalar_prefetch = 0 : i64, scratch_operands = 0 : i64, tpu.core_type = #tpu.core_type<tc>, window_params = [{transform_indices = @transform_0, window_bounds = array<i64: 1, 1, 18, 16>}, {transform_indices = @transform_1, window_bounds = array<i64: 1, 3, 16, 16>}, {transform_indices = @transform_2, window_bounds = array<i64: 1, 1, 16>}, {transform_indices = @transform_3, window_bounds = array<i64: 1, 1, 16, 16>}]} {
    %cst = arith.constant 0.000000e+00 : f32
    %0 = vector.broadcast %cst : f32 to vector<16x16xf32>
    %c0 = arith.constant 0 : index
    %c0_0 = arith.constant 0 : index
    %c0_1 = arith.constant 0 : index
    %c0_2 = arith.constant 0 : index
    %1 = vector.load %arg2[%c0, %c0_0, %c0_1, %c0_2] : memref<1x1x18x16xf32, #tpu.memory_space<vmem>>, vector<1x1x16x16xf32>
    %2 = vector.shape_cast %1 : vector<1x1x16x16xf32> to vector<16x16xf32>
    %3 = arith.truncf %2 : vector<16x16xf32> to vector<16x16xbf16>
    %c0_3 = arith.constant 0 : index
    %c0_4 = arith.constant 0 : index
    %c0_5 = arith.constant 0 : index
    %c0_6 = arith.constant 0 : index
    %4 = vector.load %arg3[%c0_3, %c0_4, %c0_5, %c0_6] : memref<1x3x16x16xbf16, #tpu.memory_space<vmem>>, vector<1x1x16x16xbf16>
    %5 = vector.shape_cast %4 : vector<1x1x16x16xbf16> to vector<16x16xbf16>
    %cst_7 = arith.constant dense<0.000000e+00> : vector<16x16xf32>
    %6 = tpu.matmul %3, %5, %cst_7 {dimension_numbers = #tpu.dot_dimension_numbers<[1], [0], [0], [1], [0, 0, 1, 1], [], []>} : vector<16x16xbf16>, vector<16x16xbf16>, vector<16x16xf32> -> vector<16x16xf32>
    %7 = arith.addf %0, %6 : vector<16x16xf32>
    %c0_8 = arith.constant 0 : index
    %c0_9 = arith.constant 0 : index
    %c1 = arith.constant 1 : index
    %c0_10 = arith.constant 0 : index
    %8 = vector.load %arg2[%c0_8, %c0_9, %c1, %c0_10] : memref<1x1x18x16xf32, #tpu.memory_space<vmem>>, vector<1x1x16x16xf32>
    %9 = vector.shape_cast %8 : vector<1x1x16x16xf32> to vector<16x16xf32>
    %10 = arith.truncf %9 : vector<16x16xf32> to vector<16x16xbf16>
    %c0_11 = arith.constant 0 : index
    %c1_12 = arith.constant 1 : index
    %c0_13 = arith.constant 0 : index
    %c0_14 = arith.constant 0 : index
    %11 = vector.load %arg3[%c0_11, %c1_12, %c0_13, %c0_14] : memref<1x3x16x16xbf16, #tpu.memory_space<vmem>>, vector<1x1x16x16xbf16>
    %12 = vector.shape_cast %11 : vector<1x1x16x16xbf16> to vector<16x16xbf16>
    %cst_15 = arith.constant dense<0.000000e+00> : vector<16x16xf32>
    %13 = tpu.matmul %10, %12, %cst_15 {dimension_numbers = #tpu.dot_dimension_numbers<[1], [0], [0], [1], [0, 0, 1, 1], [], []>} : vector<16x16xbf16>, vector<16x16xbf16>, vector<16x16xf32> -> vector<16x16xf32>
    %14 = arith.addf %7, %13 : vector<16x16xf32>
    %c0_16 = arith.constant 0 : index
    %c0_17 = arith.constant 0 : index
    %c2 = arith.constant 2 : index
    %c0_18 = arith.constant 0 : index
    %15 = vector.load %arg2[%c0_16, %c0_17, %c2, %c0_18] : memref<1x1x18x16xf32, #tpu.memory_space<vmem>>, vector<1x1x16x16xf32>
    %16 = vector.shape_cast %15 : vector<1x1x16x16xf32> to vector<16x16xf32>
    %17 = arith.truncf %16 : vector<16x16xf32> to vector<16x16xbf16>
    %c0_19 = arith.constant 0 : index
    %c2_20 = arith.constant 2 : index
    %c0_21 = arith.constant 0 : index
    %c0_22 = arith.constant 0 : index
    %18 = vector.load %arg3[%c0_19, %c2_20, %c0_21, %c0_22] : memref<1x3x16x16xbf16, #tpu.memory_space<vmem>>, vector<1x1x16x16xbf16>
    %19 = vector.shape_cast %18 : vector<1x1x16x16xbf16> to vector<16x16xbf16>
    %cst_23 = arith.constant dense<0.000000e+00> : vector<16x16xf32>
    %20 = tpu.matmul %17, %19, %cst_23 {dimension_numbers = #tpu.dot_dimension_numbers<[1], [0], [0], [1], [0, 0, 1, 1], [], []>} : vector<16x16xbf16>, vector<16x16xbf16>, vector<16x16xf32> -> vector<16x16xf32>
    %21 = arith.addf %14, %20 : vector<16x16xf32>
    %c0_24 = arith.constant 0 : index
    %c0_25 = arith.constant 0 : index
    %c0_26 = arith.constant 0 : index
    %22 = vector.load %arg4[%c0_24, %c0_25, %c0_26] : memref<1x1x16xf32, #tpu.memory_space<vmem>>, vector<1x1x16xf32>
    %23 = vector.shape_cast %22 : vector<1x1x16xf32> to vector<1x16xf32>
    %24 = vector.broadcast %23 : vector<1x16xf32> to vector<16x16xf32>
    %25 = arith.addf %21, %24 : vector<16x16xf32>
    %cst_27 = arith.constant 0.000000e+00 : f32
    %26 = vector.broadcast %cst_27 : f32 to vector<16x16xf32>
    %27 = arith.cmpf oge, %25, %26 : vector<16x16xf32>
    %cst_28 = arith.constant 0.00999999977 : f32
    %28 = vector.broadcast %cst_28 : f32 to vector<16x16xf32>
    %29 = arith.mulf %28, %25 : vector<16x16xf32>
    %30 = arith.select %27, %25, %29 : vector<16x16xi1>, vector<16x16xf32>
    %c0_29 = arith.constant 0 : index
    %c0_30 = arith.constant 0 : index
    %c0_31 = arith.constant 0 : index
    %c0_32 = arith.constant 0 : index
    %31 = vector.load %arg5[%c0_29, %c0_30, %c0_31, %c0_32] : memref<1x1x16x16xf32, #tpu.memory_space<vmem>>, vector<1x1x16x16xf32>
    %32 = vector.shape_cast %31 : vector<1x1x16x16xf32> to vector<16x16xf32>
    %33 = vector.shape_cast %30 : vector<16x16xf32> to vector<1x1x16x16xf32>
    tpu.vector_store %arg5[%c0_29, %c0_30, %c0_31, %c0_32], %33 {strides = array<i32>} : memref<1x1x16x16xf32, #tpu.memory_space<vmem>>, vector<1x1x16x16xf32>,
    return
  }
  func.func @transform_0(%arg0: i32, %arg1: i32) -> (i32, i32, i32, i32) {
    %c0_i32 = arith.constant 0 : i32
    %c0_i32_0 = arith.constant 0 : i32
    %c0_i32_1 = arith.constant 0 : i32
    return %arg0, %arg1, %c0_i32, %c0_i32_0 : i32, i32, i32, i32
  }
  func.func @transform_1(%arg0: i32, %arg1: i32) -> (i32, i32, i32, i32) {
    %c0_i32 = arith.constant 0 : i32
    %c0_i32_0 = arith.constant 0 : i32
    %c0_i32_1 = arith.constant 0 : i32
    %c0_i32_2 = arith.constant 0 : i32
    return %arg0, %c0_i32, %c0_i32_0, %c0_i32_1 : i32, i32, i32, i32
  }
  func.func @transform_2(%arg0: i32, %arg1: i32) -> (i32, i32, i32) {
    %c0_i32 = arith.constant 0 : i32
    %c0_i32_0 = arith.constant 0 : i32
    %c0_i32_1 = arith.constant 0 : i32
    return %arg0, %c0_i32, %c0_i32_0 : i32, i32, i32
  }
  func.func @transform_3(%arg0: i32, %arg1: i32) -> (i32, i32, i32, i32) {
    %c0_i32 = arith.constant 0 : i32
    %c0_i32_0 = arith.constant 0 : i32
    %c0_i32_1 = arith.constant 0 : i32
    return %arg0, %arg1, %c0_i32, %c0_i32_0 : i32, i32, i32, i32
  }
}

module attributes {stable_mosaic.version = 11 : i64} {
  func.func @_conv1d_kernel(%arg0: i32, %arg1: i32, %arg2: memref<1x1x18x32xf32, #tpu.memory_space<vmem>>, %arg3: memref<1x3x32x48xbf16, #tpu.memory_space<vmem>>, %arg4: memref<1x1x48xf32, #tpu.memory_space<vmem>>, %arg5: memref<1x1x16x48xf32, #tpu.memory_space<vmem>>) attributes {dimension_semantics = [#tpu.dimension_semantics<parallel>, #tpu.dimension_semantics<parallel>], iteration_bounds = array<i64: 1, 2>, scalar_prefetch = 0 : i64, scratch_operands = 0 : i64, tpu.core_type = #tpu.core_type<tc>, window_params = [{transform_indices = @transform_0, window_bounds = array<i64: 1, 1, 18, 32>}, {transform_indices = @transform_1, window_bounds = array<i64: 1, 3, 32, 48>}, {transform_indices = @transform_2, window_bounds = array<i64: 1, 1, 48>}, {transform_indices = @transform_3, window_bounds = array<i64: 1, 1, 16, 48>}]} {
    %cst = arith.constant 0.000000e+00 : f32
    %0 = vector.broadcast %cst : f32 to vector<16x48xf32>
    %c0 = arith.constant 0 : index
    %c0_0 = arith.constant 0 : index
    %c0_1 = arith.constant 0 : index
    %c0_2 = arith.constant 0 : index
    %1 = vector.load %arg2[%c0, %c0_0, %c0_1, %c0_2] : memref<1x1x18x32xf32, #tpu.memory_space<vmem>>, vector<1x1x16x32xf32>
    %2 = vector.shape_cast %1 : vector<1x1x16x32xf32> to vector<16x32xf32>
    %3 = arith.truncf %2 : vector<16x32xf32> to vector<16x32xbf16>
    %c0_3 = arith.constant 0 : index
    %c0_4 = arith.constant 0 : index
    %c0_5 = arith.constant 0 : index
    %c0_6 = arith.constant 0 : index
    %4 = vector.load %arg3[%c0_3, %c0_4, %c0_5, %c0_6] : memref<1x3x32x48xbf16, #tpu.memory_space<vmem>>, vector<1x1x32x48xbf16>
    %5 = vector.shape_cast %4 : vector<1x1x32x48xbf16> to vector<32x48xbf16>
    %cst_7 = arith.constant dense<0.000000e+00> : vector<16x48xf32>
    %6 = tpu.matmul %3, %5, %cst_7 {dimension_numbers = #tpu.dot_dimension_numbers<[1], [0], [0], [1], [0, 0, 1, 1], [], []>} : vector<16x32xbf16>, vector<32x48xbf16>, vector<16x48xf32> -> vector<16x48xf32>
    %7 = arith.addf %0, %6 : vector<16x48xf32>
    %c0_8 = arith.constant 0 : index
    %c0_9 = arith.constant 0 : index
    %c1 = arith.constant 1 : index
    %c0_10 = arith.constant 0 : index
    %8 = vector.load %arg2[%c0_8, %c0_9, %c1, %c0_10] : memref<1x1x18x32xf32, #tpu.memory_space<vmem>>, vector<1x1x16x32xf32>
    %9 = vector.shape_cast %8 : vector<1x1x16x32xf32> to vector<16x32xf32>
    %10 = arith.truncf %9 : vector<16x32xf32> to vector<16x32xbf16>
    %c0_11 = arith.constant 0 : index
    %c1_12 = arith.constant 1 : index
    %c0_13 = arith.constant 0 : index
    %c0_14 = arith.constant 0 : index
    %11 = vector.load %arg3[%c0_11, %c1_12, %c0_13, %c0_14] : memref<1x3x32x48xbf16, #tpu.memory_space<vmem>>, vector<1x1x32x48xbf16>
    %12 = vector.shape_cast %11 : vector<1x1x32x48xbf16> to vector<32x48xbf16>
    %cst_15 = arith.constant dense<0.000000e+00> : vector<16x48xf32>
    %13 = tpu.matmul %10, %12, %cst_15 {dimension_numbers = #tpu.dot_dimension_numbers<[1], [0], [0], [1], [0, 0, 1, 1], [], []>} : vector<16x32xbf16>, vector<32x48xbf16>, vector<16x48xf32> -> vector<16x48xf32>
    %14 = arith.addf %7, %13 : vector<16x48xf32>
    %c0_16 = arith.constant 0 : index
    %c0_17 = arith.constant 0 : index
    %c2 = arith.constant 2 : index
    %c0_18 = arith.constant 0 : index
    %15 = vector.load %arg2[%c0_16, %c0_17, %c2, %c0_18] : memref<1x1x18x32xf32, #tpu.memory_space<vmem>>, vector<1x1x16x32xf32>
    %16 = vector.shape_cast %15 : vector<1x1x16x32xf32> to vector<16x32xf32>
    %17 = arith.truncf %16 : vector<16x32xf32> to vector<16x32xbf16>
    %c0_19 = arith.constant 0 : index
    %c2_20 = arith.constant 2 : index
    %c0_21 = arith.constant 0 : index
    %c0_22 = arith.constant 0 : index
    %18 = vector.load %arg3[%c0_19, %c2_20, %c0_21, %c0_22] : memref<1x3x32x48xbf16, #tpu.memory_space<vmem>>, vector<1x1x32x48xbf16>
    %19 = vector.shape_cast %18 : vector<1x1x32x48xbf16> to vector<32x48xbf16>
    %cst_23 = arith.constant dense<0.000000e+00> : vector<16x48xf32>
    %20 = tpu.matmul %17, %19, %cst_23 {dimension_numbers = #tpu.dot_dimension_numbers<[1], [0], [0], [1], [0, 0, 1, 1], [], []>} : vector<16x32xbf16>, vector<32x48xbf16>, vector<16x48xf32> -> vector<16x48xf32>
    %21 = arith.addf %14, %20 : vector<16x48xf32>
    %c0_24 = arith.constant 0 : index
    %c0_25 = arith.constant 0 : index
    %c0_26 = arith.constant 0 : index
    %22 = vector.load %arg4[%c0_24, %c0_25, %c0_26] : memref<1x1x48xf32, #tpu.memory_space<vmem>>, vector<1x1x48xf32>
    %23 = vector.shape_cast %22 : vector<1x1x48xf32> to vector<1x48xf32>
    %24 = vector.broadcast %23 : vector<1x48xf32> to vector<16x48xf32>
    %25 = arith.addf %21, %24 : vector<16x48xf32>
    %cst_27 = arith.constant 0.000000e+00 : f32
    %26 = vector.broadcast %cst_27 : f32 to vector<16x48xf32>
    %27 = arith.cmpf oge, %25, %26 : vector<16x48xf32>
    %cst_28 = arith.constant 0.00999999977 : f32
    %28 = vector.broadcast %cst_28 : f32 to vector<16x48xf32>
    %29 = arith.mulf %28, %25 : vector<16x48xf32>
    %30 = arith.select %27, %25, %29 : vector<16x48xi1>, vector<16x48xf32>
    %c0_29 = arith.constant 0 : index
    %c0_30 = arith.constant 0 : index
    %c0_31 = arith.constant 0 : index
    %c0_32 = arith.constant 0 : index
    %31 = vector.load %arg5[%c0_29, %c0_30, %c0_31, %c0_32] : memref<1x1x16x48xf32, #tpu.memory_space<vmem>>, vector<1x1x16x48xf32>
    %32 = vector.shape_cast %31 : vector<1x1x16x48xf32> to vector<16x48xf32>
    %33 = vector.shape_cast %30 : vector<16x48xf32> to vector<1x1x16x48xf32>
    tpu.vector_store %arg5[%c0_29, %c0_30, %c0_31, %c0_32], %33 {strides = array<i32>} : memref<1x1x16x48xf32, #tpu.memory_space<vmem>>, vector<1x1x16x48xf32>,
    return
  }
  func.func @transform_0(%arg0: i32, %arg1: i32) -> (i32, i32, i32, i32) {
    %c0_i32 = arith.constant 0 : i32
    %c0_i32_0 = arith.constant 0 : i32
    %c0_i32_1 = arith.constant 0 : i32
    return %arg0, %arg1, %c0_i32, %c0_i32_0 : i32, i32, i32, i32
  }
  func.func @transform_1(%arg0: i32, %arg1: i32) -> (i32, i32, i32, i32) {
    %c0_i32 = arith.constant 0 : i32
    %c0_i32_0 = arith.constant 0 : i32
    %c0_i32_1 = arith.constant 0 : i32
    %c0_i32_2 = arith.constant 0 : i32
    return %arg0, %c0_i32, %c0_i32_0, %c0_i32_1 : i32, i32, i32, i32
  }
  func.func @transform_2(%arg0: i32, %arg1: i32) -> (i32, i32, i32) {
    %c0_i32 = arith.constant 0 : i32
    %c0_i32_0 = arith.constant 0 : i32
    %c0_i32_1 = arith.constant 0 : i32
    return %arg0, %c0_i32, %c0_i32_0 : i32, i32, i32
  }
  func.func @transform_3(%arg0: i32, %arg1: i32) -> (i32, i32, i32, i32) {
    %c0_i32 = arith.constant 0 : i32
    %c0_i32_0 = arith.constant 0 : i32
    %c0_i32_1 = arith.constant 0 : i32
    return %arg0, %arg1, %c0_i32, %c0_i32_0 : i32, i32, i32, i32
  }
}

module attributes {stable_mosaic.version = 11 : i64} {
  func.func @_matmul_kernel(%arg0: i32, %arg1: i32, %arg2: memref<1x32x32xbf16, #tpu.memory_space<vmem>>, %arg3: memref<1x32x6xbf16, #tpu.memory_space<vmem>>, %arg4: memref<1x1x6xf32, #tpu.memory_space<vmem>>, %arg5: memref<1x32x6xf32, #tpu.memory_space<vmem>>) attributes {dimension_semantics = [#tpu.dimension_semantics<parallel>, #tpu.dimension_semantics<parallel>], iteration_bounds = array<i64: 1, 1>, scalar_prefetch = 0 : i64, scratch_operands = 0 : i64, tpu.core_type = #tpu.core_type<tc>, window_params = [{transform_indices = @transform_0, window_bounds = array<i64: 1, 32, 32>}, {transform_indices = @transform_1, window_bounds = array<i64: 1, 32, 6>}, {transform_indices = @transform_2, window_bounds = array<i64: 1, 1, 6>}, {transform_indices = @transform_3, window_bounds = array<i64: 1, 32, 6>}]} {
    %c0 = arith.constant 0 : index
    %c0_0 = arith.constant 0 : index
    %c0_1 = arith.constant 0 : index
    %0 = vector.load %arg2[%c0, %c0_0, %c0_1] : memref<1x32x32xbf16, #tpu.memory_space<vmem>>, vector<1x32x32xbf16>
    %1 = vector.shape_cast %0 : vector<1x32x32xbf16> to vector<32x32xbf16>
    %c0_2 = arith.constant 0 : index
    %c0_3 = arith.constant 0 : index
    %c0_4 = arith.constant 0 : index
    %2 = vector.load %arg3[%c0_2, %c0_3, %c0_4] : memref<1x32x6xbf16, #tpu.memory_space<vmem>>, vector<1x32x6xbf16>
    %3 = vector.shape_cast %2 : vector<1x32x6xbf16> to vector<32x6xbf16>
    %cst = arith.constant dense<0.000000e+00> : vector<32x6xf32>
    %4 = tpu.matmul %1, %3, %cst {dimension_numbers = #tpu.dot_dimension_numbers<[1], [0], [0], [1], [0, 0, 1, 1], [], []>} : vector<32x32xbf16>, vector<32x6xbf16>, vector<32x6xf32> -> vector<32x6xf32>
    %c0_5 = arith.constant 0 : index
    %c0_6 = arith.constant 0 : index
    %c0_7 = arith.constant 0 : index
    %5 = vector.load %arg4[%c0_5, %c0_6, %c0_7] : memref<1x1x6xf32, #tpu.memory_space<vmem>>, vector<1x1x6xf32>
    %6 = vector.shape_cast %5 : vector<1x1x6xf32> to vector<1x6xf32>
    %7 = vector.broadcast %6 : vector<1x6xf32> to vector<32x6xf32>
    %8 = arith.addf %4, %7 : vector<32x6xf32>
    %c0_8 = arith.constant 0 : index
    %c0_9 = arith.constant 0 : index
    %c0_10 = arith.constant 0 : index
    %9 = vector.load %arg5[%c0_8, %c0_9, %c0_10] : memref<1x32x6xf32, #tpu.memory_space<vmem>>, vector<1x32x6xf32>
    %10 = vector.shape_cast %9 : vector<1x32x6xf32> to vector<32x6xf32>
    %11 = vector.shape_cast %8 : vector<32x6xf32> to vector<1x32x6xf32>
    tpu.vector_store %arg5[%c0_8, %c0_9, %c0_10], %11 {strides = array<i32>} : memref<1x32x6xf32, #tpu.memory_space<vmem>>, vector<1x32x6xf32>,
    return
  }
  func.func @transform_0(%arg0: i32, %arg1: i32) -> (i32, i32, i32) {
    %c0_i32 = arith.constant 0 : i32
    %c0_i32_0 = arith.constant 0 : i32
    return %arg0, %arg1, %c0_i32 : i32, i32, i32
  }
  func.func @transform_1(%arg0: i32, %arg1: i32) -> (i32, i32, i32) {
    %c0_i32 = arith.constant 0 : i32
    %c0_i32_0 = arith.constant 0 : i32
    %c0_i32_1 = arith.constant 0 : i32
    return %arg0, %c0_i32, %c0_i32_0 : i32, i32, i32
  }
  func.func @transform_2(%arg0: i32, %arg1: i32) -> (i32, i32, i32) {
    %c0_i32 = arith.constant 0 : i32
    %c0_i32_0 = arith.constant 0 : i32
    %c0_i32_1 = arith.constant 0 : i32
    return %arg0, %c0_i32, %c0_i32_0 : i32, i32, i32
  }
  func.func @transform_3(%arg0: i32, %arg1: i32) -> (i32, i32, i32) {
    %c0_i32 = arith.constant 0 : i32
    %c0_i32_0 = arith.constant 0 : i32
    return %arg0, %arg1, %c0_i32 : i32, i32, i32
  }
}

module attributes {stable_mosaic.version = 11 : i64} {
  func.func @_moe_combine_kernel(%arg0: i32, %arg1: memref<3x32x16xf32, #tpu.memory_space<vmem>>, %arg2: memref<32x3xf32, #tpu.memory_space<vmem>>, %arg3: memref<32x3xf32, #tpu.memory_space<vmem>>, %arg4: memref<32x16xf32, #tpu.memory_space<vmem>>, %arg5: memref<32x16xf32, #tpu.memory_space<vmem>>) attributes {dimension_semantics = [#tpu.dimension_semantics<parallel>], iteration_bounds = array<i64: 1>, scalar_prefetch = 0 : i64, scratch_operands = 0 : i64, tpu.core_type = #tpu.core_type<tc>, window_params = [{transform_indices = @transform_0, window_bounds = array<i64: 3, 32, 16>}, {transform_indices = @transform_1, window_bounds = array<i64: 32, 3>}, {transform_indices = @transform_2, window_bounds = array<i64: 32, 3>}, {transform_indices = @transform_3, window_bounds = array<i64: 32, 16>}, {transform_indices = @transform_4, window_bounds = array<i64: 32, 16>}]} {
    %c0 = arith.constant 0 : index
    %c0_0 = arith.constant 0 : index
    %0 = vector.load %arg2[%c0, %c0_0] : memref<32x3xf32, #tpu.memory_space<vmem>>, vector<32x3xf32>
    %cst = arith.constant dense<0xFF800000> : vector<32xf32>
    %1 = vector.multi_reduction <maximumf>, %0, %cst [1] : vector<32x3xf32> to vector<32xf32>
    %2 = vector.shape_cast %1 : vector<32xf32> to vector<32x1xf32>
    %3 = vector.broadcast %2 : vector<32x1xf32> to vector<32x3xf32>
    %4 = arith.subf %0, %3 : vector<32x3xf32>
    %5 = math.exp %4 : vector<32x3xf32>
    %cst_1 = arith.constant dense<0.000000e+00> : vector<32xf32>
    %6 = vector.multi_reduction <add>, %5, %cst_1 [1] : vector<32x3xf32> to vector<32xf32>
    %7 = vector.shape_cast %6 : vector<32xf32> to vector<32x1xf32>
    %8 = tpu.reciprocal %7 {approx = true} : vector<32x1xf32> -> vector<32x1xf32>
    %9 = vector.broadcast %8 : vector<32x1xf32> to vector<32x3xf32>
    %10 = arith.mulf %5, %9 : vector<32x3xf32>
    %c0_2 = arith.constant 0 : index
    %c0_3 = arith.constant 0 : index
    %c0_4 = arith.constant 0 : index
    %11 = vector.load %arg1[%c0_2, %c0_3, %c0_4] : memref<3x32x16xf32, #tpu.memory_space<vmem>>, vector<1x32x16xf32>
    %12 = vector.shape_cast %11 : vector<1x32x16xf32> to vector<32x16xf32>
    %13 = vector.extract_strided_slice %10 {offsets = [0, 0], sizes = [32, 1], strides = [1, 1]} : vector<32x3xf32> to vector<32x1xf32>
    %14 = vector.broadcast %13 : vector<32x1xf32> to vector<32x16xf32>
    %15 = arith.mulf %12, %14 : vector<32x16xf32>
    %c1 = arith.constant 1 : index
    %c0_5 = arith.constant 0 : index
    %c0_6 = arith.constant 0 : index
    %16 = vector.load %arg1[%c1, %c0_5, %c0_6] : memref<3x32x16xf32, #tpu.memory_space<vmem>>, vector<1x32x16xf32>
    %17 = vector.shape_cast %16 : vector<1x32x16xf32> to vector<32x16xf32>
    %18 = vector.extract_strided_slice %10 {offsets = [0, 1], sizes = [32, 1], strides = [1, 1]} : vector<32x3xf32> to vector<32x1xf32>
    %19 = vector.broadcast %18 : vector<32x1xf32> to vector<32x16xf32>
    %20 = arith.mulf %17, %19 : vector<32x16xf32>
    %21 = arith.addf %15, %20 : vector<32x16xf32>
    %c2 = arith.constant 2 : index
    %c0_7 = arith.constant 0 : index
    %c0_8 = arith.constant 0 : index
    %22 = vector.load %arg1[%c2, %c0_7, %c0_8] : memref<3x32x16xf32, #tpu.memory_space<vmem>>, vector<1x32x16xf32>
    %23 = vector.shape_cast %22 : vector<1x32x16xf32> to vector<32x16xf32>
    %24 = vector.extract_strided_slice %10 {offsets = [0, 2], sizes = [32, 1], strides = [1, 1]} : vector<32x3xf32> to vector<32x1xf32>
    %25 = vector.broadcast %24 : vector<32x1xf32> to vector<32x16xf32>
    %26 = arith.mulf %23, %25 : vector<32x16xf32>
    %27 = arith.addf %21, %26 : vector<32x16xf32>
    %c0_9 = arith.constant 0 : index
    %c0_10 = arith.constant 0 : index
    %28 = vector.load %arg4[%c0_9, %c0_10] : memref<32x16xf32, #tpu.memory_space<vmem>>, vector<32x16xf32>
    tpu.vector_store %arg4[%c0_9, %c0_10], %27 {strides = array<i32>} : memref<32x16xf32, #tpu.memory_space<vmem>>, vector<32x16xf32>,
    %c0_11 = arith.constant 0 : index
    %c0_12 = arith.constant 0 : index
    %29 = vector.load %arg3[%c0_11, %c0_12] : memref<32x3xf32, #tpu.memory_space<vmem>>, vector<32x3xf32>
    %cst_13 = arith.constant dense<0xFF800000> : vector<32xf32>
    %30 = vector.multi_reduction <maximumf>, %29, %cst_13 [1] : vector<32x3xf32> to vector<32xf32>
    %31 = vector.shape_cast %30 : vector<32xf32> to vector<32x1xf32>
    %32 = vector.broadcast %31 : vector<32x1xf32> to vector<32x3xf32>
    %33 = arith.subf %29, %32 : vector<32x3xf32>
    %34 = math.exp %33 : vector<32x3xf32>
    %cst_14 = arith.constant dense<0.000000e+00> : vector<32xf32>
    %35 = vector.multi_reduction <add>, %34, %cst_14 [1] : vector<32x3xf32> to vector<32xf32>
    %36 = vector.shape_cast %35 : vector<32xf32> to vector<32x1xf32>
    %37 = tpu.reciprocal %36 {approx = true} : vector<32x1xf32> -> vector<32x1xf32>
    %38 = vector.broadcast %37 : vector<32x1xf32> to vector<32x3xf32>
    %39 = arith.mulf %34, %38 : vector<32x3xf32>
    %c0_15 = arith.constant 0 : index
    %c0_16 = arith.constant 0 : index
    %c0_17 = arith.constant 0 : index
    %40 = vector.load %arg1[%c0_15, %c0_16, %c0_17] : memref<3x32x16xf32, #tpu.memory_space<vmem>>, vector<1x32x16xf32>
    %41 = vector.shape_cast %40 : vector<1x32x16xf32> to vector<32x16xf32>
    %42 = vector.extract_strided_slice %39 {offsets = [0, 0], sizes = [32, 1], strides = [1, 1]} : vector<32x3xf32> to vector<32x1xf32>
    %43 = vector.broadcast %42 : vector<32x1xf32> to vector<32x16xf32>
    %44 = arith.mulf %41, %43 : vector<32x16xf32>
    %c1_18 = arith.constant 1 : index
    %c0_19 = arith.constant 0 : index
    %c0_20 = arith.constant 0 : index
    %45 = vector.load %arg1[%c1_18, %c0_19, %c0_20] : memref<3x32x16xf32, #tpu.memory_space<vmem>>, vector<1x32x16xf32>
    %46 = vector.shape_cast %45 : vector<1x32x16xf32> to vector<32x16xf32>
    %47 = vector.extract_strided_slice %39 {offsets = [0, 1], sizes = [32, 1], strides = [1, 1]} : vector<32x3xf32> to vector<32x1xf32>
    %48 = vector.broadcast %47 : vector<32x1xf32> to vector<32x16xf32>
    %49 = arith.mulf %46, %48 : vector<32x16xf32>
    %50 = arith.addf %44, %49 : vector<32x16xf32>
    %c2_21 = arith.constant 2 : index
    %c0_22 = arith.constant 0 : index
    %c0_23 = arith.constant 0 : index
    %51 = vector.load %arg1[%c2_21, %c0_22, %c0_23] : memref<3x32x16xf32, #tpu.memory_space<vmem>>, vector<1x32x16xf32>
    %52 = vector.shape_cast %51 : vector<1x32x16xf32> to vector<32x16xf32>
    %53 = vector.extract_strided_slice %39 {offsets = [0, 2], sizes = [32, 1], strides = [1, 1]} : vector<32x3xf32> to vector<32x1xf32>
    %54 = vector.broadcast %53 : vector<32x1xf32> to vector<32x16xf32>
    %55 = arith.mulf %52, %54 : vector<32x16xf32>
    %56 = arith.addf %50, %55 : vector<32x16xf32>
    %c0_24 = arith.constant 0 : index
    %c0_25 = arith.constant 0 : index
    %57 = vector.load %arg5[%c0_24, %c0_25] : memref<32x16xf32, #tpu.memory_space<vmem>>, vector<32x16xf32>
    tpu.vector_store %arg5[%c0_24, %c0_25], %56 {strides = array<i32>} : memref<32x16xf32, #tpu.memory_space<vmem>>, vector<32x16xf32>,
    return
  }
  func.func @transform_0(%arg0: i32) -> (i32, i32, i32) {
    %c0_i32 = arith.constant 0 : i32
    %c0_i32_0 = arith.constant 0 : i32
    %c0_i32_1 = arith.constant 0 : i32
    return %c0_i32, %arg0, %c0_i32_0 : i32, i32, i32
  }
  func.func @transform_1(%arg0: i32) -> (i32, i32) {
    %c0_i32 = arith.constant 0 : i32
    %c0_i32_0 = arith.constant 0 : i32
    return %arg0, %c0_i32 : i32, i32
  }
  func.func @transform_2(%arg0: i32) -> (i32, i32) {
    %c0_i32 = arith.constant 0 : i32
    %c0_i32_0 = arith.constant 0 : i32
    return %arg0, %c0_i32 : i32, i32
  }
  func.func @transform_3(%arg0: i32) -> (i32, i32) {
    %c0_i32 = arith.constant 0 : i32
    %c0_i32_0 = arith.constant 0 : i32
    return %arg0, %c0_i32 : i32, i32
  }
  func.func @transform_4(%arg0: i32) -> (i32, i32) {
    %c0_i32 = arith.constant 0 : i32
    %c0_i32_0 = arith.constant 0 : i32
    return %arg0, %c0_i32 : i32, i32
  }
}

module attributes {stable_mosaic.version = 11 : i64} {
  func.func @_conv1d_kernel(%arg0: i32, %arg1: i32, %arg2: memref<1x1x18x16xf32, #tpu.memory_space<vmem>>, %arg3: memref<1x3x16x16xbf16, #tpu.memory_space<vmem>>, %arg4: memref<1x1x16xf32, #tpu.memory_space<vmem>>, %arg5: memref<1x1x16x16xf32, #tpu.memory_space<vmem>>) attributes {dimension_semantics = [#tpu.dimension_semantics<parallel>, #tpu.dimension_semantics<parallel>], iteration_bounds = array<i64: 1, 2>, scalar_prefetch = 0 : i64, scratch_operands = 0 : i64, tpu.core_type = #tpu.core_type<tc>, window_params = [{transform_indices = @transform_0, window_bounds = array<i64: 1, 1, 18, 16>}, {transform_indices = @transform_1, window_bounds = array<i64: 1, 3, 16, 16>}, {transform_indices = @transform_2, window_bounds = array<i64: 1, 1, 16>}, {transform_indices = @transform_3, window_bounds = array<i64: 1, 1, 16, 16>}]} {
    %cst = arith.constant 0.000000e+00 : f32
    %0 = vector.broadcast %cst : f32 to vector<16x16xf32>
    %c0 = arith.constant 0 : index
    %c0_0 = arith.constant 0 : index
    %c0_1 = arith.constant 0 : index
    %c0_2 = arith.constant 0 : index
    %1 = vector.load %arg2[%c0, %c0_0, %c0_1, %c0_2] : memref<1x1x18x16xf32, #tpu.memory_space<vmem>>, vector<1x1x16x16xf32>
    %2 = vector.shape_cast %1 : vector<1x1x16x16xf32> to vector<16x16xf32>
    %3 = arith.truncf %2 : vector<16x16xf32> to vector<16x16xbf16>
    %c0_3 = arith.constant 0 : index
    %c0_4 = arith.constant 0 : index
    %c0_5 = arith.constant 0 : index
    %c0_6 = arith.constant 0 : index
    %4 = vector.load %arg3[%c0_3, %c0_4, %c0_5, %c0_6] : memref<1x3x16x16xbf16, #tpu.memory_space<vmem>>, vector<1x1x16x16xbf16>
    %5 = vector.shape_cast %4 : vector<1x1x16x16xbf16> to vector<16x16xbf16>
    %cst_7 = arith.constant dense<0.000000e+00> : vector<16x16xf32>
    %6 = tpu.matmul %3, %5, %cst_7 {dimension_numbers = #tpu.dot_dimension_numbers<[1], [0], [0], [1], [0, 0, 1, 1], [], []>} : vector<16x16xbf16>, vector<16x16xbf16>, vector<16x16xf32> -> vector<16x16xf32>
    %7 = arith.addf %0, %6 : vector<16x16xf32>
    %c0_8 = arith.constant 0 : index
    %c0_9 = arith.constant 0 : index
    %c1 = arith.constant 1 : index
    %c0_10 = arith.constant 0 : index
    %8 = vector.load %arg2[%c0_8, %c0_9, %c1, %c0_10] : memref<1x1x18x16xf32, #tpu.memory_space<vmem>>, vector<1x1x16x16xf32>
    %9 = vector.shape_cast %8 : vector<1x1x16x16xf32> to vector<16x16xf32>
    %10 = arith.truncf %9 : vector<16x16xf32> to vector<16x16xbf16>
    %c0_11 = arith.constant 0 : index
    %c1_12 = arith.constant 1 : index
    %c0_13 = arith.constant 0 : index
    %c0_14 = arith.constant 0 : index
    %11 = vector.load %arg3[%c0_11, %c1_12, %c0_13, %c0_14] : memref<1x3x16x16xbf16, #tpu.memory_space<vmem>>, vector<1x1x16x16xbf16>
    %12 = vector.shape_cast %11 : vector<1x1x16x16xbf16> to vector<16x16xbf16>
    %cst_15 = arith.constant dense<0.000000e+00> : vector<16x16xf32>
    %13 = tpu.matmul %10, %12, %cst_15 {dimension_numbers = #tpu.dot_dimension_numbers<[1], [0], [0], [1], [0, 0, 1, 1], [], []>} : vector<16x16xbf16>, vector<16x16xbf16>, vector<16x16xf32> -> vector<16x16xf32>
    %14 = arith.addf %7, %13 : vector<16x16xf32>
    %c0_16 = arith.constant 0 : index
    %c0_17 = arith.constant 0 : index
    %c2 = arith.constant 2 : index
    %c0_18 = arith.constant 0 : index
    %15 = vector.load %arg2[%c0_16, %c0_17, %c2, %c0_18] : memref<1x1x18x16xf32, #tpu.memory_space<vmem>>, vector<1x1x16x16xf32>
    %16 = vector.shape_cast %15 : vector<1x1x16x16xf32> to vector<16x16xf32>
    %17 = arith.truncf %16 : vector<16x16xf32> to vector<16x16xbf16>
    %c0_19 = arith.constant 0 : index
    %c2_20 = arith.constant 2 : index
    %c0_21 = arith.constant 0 : index
    %c0_22 = arith.constant 0 : index
    %18 = vector.load %arg3[%c0_19, %c2_20, %c0_21, %c0_22] : memref<1x3x16x16xbf16, #tpu.memory_space<vmem>>, vector<1x1x16x16xbf16>
    %19 = vector.shape_cast %18 : vector<1x1x16x16xbf16> to vector<16x16xbf16>
    %cst_23 = arith.constant dense<0.000000e+00> : vector<16x16xf32>
    %20 = tpu.matmul %17, %19, %cst_23 {dimension_numbers = #tpu.dot_dimension_numbers<[1], [0], [0], [1], [0, 0, 1, 1], [], []>} : vector<16x16xbf16>, vector<16x16xbf16>, vector<16x16xf32> -> vector<16x16xf32>
    %21 = arith.addf %14, %20 : vector<16x16xf32>
    %c0_24 = arith.constant 0 : index
    %c0_25 = arith.constant 0 : index
    %c0_26 = arith.constant 0 : index
    %22 = vector.load %arg4[%c0_24, %c0_25, %c0_26] : memref<1x1x16xf32, #tpu.memory_space<vmem>>, vector<1x1x16xf32>
    %23 = vector.shape_cast %22 : vector<1x1x16xf32> to vector<1x16xf32>
    %24 = vector.broadcast %23 : vector<1x16xf32> to vector<16x16xf32>
    %25 = arith.addf %21, %24 : vector<16x16xf32>
    %cst_27 = arith.constant 0.000000e+00 : f32
    %26 = vector.broadcast %cst_27 : f32 to vector<16x16xf32>
    %27 = arith.maximumf %25, %26 : vector<16x16xf32>
    %c0_28 = arith.constant 0 : index
    %c0_29 = arith.constant 0 : index
    %c0_30 = arith.constant 0 : index
    %c0_31 = arith.constant 0 : index
    %28 = vector.load %arg5[%c0_28, %c0_29, %c0_30, %c0_31] : memref<1x1x16x16xf32, #tpu.memory_space<vmem>>, vector<1x1x16x16xf32>
    %29 = vector.shape_cast %28 : vector<1x1x16x16xf32> to vector<16x16xf32>
    %30 = vector.shape_cast %27 : vector<16x16xf32> to vector<1x1x16x16xf32>
    tpu.vector_store %arg5[%c0_28, %c0_29, %c0_30, %c0_31], %30 {strides = array<i32>} : memref<1x1x16x16xf32, #tpu.memory_space<vmem>>, vector<1x1x16x16xf32>,
    return
  }
  func.func @transform_0(%arg0: i32, %arg1: i32) -> (i32, i32, i32, i32) {
    %c0_i32 = arith.constant 0 : i32
    %c0_i32_0 = arith.constant 0 : i32
    %c0_i32_1 = arith.constant 0 : i32
    return %arg0, %arg1, %c0_i32, %c0_i32_0 : i32, i32, i32, i32
  }
  func.func @transform_1(%arg0: i32, %arg1: i32) -> (i32, i32, i32, i32) {
    %c0_i32 = arith.constant 0 : i32
    %c0_i32_0 = arith.constant 0 : i32
    %c0_i32_1 = arith.constant 0 : i32
    %c0_i32_2 = arith.constant 0 : i32
    return %arg0, %c0_i32, %c0_i32_0, %c0_i32_1 : i32, i32, i32, i32
  }
  func.func @transform_2(%arg0: i32, %arg1: i32) -> (i32, i32, i32) {
    %c0_i32 = arith.constant 0 : i32
    %c0_i32_0 = arith.constant 0 : i32
    %c0_i32_1 = arith.constant 0 : i32
    return %arg0, %c0_i32, %c0_i32_0 : i32, i32, i32
  }
  func.func @transform_3(%arg0: i32, %arg1: i32) -> (i32, i32, i32, i32) {
    %c0_i32 = arith.constant 0 : i32
    %c0_i32_0 = arith.constant 0 : i32
    %c0_i32_1 = arith.constant 0 : i32
    return %arg0, %arg1, %c0_i32, %c0_i32_0 : i32, i32, i32, i32
  }
}

module attributes {stable_mosaic.version = 11 : i64} {
  func.func @_conv1d_kernel(%arg0: i32, %arg1: i32, %arg2: memref<1x1x18x16xf32, #tpu.memory_space<vmem>>, %arg3: memref<1x3x16x16xbf16, #tpu.memory_space<vmem>>, %arg4: memref<1x1x16xf32, #tpu.memory_space<vmem>>, %arg5: memref<1x1x16x16xf32, #tpu.memory_space<vmem>>) attributes {dimension_semantics = [#tpu.dimension_semantics<parallel>, #tpu.dimension_semantics<parallel>], iteration_bounds = array<i64: 3, 2>, scalar_prefetch = 0 : i64, scratch_operands = 0 : i64, tpu.core_type = #tpu.core_type<tc>, window_params = [{transform_indices = @transform_0, window_bounds = array<i64: 1, 1, 18, 16>}, {transform_indices = @transform_1, window_bounds = array<i64: 1, 3, 16, 16>}, {transform_indices = @transform_2, window_bounds = array<i64: 1, 1, 16>}, {transform_indices = @transform_3, window_bounds = array<i64: 1, 1, 16, 16>}]} {
    %cst = arith.constant 0.000000e+00 : f32
    %0 = vector.broadcast %cst : f32 to vector<16x16xf32>
    %c0 = arith.constant 0 : index
    %c0_0 = arith.constant 0 : index
    %c0_1 = arith.constant 0 : index
    %c0_2 = arith.constant 0 : index
    %1 = vector.load %arg2[%c0, %c0_0, %c0_1, %c0_2] : memref<1x1x18x16xf32, #tpu.memory_space<vmem>>, vector<1x1x16x16xf32>
    %2 = vector.shape_cast %1 : vector<1x1x16x16xf32> to vector<16x16xf32>
    %3 = arith.truncf %2 : vector<16x16xf32> to vector<16x16xbf16>
    %c0_3 = arith.constant 0 : index
    %c0_4 = arith.constant 0 : index
    %c0_5 = arith.constant 0 : index
    %c0_6 = arith.constant 0 : index
    %4 = vector.load %arg3[%c0_3, %c0_4, %c0_5, %c0_6] : memref<1x3x16x16xbf16, #tpu.memory_space<vmem>>, vector<1x1x16x16xbf16>
    %5 = vector.shape_cast %4 : vector<1x1x16x16xbf16> to vector<16x16xbf16>
    %cst_7 = arith.constant dense<0.000000e+00> : vector<16x16xf32>
    %6 = tpu.matmul %3, %5, %cst_7 {dimension_numbers = #tpu.dot_dimension_numbers<[1], [0], [0], [1], [0, 0, 1, 1], [], []>} : vector<16x16xbf16>, vector<16x16xbf16>, vector<16x16xf32> -> vector<16x16xf32>
    %7 = arith.addf %0, %6 : vector<16x16xf32>
    %c0_8 = arith.constant 0 : index
    %c0_9 = arith.constant 0 : index
    %c1 = arith.constant 1 : index
    %c0_10 = arith.constant 0 : index
    %8 = vector.load %arg2[%c0_8, %c0_9, %c1, %c0_10] : memref<1x1x18x16xf32, #tpu.memory_space<vmem>>, vector<1x1x16x16xf32>
    %9 = vector.shape_cast %8 : vector<1x1x16x16xf32> to vector<16x16xf32>
    %10 = arith.truncf %9 : vector<16x16xf32> to vector<16x16xbf16>
    %c0_11 = arith.constant 0 : index
    %c1_12 = arith.constant 1 : index
    %c0_13 = arith.constant 0 : index
    %c0_14 = arith.constant 0 : index
    %11 = vector.load %arg3[%c0_11, %c1_12, %c0_13, %c0_14] : memref<1x3x16x16xbf16, #tpu.memory_space<vmem>>, vector<1x1x16x16xbf16>
    %12 = vector.shape_cast %11 : vector<1x1x16x16xbf16> to vector<16x16xbf16>
    %cst_15 = arith.constant dense<0.000000e+00> : vector<16x16xf32>
    %13 = tpu.matmul %10, %12, %cst_15 {dimension_numbers = #tpu.dot_dimension_numbers<[1], [0], [0], [1], [0, 0, 1, 1], [], []>} : vector<16x16xbf16>, vector<16x16xbf16>, vector<16x16xf32> -> vector<16x16xf32>
    %14 = arith.addf %7, %13 : vector<16x16xf32>
    %c0_16 = arith.constant 0 : index
    %c0_17 = arith.constant 0 : index
    %c2 = arith.constant 2 : index
    %c0_18 = arith.constant 0 : index
    %15 = vector.load %arg2[%c0_16, %c0_17, %c2, %c0_18] : memref<1x1x18x16xf32, #tpu.memory_space<vmem>>, vector<1x1x16x16xf32>
    %16 = vector.shape_cast %15 : vector<1x1x16x16xf32> to vector<16x16xf32>
    %17 = arith.truncf %16 : vector<16x16xf32> to vector<16x16xbf16>
    %c0_19 = arith.constant 0 : index
    %c2_20 = arith.constant 2 : index
    %c0_21 = arith.constant 0 : index
    %c0_22 = arith.constant 0 : index
    %18 = vector.load %arg3[%c0_19, %c2_20, %c0_21, %c0_22] : memref<1x3x16x16xbf16, #tpu.memory_space<vmem>>, vector<1x1x16x16xbf16>
    %19 = vector.shape_cast %18 : vector<1x1x16x16xbf16> to vector<16x16xbf16>
    %cst_23 = arith.constant dense<0.000000e+00> : vector<16x16xf32>
    %20 = tpu.matmul %17, %19, %cst_23 {dimension_numbers = #tpu.dot_dimension_numbers<[1], [0], [0], [1], [0, 0, 1, 1], [], []>} : vector<16x16xbf16>, vector<16x16xbf16>, vector<16x16xf32> -> vector<16x16xf32>
    %21 = arith.addf %14, %20 : vector<16x16xf32>
    %c0_24 = arith.constant 0 : index
    %c0_25 = arith.constant 0 : index
    %c0_26 = arith.constant 0 : index
    %22 = vector.load %arg4[%c0_24, %c0_25, %c0_26] : memref<1x1x16xf32, #tpu.memory_space<vmem>>, vector<1x1x16xf32>
    %23 = vector.shape_cast %22 : vector<1x1x16xf32> to vector<1x16xf32>
    %24 = vector.broadcast %23 : vector<1x16xf32> to vector<16x16xf32>
    %25 = arith.addf %21, %24 : vector<16x16xf32>
    %cst_27 = arith.constant 0.000000e+00 : f32
    %26 = vector.broadcast %cst_27 : f32 to vector<16x16xf32>
    %27 = arith.cmpf oge, %25, %26 : vector<16x16xf32>
    %cst_28 = arith.constant 0.00999999977 : f32
    %28 = vector.broadcast %cst_28 : f32 to vector<16x16xf32>
    %29 = arith.mulf %28, %25 : vector<16x16xf32>
    %30 = arith.select %27, %25, %29 : vector<16x16xi1>, vector<16x16xf32>
    %c0_29 = arith.constant 0 : index
    %c0_30 = arith.constant 0 : index
    %c0_31 = arith.constant 0 : index
    %c0_32 = arith.constant 0 : index
    %31 = vector.load %arg5[%c0_29, %c0_30, %c0_31, %c0_32] : memref<1x1x16x16xf32, #tpu.memory_space<vmem>>, vector<1x1x16x16xf32>
    %32 = vector.shape_cast %31 : vector<1x1x16x16xf32> to vector<16x16xf32>
    %33 = vector.shape_cast %30 : vector<16x16xf32> to vector<1x1x16x16xf32>
    tpu.vector_store %arg5[%c0_29, %c0_30, %c0_31, %c0_32], %33 {strides = array<i32>} : memref<1x1x16x16xf32, #tpu.memory_space<vmem>>, vector<1x1x16x16xf32>,
    return
  }
  func.func @transform_0(%arg0: i32, %arg1: i32) -> (i32, i32, i32, i32) {
    %c0_i32 = arith.constant 0 : i32
    %c0_i32_0 = arith.constant 0 : i32
    %c0_i32_1 = arith.constant 0 : i32
    return %arg0, %arg1, %c0_i32, %c0_i32_0 : i32, i32, i32, i32
  }
  func.func @transform_1(%arg0: i32, %arg1: i32) -> (i32, i32, i32, i32) {
    %c0_i32 = arith.constant 0 : i32
    %c0_i32_0 = arith.constant 0 : i32
    %c0_i32_1 = arith.constant 0 : i32
    %c0_i32_2 = arith.constant 0 : i32
    return %arg0, %c0_i32, %c0_i32_0, %c0_i32_1 : i32, i32, i32, i32
  }
  func.func @transform_2(%arg0: i32, %arg1: i32) -> (i32, i32, i32) {
    %c0_i32 = arith.constant 0 : i32
    %c0_i32_0 = arith.constant 0 : i32
    %c0_i32_1 = arith.constant 0 : i32
    return %arg0, %c0_i32, %c0_i32_0 : i32, i32, i32
  }
  func.func @transform_3(%arg0: i32, %arg1: i32) -> (i32, i32, i32, i32) {
    %c0_i32 = arith.constant 0 : i32
    %c0_i32_0 = arith.constant 0 : i32
    %c0_i32_1 = arith.constant 0 : i32
    return %arg0, %arg1, %c0_i32, %c0_i32_0 : i32, i32, i32, i32
  }
}

module attributes {stable_mosaic.version = 11 : i64} {
  func.func @_conv1d_kernel(%arg0: i32, %arg1: i32, %arg2: memref<1x1x20x16xf32, #tpu.memory_space<vmem>>, %arg3: memref<1x3x16x16xbf16, #tpu.memory_space<vmem>>, %arg4: memref<1x1x16xf32, #tpu.memory_space<vmem>>, %arg5: memref<1x1x16x16xf32, #tpu.memory_space<vmem>>) attributes {dimension_semantics = [#tpu.dimension_semantics<parallel>, #tpu.dimension_semantics<parallel>], iteration_bounds = array<i64: 1, 2>, scalar_prefetch = 0 : i64, scratch_operands = 0 : i64, tpu.core_type = #tpu.core_type<tc>, window_params = [{transform_indices = @transform_0, window_bounds = array<i64: 1, 1, 20, 16>}, {transform_indices = @transform_1, window_bounds = array<i64: 1, 3, 16, 16>}, {transform_indices = @transform_2, window_bounds = array<i64: 1, 1, 16>}, {transform_indices = @transform_3, window_bounds = array<i64: 1, 1, 16, 16>}]} {
    %cst = arith.constant 0.000000e+00 : f32
    %0 = vector.broadcast %cst : f32 to vector<16x16xf32>
    %c0 = arith.constant 0 : index
    %c0_0 = arith.constant 0 : index
    %c0_1 = arith.constant 0 : index
    %c0_2 = arith.constant 0 : index
    %1 = vector.load %arg2[%c0, %c0_0, %c0_1, %c0_2] : memref<1x1x20x16xf32, #tpu.memory_space<vmem>>, vector<1x1x16x16xf32>
    %2 = vector.shape_cast %1 : vector<1x1x16x16xf32> to vector<16x16xf32>
    %3 = arith.truncf %2 : vector<16x16xf32> to vector<16x16xbf16>
    %c0_3 = arith.constant 0 : index
    %c0_4 = arith.constant 0 : index
    %c0_5 = arith.constant 0 : index
    %c0_6 = arith.constant 0 : index
    %4 = vector.load %arg3[%c0_3, %c0_4, %c0_5, %c0_6] : memref<1x3x16x16xbf16, #tpu.memory_space<vmem>>, vector<1x1x16x16xbf16>
    %5 = vector.shape_cast %4 : vector<1x1x16x16xbf16> to vector<16x16xbf16>
    %cst_7 = arith.constant dense<0.000000e+00> : vector<16x16xf32>
    %6 = tpu.matmul %3, %5, %cst_7 {dimension_numbers = #tpu.dot_dimension_numbers<[1], [0], [0], [1], [0, 0, 1, 1], [], []>} : vector<16x16xbf16>, vector<16x16xbf16>, vector<16x16xf32> -> vector<16x16xf32>
    %7 = arith.addf %0, %6 : vector<16x16xf32>
    %c0_8 = arith.constant 0 : index
    %c0_9 = arith.constant 0 : index
    %c2 = arith.constant 2 : index
    %c0_10 = arith.constant 0 : index
    %8 = vector.load %arg2[%c0_8, %c0_9, %c2, %c0_10] : memref<1x1x20x16xf32, #tpu.memory_space<vmem>>, vector<1x1x16x16xf32>
    %9 = vector.shape_cast %8 : vector<1x1x16x16xf32> to vector<16x16xf32>
    %10 = arith.truncf %9 : vector<16x16xf32> to vector<16x16xbf16>
    %c0_11 = arith.constant 0 : index
    %c1 = arith.constant 1 : index
    %c0_12 = arith.constant 0 : index
    %c0_13 = arith.constant 0 : index
    %11 = vector.load %arg3[%c0_11, %c1, %c0_12, %c0_13] : memref<1x3x16x16xbf16, #tpu.memory_space<vmem>>, vector<1x1x16x16xbf16>
    %12 = vector.shape_cast %11 : vector<1x1x16x16xbf16> to vector<16x16xbf16>
    %cst_14 = arith.constant dense<0.000000e+00> : vector<16x16xf32>
    %13 = tpu.matmul %10, %12, %cst_14 {dimension_numbers = #tpu.dot_dimension_numbers<[1], [0], [0], [1], [0, 0, 1, 1], [], []>} : vector<16x16xbf16>, vector<16x16xbf16>, vector<16x16xf32> -> vector<16x16xf32>
    %14 = arith.addf %7, %13 : vector<16x16xf32>
    %c0_15 = arith.constant 0 : index
    %c0_16 = arith.constant 0 : index
    %c4 = arith.constant 4 : index
    %c0_17 = arith.constant 0 : index
    %15 = vector.load %arg2[%c0_15, %c0_16, %c4, %c0_17] : memref<1x1x20x16xf32, #tpu.memory_space<vmem>>, vector<1x1x16x16xf32>
    %16 = vector.shape_cast %15 : vector<1x1x16x16xf32> to vector<16x16xf32>
    %17 = arith.truncf %16 : vector<16x16xf32> to vector<16x16xbf16>
    %c0_18 = arith.constant 0 : index
    %c2_19 = arith.constant 2 : index
    %c0_20 = arith.constant 0 : index
    %c0_21 = arith.constant 0 : index
    %18 = vector.load %arg3[%c0_18, %c2_19, %c0_20, %c0_21] : memref<1x3x16x16xbf16, #tpu.memory_space<vmem>>, vector<1x1x16x16xbf16>
    %19 = vector.shape_cast %18 : vector<1x1x16x16xbf16> to vector<16x16xbf16>
    %cst_22 = arith.constant dense<0.000000e+00> : vector<16x16xf32>
    %20 = tpu.matmul %17, %19, %cst_22 {dimension_numbers = #tpu.dot_dimension_numbers<[1], [0], [0], [1], [0, 0, 1, 1], [], []>} : vector<16x16xbf16>, vector<16x16xbf16>, vector<16x16xf32> -> vector<16x16xf32>
    %21 = arith.addf %14, %20 : vector<16x16xf32>
    %c0_23 = arith.constant 0 : index
    %c0_24 = arith.constant 0 : index
    %c0_25 = arith.constant 0 : index
    %22 = vector.load %arg4[%c0_23, %c0_24, %c0_25] : memref<1x1x16xf32, #tpu.memory_space<vmem>>, vector<1x1x16xf32>
    %23 = vector.shape_cast %22 : vector<1x1x16xf32> to vector<1x16xf32>
    %24 = vector.broadcast %23 : vector<1x16xf32> to vector<16x16xf32>
    %25 = arith.addf %21, %24 : vector<16x16xf32>
    %cst_26 = arith.constant 0.000000e+00 : f32
    %26 = vector.broadcast %cst_26 : f32 to vector<16x16xf32>
    %27 = arith.maximumf %25, %26 : vector<16x16xf32>
    %c0_27 = arith.constant 0 : index
    %c0_28 = arith.constant 0 : index
    %c0_29 = arith.constant 0 : index
    %c0_30 = arith.constant 0 : index
    %28 = vector.load %arg5[%c0_27, %c0_28, %c0_29, %c0_30] : memref<1x1x16x16xf32, #tpu.memory_space<vmem>>, vector<1x1x16x16xf32>
    %29 = vector.shape_cast %28 : vector<1x1x16x16xf32> to vector<16x16xf32>
    %30 = vector.shape_cast %27 : vector<16x16xf32> to vector<1x1x16x16xf32>
    tpu.vector_store %arg5[%c0_27, %c0_28, %c0_29, %c0_30], %30 {strides = array<i32>} : memref<1x1x16x16xf32, #tpu.memory_space<vmem>>, vector<1x1x16x16xf32>,
    return
  }
  func.func @transform_0(%arg0: i32, %arg1: i32) -> (i32, i32, i32, i32) {
    %c0_i32 = arith.constant 0 : i32
    %c0_i32_0 = arith.constant 0 : i32
    %c0_i32_1 = arith.constant 0 : i32
    return %arg0, %arg1, %c0_i32, %c0_i32_0 : i32, i32, i32, i32
  }
  func.func @transform_1(%arg0: i32, %arg1: i32) -> (i32, i32, i32, i32) {
    %c0_i32 = arith.constant 0 : i32
    %c0_i32_0 = arith.constant 0 : i32
    %c0_i32_1 = arith.constant 0 : i32
    %c0_i32_2 = arith.constant 0 : i32
    return %arg0, %c0_i32, %c0_i32_0, %c0_i32_1 : i32, i32, i32, i32
  }
  func.func @transform_2(%arg0: i32, %arg1: i32) -> (i32, i32, i32) {
    %c0_i32 = arith.constant 0 : i32
    %c0_i32_0 = arith.constant 0 : i32
    %c0_i32_1 = arith.constant 0 : i32
    return %arg0, %c0_i32, %c0_i32_0 : i32, i32, i32
  }
  func.func @transform_3(%arg0: i32, %arg1: i32) -> (i32, i32, i32, i32) {
    %c0_i32 = arith.constant 0 : i32
    %c0_i32_0 = arith.constant 0 : i32
    %c0_i32_1 = arith.constant 0 : i32
    return %arg0, %arg1, %c0_i32, %c0_i32_0 : i32, i32, i32, i32
  }
}

module attributes {stable_mosaic.version = 11 : i64} {
  func.func @_matmul_kernel(%arg0: i32, %arg1: i32, %arg2: memref<1x32x16xbf16, #tpu.memory_space<vmem>>, %arg3: memref<1x16x96xbf16, #tpu.memory_space<vmem>>, %arg4: memref<1x1x96xf32, #tpu.memory_space<vmem>>, %arg5: memref<1x32x96xf32, #tpu.memory_space<vmem>>) attributes {dimension_semantics = [#tpu.dimension_semantics<parallel>, #tpu.dimension_semantics<parallel>], iteration_bounds = array<i64: 2, 1>, scalar_prefetch = 0 : i64, scratch_operands = 0 : i64, tpu.core_type = #tpu.core_type<tc>, window_params = [{transform_indices = @transform_0, window_bounds = array<i64: 1, 32, 16>}, {transform_indices = @transform_1, window_bounds = array<i64: 1, 16, 96>}, {transform_indices = @transform_2, window_bounds = array<i64: 1, 1, 96>}, {transform_indices = @transform_3, window_bounds = array<i64: 1, 32, 96>}]} {
    %c0 = arith.constant 0 : index
    %c0_0 = arith.constant 0 : index
    %c0_1 = arith.constant 0 : index
    %0 = vector.load %arg2[%c0, %c0_0, %c0_1] : memref<1x32x16xbf16, #tpu.memory_space<vmem>>, vector<1x32x16xbf16>
    %1 = vector.shape_cast %0 : vector<1x32x16xbf16> to vector<32x16xbf16>
    %c0_2 = arith.constant 0 : index
    %c0_3 = arith.constant 0 : index
    %c0_4 = arith.constant 0 : index
    %2 = vector.load %arg3[%c0_2, %c0_3, %c0_4] : memref<1x16x96xbf16, #tpu.memory_space<vmem>>, vector<1x16x96xbf16>
    %3 = vector.shape_cast %2 : vector<1x16x96xbf16> to vector<16x96xbf16>
    %cst = arith.constant dense<0.000000e+00> : vector<32x96xf32>
    %4 = tpu.matmul %1, %3, %cst {dimension_numbers = #tpu.dot_dimension_numbers<[1], [0], [0], [1], [0, 0, 1, 1], [], []>} : vector<32x16xbf16>, vector<16x96xbf16>, vector<32x96xf32> -> vector<32x96xf32>
    %c0_5 = arith.constant 0 : index
    %c0_6 = arith.constant 0 : index
    %c0_7 = arith.constant 0 : index
    %5 = vector.load %arg4[%c0_5, %c0_6, %c0_7] : memref<1x1x96xf32, #tpu.memory_space<vmem>>, vector<1x1x96xf32>
    %6 = vector.shape_cast %5 : vector<1x1x96xf32> to vector<1x96xf32>
    %7 = vector.broadcast %6 : vector<1x96xf32> to vector<32x96xf32>
    %8 = arith.addf %4, %7 : vector<32x96xf32>
    %c0_8 = arith.constant 0 : index
    %c0_9 = arith.constant 0 : index
    %c0_10 = arith.constant 0 : index
    %9 = vector.load %arg5[%c0_8, %c0_9, %c0_10] : memref<1x32x96xf32, #tpu.memory_space<vmem>>, vector<1x32x96xf32>
    %10 = vector.shape_cast %9 : vector<1x32x96xf32> to vector<32x96xf32>
    %11 = vector.shape_cast %8 : vector<32x96xf32> to vector<1x32x96xf32>
    tpu.vector_store %arg5[%c0_8, %c0_9, %c0_10], %11 {strides = array<i32>} : memref<1x32x96xf32, #tpu.memory_space<vmem>>, vector<1x32x96xf32>,
    return
  }
  func.func @transform_0(%arg0: i32, %arg1: i32) -> (i32, i32, i32) {
    %c0_i32 = arith.constant 0 : i32
    %c0_i32_0 = arith.constant 0 : i32
    return %arg0, %arg1, %c0_i32 : i32, i32, i32
  }
  func.func @transform_1(%arg0: i32, %arg1: i32) -> (i32, i32, i32) {
    %c0_i32 = arith.constant 0 : i32
    %c0_i32_0 = arith.constant 0 : i32
    %c0_i32_1 = arith.constant 0 : i32
    return %arg0, %c0_i32, %c0_i32_0 : i32, i32, i32
  }
  func.func @transform_2(%arg0: i32, %arg1: i32) -> (i32, i32, i32) {
    %c0_i32 = arith.constant 0 : i32
    %c0_i32_0 = arith.constant 0 : i32
    %c0_i32_1 = arith.constant 0 : i32
    return %arg0, %c0_i32, %c0_i32_0 : i32, i32, i32
  }
  func.func @transform_3(%arg0: i32, %arg1: i32) -> (i32, i32, i32) {
    %c0_i32 = arith.constant 0 : i32
    %c0_i32_0 = arith.constant 0 : i32
    return %arg0, %arg1, %c0_i32 : i32, i32, i32
  }
}

module attributes {stable_mosaic.version = 11 : i64} {
  func.func @_gru_kernel(%arg0: i32, %arg1: memref<16x2x64xf32, #tpu.memory_space<vmem>>, %arg2: memref<16x2x64xf32, #tpu.memory_space<vmem>>, %arg3: memref<16x2x64xf32, #tpu.memory_space<vmem>>, %arg4: memref<64x64xf32, #tpu.memory_space<vmem>>, %arg5: memref<64x64xf32, #tpu.memory_space<vmem>>, %arg6: memref<64x64xf32, #tpu.memory_space<vmem>>, %arg7: memref<1x64xf32, #tpu.memory_space<vmem>>, %arg8: memref<1x64xf32, #tpu.memory_space<vmem>>, %arg9: memref<1x64xf32, #tpu.memory_space<vmem>>, %arg10: memref<16x2x64xf32, #tpu.memory_space<vmem>>, %arg11: memref<2x64xf32, #tpu.memory_space<vmem>>) attributes {dimension_semantics = [#tpu.dimension_semantics<arbitrary>], iteration_bounds = array<i64: 1>, scalar_prefetch = 0 : i64, scratch_operands = 1 : i64, tpu.core_type = #tpu.core_type<tc>, window_params = [{pipeline_mode = #tpu.pipeline_mode<synchronous>, transform_indices = @transform_0, window_bounds = array<i64: 16, 2, 64>}, {pipeline_mode = #tpu.pipeline_mode<synchronous>, transform_indices = @transform_1, window_bounds = array<i64: 16, 2, 64>}, {pipeline_mode = #tpu.pipeline_mode<synchronous>, transform_indices = @transform_2, window_bounds = array<i64: 16, 2, 64>}, {pipeline_mode = #tpu.pipeline_mode<synchronous>, transform_indices = @transform_3, window_bounds = array<i64: 64, 64>}, {pipeline_mode = #tpu.pipeline_mode<synchronous>, transform_indices = @transform_4, window_bounds = array<i64: 64, 64>}, {pipeline_mode = #tpu.pipeline_mode<synchronous>, transform_indices = @transform_5, window_bounds = array<i64: 64, 64>}, {pipeline_mode = #tpu.pipeline_mode<synchronous>, transform_indices = @transform_6, window_bounds = array<i64: 1, 64>}, {pipeline_mode = #tpu.pipeline_mode<synchronous>, transform_indices = @transform_7, window_bounds = array<i64: 1, 64>}, {pipeline_mode = #tpu.pipeline_mode<synchronous>, transform_indices = @transform_8, window_bounds = array<i64: 1, 64>}, {pipeline_mode = #tpu.pipeline_mode<synchronous>, transform_indices = @transform_9, window_bounds = array<i64: 16, 2, 64>}]} {
    %cst = arith.constant 0.000000e+00 : f32
    %0 = vector.broadcast %cst : f32 to vector<2x64xf32>
    %c0 = arith.constant 0 : index
    %c0_0 = arith.constant 0 : index
    %1 = vector.load %arg11[%c0, %c0_0] : memref<2x64xf32, #tpu.memory_space<vmem>>, vector<2x64xf32>
    tpu.vector_store %arg11[%c0, %c0_0], %0 {strides = array<i32>} : memref<2x64xf32, #tpu.memory_space<vmem>>, vector<2x64xf32>,
    %c0_1 = arith.constant 0 : index
    %c0_2 = arith.constant 0 : index
    %2 = vector.load %arg4[%c0_1, %c0_2] : memref<64x64xf32, #tpu.memory_space<vmem>>, vector<64x64xf32>
    %c0_3 = arith.constant 0 : index
    %c0_4 = arith.constant 0 : index
    %3 = vector.load %arg5[%c0_3, %c0_4] : memref<64x64xf32, #tpu.memory_space<vmem>>, vector<64x64xf32>
    %c0_5 = arith.constant 0 : index
    %c0_6 = arith.constant 0 : index
    %4 = vector.load %arg6[%c0_5, %c0_6] : memref<64x64xf32, #tpu.memory_space<vmem>>, vector<64x64xf32>
    %c0_7 = arith.constant 0 : index
    %c0_8 = arith.constant 0 : index
    %5 = vector.load %arg7[%c0_7, %c0_8] : memref<1x64xf32, #tpu.memory_space<vmem>>, vector<1x64xf32>
    %c0_9 = arith.constant 0 : index
    %c0_10 = arith.constant 0 : index
    %6 = vector.load %arg8[%c0_9, %c0_10] : memref<1x64xf32, #tpu.memory_space<vmem>>, vector<1x64xf32>
    %c0_11 = arith.constant 0 : index
    %c0_12 = arith.constant 0 : index
    %7 = vector.load %arg9[%c0_11, %c0_12] : memref<1x64xf32, #tpu.memory_space<vmem>>, vector<1x64xf32>
    %c0_i32 = arith.constant 0 : i32
    %c0_13 = arith.constant 0 : index
    %c0_14 = arith.constant 0 : index
    %8 = vector.load %arg11[%c0_13, %c0_14] : memref<2x64xf32, #tpu.memory_space<vmem>>, vector<2x64xf32>
    %cst_15 = arith.constant dense<0.000000e+00> : vector<2x64xf32>
    %9 = tpu.matmul %8, %2, %cst_15 {dimension_numbers = #tpu.dot_dimension_numbers<[1], [0], [0], [1], [0, 0, 1, 1], [], []>} : vector<2x64xf32>, vector<64x64xf32>, vector<2x64xf32> -> vector<2x64xf32>
    %10 = vector.broadcast %5 : vector<1x64xf32> to vector<2x64xf32>
    %11 = arith.addf %9, %10 : vector<2x64xf32>
    %cst_16 = arith.constant dense<0.000000e+00> : vector<2x64xf32>
    %12 = tpu.matmul %8, %3, %cst_16 {dimension_numbers = #tpu.dot_dimension_numbers<[1], [0], [0], [1], [0, 0, 1, 1], [], []>} : vector<2x64xf32>, vector<64x64xf32>, vector<2x64xf32> -> vector<2x64xf32>
    %13 = vector.broadcast %6 : vector<1x64xf32> to vector<2x64xf32>
    %14 = arith.addf %12, %13 : vector<2x64xf32>
    %cst_17 = arith.constant dense<0.000000e+00> : vector<2x64xf32>
    %15 = tpu.matmul %8, %4, %cst_17 {dimension_numbers = #tpu.dot_dimension_numbers<[1], [0], [0], [1], [0, 0, 1, 1], [], []>} : vector<2x64xf32>, vector<64x64xf32>, vector<2x64xf32> -> vector<2x64xf32>
    %16 = vector.broadcast %7 : vector<1x64xf32> to vector<2x64xf32>
    %17 = arith.addf %15, %16 : vector<2x64xf32>
    %18 = arith.index_cast %c0_i32 : i32 to index
    %c0_18 = arith.constant 0 : index
    %c0_19 = arith.constant 0 : index
    %19 = vector.load %arg1[%18, %c0_18, %c0_19] : memref<16x2x64xf32, #tpu.memory_space<vmem>>, vector<1x2x64xf32>
    %20 = vector.shape_cast %19 : vector<1x2x64xf32> to vector<2x64xf32>
    %21 = arith.addf %20, %11 : vector<2x64xf32>
    %22 = arith.negf %21 : vector<2x64xf32>
    %23 = math.exp %22 : vector<2x64xf32>
    %cst_20 = arith.constant 1.000000e+00 : f32
    %24 = vector.broadcast %cst_20 : f32 to vector<2x64xf32>
    %25 = arith.addf %24, %23 : vector<2x64xf32>
    %26 = arith.divf %24, %25 : vector<2x64xf32>
    %27 = arith.index_cast %c0_i32 : i32 to index
    %c0_21 = arith.constant 0 : index
    %c0_22 = arith.constant 0 : index
    %28 = vector.load %arg2[%27, %c0_21, %c0_22] : memref<16x2x64xf32, #tpu.memory_space<vmem>>, vector<1x2x64xf32>
    %29 = vector.shape_cast %28 : vector<1x2x64xf32> to vector<2x64xf32>
    %30 = arith.addf %29, %14 : vector<2x64xf32>
    %31 = arith.negf %30 : vector<2x64xf32>
    %32 = math.exp %31 : vector<2x64xf32>
    %cst_23 = arith.constant 1.000000e+00 : f32
    %33 = vector.broadcast %cst_23 : f32 to vector<2x64xf32>
    %34 = arith.addf %33, %32 : vector<2x64xf32>
    %35 = arith.divf %33, %34 : vector<2x64xf32>
    %36 = arith.index_cast %c0_i32 : i32 to index
    %c0_24 = arith.constant 0 : index
    %c0_25 = arith.constant 0 : index
    %37 = vector.load %arg3[%36, %c0_24, %c0_25] : memref<16x2x64xf32, #tpu.memory_space<vmem>>, vector<1x2x64xf32>
    %38 = vector.shape_cast %37 : vector<1x2x64xf32> to vector<2x64xf32>
    %39 = arith.mulf %26, %17 : vector<2x64xf32>
    %40 = arith.addf %38, %39 : vector<2x64xf32>
    %41 = math.tanh %40 : vector<2x64xf32>
    %cst_26 = arith.constant 1.000000e+00 : f32
    %42 = vector.broadcast %cst_26 : f32 to vector<2x64xf32>
    %43 = arith.subf %42, %35 : vector<2x64xf32>
    %44 = arith.mulf %43, %41 : vector<2x64xf32>
    %45 = arith.mulf %35, %8 : vector<2x64xf32>
    %46 = arith.addf %44, %45 : vector<2x64xf32>
    %c0_27 = arith.constant 0 : index
    %c0_28 = arith.constant 0 : index
    %47 = vector.load %arg11[%c0_27, %c0_28] : memref<2x64xf32, #tpu.memory_space<vmem>>, vector<2x64xf32>
    tpu.vector_store %arg11[%c0_27, %c0_28], %46 {strides = array<i32>} : memref<2x64xf32, #tpu.memory_space<vmem>>, vector<2x64xf32>,
    %48 = arith.index_cast %c0_i32 : i32 to index
    %c0_29 = arith.constant 0 : index
    %c0_30 = arith.constant 0 : index
    %49 = vector.load %arg10[%48, %c0_29, %c0_30] : memref<16x2x64xf32, #tpu.memory_space<vmem>>, vector<1x2x64xf32>
    %50 = vector.shape_cast %49 : vector<1x2x64xf32> to vector<2x64xf32>
    %51 = vector.shape_cast %46 : vector<2x64xf32> to vector<1x2x64xf32>
    tpu.vector_store %arg10[%48, %c0_29, %c0_30], %51 {strides = array<i32>} : memref<16x2x64xf32, #tpu.memory_space<vmem>>, vector<1x2x64xf32>,
    %c1_i32 = arith.constant 1 : i32
    %c0_31 = arith.constant 0 : index
    %c0_32 = arith.constant 0 : index
    %52 = vector.load %arg11[%c0_31, %c0_32] : memref<2x64xf32, #tpu.memory_space<vmem>>, vector<2x64xf32>
    %cst_33 = arith.constant dense<0.000000e+00> : vector<2x64xf32>
    %53 = tpu.matmul %52, %2, %cst_33 {dimension_numbers = #tpu.dot_dimension_numbers<[1], [0], [0], [1], [0, 0, 1, 1], [], []>} : vector<2x64xf32>, vector<64x64xf32>, vector<2x64xf32> -> vector<2x64xf32>
    %54 = vector.broadcast %5 : vector<1x64xf32> to vector<2x64xf32>
    %55 = arith.addf %53, %54 : vector<2x64xf32>
    %cst_34 = arith.constant dense<0.000000e+00> : vector<2x64xf32>
    %56 = tpu.matmul %52, %3, %cst_34 {dimension_numbers = #tpu.dot_dimension_numbers<[1], [0], [0], [1], [0, 0, 1, 1], [], []>} : vector<2x64xf32>, vector<64x64xf32>, vector<2x64xf32> -> vector<2x64xf32>
    %57 = vector.broadcast %6 : vector<1x64xf32> to vector<2x64xf32>
    %58 = arith.addf %56, %57 : vector<2x64xf32>
    %cst_35 = arith.constant dense<0.000000e+00> : vector<2x64xf32>
    %59 = tpu.matmul %52, %4, %cst_35 {dimension_numbers = #tpu.dot_dimension_numbers<[1], [0], [0], [1], [0, 0, 1, 1], [], []>} : vector<2x64xf32>, vector<64x64xf32>, vector<2x64xf32> -> vector<2x64xf32>
    %60 = vector.broadcast %7 : vector<1x64xf32> to vector<2x64xf32>
    %61 = arith.addf %59, %60 : vector<2x64xf32>
    %62 = arith.index_cast %c1_i32 : i32 to index
    %c0_36 = arith.constant 0 : index
    %c0_37 = arith.constant 0 : index
    %63 = vector.load %arg1[%62, %c0_36, %c0_37] : memref<16x2x64xf32, #tpu.memory_space<vmem>>, vector<1x2x64xf32>
    %64 = vector.shape_cast %63 : vector<1x2x64xf32> to vector<2x64xf32>
    %65 = arith.addf %64, %55 : vector<2x64xf32>
    %66 = arith.negf %65 : vector<2x64xf32>
    %67 = math.exp %66 : vector<2x64xf32>
    %cst_38 = arith.constant 1.000000e+00 : f32
    %68 = vector.broadcast %cst_38 : f32 to vector<2x64xf32>
    %69 = arith.addf %68, %67 : vector<2x64xf32>
    %70 = arith.divf %68, %69 : vector<2x64xf32>
    %71 = arith.index_cast %c1_i32 : i32 to index
    %c0_39 = arith.constant 0 : index
    %c0_40 = arith.constant 0 : index
    %72 = vector.load %arg2[%71, %c0_39, %c0_40] : memref<16x2x64xf32, #tpu.memory_space<vmem>>, vector<1x2x64xf32>
    %73 = vector.shape_cast %72 : vector<1x2x64xf32> to vector<2x64xf32>
    %74 = arith.addf %73, %58 : vector<2x64xf32>
    %75 = arith.negf %74 : vector<2x64xf32>
    %76 = math.exp %75 : vector<2x64xf32>
    %cst_41 = arith.constant 1.000000e+00 : f32
    %77 = vector.broadcast %cst_41 : f32 to vector<2x64xf32>
    %78 = arith.addf %77, %76 : vector<2x64xf32>
    %79 = arith.divf %77, %78 : vector<2x64xf32>
    %80 = arith.index_cast %c1_i32 : i32 to index
    %c0_42 = arith.constant 0 : index
    %c0_43 = arith.constant 0 : index
    %81 = vector.load %arg3[%80, %c0_42, %c0_43] : memref<16x2x64xf32, #tpu.memory_space<vmem>>, vector<1x2x64xf32>
    %82 = vector.shape_cast %81 : vector<1x2x64xf32> to vector<2x64xf32>
    %83 = arith.mulf %70, %61 : vector<2x64xf32>
    %84 = arith.addf %82, %83 : vector<2x64xf32>
    %85 = math.tanh %84 : vector<2x64xf32>
    %cst_44 = arith.constant 1.000000e+00 : f32
    %86 = vector.broadcast %cst_44 : f32 to vector<2x64xf32>
    %87 = arith.subf %86, %79 : vector<2x64xf32>
    %88 = arith.mulf %87, %85 : vector<2x64xf32>
    %89 = arith.mulf %79, %52 : vector<2x64xf32>
    %90 = arith.addf %88, %89 : vector<2x64xf32>
    %c0_45 = arith.constant 0 : index
    %c0_46 = arith.constant 0 : index
    %91 = vector.load %arg11[%c0_45, %c0_46] : memref<2x64xf32, #tpu.memory_space<vmem>>, vector<2x64xf32>
    tpu.vector_store %arg11[%c0_45, %c0_46], %90 {strides = array<i32>} : memref<2x64xf32, #tpu.memory_space<vmem>>, vector<2x64xf32>,
    %92 = arith.index_cast %c1_i32 : i32 to index
    %c0_47 = arith.constant 0 : index
    %c0_48 = arith.constant 0 : index
    %93 = vector.load %arg10[%92, %c0_47, %c0_48] : memref<16x2x64xf32, #tpu.memory_space<vmem>>, vector<1x2x64xf32>
    %94 = vector.shape_cast %93 : vector<1x2x64xf32> to vector<2x64xf32>
    %95 = vector.shape_cast %90 : vector<2x64xf32> to vector<1x2x64xf32>
    tpu.vector_store %arg10[%92, %c0_47, %c0_48], %95 {strides = array<i32>} : memref<16x2x64xf32, #tpu.memory_space<vmem>>, vector<1x2x64xf32>,
    %c2_i32 = arith.constant 2 : i32
    %c0_49 = arith.constant 0 : index
    %c0_50 = arith.constant 0 : index
    %96 = vector.load %arg11[%c0_49, %c0_50] : memref<2x64xf32, #tpu.memory_space<vmem>>, vector<2x64xf32>
    %cst_51 = arith.constant dense<0.000000e+00> : vector<2x64xf32>
    %97 = tpu.matmul %96, %2, %cst_51 {dimension_numbers = #tpu.dot_dimension_numbers<[1], [0], [0], [1], [0, 0, 1, 1], [], []>} : vector<2x64xf32>, vector<64x64xf32>, vector<2x64xf32> -> vector<2x64xf32>
    %98 = vector.broadcast %5 : vector<1x64xf32> to vector<2x64xf32>
    %99 = arith.addf %97, %98 : vector<2x64xf32>
    %cst_52 = arith.constant dense<0.000000e+00> : vector<2x64xf32>
    %100 = tpu.matmul %96, %3, %cst_52 {dimension_numbers = #tpu.dot_dimension_numbers<[1], [0], [0], [1], [0, 0, 1, 1], [], []>} : vector<2x64xf32>, vector<64x64xf32>, vector<2x64xf32> -> vector<2x64xf32>
    %101 = vector.broadcast %6 : vector<1x64xf32> to vector<2x64xf32>
    %102 = arith.addf %100, %101 : vector<2x64xf32>
    %cst_53 = arith.constant dense<0.000000e+00> : vector<2x64xf32>
    %103 = tpu.matmul %96, %4, %cst_53 {dimension_numbers = #tpu.dot_dimension_numbers<[1], [0], [0], [1], [0, 0, 1, 1], [], []>} : vector<2x64xf32>, vector<64x64xf32>, vector<2x64xf32> -> vector<2x64xf32>
    %104 = vector.broadcast %7 : vector<1x64xf32> to vector<2x64xf32>
    %105 = arith.addf %103, %104 : vector<2x64xf32>
    %106 = arith.index_cast %c2_i32 : i32 to index
    %c0_54 = arith.constant 0 : index
    %c0_55 = arith.constant 0 : index
    %107 = vector.load %arg1[%106, %c0_54, %c0_55] : memref<16x2x64xf32, #tpu.memory_space<vmem>>, vector<1x2x64xf32>
    %108 = vector.shape_cast %107 : vector<1x2x64xf32> to vector<2x64xf32>
    %109 = arith.addf %108, %99 : vector<2x64xf32>
    %110 = arith.negf %109 : vector<2x64xf32>
    %111 = math.exp %110 : vector<2x64xf32>
    %cst_56 = arith.constant 1.000000e+00 : f32
    %112 = vector.broadcast %cst_56 : f32 to vector<2x64xf32>
    %113 = arith.addf %112, %111 : vector<2x64xf32>
    %114 = arith.divf %112, %113 : vector<2x64xf32>
    %115 = arith.index_cast %c2_i32 : i32 to index
    %c0_57 = arith.constant 0 : index
    %c0_58 = arith.constant 0 : index
    %116 = vector.load %arg2[%115, %c0_57, %c0_58] : memref<16x2x64xf32, #tpu.memory_space<vmem>>, vector<1x2x64xf32>
    %117 = vector.shape_cast %116 : vector<1x2x64xf32> to vector<2x64xf32>
    %118 = arith.addf %117, %102 : vector<2x64xf32>
    %119 = arith.negf %118 : vector<2x64xf32>
    %120 = math.exp %119 : vector<2x64xf32>
    %cst_59 = arith.constant 1.000000e+00 : f32
    %121 = vector.broadcast %cst_59 : f32 to vector<2x64xf32>
    %122 = arith.addf %121, %120 : vector<2x64xf32>
    %123 = arith.divf %121, %122 : vector<2x64xf32>
    %124 = arith.index_cast %c2_i32 : i32 to index
    %c0_60 = arith.constant 0 : index
    %c0_61 = arith.constant 0 : index
    %125 = vector.load %arg3[%124, %c0_60, %c0_61] : memref<16x2x64xf32, #tpu.memory_space<vmem>>, vector<1x2x64xf32>
    %126 = vector.shape_cast %125 : vector<1x2x64xf32> to vector<2x64xf32>
    %127 = arith.mulf %114, %105 : vector<2x64xf32>
    %128 = arith.addf %126, %127 : vector<2x64xf32>
    %129 = math.tanh %128 : vector<2x64xf32>
    %cst_62 = arith.constant 1.000000e+00 : f32
    %130 = vector.broadcast %cst_62 : f32 to vector<2x64xf32>
    %131 = arith.subf %130, %123 : vector<2x64xf32>
    %132 = arith.mulf %131, %129 : vector<2x64xf32>
    %133 = arith.mulf %123, %96 : vector<2x64xf32>
    %134 = arith.addf %132, %133 : vector<2x64xf32>
    %c0_63 = arith.constant 0 : index
    %c0_64 = arith.constant 0 : index
    %135 = vector.load %arg11[%c0_63, %c0_64] : memref<2x64xf32, #tpu.memory_space<vmem>>, vector<2x64xf32>
    tpu.vector_store %arg11[%c0_63, %c0_64], %134 {strides = array<i32>} : memref<2x64xf32, #tpu.memory_space<vmem>>, vector<2x64xf32>,
    %136 = arith.index_cast %c2_i32 : i32 to index
    %c0_65 = arith.constant 0 : index
    %c0_66 = arith.constant 0 : index
    %137 = vector.load %arg10[%136, %c0_65, %c0_66] : memref<16x2x64xf32, #tpu.memory_space<vmem>>, vector<1x2x64xf32>
    %138 = vector.shape_cast %137 : vector<1x2x64xf32> to vector<2x64xf32>
    %139 = vector.shape_cast %134 : vector<2x64xf32> to vector<1x2x64xf32>
    tpu.vector_store %arg10[%136, %c0_65, %c0_66], %139 {strides = array<i32>} : memref<16x2x64xf32, #tpu.memory_space<vmem>>, vector<1x2x64xf32>,
    %c3_i32 = arith.constant 3 : i32
    %c0_67 = arith.constant 0 : index
    %c0_68 = arith.constant 0 : index
    %140 = vector.load %arg11[%c0_67, %c0_68] : memref<2x64xf32, #tpu.memory_space<vmem>>, vector<2x64xf32>
    %cst_69 = arith.constant dense<0.000000e+00> : vector<2x64xf32>
    %141 = tpu.matmul %140, %2, %cst_69 {dimension_numbers = #tpu.dot_dimension_numbers<[1], [0], [0], [1], [0, 0, 1, 1], [], []>} : vector<2x64xf32>, vector<64x64xf32>, vector<2x64xf32> -> vector<2x64xf32>
    %142 = vector.broadcast %5 : vector<1x64xf32> to vector<2x64xf32>
    %143 = arith.addf %141, %142 : vector<2x64xf32>
    %cst_70 = arith.constant dense<0.000000e+00> : vector<2x64xf32>
    %144 = tpu.matmul %140, %3, %cst_70 {dimension_numbers = #tpu.dot_dimension_numbers<[1], [0], [0], [1], [0, 0, 1, 1], [], []>} : vector<2x64xf32>, vector<64x64xf32>, vector<2x64xf32> -> vector<2x64xf32>
    %145 = vector.broadcast %6 : vector<1x64xf32> to vector<2x64xf32>
    %146 = arith.addf %144, %145 : vector<2x64xf32>
    %cst_71 = arith.constant dense<0.000000e+00> : vector<2x64xf32>
    %147 = tpu.matmul %140, %4, %cst_71 {dimension_numbers = #tpu.dot_dimension_numbers<[1], [0], [0], [1], [0, 0, 1, 1], [], []>} : vector<2x64xf32>, vector<64x64xf32>, vector<2x64xf32> -> vector<2x64xf32>
    %148 = vector.broadcast %7 : vector<1x64xf32> to vector<2x64xf32>
    %149 = arith.addf %147, %148 : vector<2x64xf32>
    %150 = arith.index_cast %c3_i32 : i32 to index
    %c0_72 = arith.constant 0 : index
    %c0_73 = arith.constant 0 : index
    %151 = vector.load %arg1[%150, %c0_72, %c0_73] : memref<16x2x64xf32, #tpu.memory_space<vmem>>, vector<1x2x64xf32>
    %152 = vector.shape_cast %151 : vector<1x2x64xf32> to vector<2x64xf32>
    %153 = arith.addf %152, %143 : vector<2x64xf32>
    %154 = arith.negf %153 : vector<2x64xf32>
    %155 = math.exp %154 : vector<2x64xf32>
    %cst_74 = arith.constant 1.000000e+00 : f32
    %156 = vector.broadcast %cst_74 : f32 to vector<2x64xf32>
    %157 = arith.addf %156, %155 : vector<2x64xf32>
    %158 = arith.divf %156, %157 : vector<2x64xf32>
    %159 = arith.index_cast %c3_i32 : i32 to index
    %c0_75 = arith.constant 0 : index
    %c0_76 = arith.constant 0 : index
    %160 = vector.load %arg2[%159, %c0_75, %c0_76] : memref<16x2x64xf32, #tpu.memory_space<vmem>>, vector<1x2x64xf32>
    %161 = vector.shape_cast %160 : vector<1x2x64xf32> to vector<2x64xf32>
    %162 = arith.addf %161, %146 : vector<2x64xf32>
    %163 = arith.negf %162 : vector<2x64xf32>
    %164 = math.exp %163 : vector<2x64xf32>
    %cst_77 = arith.constant 1.000000e+00 : f32
    %165 = vector.broadcast %cst_77 : f32 to vector<2x64xf32>
    %166 = arith.addf %165, %164 : vector<2x64xf32>
    %167 = arith.divf %165, %166 : vector<2x64xf32>
    %168 = arith.index_cast %c3_i32 : i32 to index
    %c0_78 = arith.constant 0 : index
    %c0_79 = arith.constant 0 : index
    %169 = vector.load %arg3[%168, %c0_78, %c0_79] : memref<16x2x64xf32, #tpu.memory_space<vmem>>, vector<1x2x64xf32>
    %170 = vector.shape_cast %169 : vector<1x2x64xf32> to vector<2x64xf32>
    %171 = arith.mulf %158, %149 : vector<2x64xf32>
    %172 = arith.addf %170, %171 : vector<2x64xf32>
    %173 = math.tanh %172 : vector<2x64xf32>
    %cst_80 = arith.constant 1.000000e+00 : f32
    %174 = vector.broadcast %cst_80 : f32 to vector<2x64xf32>
    %175 = arith.subf %174, %167 : vector<2x64xf32>
    %176 = arith.mulf %175, %173 : vector<2x64xf32>
    %177 = arith.mulf %167, %140 : vector<2x64xf32>
    %178 = arith.addf %176, %177 : vector<2x64xf32>
    %c0_81 = arith.constant 0 : index
    %c0_82 = arith.constant 0 : index
    %179 = vector.load %arg11[%c0_81, %c0_82] : memref<2x64xf32, #tpu.memory_space<vmem>>, vector<2x64xf32>
    tpu.vector_store %arg11[%c0_81, %c0_82], %178 {strides = array<i32>} : memref<2x64xf32, #tpu.memory_space<vmem>>, vector<2x64xf32>,
    %180 = arith.index_cast %c3_i32 : i32 to index
    %c0_83 = arith.constant 0 : index
    %c0_84 = arith.constant 0 : index
    %181 = vector.load %arg10[%180, %c0_83, %c0_84] : memref<16x2x64xf32, #tpu.memory_space<vmem>>, vector<1x2x64xf32>
    %182 = vector.shape_cast %181 : vector<1x2x64xf32> to vector<2x64xf32>
    %183 = vector.shape_cast %178 : vector<2x64xf32> to vector<1x2x64xf32>
    tpu.vector_store %arg10[%180, %c0_83, %c0_84], %183 {strides = array<i32>} : memref<16x2x64xf32, #tpu.memory_space<vmem>>, vector<1x2x64xf32>,
    %c4_i32 = arith.constant 4 : i32
    %c0_85 = arith.constant 0 : index
    %c0_86 = arith.constant 0 : index
    %184 = vector.load %arg11[%c0_85, %c0_86] : memref<2x64xf32, #tpu.memory_space<vmem>>, vector<2x64xf32>
    %cst_87 = arith.constant dense<0.000000e+00> : vector<2x64xf32>
    %185 = tpu.matmul %184, %2, %cst_87 {dimension_numbers = #tpu.dot_dimension_numbers<[1], [0], [0], [1], [0, 0, 1, 1], [], []>} : vector<2x64xf32>, vector<64x64xf32>, vector<2x64xf32> -> vector<2x64xf32>
    %186 = vector.broadcast %5 : vector<1x64xf32> to vector<2x64xf32>
    %187 = arith.addf %185, %186 : vector<2x64xf32>
    %cst_88 = arith.constant dense<0.000000e+00> : vector<2x64xf32>
    %188 = tpu.matmul %184, %3, %cst_88 {dimension_numbers = #tpu.dot_dimension_numbers<[1], [0], [0], [1], [0, 0, 1, 1], [], []>} : vector<2x64xf32>, vector<64x64xf32>, vector<2x64xf32> -> vector<2x64xf32>
    %189 = vector.broadcast %6 : vector<1x64xf32> to vector<2x64xf32>
    %190 = arith.addf %188, %189 : vector<2x64xf32>
    %cst_89 = arith.constant dense<0.000000e+00> : vector<2x64xf32>
    %191 = tpu.matmul %184, %4, %cst_89 {dimension_numbers = #tpu.dot_dimension_numbers<[1], [0], [0], [1], [0, 0, 1, 1], [], []>} : vector<2x64xf32>, vector<64x64xf32>, vector<2x64xf32> -> vector<2x64xf32>
    %192 = vector.broadcast %7 : vector<1x64xf32> to vector<2x64xf32>
    %193 = arith.addf %191, %192 : vector<2x64xf32>
    %194 = arith.index_cast %c4_i32 : i32 to index
    %c0_90 = arith.constant 0 : index
    %c0_91 = arith.constant 0 : index
    %195 = vector.load %arg1[%194, %c0_90, %c0_91] : memref<16x2x64xf32, #tpu.memory_space<vmem>>, vector<1x2x64xf32>
    %196 = vector.shape_cast %195 : vector<1x2x64xf32> to vector<2x64xf32>
    %197 = arith.addf %196, %187 : vector<2x64xf32>
    %198 = arith.negf %197 : vector<2x64xf32>
    %199 = math.exp %198 : vector<2x64xf32>
    %cst_92 = arith.constant 1.000000e+00 : f32
    %200 = vector.broadcast %cst_92 : f32 to vector<2x64xf32>
    %201 = arith.addf %200, %199 : vector<2x64xf32>
    %202 = arith.divf %200, %201 : vector<2x64xf32>
    %203 = arith.index_cast %c4_i32 : i32 to index
    %c0_93 = arith.constant 0 : index
    %c0_94 = arith.constant 0 : index
    %204 = vector.load %arg2[%203, %c0_93, %c0_94] : memref<16x2x64xf32, #tpu.memory_space<vmem>>, vector<1x2x64xf32>
    %205 = vector.shape_cast %204 : vector<1x2x64xf32> to vector<2x64xf32>
    %206 = arith.addf %205, %190 : vector<2x64xf32>
    %207 = arith.negf %206 : vector<2x64xf32>
    %208 = math.exp %207 : vector<2x64xf32>
    %cst_95 = arith.constant 1.000000e+00 : f32
    %209 = vector.broadcast %cst_95 : f32 to vector<2x64xf32>
    %210 = arith.addf %209, %208 : vector<2x64xf32>
    %211 = arith.divf %209, %210 : vector<2x64xf32>
    %212 = arith.index_cast %c4_i32 : i32 to index
    %c0_96 = arith.constant 0 : index
    %c0_97 = arith.constant 0 : index
    %213 = vector.load %arg3[%212, %c0_96, %c0_97] : memref<16x2x64xf32, #tpu.memory_space<vmem>>, vector<1x2x64xf32>
    %214 = vector.shape_cast %213 : vector<1x2x64xf32> to vector<2x64xf32>
    %215 = arith.mulf %202, %193 : vector<2x64xf32>
    %216 = arith.addf %214, %215 : vector<2x64xf32>
    %217 = math.tanh %216 : vector<2x64xf32>
    %cst_98 = arith.constant 1.000000e+00 : f32
    %218 = vector.broadcast %cst_98 : f32 to vector<2x64xf32>
    %219 = arith.subf %218, %211 : vector<2x64xf32>
    %220 = arith.mulf %219, %217 : vector<2x64xf32>
    %221 = arith.mulf %211, %184 : vector<2x64xf32>
    %222 = arith.addf %220, %221 : vector<2x64xf32>
    %c0_99 = arith.constant 0 : index
    %c0_100 = arith.constant 0 : index
    %223 = vector.load %arg11[%c0_99, %c0_100] : memref<2x64xf32, #tpu.memory_space<vmem>>, vector<2x64xf32>
    tpu.vector_store %arg11[%c0_99, %c0_100], %222 {strides = array<i32>} : memref<2x64xf32, #tpu.memory_space<vmem>>, vector<2x64xf32>,
    %224 = arith.index_cast %c4_i32 : i32 to index
    %c0_101 = arith.constant 0 : index
    %c0_102 = arith.constant 0 : index
    %225 = vector.load %arg10[%224, %c0_101, %c0_102] : memref<16x2x64xf32, #tpu.memory_space<vmem>>, vector<1x2x64xf32>
    %226 = vector.shape_cast %225 : vector<1x2x64xf32> to vector<2x64xf32>
    %227 = vector.shape_cast %222 : vector<2x64xf32> to vector<1x2x64xf32>
    tpu.vector_store %arg10[%224, %c0_101, %c0_102], %227 {strides = array<i32>} : memref<16x2x64xf32, #tpu.memory_space<vmem>>, vector<1x2x64xf32>,
    %c5_i32 = arith.constant 5 : i32
    %c0_103 = arith.constant 0 : index
    %c0_104 = arith.constant 0 : index
    %228 = vector.load %arg11[%c0_103, %c0_104] : memref<2x64xf32, #tpu.memory_space<vmem>>, vector<2x64xf32>
    %cst_105 = arith.constant dense<0.000000e+00> : vector<2x64xf32>
    %229 = tpu.matmul %228, %2, %cst_105 {dimension_numbers = #tpu.dot_dimension_numbers<[1], [0], [0], [1], [0, 0, 1, 1], [], []>} : vector<2x64xf32>, vector<64x64xf32>, vector<2x64xf32> -> vector<2x64xf32>
    %230 = vector.broadcast %5 : vector<1x64xf32> to vector<2x64xf32>
    %231 = arith.addf %229, %230 : vector<2x64xf32>
    %cst_106 = arith.constant dense<0.000000e+00> : vector<2x64xf32>
    %232 = tpu.matmul %228, %3, %cst_106 {dimension_numbers = #tpu.dot_dimension_numbers<[1], [0], [0], [1], [0, 0, 1, 1], [], []>} : vector<2x64xf32>, vector<64x64xf32>, vector<2x64xf32> -> vector<2x64xf32>
    %233 = vector.broadcast %6 : vector<1x64xf32> to vector<2x64xf32>
    %234 = arith.addf %232, %233 : vector<2x64xf32>
    %cst_107 = arith.constant dense<0.000000e+00> : vector<2x64xf32>
    %235 = tpu.matmul %228, %4, %cst_107 {dimension_numbers = #tpu.dot_dimension_numbers<[1], [0], [0], [1], [0, 0, 1, 1], [], []>} : vector<2x64xf32>, vector<64x64xf32>, vector<2x64xf32> -> vector<2x64xf32>
    %236 = vector.broadcast %7 : vector<1x64xf32> to vector<2x64xf32>
    %237 = arith.addf %235, %236 : vector<2x64xf32>
    %238 = arith.index_cast %c5_i32 : i32 to index
    %c0_108 = arith.constant 0 : index
    %c0_109 = arith.constant 0 : index
    %239 = vector.load %arg1[%238, %c0_108, %c0_109] : memref<16x2x64xf32, #tpu.memory_space<vmem>>, vector<1x2x64xf32>
    %240 = vector.shape_cast %239 : vector<1x2x64xf32> to vector<2x64xf32>
    %241 = arith.addf %240, %231 : vector<2x64xf32>
    %242 = arith.negf %241 : vector<2x64xf32>
    %243 = math.exp %242 : vector<2x64xf32>
    %cst_110 = arith.constant 1.000000e+00 : f32
    %244 = vector.broadcast %cst_110 : f32 to vector<2x64xf32>
    %245 = arith.addf %244, %243 : vector<2x64xf32>
    %246 = arith.divf %244, %245 : vector<2x64xf32>
    %247 = arith.index_cast %c5_i32 : i32 to index
    %c0_111 = arith.constant 0 : index
    %c0_112 = arith.constant 0 : index
    %248 = vector.load %arg2[%247, %c0_111, %c0_112] : memref<16x2x64xf32, #tpu.memory_space<vmem>>, vector<1x2x64xf32>
    %249 = vector.shape_cast %248 : vector<1x2x64xf32> to vector<2x64xf32>
    %250 = arith.addf %249, %234 : vector<2x64xf32>
    %251 = arith.negf %250 : vector<2x64xf32>
    %252 = math.exp %251 : vector<2x64xf32>
    %cst_113 = arith.constant 1.000000e+00 : f32
    %253 = vector.broadcast %cst_113 : f32 to vector<2x64xf32>
    %254 = arith.addf %253, %252 : vector<2x64xf32>
    %255 = arith.divf %253, %254 : vector<2x64xf32>
    %256 = arith.index_cast %c5_i32 : i32 to index
    %c0_114 = arith.constant 0 : index
    %c0_115 = arith.constant 0 : index
    %257 = vector.load %arg3[%256, %c0_114, %c0_115] : memref<16x2x64xf32, #tpu.memory_space<vmem>>, vector<1x2x64xf32>
    %258 = vector.shape_cast %257 : vector<1x2x64xf32> to vector<2x64xf32>
    %259 = arith.mulf %246, %237 : vector<2x64xf32>
    %260 = arith.addf %258, %259 : vector<2x64xf32>
    %261 = math.tanh %260 : vector<2x64xf32>
    %cst_116 = arith.constant 1.000000e+00 : f32
    %262 = vector.broadcast %cst_116 : f32 to vector<2x64xf32>
    %263 = arith.subf %262, %255 : vector<2x64xf32>
    %264 = arith.mulf %263, %261 : vector<2x64xf32>
    %265 = arith.mulf %255, %228 : vector<2x64xf32>
    %266 = arith.addf %264, %265 : vector<2x64xf32>
    %c0_117 = arith.constant 0 : index
    %c0_118 = arith.constant 0 : index
    %267 = vector.load %arg11[%c0_117, %c0_118] : memref<2x64xf32, #tpu.memory_space<vmem>>, vector<2x64xf32>
    tpu.vector_store %arg11[%c0_117, %c0_118], %266 {strides = array<i32>} : memref<2x64xf32, #tpu.memory_space<vmem>>, vector<2x64xf32>,
    %268 = arith.index_cast %c5_i32 : i32 to index
    %c0_119 = arith.constant 0 : index
    %c0_120 = arith.constant 0 : index
    %269 = vector.load %arg10[%268, %c0_119, %c0_120] : memref<16x2x64xf32, #tpu.memory_space<vmem>>, vector<1x2x64xf32>
    %270 = vector.shape_cast %269 : vector<1x2x64xf32> to vector<2x64xf32>
    %271 = vector.shape_cast %266 : vector<2x64xf32> to vector<1x2x64xf32>
    tpu.vector_store %arg10[%268, %c0_119, %c0_120], %271 {strides = array<i32>} : memref<16x2x64xf32, #tpu.memory_space<vmem>>, vector<1x2x64xf32>,
    %c6_i32 = arith.constant 6 : i32
    %c0_121 = arith.constant 0 : index
    %c0_122 = arith.constant 0 : index
    %272 = vector.load %arg11[%c0_121, %c0_122] : memref<2x64xf32, #tpu.memory_space<vmem>>, vector<2x64xf32>
    %cst_123 = arith.constant dense<0.000000e+00> : vector<2x64xf32>
    %273 = tpu.matmul %272, %2, %cst_123 {dimension_numbers = #tpu.dot_dimension_numbers<[1], [0], [0], [1], [0, 0, 1, 1], [], []>} : vector<2x64xf32>, vector<64x64xf32>, vector<2x64xf32> -> vector<2x64xf32>
    %274 = vector.broadcast %5 : vector<1x64xf32> to vector<2x64xf32>
    %275 = arith.addf %273, %274 : vector<2x64xf32>
    %cst_124 = arith.constant dense<0.000000e+00> : vector<2x64xf32>
    %276 = tpu.matmul %272, %3, %cst_124 {dimension_numbers = #tpu.dot_dimension_numbers<[1], [0], [0], [1], [0, 0, 1, 1], [], []>} : vector<2x64xf32>, vector<64x64xf32>, vector<2x64xf32> -> vector<2x64xf32>
    %277 = vector.broadcast %6 : vector<1x64xf32> to vector<2x64xf32>
    %278 = arith.addf %276, %277 : vector<2x64xf32>
    %cst_125 = arith.constant dense<0.000000e+00> : vector<2x64xf32>
    %279 = tpu.matmul %272, %4, %cst_125 {dimension_numbers = #tpu.dot_dimension_numbers<[1], [0], [0], [1], [0, 0, 1, 1], [], []>} : vector<2x64xf32>, vector<64x64xf32>, vector<2x64xf32> -> vector<2x64xf32>
    %280 = vector.broadcast %7 : vector<1x64xf32> to vector<2x64xf32>
    %281 = arith.addf %279, %280 : vector<2x64xf32>
    %282 = arith.index_cast %c6_i32 : i32 to index
    %c0_126 = arith.constant 0 : index
    %c0_127 = arith.constant 0 : index
    %283 = vector.load %arg1[%282, %c0_126, %c0_127] : memref<16x2x64xf32, #tpu.memory_space<vmem>>, vector<1x2x64xf32>
    %284 = vector.shape_cast %283 : vector<1x2x64xf32> to vector<2x64xf32>
    %285 = arith.addf %284, %275 : vector<2x64xf32>
    %286 = arith.negf %285 : vector<2x64xf32>
    %287 = math.exp %286 : vector<2x64xf32>
    %cst_128 = arith.constant 1.000000e+00 : f32
    %288 = vector.broadcast %cst_128 : f32 to vector<2x64xf32>
    %289 = arith.addf %288, %287 : vector<2x64xf32>
    %290 = arith.divf %288, %289 : vector<2x64xf32>
    %291 = arith.index_cast %c6_i32 : i32 to index
    %c0_129 = arith.constant 0 : index
    %c0_130 = arith.constant 0 : index
    %292 = vector.load %arg2[%291, %c0_129, %c0_130] : memref<16x2x64xf32, #tpu.memory_space<vmem>>, vector<1x2x64xf32>
    %293 = vector.shape_cast %292 : vector<1x2x64xf32> to vector<2x64xf32>
    %294 = arith.addf %293, %278 : vector<2x64xf32>
    %295 = arith.negf %294 : vector<2x64xf32>
    %296 = math.exp %295 : vector<2x64xf32>
    %cst_131 = arith.constant 1.000000e+00 : f32
    %297 = vector.broadcast %cst_131 : f32 to vector<2x64xf32>
    %298 = arith.addf %297, %296 : vector<2x64xf32>
    %299 = arith.divf %297, %298 : vector<2x64xf32>
    %300 = arith.index_cast %c6_i32 : i32 to index
    %c0_132 = arith.constant 0 : index
    %c0_133 = arith.constant 0 : index
    %301 = vector.load %arg3[%300, %c0_132, %c0_133] : memref<16x2x64xf32, #tpu.memory_space<vmem>>, vector<1x2x64xf32>
    %302 = vector.shape_cast %301 : vector<1x2x64xf32> to vector<2x64xf32>
    %303 = arith.mulf %290, %281 : vector<2x64xf32>
    %304 = arith.addf %302, %303 : vector<2x64xf32>
    %305 = math.tanh %304 : vector<2x64xf32>
    %cst_134 = arith.constant 1.000000e+00 : f32
    %306 = vector.broadcast %cst_134 : f32 to vector<2x64xf32>
    %307 = arith.subf %306, %299 : vector<2x64xf32>
    %308 = arith.mulf %307, %305 : vector<2x64xf32>
    %309 = arith.mulf %299, %272 : vector<2x64xf32>
    %310 = arith.addf %308, %309 : vector<2x64xf32>
    %c0_135 = arith.constant 0 : index
    %c0_136 = arith.constant 0 : index
    %311 = vector.load %arg11[%c0_135, %c0_136] : memref<2x64xf32, #tpu.memory_space<vmem>>, vector<2x64xf32>
    tpu.vector_store %arg11[%c0_135, %c0_136], %310 {strides = array<i32>} : memref<2x64xf32, #tpu.memory_space<vmem>>, vector<2x64xf32>,
    %312 = arith.index_cast %c6_i32 : i32 to index
    %c0_137 = arith.constant 0 : index
    %c0_138 = arith.constant 0 : index
    %313 = vector.load %arg10[%312, %c0_137, %c0_138] : memref<16x2x64xf32, #tpu.memory_space<vmem>>, vector<1x2x64xf32>
    %314 = vector.shape_cast %313 : vector<1x2x64xf32> to vector<2x64xf32>
    %315 = vector.shape_cast %310 : vector<2x64xf32> to vector<1x2x64xf32>
    tpu.vector_store %arg10[%312, %c0_137, %c0_138], %315 {strides = array<i32>} : memref<16x2x64xf32, #tpu.memory_space<vmem>>, vector<1x2x64xf32>,
    %c7_i32 = arith.constant 7 : i32
    %c0_139 = arith.constant 0 : index
    %c0_140 = arith.constant 0 : index
    %316 = vector.load %arg11[%c0_139, %c0_140] : memref<2x64xf32, #tpu.memory_space<vmem>>, vector<2x64xf32>
    %cst_141 = arith.constant dense<0.000000e+00> : vector<2x64xf32>
    %317 = tpu.matmul %316, %2, %cst_141 {dimension_numbers = #tpu.dot_dimension_numbers<[1], [0], [0], [1], [0, 0, 1, 1], [], []>} : vector<2x64xf32>, vector<64x64xf32>, vector<2x64xf32> -> vector<2x64xf32>
    %318 = vector.broadcast %5 : vector<1x64xf32> to vector<2x64xf32>
    %319 = arith.addf %317, %318 : vector<2x64xf32>
    %cst_142 = arith.constant dense<0.000000e+00> : vector<2x64xf32>
    %320 = tpu.matmul %316, %3, %cst_142 {dimension_numbers = #tpu.dot_dimension_numbers<[1], [0], [0], [1], [0, 0, 1, 1], [], []>} : vector<2x64xf32>, vector<64x64xf32>, vector<2x64xf32> -> vector<2x64xf32>
    %321 = vector.broadcast %6 : vector<1x64xf32> to vector<2x64xf32>
    %322 = arith.addf %320, %321 : vector<2x64xf32>
    %cst_143 = arith.constant dense<0.000000e+00> : vector<2x64xf32>
    %323 = tpu.matmul %316, %4, %cst_143 {dimension_numbers = #tpu.dot_dimension_numbers<[1], [0], [0], [1], [0, 0, 1, 1], [], []>} : vector<2x64xf32>, vector<64x64xf32>, vector<2x64xf32> -> vector<2x64xf32>
    %324 = vector.broadcast %7 : vector<1x64xf32> to vector<2x64xf32>
    %325 = arith.addf %323, %324 : vector<2x64xf32>
    %326 = arith.index_cast %c7_i32 : i32 to index
    %c0_144 = arith.constant 0 : index
    %c0_145 = arith.constant 0 : index
    %327 = vector.load %arg1[%326, %c0_144, %c0_145] : memref<16x2x64xf32, #tpu.memory_space<vmem>>, vector<1x2x64xf32>
    %328 = vector.shape_cast %327 : vector<1x2x64xf32> to vector<2x64xf32>
    %329 = arith.addf %328, %319 : vector<2x64xf32>
    %330 = arith.negf %329 : vector<2x64xf32>
    %331 = math.exp %330 : vector<2x64xf32>
    %cst_146 = arith.constant 1.000000e+00 : f32
    %332 = vector.broadcast %cst_146 : f32 to vector<2x64xf32>
    %333 = arith.addf %332, %331 : vector<2x64xf32>
    %334 = arith.divf %332, %333 : vector<2x64xf32>
    %335 = arith.index_cast %c7_i32 : i32 to index
    %c0_147 = arith.constant 0 : index
    %c0_148 = arith.constant 0 : index
    %336 = vector.load %arg2[%335, %c0_147, %c0_148] : memref<16x2x64xf32, #tpu.memory_space<vmem>>, vector<1x2x64xf32>
    %337 = vector.shape_cast %336 : vector<1x2x64xf32> to vector<2x64xf32>
    %338 = arith.addf %337, %322 : vector<2x64xf32>
    %339 = arith.negf %338 : vector<2x64xf32>
    %340 = math.exp %339 : vector<2x64xf32>
    %cst_149 = arith.constant 1.000000e+00 : f32
    %341 = vector.broadcast %cst_149 : f32 to vector<2x64xf32>
    %342 = arith.addf %341, %340 : vector<2x64xf32>
    %343 = arith.divf %341, %342 : vector<2x64xf32>
    %344 = arith.index_cast %c7_i32 : i32 to index
    %c0_150 = arith.constant 0 : index
    %c0_151 = arith.constant 0 : index
    %345 = vector.load %arg3[%344, %c0_150, %c0_151] : memref<16x2x64xf32, #tpu.memory_space<vmem>>, vector<1x2x64xf32>
    %346 = vector.shape_cast %345 : vector<1x2x64xf32> to vector<2x64xf32>
    %347 = arith.mulf %334, %325 : vector<2x64xf32>
    %348 = arith.addf %346, %347 : vector<2x64xf32>
    %349 = math.tanh %348 : vector<2x64xf32>
    %cst_152 = arith.constant 1.000000e+00 : f32
    %350 = vector.broadcast %cst_152 : f32 to vector<2x64xf32>
    %351 = arith.subf %350, %343 : vector<2x64xf32>
    %352 = arith.mulf %351, %349 : vector<2x64xf32>
    %353 = arith.mulf %343, %316 : vector<2x64xf32>
    %354 = arith.addf %352, %353 : vector<2x64xf32>
    %c0_153 = arith.constant 0 : index
    %c0_154 = arith.constant 0 : index
    %355 = vector.load %arg11[%c0_153, %c0_154] : memref<2x64xf32, #tpu.memory_space<vmem>>, vector<2x64xf32>
    tpu.vector_store %arg11[%c0_153, %c0_154], %354 {strides = array<i32>} : memref<2x64xf32, #tpu.memory_space<vmem>>, vector<2x64xf32>,
    %356 = arith.index_cast %c7_i32 : i32 to index
    %c0_155 = arith.constant 0 : index
    %c0_156 = arith.constant 0 : index
    %357 = vector.load %arg10[%356, %c0_155, %c0_156] : memref<16x2x64xf32, #tpu.memory_space<vmem>>, vector<1x2x64xf32>
    %358 = vector.shape_cast %357 : vector<1x2x64xf32> to vector<2x64xf32>
    %359 = vector.shape_cast %354 : vector<2x64xf32> to vector<1x2x64xf32>
    tpu.vector_store %arg10[%356, %c0_155, %c0_156], %359 {strides = array<i32>} : memref<16x2x64xf32, #tpu.memory_space<vmem>>, vector<1x2x64xf32>,
    %c8_i32 = arith.constant 8 : i32
    %c0_157 = arith.constant 0 : index
    %c0_158 = arith.constant 0 : index
    %360 = vector.load %arg11[%c0_157, %c0_158] : memref<2x64xf32, #tpu.memory_space<vmem>>, vector<2x64xf32>
    %cst_159 = arith.constant dense<0.000000e+00> : vector<2x64xf32>
    %361 = tpu.matmul %360, %2, %cst_159 {dimension_numbers = #tpu.dot_dimension_numbers<[1], [0], [0], [1], [0, 0, 1, 1], [], []>} : vector<2x64xf32>, vector<64x64xf32>, vector<2x64xf32> -> vector<2x64xf32>
    %362 = vector.broadcast %5 : vector<1x64xf32> to vector<2x64xf32>
    %363 = arith.addf %361, %362 : vector<2x64xf32>
    %cst_160 = arith.constant dense<0.000000e+00> : vector<2x64xf32>
    %364 = tpu.matmul %360, %3, %cst_160 {dimension_numbers = #tpu.dot_dimension_numbers<[1], [0], [0], [1], [0, 0, 1, 1], [], []>} : vector<2x64xf32>, vector<64x64xf32>, vector<2x64xf32> -> vector<2x64xf32>
    %365 = vector.broadcast %6 : vector<1x64xf32> to vector<2x64xf32>
    %366 = arith.addf %364, %365 : vector<2x64xf32>
    %cst_161 = arith.constant dense<0.000000e+00> : vector<2x64xf32>
    %367 = tpu.matmul %360, %4, %cst_161 {dimension_numbers = #tpu.dot_dimension_numbers<[1], [0], [0], [1], [0, 0, 1, 1], [], []>} : vector<2x64xf32>, vector<64x64xf32>, vector<2x64xf32> -> vector<2x64xf32>
    %368 = vector.broadcast %7 : vector<1x64xf32> to vector<2x64xf32>
    %369 = arith.addf %367, %368 : vector<2x64xf32>
    %370 = arith.index_cast %c8_i32 : i32 to index
    %c0_162 = arith.constant 0 : index
    %c0_163 = arith.constant 0 : index
    %371 = vector.load %arg1[%370, %c0_162, %c0_163] : memref<16x2x64xf32, #tpu.memory_space<vmem>>, vector<1x2x64xf32>
    %372 = vector.shape_cast %371 : vector<1x2x64xf32> to vector<2x64xf32>
    %373 = arith.addf %372, %363 : vector<2x64xf32>
    %374 = arith.negf %373 : vector<2x64xf32>
    %375 = math.exp %374 : vector<2x64xf32>
    %cst_164 = arith.constant 1.000000e+00 : f32
    %376 = vector.broadcast %cst_164 : f32 to vector<2x64xf32>
    %377 = arith.addf %376, %375 : vector<2x64xf32>
    %378 = arith.divf %376, %377 : vector<2x64xf32>
    %379 = arith.index_cast %c8_i32 : i32 to index
    %c0_165 = arith.constant 0 : index
    %c0_166 = arith.constant 0 : index
    %380 = vector.load %arg2[%379, %c0_165, %c0_166] : memref<16x2x64xf32, #tpu.memory_space<vmem>>, vector<1x2x64xf32>
    %381 = vector.shape_cast %380 : vector<1x2x64xf32> to vector<2x64xf32>
    %382 = arith.addf %381, %366 : vector<2x64xf32>
    %383 = arith.negf %382 : vector<2x64xf32>
    %384 = math.exp %383 : vector<2x64xf32>
    %cst_167 = arith.constant 1.000000e+00 : f32
    %385 = vector.broadcast %cst_167 : f32 to vector<2x64xf32>
    %386 = arith.addf %385, %384 : vector<2x64xf32>
    %387 = arith.divf %385, %386 : vector<2x64xf32>
    %388 = arith.index_cast %c8_i32 : i32 to index
    %c0_168 = arith.constant 0 : index
    %c0_169 = arith.constant 0 : index
    %389 = vector.load %arg3[%388, %c0_168, %c0_169] : memref<16x2x64xf32, #tpu.memory_space<vmem>>, vector<1x2x64xf32>
    %390 = vector.shape_cast %389 : vector<1x2x64xf32> to vector<2x64xf32>
    %391 = arith.mulf %378, %369 : vector<2x64xf32>
    %392 = arith.addf %390, %391 : vector<2x64xf32>
    %393 = math.tanh %392 : vector<2x64xf32>
    %cst_170 = arith.constant 1.000000e+00 : f32
    %394 = vector.broadcast %cst_170 : f32 to vector<2x64xf32>
    %395 = arith.subf %394, %387 : vector<2x64xf32>
    %396 = arith.mulf %395, %393 : vector<2x64xf32>
    %397 = arith.mulf %387, %360 : vector<2x64xf32>
    %398 = arith.addf %396, %397 : vector<2x64xf32>
    %c0_171 = arith.constant 0 : index
    %c0_172 = arith.constant 0 : index
    %399 = vector.load %arg11[%c0_171, %c0_172] : memref<2x64xf32, #tpu.memory_space<vmem>>, vector<2x64xf32>
    tpu.vector_store %arg11[%c0_171, %c0_172], %398 {strides = array<i32>} : memref<2x64xf32, #tpu.memory_space<vmem>>, vector<2x64xf32>,
    %400 = arith.index_cast %c8_i32 : i32 to index
    %c0_173 = arith.constant 0 : index
    %c0_174 = arith.constant 0 : index
    %401 = vector.load %arg10[%400, %c0_173, %c0_174] : memref<16x2x64xf32, #tpu.memory_space<vmem>>, vector<1x2x64xf32>
    %402 = vector.shape_cast %401 : vector<1x2x64xf32> to vector<2x64xf32>
    %403 = vector.shape_cast %398 : vector<2x64xf32> to vector<1x2x64xf32>
    tpu.vector_store %arg10[%400, %c0_173, %c0_174], %403 {strides = array<i32>} : memref<16x2x64xf32, #tpu.memory_space<vmem>>, vector<1x2x64xf32>,
    %c9_i32 = arith.constant 9 : i32
    %c0_175 = arith.constant 0 : index
    %c0_176 = arith.constant 0 : index
    %404 = vector.load %arg11[%c0_175, %c0_176] : memref<2x64xf32, #tpu.memory_space<vmem>>, vector<2x64xf32>
    %cst_177 = arith.constant dense<0.000000e+00> : vector<2x64xf32>
    %405 = tpu.matmul %404, %2, %cst_177 {dimension_numbers = #tpu.dot_dimension_numbers<[1], [0], [0], [1], [0, 0, 1, 1], [], []>} : vector<2x64xf32>, vector<64x64xf32>, vector<2x64xf32> -> vector<2x64xf32>
    %406 = vector.broadcast %5 : vector<1x64xf32> to vector<2x64xf32>
    %407 = arith.addf %405, %406 : vector<2x64xf32>
    %cst_178 = arith.constant dense<0.000000e+00> : vector<2x64xf32>
    %408 = tpu.matmul %404, %3, %cst_178 {dimension_numbers = #tpu.dot_dimension_numbers<[1], [0], [0], [1], [0, 0, 1, 1], [], []>} : vector<2x64xf32>, vector<64x64xf32>, vector<2x64xf32> -> vector<2x64xf32>
    %409 = vector.broadcast %6 : vector<1x64xf32> to vector<2x64xf32>
    %410 = arith.addf %408, %409 : vector<2x64xf32>
    %cst_179 = arith.constant dense<0.000000e+00> : vector<2x64xf32>
    %411 = tpu.matmul %404, %4, %cst_179 {dimension_numbers = #tpu.dot_dimension_numbers<[1], [0], [0], [1], [0, 0, 1, 1], [], []>} : vector<2x64xf32>, vector<64x64xf32>, vector<2x64xf32> -> vector<2x64xf32>
    %412 = vector.broadcast %7 : vector<1x64xf32> to vector<2x64xf32>
    %413 = arith.addf %411, %412 : vector<2x64xf32>
    %414 = arith.index_cast %c9_i32 : i32 to index
    %c0_180 = arith.constant 0 : index
    %c0_181 = arith.constant 0 : index
    %415 = vector.load %arg1[%414, %c0_180, %c0_181] : memref<16x2x64xf32, #tpu.memory_space<vmem>>, vector<1x2x64xf32>
    %416 = vector.shape_cast %415 : vector<1x2x64xf32> to vector<2x64xf32>
    %417 = arith.addf %416, %407 : vector<2x64xf32>
    %418 = arith.negf %417 : vector<2x64xf32>
    %419 = math.exp %418 : vector<2x64xf32>
    %cst_182 = arith.constant 1.000000e+00 : f32
    %420 = vector.broadcast %cst_182 : f32 to vector<2x64xf32>
    %421 = arith.addf %420, %419 : vector<2x64xf32>
    %422 = arith.divf %420, %421 : vector<2x64xf32>
    %423 = arith.index_cast %c9_i32 : i32 to index
    %c0_183 = arith.constant 0 : index
    %c0_184 = arith.constant 0 : index
    %424 = vector.load %arg2[%423, %c0_183, %c0_184] : memref<16x2x64xf32, #tpu.memory_space<vmem>>, vector<1x2x64xf32>
    %425 = vector.shape_cast %424 : vector<1x2x64xf32> to vector<2x64xf32>
    %426 = arith.addf %425, %410 : vector<2x64xf32>
    %427 = arith.negf %426 : vector<2x64xf32>
    %428 = math.exp %427 : vector<2x64xf32>
    %cst_185 = arith.constant 1.000000e+00 : f32
    %429 = vector.broadcast %cst_185 : f32 to vector<2x64xf32>
    %430 = arith.addf %429, %428 : vector<2x64xf32>
    %431 = arith.divf %429, %430 : vector<2x64xf32>
    %432 = arith.index_cast %c9_i32 : i32 to index
    %c0_186 = arith.constant 0 : index
    %c0_187 = arith.constant 0 : index
    %433 = vector.load %arg3[%432, %c0_186, %c0_187] : memref<16x2x64xf32, #tpu.memory_space<vmem>>, vector<1x2x64xf32>
    %434 = vector.shape_cast %433 : vector<1x2x64xf32> to vector<2x64xf32>
    %435 = arith.mulf %422, %413 : vector<2x64xf32>
    %436 = arith.addf %434, %435 : vector<2x64xf32>
    %437 = math.tanh %436 : vector<2x64xf32>
    %cst_188 = arith.constant 1.000000e+00 : f32
    %438 = vector.broadcast %cst_188 : f32 to vector<2x64xf32>
    %439 = arith.subf %438, %431 : vector<2x64xf32>
    %440 = arith.mulf %439, %437 : vector<2x64xf32>
    %441 = arith.mulf %431, %404 : vector<2x64xf32>
    %442 = arith.addf %440, %441 : vector<2x64xf32>
    %c0_189 = arith.constant 0 : index
    %c0_190 = arith.constant 0 : index
    %443 = vector.load %arg11[%c0_189, %c0_190] : memref<2x64xf32, #tpu.memory_space<vmem>>, vector<2x64xf32>
    tpu.vector_store %arg11[%c0_189, %c0_190], %442 {strides = array<i32>} : memref<2x64xf32, #tpu.memory_space<vmem>>, vector<2x64xf32>,
    %444 = arith.index_cast %c9_i32 : i32 to index
    %c0_191 = arith.constant 0 : index
    %c0_192 = arith.constant 0 : index
    %445 = vector.load %arg10[%444, %c0_191, %c0_192] : memref<16x2x64xf32, #tpu.memory_space<vmem>>, vector<1x2x64xf32>
    %446 = vector.shape_cast %445 : vector<1x2x64xf32> to vector<2x64xf32>
    %447 = vector.shape_cast %442 : vector<2x64xf32> to vector<1x2x64xf32>
    tpu.vector_store %arg10[%444, %c0_191, %c0_192], %447 {strides = array<i32>} : memref<16x2x64xf32, #tpu.memory_space<vmem>>, vector<1x2x64xf32>,
    %c10_i32 = arith.constant 10 : i32
    %c0_193 = arith.constant 0 : index
    %c0_194 = arith.constant 0 : index
    %448 = vector.load %arg11[%c0_193, %c0_194] : memref<2x64xf32, #tpu.memory_space<vmem>>, vector<2x64xf32>
    %cst_195 = arith.constant dense<0.000000e+00> : vector<2x64xf32>
    %449 = tpu.matmul %448, %2, %cst_195 {dimension_numbers = #tpu.dot_dimension_numbers<[1], [0], [0], [1], [0, 0, 1, 1], [], []>} : vector<2x64xf32>, vector<64x64xf32>, vector<2x64xf32> -> vector<2x64xf32>
    %450 = vector.broadcast %5 : vector<1x64xf32> to vector<2x64xf32>
    %451 = arith.addf %449, %450 : vector<2x64xf32>
    %cst_196 = arith.constant dense<0.000000e+00> : vector<2x64xf32>
    %452 = tpu.matmul %448, %3, %cst_196 {dimension_numbers = #tpu.dot_dimension_numbers<[1], [0], [0], [1], [0, 0, 1, 1], [], []>} : vector<2x64xf32>, vector<64x64xf32>, vector<2x64xf32> -> vector<2x64xf32>
    %453 = vector.broadcast %6 : vector<1x64xf32> to vector<2x64xf32>
    %454 = arith.addf %452, %453 : vector<2x64xf32>
    %cst_197 = arith.constant dense<0.000000e+00> : vector<2x64xf32>
    %455 = tpu.matmul %448, %4, %cst_197 {dimension_numbers = #tpu.dot_dimension_numbers<[1], [0], [0], [1], [0, 0, 1, 1], [], []>} : vector<2x64xf32>, vector<64x64xf32>, vector<2x64xf32> -> vector<2x64xf32>
    %456 = vector.broadcast %7 : vector<1x64xf32> to vector<2x64xf32>
    %457 = arith.addf %455, %456 : vector<2x64xf32>
    %458 = arith.index_cast %c10_i32 : i32 to index
    %c0_198 = arith.constant 0 : index
    %c0_199 = arith.constant 0 : index
    %459 = vector.load %arg1[%458, %c0_198, %c0_199] : memref<16x2x64xf32, #tpu.memory_space<vmem>>, vector<1x2x64xf32>
    %460 = vector.shape_cast %459 : vector<1x2x64xf32> to vector<2x64xf32>
    %461 = arith.addf %460, %451 : vector<2x64xf32>
    %462 = arith.negf %461 : vector<2x64xf32>
    %463 = math.exp %462 : vector<2x64xf32>
    %cst_200 = arith.constant 1.000000e+00 : f32
    %464 = vector.broadcast %cst_200 : f32 to vector<2x64xf32>
    %465 = arith.addf %464, %463 : vector<2x64xf32>
    %466 = arith.divf %464, %465 : vector<2x64xf32>
    %467 = arith.index_cast %c10_i32 : i32 to index
    %c0_201 = arith.constant 0 : index
    %c0_202 = arith.constant 0 : index
    %468 = vector.load %arg2[%467, %c0_201, %c0_202] : memref<16x2x64xf32, #tpu.memory_space<vmem>>, vector<1x2x64xf32>
    %469 = vector.shape_cast %468 : vector<1x2x64xf32> to vector<2x64xf32>
    %470 = arith.addf %469, %454 : vector<2x64xf32>
    %471 = arith.negf %470 : vector<2x64xf32>
    %472 = math.exp %471 : vector<2x64xf32>
    %cst_203 = arith.constant 1.000000e+00 : f32
    %473 = vector.broadcast %cst_203 : f32 to vector<2x64xf32>
    %474 = arith.addf %473, %472 : vector<2x64xf32>
    %475 = arith.divf %473, %474 : vector<2x64xf32>
    %476 = arith.index_cast %c10_i32 : i32 to index
    %c0_204 = arith.constant 0 : index
    %c0_205 = arith.constant 0 : index
    %477 = vector.load %arg3[%476, %c0_204, %c0_205] : memref<16x2x64xf32, #tpu.memory_space<vmem>>, vector<1x2x64xf32>
    %478 = vector.shape_cast %477 : vector<1x2x64xf32> to vector<2x64xf32>
    %479 = arith.mulf %466, %457 : vector<2x64xf32>
    %480 = arith.addf %478, %479 : vector<2x64xf32>
    %481 = math.tanh %480 : vector<2x64xf32>
    %cst_206 = arith.constant 1.000000e+00 : f32
    %482 = vector.broadcast %cst_206 : f32 to vector<2x64xf32>
    %483 = arith.subf %482, %475 : vector<2x64xf32>
    %484 = arith.mulf %483, %481 : vector<2x64xf32>
    %485 = arith.mulf %475, %448 : vector<2x64xf32>
    %486 = arith.addf %484, %485 : vector<2x64xf32>
    %c0_207 = arith.constant 0 : index
    %c0_208 = arith.constant 0 : index
    %487 = vector.load %arg11[%c0_207, %c0_208] : memref<2x64xf32, #tpu.memory_space<vmem>>, vector<2x64xf32>
    tpu.vector_store %arg11[%c0_207, %c0_208], %486 {strides = array<i32>} : memref<2x64xf32, #tpu.memory_space<vmem>>, vector<2x64xf32>,
    %488 = arith.index_cast %c10_i32 : i32 to index
    %c0_209 = arith.constant 0 : index
    %c0_210 = arith.constant 0 : index
    %489 = vector.load %arg10[%488, %c0_209, %c0_210] : memref<16x2x64xf32, #tpu.memory_space<vmem>>, vector<1x2x64xf32>
    %490 = vector.shape_cast %489 : vector<1x2x64xf32> to vector<2x64xf32>
    %491 = vector.shape_cast %486 : vector<2x64xf32> to vector<1x2x64xf32>
    tpu.vector_store %arg10[%488, %c0_209, %c0_210], %491 {strides = array<i32>} : memref<16x2x64xf32, #tpu.memory_space<vmem>>, vector<1x2x64xf32>,
    %c11_i32 = arith.constant 11 : i32
    %c0_211 = arith.constant 0 : index
    %c0_212 = arith.constant 0 : index
    %492 = vector.load %arg11[%c0_211, %c0_212] : memref<2x64xf32, #tpu.memory_space<vmem>>, vector<2x64xf32>
    %cst_213 = arith.constant dense<0.000000e+00> : vector<2x64xf32>
    %493 = tpu.matmul %492, %2, %cst_213 {dimension_numbers = #tpu.dot_dimension_numbers<[1], [0], [0], [1], [0, 0, 1, 1], [], []>} : vector<2x64xf32>, vector<64x64xf32>, vector<2x64xf32> -> vector<2x64xf32>
    %494 = vector.broadcast %5 : vector<1x64xf32> to vector<2x64xf32>
    %495 = arith.addf %493, %494 : vector<2x64xf32>
    %cst_214 = arith.constant dense<0.000000e+00> : vector<2x64xf32>
    %496 = tpu.matmul %492, %3, %cst_214 {dimension_numbers = #tpu.dot_dimension_numbers<[1], [0], [0], [1], [0, 0, 1, 1], [], []>} : vector<2x64xf32>, vector<64x64xf32>, vector<2x64xf32> -> vector<2x64xf32>
    %497 = vector.broadcast %6 : vector<1x64xf32> to vector<2x64xf32>
    %498 = arith.addf %496, %497 : vector<2x64xf32>
    %cst_215 = arith.constant dense<0.000000e+00> : vector<2x64xf32>
    %499 = tpu.matmul %492, %4, %cst_215 {dimension_numbers = #tpu.dot_dimension_numbers<[1], [0], [0], [1], [0, 0, 1, 1], [], []>} : vector<2x64xf32>, vector<64x64xf32>, vector<2x64xf32> -> vector<2x64xf32>
    %500 = vector.broadcast %7 : vector<1x64xf32> to vector<2x64xf32>
    %501 = arith.addf %499, %500 : vector<2x64xf32>
    %502 = arith.index_cast %c11_i32 : i32 to index
    %c0_216 = arith.constant 0 : index
    %c0_217 = arith.constant 0 : index
    %503 = vector.load %arg1[%502, %c0_216, %c0_217] : memref<16x2x64xf32, #tpu.memory_space<vmem>>, vector<1x2x64xf32>
    %504 = vector.shape_cast %503 : vector<1x2x64xf32> to vector<2x64xf32>
    %505 = arith.addf %504, %495 : vector<2x64xf32>
    %506 = arith.negf %505 : vector<2x64xf32>
    %507 = math.exp %506 : vector<2x64xf32>
    %cst_218 = arith.constant 1.000000e+00 : f32
    %508 = vector.broadcast %cst_218 : f32 to vector<2x64xf32>
    %509 = arith.addf %508, %507 : vector<2x64xf32>
    %510 = arith.divf %508, %509 : vector<2x64xf32>
    %511 = arith.index_cast %c11_i32 : i32 to index
    %c0_219 = arith.constant 0 : index
    %c0_220 = arith.constant 0 : index
    %512 = vector.load %arg2[%511, %c0_219, %c0_220] : memref<16x2x64xf32, #tpu.memory_space<vmem>>, vector<1x2x64xf32>
    %513 = vector.shape_cast %512 : vector<1x2x64xf32> to vector<2x64xf32>
    %514 = arith.addf %513, %498 : vector<2x64xf32>
    %515 = arith.negf %514 : vector<2x64xf32>
    %516 = math.exp %515 : vector<2x64xf32>
    %cst_221 = arith.constant 1.000000e+00 : f32
    %517 = vector.broadcast %cst_221 : f32 to vector<2x64xf32>
    %518 = arith.addf %517, %516 : vector<2x64xf32>
    %519 = arith.divf %517, %518 : vector<2x64xf32>
    %520 = arith.index_cast %c11_i32 : i32 to index
    %c0_222 = arith.constant 0 : index
    %c0_223 = arith.constant 0 : index
    %521 = vector.load %arg3[%520, %c0_222, %c0_223] : memref<16x2x64xf32, #tpu.memory_space<vmem>>, vector<1x2x64xf32>
    %522 = vector.shape_cast %521 : vector<1x2x64xf32> to vector<2x64xf32>
    %523 = arith.mulf %510, %501 : vector<2x64xf32>
    %524 = arith.addf %522, %523 : vector<2x64xf32>
    %525 = math.tanh %524 : vector<2x64xf32>
    %cst_224 = arith.constant 1.000000e+00 : f32
    %526 = vector.broadcast %cst_224 : f32 to vector<2x64xf32>
    %527 = arith.subf %526, %519 : vector<2x64xf32>
    %528 = arith.mulf %527, %525 : vector<2x64xf32>
    %529 = arith.mulf %519, %492 : vector<2x64xf32>
    %530 = arith.addf %528, %529 : vector<2x64xf32>
    %c0_225 = arith.constant 0 : index
    %c0_226 = arith.constant 0 : index
    %531 = vector.load %arg11[%c0_225, %c0_226] : memref<2x64xf32, #tpu.memory_space<vmem>>, vector<2x64xf32>
    tpu.vector_store %arg11[%c0_225, %c0_226], %530 {strides = array<i32>} : memref<2x64xf32, #tpu.memory_space<vmem>>, vector<2x64xf32>,
    %532 = arith.index_cast %c11_i32 : i32 to index
    %c0_227 = arith.constant 0 : index
    %c0_228 = arith.constant 0 : index
    %533 = vector.load %arg10[%532, %c0_227, %c0_228] : memref<16x2x64xf32, #tpu.memory_space<vmem>>, vector<1x2x64xf32>
    %534 = vector.shape_cast %533 : vector<1x2x64xf32> to vector<2x64xf32>
    %535 = vector.shape_cast %530 : vector<2x64xf32> to vector<1x2x64xf32>
    tpu.vector_store %arg10[%532, %c0_227, %c0_228], %535 {strides = array<i32>} : memref<16x2x64xf32, #tpu.memory_space<vmem>>, vector<1x2x64xf32>,
    %c12_i32 = arith.constant 12 : i32
    %c0_229 = arith.constant 0 : index
    %c0_230 = arith.constant 0 : index
    %536 = vector.load %arg11[%c0_229, %c0_230] : memref<2x64xf32, #tpu.memory_space<vmem>>, vector<2x64xf32>
    %cst_231 = arith.constant dense<0.000000e+00> : vector<2x64xf32>
    %537 = tpu.matmul %536, %2, %cst_231 {dimension_numbers = #tpu.dot_dimension_numbers<[1], [0], [0], [1], [0, 0, 1, 1], [], []>} : vector<2x64xf32>, vector<64x64xf32>, vector<2x64xf32> -> vector<2x64xf32>
    %538 = vector.broadcast %5 : vector<1x64xf32> to vector<2x64xf32>
    %539 = arith.addf %537, %538 : vector<2x64xf32>
    %cst_232 = arith.constant dense<0.000000e+00> : vector<2x64xf32>
    %540 = tpu.matmul %536, %3, %cst_232 {dimension_numbers = #tpu.dot_dimension_numbers<[1], [0], [0], [1], [0, 0, 1, 1], [], []>} : vector<2x64xf32>, vector<64x64xf32>, vector<2x64xf32> -> vector<2x64xf32>
    %541 = vector.broadcast %6 : vector<1x64xf32> to vector<2x64xf32>
    %542 = arith.addf %540, %541 : vector<2x64xf32>
    %cst_233 = arith.constant dense<0.000000e+00> : vector<2x64xf32>
    %543 = tpu.matmul %536, %4, %cst_233 {dimension_numbers = #tpu.dot_dimension_numbers<[1], [0], [0], [1], [0, 0, 1, 1], [], []>} : vector<2x64xf32>, vector<64x64xf32>, vector<2x64xf32> -> vector<2x64xf32>
    %544 = vector.broadcast %7 : vector<1x64xf32> to vector<2x64xf32>
    %545 = arith.addf %543, %544 : vector<2x64xf32>
    %546 = arith.index_cast %c12_i32 : i32 to index
    %c0_234 = arith.constant 0 : index
    %c0_235 = arith.constant 0 : index
    %547 = vector.load %arg1[%546, %c0_234, %c0_235] : memref<16x2x64xf32, #tpu.memory_space<vmem>>, vector<1x2x64xf32>
    %548 = vector.shape_cast %547 : vector<1x2x64xf32> to vector<2x64xf32>
    %549 = arith.addf %548, %539 : vector<2x64xf32>
    %550 = arith.negf %549 : vector<2x64xf32>
    %551 = math.exp %550 : vector<2x64xf32>
    %cst_236 = arith.constant 1.000000e+00 : f32
    %552 = vector.broadcast %cst_236 : f32 to vector<2x64xf32>
    %553 = arith.addf %552, %551 : vector<2x64xf32>
    %554 = arith.divf %552, %553 : vector<2x64xf32>
    %555 = arith.index_cast %c12_i32 : i32 to index
    %c0_237 = arith.constant 0 : index
    %c0_238 = arith.constant 0 : index
    %556 = vector.load %arg2[%555, %c0_237, %c0_238] : memref<16x2x64xf32, #tpu.memory_space<vmem>>, vector<1x2x64xf32>
    %557 = vector.shape_cast %556 : vector<1x2x64xf32> to vector<2x64xf32>
    %558 = arith.addf %557, %542 : vector<2x64xf32>
    %559 = arith.negf %558 : vector<2x64xf32>
    %560 = math.exp %559 : vector<2x64xf32>
    %cst_239 = arith.constant 1.000000e+00 : f32
    %561 = vector.broadcast %cst_239 : f32 to vector<2x64xf32>
    %562 = arith.addf %561, %560 : vector<2x64xf32>
    %563 = arith.divf %561, %562 : vector<2x64xf32>
    %564 = arith.index_cast %c12_i32 : i32 to index
    %c0_240 = arith.constant 0 : index
    %c0_241 = arith.constant 0 : index
    %565 = vector.load %arg3[%564, %c0_240, %c0_241] : memref<16x2x64xf32, #tpu.memory_space<vmem>>, vector<1x2x64xf32>
    %566 = vector.shape_cast %565 : vector<1x2x64xf32> to vector<2x64xf32>
    %567 = arith.mulf %554, %545 : vector<2x64xf32>
    %568 = arith.addf %566, %567 : vector<2x64xf32>
    %569 = math.tanh %568 : vector<2x64xf32>
    %cst_242 = arith.constant 1.000000e+00 : f32
    %570 = vector.broadcast %cst_242 : f32 to vector<2x64xf32>
    %571 = arith.subf %570, %563 : vector<2x64xf32>
    %572 = arith.mulf %571, %569 : vector<2x64xf32>
    %573 = arith.mulf %563, %536 : vector<2x64xf32>
    %574 = arith.addf %572, %573 : vector<2x64xf32>
    %c0_243 = arith.constant 0 : index
    %c0_244 = arith.constant 0 : index
    %575 = vector.load %arg11[%c0_243, %c0_244] : memref<2x64xf32, #tpu.memory_space<vmem>>, vector<2x64xf32>
    tpu.vector_store %arg11[%c0_243, %c0_244], %574 {strides = array<i32>} : memref<2x64xf32, #tpu.memory_space<vmem>>, vector<2x64xf32>,
    %576 = arith.index_cast %c12_i32 : i32 to index
    %c0_245 = arith.constant 0 : index
    %c0_246 = arith.constant 0 : index
    %577 = vector.load %arg10[%576, %c0_245, %c0_246] : memref<16x2x64xf32, #tpu.memory_space<vmem>>, vector<1x2x64xf32>
    %578 = vector.shape_cast %577 : vector<1x2x64xf32> to vector<2x64xf32>
    %579 = vector.shape_cast %574 : vector<2x64xf32> to vector<1x2x64xf32>
    tpu.vector_store %arg10[%576, %c0_245, %c0_246], %579 {strides = array<i32>} : memref<16x2x64xf32, #tpu.memory_space<vmem>>, vector<1x2x64xf32>,
    %c13_i32 = arith.constant 13 : i32
    %c0_247 = arith.constant 0 : index
    %c0_248 = arith.constant 0 : index
    %580 = vector.load %arg11[%c0_247, %c0_248] : memref<2x64xf32, #tpu.memory_space<vmem>>, vector<2x64xf32>
    %cst_249 = arith.constant dense<0.000000e+00> : vector<2x64xf32>
    %581 = tpu.matmul %580, %2, %cst_249 {dimension_numbers = #tpu.dot_dimension_numbers<[1], [0], [0], [1], [0, 0, 1, 1], [], []>} : vector<2x64xf32>, vector<64x64xf32>, vector<2x64xf32> -> vector<2x64xf32>
    %582 = vector.broadcast %5 : vector<1x64xf32> to vector<2x64xf32>
    %583 = arith.addf %581, %582 : vector<2x64xf32>
    %cst_250 = arith.constant dense<0.000000e+00> : vector<2x64xf32>
    %584 = tpu.matmul %580, %3, %cst_250 {dimension_numbers = #tpu.dot_dimension_numbers<[1], [0], [0], [1], [0, 0, 1, 1], [], []>} : vector<2x64xf32>, vector<64x64xf32>, vector<2x64xf32> -> vector<2x64xf32>
    %585 = vector.broadcast %6 : vector<1x64xf32> to vector<2x64xf32>
    %586 = arith.addf %584, %585 : vector<2x64xf32>
    %cst_251 = arith.constant dense<0.000000e+00> : vector<2x64xf32>
    %587 = tpu.matmul %580, %4, %cst_251 {dimension_numbers = #tpu.dot_dimension_numbers<[1], [0], [0], [1], [0, 0, 1, 1], [], []>} : vector<2x64xf32>, vector<64x64xf32>, vector<2x64xf32> -> vector<2x64xf32>
    %588 = vector.broadcast %7 : vector<1x64xf32> to vector<2x64xf32>
    %589 = arith.addf %587, %588 : vector<2x64xf32>
    %590 = arith.index_cast %c13_i32 : i32 to index
    %c0_252 = arith.constant 0 : index
    %c0_253 = arith.constant 0 : index
    %591 = vector.load %arg1[%590, %c0_252, %c0_253] : memref<16x2x64xf32, #tpu.memory_space<vmem>>, vector<1x2x64xf32>
    %592 = vector.shape_cast %591 : vector<1x2x64xf32> to vector<2x64xf32>
    %593 = arith.addf %592, %583 : vector<2x64xf32>
    %594 = arith.negf %593 : vector<2x64xf32>
    %595 = math.exp %594 : vector<2x64xf32>
    %cst_254 = arith.constant 1.000000e+00 : f32
    %596 = vector.broadcast %cst_254 : f32 to vector<2x64xf32>
    %597 = arith.addf %596, %595 : vector<2x64xf32>
    %598 = arith.divf %596, %597 : vector<2x64xf32>
    %599 = arith.index_cast %c13_i32 : i32 to index
    %c0_255 = arith.constant 0 : index
    %c0_256 = arith.constant 0 : index
    %600 = vector.load %arg2[%599, %c0_255, %c0_256] : memref<16x2x64xf32, #tpu.memory_space<vmem>>, vector<1x2x64xf32>
    %601 = vector.shape_cast %600 : vector<1x2x64xf32> to vector<2x64xf32>
    %602 = arith.addf %601, %586 : vector<2x64xf32>
    %603 = arith.negf %602 : vector<2x64xf32>
    %604 = math.exp %603 : vector<2x64xf32>
    %cst_257 = arith.constant 1.000000e+00 : f32
    %605 = vector.broadcast %cst_257 : f32 to vector<2x64xf32>
    %606 = arith.addf %605, %604 : vector<2x64xf32>
    %607 = arith.divf %605, %606 : vector<2x64xf32>
    %608 = arith.index_cast %c13_i32 : i32 to index
    %c0_258 = arith.constant 0 : index
    %c0_259 = arith.constant 0 : index
    %609 = vector.load %arg3[%608, %c0_258, %c0_259] : memref<16x2x64xf32, #tpu.memory_space<vmem>>, vector<1x2x64xf32>
    %610 = vector.shape_cast %609 : vector<1x2x64xf32> to vector<2x64xf32>
    %611 = arith.mulf %598, %589 : vector<2x64xf32>
    %612 = arith.addf %610, %611 : vector<2x64xf32>
    %613 = math.tanh %612 : vector<2x64xf32>
    %cst_260 = arith.constant 1.000000e+00 : f32
    %614 = vector.broadcast %cst_260 : f32 to vector<2x64xf32>
    %615 = arith.subf %614, %607 : vector<2x64xf32>
    %616 = arith.mulf %615, %613 : vector<2x64xf32>
    %617 = arith.mulf %607, %580 : vector<2x64xf32>
    %618 = arith.addf %616, %617 : vector<2x64xf32>
    %c0_261 = arith.constant 0 : index
    %c0_262 = arith.constant 0 : index
    %619 = vector.load %arg11[%c0_261, %c0_262] : memref<2x64xf32, #tpu.memory_space<vmem>>, vector<2x64xf32>
    tpu.vector_store %arg11[%c0_261, %c0_262], %618 {strides = array<i32>} : memref<2x64xf32, #tpu.memory_space<vmem>>, vector<2x64xf32>,
    %620 = arith.index_cast %c13_i32 : i32 to index
    %c0_263 = arith.constant 0 : index
    %c0_264 = arith.constant 0 : index
    %621 = vector.load %arg10[%620, %c0_263, %c0_264] : memref<16x2x64xf32, #tpu.memory_space<vmem>>, vector<1x2x64xf32>
    %622 = vector.shape_cast %621 : vector<1x2x64xf32> to vector<2x64xf32>
    %623 = vector.shape_cast %618 : vector<2x64xf32> to vector<1x2x64xf32>
    tpu.vector_store %arg10[%620, %c0_263, %c0_264], %623 {strides = array<i32>} : memref<16x2x64xf32, #tpu.memory_space<vmem>>, vector<1x2x64xf32>,
    %c14_i32 = arith.constant 14 : i32
    %c0_265 = arith.constant 0 : index
    %c0_266 = arith.constant 0 : index
    %624 = vector.load %arg11[%c0_265, %c0_266] : memref<2x64xf32, #tpu.memory_space<vmem>>, vector<2x64xf32>
    %cst_267 = arith.constant dense<0.000000e+00> : vector<2x64xf32>
    %625 = tpu.matmul %624, %2, %cst_267 {dimension_numbers = #tpu.dot_dimension_numbers<[1], [0], [0], [1], [0, 0, 1, 1], [], []>} : vector<2x64xf32>, vector<64x64xf32>, vector<2x64xf32> -> vector<2x64xf32>
    %626 = vector.broadcast %5 : vector<1x64xf32> to vector<2x64xf32>
    %627 = arith.addf %625, %626 : vector<2x64xf32>
    %cst_268 = arith.constant dense<0.000000e+00> : vector<2x64xf32>
    %628 = tpu.matmul %624, %3, %cst_268 {dimension_numbers = #tpu.dot_dimension_numbers<[1], [0], [0], [1], [0, 0, 1, 1], [], []>} : vector<2x64xf32>, vector<64x64xf32>, vector<2x64xf32> -> vector<2x64xf32>
    %629 = vector.broadcast %6 : vector<1x64xf32> to vector<2x64xf32>
    %630 = arith.addf %628, %629 : vector<2x64xf32>
    %cst_269 = arith.constant dense<0.000000e+00> : vector<2x64xf32>
    %631 = tpu.matmul %624, %4, %cst_269 {dimension_numbers = #tpu.dot_dimension_numbers<[1], [0], [0], [1], [0, 0, 1, 1], [], []>} : vector<2x64xf32>, vector<64x64xf32>, vector<2x64xf32> -> vector<2x64xf32>
    %632 = vector.broadcast %7 : vector<1x64xf32> to vector<2x64xf32>
    %633 = arith.addf %631, %632 : vector<2x64xf32>
    %634 = arith.index_cast %c14_i32 : i32 to index
    %c0_270 = arith.constant 0 : index
    %c0_271 = arith.constant 0 : index
    %635 = vector.load %arg1[%634, %c0_270, %c0_271] : memref<16x2x64xf32, #tpu.memory_space<vmem>>, vector<1x2x64xf32>
    %636 = vector.shape_cast %635 : vector<1x2x64xf32> to vector<2x64xf32>
    %637 = arith.addf %636, %627 : vector<2x64xf32>
    %638 = arith.negf %637 : vector<2x64xf32>
    %639 = math.exp %638 : vector<2x64xf32>
    %cst_272 = arith.constant 1.000000e+00 : f32
    %640 = vector.broadcast %cst_272 : f32 to vector<2x64xf32>
    %641 = arith.addf %640, %639 : vector<2x64xf32>
    %642 = arith.divf %640, %641 : vector<2x64xf32>
    %643 = arith.index_cast %c14_i32 : i32 to index
    %c0_273 = arith.constant 0 : index
    %c0_274 = arith.constant 0 : index
    %644 = vector.load %arg2[%643, %c0_273, %c0_274] : memref<16x2x64xf32, #tpu.memory_space<vmem>>, vector<1x2x64xf32>
    %645 = vector.shape_cast %644 : vector<1x2x64xf32> to vector<2x64xf32>
    %646 = arith.addf %645, %630 : vector<2x64xf32>
    %647 = arith.negf %646 : vector<2x64xf32>
    %648 = math.exp %647 : vector<2x64xf32>
    %cst_275 = arith.constant 1.000000e+00 : f32
    %649 = vector.broadcast %cst_275 : f32 to vector<2x64xf32>
    %650 = arith.addf %649, %648 : vector<2x64xf32>
    %651 = arith.divf %649, %650 : vector<2x64xf32>
    %652 = arith.index_cast %c14_i32 : i32 to index
    %c0_276 = arith.constant 0 : index
    %c0_277 = arith.constant 0 : index
    %653 = vector.load %arg3[%652, %c0_276, %c0_277] : memref<16x2x64xf32, #tpu.memory_space<vmem>>, vector<1x2x64xf32>
    %654 = vector.shape_cast %653 : vector<1x2x64xf32> to vector<2x64xf32>
    %655 = arith.mulf %642, %633 : vector<2x64xf32>
    %656 = arith.addf %654, %655 : vector<2x64xf32>
    %657 = math.tanh %656 : vector<2x64xf32>
    %cst_278 = arith.constant 1.000000e+00 : f32
    %658 = vector.broadcast %cst_278 : f32 to vector<2x64xf32>
    %659 = arith.subf %658, %651 : vector<2x64xf32>
    %660 = arith.mulf %659, %657 : vector<2x64xf32>
    %661 = arith.mulf %651, %624 : vector<2x64xf32>
    %662 = arith.addf %660, %661 : vector<2x64xf32>
    %c0_279 = arith.constant 0 : index
    %c0_280 = arith.constant 0 : index
    %663 = vector.load %arg11[%c0_279, %c0_280] : memref<2x64xf32, #tpu.memory_space<vmem>>, vector<2x64xf32>
    tpu.vector_store %arg11[%c0_279, %c0_280], %662 {strides = array<i32>} : memref<2x64xf32, #tpu.memory_space<vmem>>, vector<2x64xf32>,
    %664 = arith.index_cast %c14_i32 : i32 to index
    %c0_281 = arith.constant 0 : index
    %c0_282 = arith.constant 0 : index
    %665 = vector.load %arg10[%664, %c0_281, %c0_282] : memref<16x2x64xf32, #tpu.memory_space<vmem>>, vector<1x2x64xf32>
    %666 = vector.shape_cast %665 : vector<1x2x64xf32> to vector<2x64xf32>
    %667 = vector.shape_cast %662 : vector<2x64xf32> to vector<1x2x64xf32>
    tpu.vector_store %arg10[%664, %c0_281, %c0_282], %667 {strides = array<i32>} : memref<16x2x64xf32, #tpu.memory_space<vmem>>, vector<1x2x64xf32>,
    %c15_i32 = arith.constant 15 : i32
    %c0_283 = arith.constant 0 : index
    %c0_284 = arith.constant 0 : index
    %668 = vector.load %arg11[%c0_283, %c0_284] : memref<2x64xf32, #tpu.memory_space<vmem>>, vector<2x64xf32>
    %cst_285 = arith.constant dense<0.000000e+00> : vector<2x64xf32>
    %669 = tpu.matmul %668, %2, %cst_285 {dimension_numbers = #tpu.dot_dimension_numbers<[1], [0], [0], [1], [0, 0, 1, 1], [], []>} : vector<2x64xf32>, vector<64x64xf32>, vector<2x64xf32> -> vector<2x64xf32>
    %670 = vector.broadcast %5 : vector<1x64xf32> to vector<2x64xf32>
    %671 = arith.addf %669, %670 : vector<2x64xf32>
    %cst_286 = arith.constant dense<0.000000e+00> : vector<2x64xf32>
    %672 = tpu.matmul %668, %3, %cst_286 {dimension_numbers = #tpu.dot_dimension_numbers<[1], [0], [0], [1], [0, 0, 1, 1], [], []>} : vector<2x64xf32>, vector<64x64xf32>, vector<2x64xf32> -> vector<2x64xf32>
    %673 = vector.broadcast %6 : vector<1x64xf32> to vector<2x64xf32>
    %674 = arith.addf %672, %673 : vector<2x64xf32>
    %cst_287 = arith.constant dense<0.000000e+00> : vector<2x64xf32>
    %675 = tpu.matmul %668, %4, %cst_287 {dimension_numbers = #tpu.dot_dimension_numbers<[1], [0], [0], [1], [0, 0, 1, 1], [], []>} : vector<2x64xf32>, vector<64x64xf32>, vector<2x64xf32> -> vector<2x64xf32>
    %676 = vector.broadcast %7 : vector<1x64xf32> to vector<2x64xf32>
    %677 = arith.addf %675, %676 : vector<2x64xf32>
    %678 = arith.index_cast %c15_i32 : i32 to index
    %c0_288 = arith.constant 0 : index
    %c0_289 = arith.constant 0 : index
    %679 = vector.load %arg1[%678, %c0_288, %c0_289] : memref<16x2x64xf32, #tpu.memory_space<vmem>>, vector<1x2x64xf32>
    %680 = vector.shape_cast %679 : vector<1x2x64xf32> to vector<2x64xf32>
    %681 = arith.addf %680, %671 : vector<2x64xf32>
    %682 = arith.negf %681 : vector<2x64xf32>
    %683 = math.exp %682 : vector<2x64xf32>
    %cst_290 = arith.constant 1.000000e+00 : f32
    %684 = vector.broadcast %cst_290 : f32 to vector<2x64xf32>
    %685 = arith.addf %684, %683 : vector<2x64xf32>
    %686 = arith.divf %684, %685 : vector<2x64xf32>
    %687 = arith.index_cast %c15_i32 : i32 to index
    %c0_291 = arith.constant 0 : index
    %c0_292 = arith.constant 0 : index
    %688 = vector.load %arg2[%687, %c0_291, %c0_292] : memref<16x2x64xf32, #tpu.memory_space<vmem>>, vector<1x2x64xf32>
    %689 = vector.shape_cast %688 : vector<1x2x64xf32> to vector<2x64xf32>
    %690 = arith.addf %689, %674 : vector<2x64xf32>
    %691 = arith.negf %690 : vector<2x64xf32>
    %692 = math.exp %691 : vector<2x64xf32>
    %cst_293 = arith.constant 1.000000e+00 : f32
    %693 = vector.broadcast %cst_293 : f32 to vector<2x64xf32>
    %694 = arith.addf %693, %692 : vector<2x64xf32>
    %695 = arith.divf %693, %694 : vector<2x64xf32>
    %696 = arith.index_cast %c15_i32 : i32 to index
    %c0_294 = arith.constant 0 : index
    %c0_295 = arith.constant 0 : index
    %697 = vector.load %arg3[%696, %c0_294, %c0_295] : memref<16x2x64xf32, #tpu.memory_space<vmem>>, vector<1x2x64xf32>
    %698 = vector.shape_cast %697 : vector<1x2x64xf32> to vector<2x64xf32>
    %699 = arith.mulf %686, %677 : vector<2x64xf32>
    %700 = arith.addf %698, %699 : vector<2x64xf32>
    %701 = math.tanh %700 : vector<2x64xf32>
    %cst_296 = arith.constant 1.000000e+00 : f32
    %702 = vector.broadcast %cst_296 : f32 to vector<2x64xf32>
    %703 = arith.subf %702, %695 : vector<2x64xf32>
    %704 = arith.mulf %703, %701 : vector<2x64xf32>
    %705 = arith.mulf %695, %668 : vector<2x64xf32>
    %706 = arith.addf %704, %705 : vector<2x64xf32>
    %c0_297 = arith.constant 0 : index
    %c0_298 = arith.constant 0 : index
    %707 = vector.load %arg11[%c0_297, %c0_298] : memref<2x64xf32, #tpu.memory_space<vmem>>, vector<2x64xf32>
    tpu.vector_store %arg11[%c0_297, %c0_298], %706 {strides = array<i32>} : memref<2x64xf32, #tpu.memory_space<vmem>>, vector<2x64xf32>,
    %708 = arith.index_cast %c15_i32 : i32 to index
    %c0_299 = arith.constant 0 : index
    %c0_300 = arith.constant 0 : index
    %709 = vector.load %arg10[%708, %c0_299, %c0_300] : memref<16x2x64xf32, #tpu.memory_space<vmem>>, vector<1x2x64xf32>
    %710 = vector.shape_cast %709 : vector<1x2x64xf32> to vector<2x64xf32>
    %711 = vector.shape_cast %706 : vector<2x64xf32> to vector<1x2x64xf32>
    tpu.vector_store %arg10[%708, %c0_299, %c0_300], %711 {strides = array<i32>} : memref<16x2x64xf32, #tpu.memory_space<vmem>>, vector<1x2x64xf32>,
    %c16_i32 = arith.constant 16 : i32
    return
  }
  func.func @transform_0(%arg0: i32) -> (i32, i32, i32) {
    %c0_i32 = arith.constant 0 : i32
    %c0_i32_0 = arith.constant 0 : i32
    %c0_i32_1 = arith.constant 0 : i32
    %c0_i32_2 = arith.constant 0 : i32
    return %c0_i32, %c0_i32_0, %c0_i32_1 : i32, i32, i32
  }
  func.func @transform_1(%arg0: i32) -> (i32, i32, i32) {
    %c0_i32 = arith.constant 0 : i32
    %c0_i32_0 = arith.constant 0 : i32
    %c0_i32_1 = arith.constant 0 : i32
    %c0_i32_2 = arith.constant 0 : i32
    return %c0_i32, %c0_i32_0, %c0_i32_1 : i32, i32, i32
  }
  func.func @transform_2(%arg0: i32) -> (i32, i32, i32) {
    %c0_i32 = arith.constant 0 : i32
    %c0_i32_0 = arith.constant 0 : i32
    %c0_i32_1 = arith.constant 0 : i32
    %c0_i32_2 = arith.constant 0 : i32
    return %c0_i32, %c0_i32_0, %c0_i32_1 : i32, i32, i32
  }
  func.func @transform_3(%arg0: i32) -> (i32, i32) {
    %c0_i32 = arith.constant 0 : i32
    %c0_i32_0 = arith.constant 0 : i32
    %c0_i32_1 = arith.constant 0 : i32
    return %c0_i32, %c0_i32_0 : i32, i32
  }
  func.func @transform_4(%arg0: i32) -> (i32, i32) {
    %c0_i32 = arith.constant 0 : i32
    %c0_i32_0 = arith.constant 0 : i32
    %c0_i32_1 = arith.constant 0 : i32
    return %c0_i32, %c0_i32_0 : i32, i32
  }
  func.func @transform_5(%arg0: i32) -> (i32, i32) {
    %c0_i32 = arith.constant 0 : i32
    %c0_i32_0 = arith.constant 0 : i32
    %c0_i32_1 = arith.constant 0 : i32
    return %c0_i32, %c0_i32_0 : i32, i32
  }
  func.func @transform_6(%arg0: i32) -> (i32, i32) {
    %c0_i32 = arith.constant 0 : i32
    %c0_i32_0 = arith.constant 0 : i32
    %c0_i32_1 = arith.constant 0 : i32
    return %c0_i32, %c0_i32_0 : i32, i32
  }
  func.func @transform_7(%arg0: i32) -> (i32, i32) {
    %c0_i32 = arith.constant 0 : i32
    %c0_i32_0 = arith.constant 0 : i32
    %c0_i32_1 = arith.constant 0 : i32
    return %c0_i32, %c0_i32_0 : i32, i32
  }
  func.func @transform_8(%arg0: i32) -> (i32, i32) {
    %c0_i32 = arith.constant 0 : i32
    %c0_i32_0 = arith.constant 0 : i32
    %c0_i32_1 = arith.constant 0 : i32
    return %c0_i32, %c0_i32_0 : i32, i32
  }
  func.func @transform_9(%arg0: i32) -> (i32, i32, i32) {
    %c0_i32 = arith.constant 0 : i32
    %c0_i32_0 = arith.constant 0 : i32
    %c0_i32_1 = arith.constant 0 : i32
    %c0_i32_2 = arith.constant 0 : i32
    return %c0_i32, %c0_i32_0, %c0_i32_1 : i32, i32, i32
  }
}

module attributes {stable_mosaic.version = 11 : i64} {
  func.func @_head_kernel(%arg0: i32, %arg1: memref<32x32xbf16, #tpu.memory_space<vmem>>, %arg2: memref<32x16xbf16, #tpu.memory_space<vmem>>, %arg3: memref<1x16xf32, #tpu.memory_space<vmem>>, %arg4: memref<16x16xbf16, #tpu.memory_space<vmem>>, %arg5: memref<1x16xf32, #tpu.memory_space<vmem>>, %arg6: memref<16x8xbf16, #tpu.memory_space<vmem>>, %arg7: memref<1x8xf32, #tpu.memory_space<vmem>>, %arg8: memref<32x8xf32, #tpu.memory_space<vmem>>) attributes {dimension_semantics = [#tpu.dimension_semantics<parallel>], iteration_bounds = array<i64: 1>, scalar_prefetch = 0 : i64, scratch_operands = 0 : i64, tpu.core_type = #tpu.core_type<tc>, window_params = [{transform_indices = @transform_0, window_bounds = array<i64: 32, 32>}, {pipeline_mode = #tpu.pipeline_mode<synchronous>, transform_indices = @transform_1, window_bounds = array<i64: 32, 16>}, {pipeline_mode = #tpu.pipeline_mode<synchronous>, transform_indices = @transform_2, window_bounds = array<i64: 1, 16>}, {pipeline_mode = #tpu.pipeline_mode<synchronous>, transform_indices = @transform_3, window_bounds = array<i64: 16, 16>}, {pipeline_mode = #tpu.pipeline_mode<synchronous>, transform_indices = @transform_4, window_bounds = array<i64: 1, 16>}, {pipeline_mode = #tpu.pipeline_mode<synchronous>, transform_indices = @transform_5, window_bounds = array<i64: 16, 8>}, {pipeline_mode = #tpu.pipeline_mode<synchronous>, transform_indices = @transform_6, window_bounds = array<i64: 1, 8>}, {transform_indices = @transform_7, window_bounds = array<i64: 32, 8>}]} {
    %c0 = arith.constant 0 : index
    %c0_0 = arith.constant 0 : index
    %0 = vector.load %arg1[%c0, %c0_0] : memref<32x32xbf16, #tpu.memory_space<vmem>>, vector<32x32xbf16>
    %c0_1 = arith.constant 0 : index
    %c0_2 = arith.constant 0 : index
    %1 = vector.load %arg2[%c0_1, %c0_2] : memref<32x16xbf16, #tpu.memory_space<vmem>>, vector<32x16xbf16>
    %cst = arith.constant dense<0.000000e+00> : vector<32x16xf32>
    %2 = tpu.matmul %0, %1, %cst {dimension_numbers = #tpu.dot_dimension_numbers<[1], [0], [0], [1], [0, 0, 1, 1], [], []>} : vector<32x32xbf16>, vector<32x16xbf16>, vector<32x16xf32> -> vector<32x16xf32>
    %c0_3 = arith.constant 0 : index
    %c0_4 = arith.constant 0 : index
    %3 = vector.load %arg3[%c0_3, %c0_4] : memref<1x16xf32, #tpu.memory_space<vmem>>, vector<1x16xf32>
    %4 = vector.broadcast %3 : vector<1x16xf32> to vector<32x16xf32>
    %5 = arith.addf %2, %4 : vector<32x16xf32>
    %cst_5 = arith.constant 0.000000e+00 : f32
    %6 = vector.broadcast %cst_5 : f32 to vector<32x16xf32>
    %7 = arith.cmpf oge, %5, %6 : vector<32x16xf32>
    %cst_6 = arith.constant 0.00999999977 : f32
    %8 = vector.broadcast %cst_6 : f32 to vector<32x16xf32>
    %9 = arith.mulf %8, %5 : vector<32x16xf32>
    %10 = arith.select %7, %5, %9 : vector<32x16xi1>, vector<32x16xf32>
    %11 = arith.truncf %10 : vector<32x16xf32> to vector<32x16xbf16>
    %c0_7 = arith.constant 0 : index
    %c0_8 = arith.constant 0 : index
    %12 = vector.load %arg4[%c0_7, %c0_8] : memref<16x16xbf16, #tpu.memory_space<vmem>>, vector<16x16xbf16>
    %cst_9 = arith.constant dense<0.000000e+00> : vector<32x16xf32>
    %13 = tpu.matmul %11, %12, %cst_9 {dimension_numbers = #tpu.dot_dimension_numbers<[1], [0], [0], [1], [0, 0, 1, 1], [], []>} : vector<32x16xbf16>, vector<16x16xbf16>, vector<32x16xf32> -> vector<32x16xf32>
    %c0_10 = arith.constant 0 : index
    %c0_11 = arith.constant 0 : index
    %14 = vector.load %arg5[%c0_10, %c0_11] : memref<1x16xf32, #tpu.memory_space<vmem>>, vector<1x16xf32>
    %15 = vector.broadcast %14 : vector<1x16xf32> to vector<32x16xf32>
    %16 = arith.addf %13, %15 : vector<32x16xf32>
    %17 = arith.truncf %16 : vector<32x16xf32> to vector<32x16xbf16>
    %c0_12 = arith.constant 0 : index
    %c0_13 = arith.constant 0 : index
    %18 = vector.load %arg6[%c0_12, %c0_13] : memref<16x8xbf16, #tpu.memory_space<vmem>>, vector<16x8xbf16>
    %cst_14 = arith.constant dense<0.000000e+00> : vector<32x8xf32>
    %19 = tpu.matmul %17, %18, %cst_14 {dimension_numbers = #tpu.dot_dimension_numbers<[1], [0], [0], [1], [0, 0, 1, 1], [], []>} : vector<32x16xbf16>, vector<16x8xbf16>, vector<32x8xf32> -> vector<32x8xf32>
    %c0_15 = arith.constant 0 : index
    %c0_16 = arith.constant 0 : index
    %20 = vector.load %arg7[%c0_15, %c0_16] : memref<1x8xf32, #tpu.memory_space<vmem>>, vector<1x8xf32>
    %21 = vector.broadcast %20 : vector<1x8xf32> to vector<32x8xf32>
    %22 = arith.addf %19, %21 : vector<32x8xf32>
    %cst_17 = arith.constant 0.000000e+00 : f32
    %23 = vector.broadcast %cst_17 : f32 to vector<32x8xf32>
    %24 = arith.cmpf oge, %22, %23 : vector<32x8xf32>
    %cst_18 = arith.constant 0.00999999977 : f32
    %25 = vector.broadcast %cst_18 : f32 to vector<32x8xf32>
    %26 = arith.mulf %25, %22 : vector<32x8xf32>
    %27 = arith.select %24, %22, %26 : vector<32x8xi1>, vector<32x8xf32>
    %c0_19 = arith.constant 0 : index
    %c0_20 = arith.constant 0 : index
    %28 = vector.load %arg8[%c0_19, %c0_20] : memref<32x8xf32, #tpu.memory_space<vmem>>, vector<32x8xf32>
    tpu.vector_store %arg8[%c0_19, %c0_20], %27 {strides = array<i32>} : memref<32x8xf32, #tpu.memory_space<vmem>>, vector<32x8xf32>,
    return
  }
  func.func @transform_0(%arg0: i32) -> (i32, i32) {
    %c0_i32 = arith.constant 0 : i32
    %c0_i32_0 = arith.constant 0 : i32
    return %arg0, %c0_i32 : i32, i32
  }
  func.func @transform_1(%arg0: i32) -> (i32, i32) {
    %c0_i32 = arith.constant 0 : i32
    %c0_i32_0 = arith.constant 0 : i32
    %c0_i32_1 = arith.constant 0 : i32
    return %c0_i32, %c0_i32_0 : i32, i32
  }
  func.func @transform_2(%arg0: i32) -> (i32, i32) {
    %c0_i32 = arith.constant 0 : i32
    %c0_i32_0 = arith.constant 0 : i32
    %c0_i32_1 = arith.constant 0 : i32
    return %c0_i32, %c0_i32_0 : i32, i32
  }
  func.func @transform_3(%arg0: i32) -> (i32, i32) {
    %c0_i32 = arith.constant 0 : i32
    %c0_i32_0 = arith.constant 0 : i32
    %c0_i32_1 = arith.constant 0 : i32
    return %c0_i32, %c0_i32_0 : i32, i32
  }
  func.func @transform_4(%arg0: i32) -> (i32, i32) {
    %c0_i32 = arith.constant 0 : i32
    %c0_i32_0 = arith.constant 0 : i32
    %c0_i32_1 = arith.constant 0 : i32
    return %c0_i32, %c0_i32_0 : i32, i32
  }
  func.func @transform_5(%arg0: i32) -> (i32, i32) {
    %c0_i32 = arith.constant 0 : i32
    %c0_i32_0 = arith.constant 0 : i32
    %c0_i32_1 = arith.constant 0 : i32
    return %c0_i32, %c0_i32_0 : i32, i32
  }
  func.func @transform_6(%arg0: i32) -> (i32, i32) {
    %c0_i32 = arith.constant 0 : i32
    %c0_i32_0 = arith.constant 0 : i32
    %c0_i32_1 = arith.constant 0 : i32
    return %c0_i32, %c0_i32_0 : i32, i32
  }
  func.func @transform_7(%arg0: i32) -> (i32, i32) {
    %c0_i32 = arith.constant 0 : i32
    %c0_i32_0 = arith.constant 0 : i32
    return %arg0, %c0_i32 : i32, i32
  }
}

module attributes {stable_mosaic.version = 11 : i64} {
  func.func @_head_kernel(%arg0: i32, %arg1: memref<32x32xbf16, #tpu.memory_space<vmem>>, %arg2: memref<32x16xbf16, #tpu.memory_space<vmem>>, %arg3: memref<1x16xf32, #tpu.memory_space<vmem>>, %arg4: memref<16x16xbf16, #tpu.memory_space<vmem>>, %arg5: memref<1x16xf32, #tpu.memory_space<vmem>>, %arg6: memref<16x2xbf16, #tpu.memory_space<vmem>>, %arg7: memref<1x2xf32, #tpu.memory_space<vmem>>, %arg8: memref<32x2xf32, #tpu.memory_space<vmem>>) attributes {dimension_semantics = [#tpu.dimension_semantics<parallel>], iteration_bounds = array<i64: 1>, scalar_prefetch = 0 : i64, scratch_operands = 0 : i64, tpu.core_type = #tpu.core_type<tc>, window_params = [{transform_indices = @transform_0, window_bounds = array<i64: 32, 32>}, {pipeline_mode = #tpu.pipeline_mode<synchronous>, transform_indices = @transform_1, window_bounds = array<i64: 32, 16>}, {pipeline_mode = #tpu.pipeline_mode<synchronous>, transform_indices = @transform_2, window_bounds = array<i64: 1, 16>}, {pipeline_mode = #tpu.pipeline_mode<synchronous>, transform_indices = @transform_3, window_bounds = array<i64: 16, 16>}, {pipeline_mode = #tpu.pipeline_mode<synchronous>, transform_indices = @transform_4, window_bounds = array<i64: 1, 16>}, {pipeline_mode = #tpu.pipeline_mode<synchronous>, transform_indices = @transform_5, window_bounds = array<i64: 16, 2>}, {pipeline_mode = #tpu.pipeline_mode<synchronous>, transform_indices = @transform_6, window_bounds = array<i64: 1, 2>}, {transform_indices = @transform_7, window_bounds = array<i64: 32, 2>}]} {
    %c0 = arith.constant 0 : index
    %c0_0 = arith.constant 0 : index
    %0 = vector.load %arg1[%c0, %c0_0] : memref<32x32xbf16, #tpu.memory_space<vmem>>, vector<32x32xbf16>
    %c0_1 = arith.constant 0 : index
    %c0_2 = arith.constant 0 : index
    %1 = vector.load %arg2[%c0_1, %c0_2] : memref<32x16xbf16, #tpu.memory_space<vmem>>, vector<32x16xbf16>
    %cst = arith.constant dense<0.000000e+00> : vector<32x16xf32>
    %2 = tpu.matmul %0, %1, %cst {dimension_numbers = #tpu.dot_dimension_numbers<[1], [0], [0], [1], [0, 0, 1, 1], [], []>} : vector<32x32xbf16>, vector<32x16xbf16>, vector<32x16xf32> -> vector<32x16xf32>
    %c0_3 = arith.constant 0 : index
    %c0_4 = arith.constant 0 : index
    %3 = vector.load %arg3[%c0_3, %c0_4] : memref<1x16xf32, #tpu.memory_space<vmem>>, vector<1x16xf32>
    %4 = vector.broadcast %3 : vector<1x16xf32> to vector<32x16xf32>
    %5 = arith.addf %2, %4 : vector<32x16xf32>
    %cst_5 = arith.constant 0.000000e+00 : f32
    %6 = vector.broadcast %cst_5 : f32 to vector<32x16xf32>
    %7 = arith.cmpf oge, %5, %6 : vector<32x16xf32>
    %cst_6 = arith.constant 0.00999999977 : f32
    %8 = vector.broadcast %cst_6 : f32 to vector<32x16xf32>
    %9 = arith.mulf %8, %5 : vector<32x16xf32>
    %10 = arith.select %7, %5, %9 : vector<32x16xi1>, vector<32x16xf32>
    %11 = arith.truncf %10 : vector<32x16xf32> to vector<32x16xbf16>
    %c0_7 = arith.constant 0 : index
    %c0_8 = arith.constant 0 : index
    %12 = vector.load %arg4[%c0_7, %c0_8] : memref<16x16xbf16, #tpu.memory_space<vmem>>, vector<16x16xbf16>
    %cst_9 = arith.constant dense<0.000000e+00> : vector<32x16xf32>
    %13 = tpu.matmul %11, %12, %cst_9 {dimension_numbers = #tpu.dot_dimension_numbers<[1], [0], [0], [1], [0, 0, 1, 1], [], []>} : vector<32x16xbf16>, vector<16x16xbf16>, vector<32x16xf32> -> vector<32x16xf32>
    %c0_10 = arith.constant 0 : index
    %c0_11 = arith.constant 0 : index
    %14 = vector.load %arg5[%c0_10, %c0_11] : memref<1x16xf32, #tpu.memory_space<vmem>>, vector<1x16xf32>
    %15 = vector.broadcast %14 : vector<1x16xf32> to vector<32x16xf32>
    %16 = arith.addf %13, %15 : vector<32x16xf32>
    %17 = arith.truncf %16 : vector<32x16xf32> to vector<32x16xbf16>
    %c0_12 = arith.constant 0 : index
    %c0_13 = arith.constant 0 : index
    %18 = vector.load %arg6[%c0_12, %c0_13] : memref<16x2xbf16, #tpu.memory_space<vmem>>, vector<16x2xbf16>
    %cst_14 = arith.constant dense<0.000000e+00> : vector<32x2xf32>
    %19 = tpu.matmul %17, %18, %cst_14 {dimension_numbers = #tpu.dot_dimension_numbers<[1], [0], [0], [1], [0, 0, 1, 1], [], []>} : vector<32x16xbf16>, vector<16x2xbf16>, vector<32x2xf32> -> vector<32x2xf32>
    %c0_15 = arith.constant 0 : index
    %c0_16 = arith.constant 0 : index
    %20 = vector.load %arg7[%c0_15, %c0_16] : memref<1x2xf32, #tpu.memory_space<vmem>>, vector<1x2xf32>
    %21 = vector.broadcast %20 : vector<1x2xf32> to vector<32x2xf32>
    %22 = arith.addf %19, %21 : vector<32x2xf32>
    %cst_17 = arith.constant 0.000000e+00 : f32
    %23 = vector.broadcast %cst_17 : f32 to vector<32x2xf32>
    %24 = arith.cmpf oge, %22, %23 : vector<32x2xf32>
    %cst_18 = arith.constant 0.00999999977 : f32
    %25 = vector.broadcast %cst_18 : f32 to vector<32x2xf32>
    %26 = arith.mulf %25, %22 : vector<32x2xf32>
    %27 = arith.select %24, %22, %26 : vector<32x2xi1>, vector<32x2xf32>
    %c0_19 = arith.constant 0 : index
    %c0_20 = arith.constant 0 : index
    %28 = vector.load %arg8[%c0_19, %c0_20] : memref<32x2xf32, #tpu.memory_space<vmem>>, vector<32x2xf32>
    tpu.vector_store %arg8[%c0_19, %c0_20], %27 {strides = array<i32>} : memref<32x2xf32, #tpu.memory_space<vmem>>, vector<32x2xf32>,
    return
  }
  func.func @transform_0(%arg0: i32) -> (i32, i32) {
    %c0_i32 = arith.constant 0 : i32
    %c0_i32_0 = arith.constant 0 : i32
    return %arg0, %c0_i32 : i32, i32
  }
  func.func @transform_1(%arg0: i32) -> (i32, i32) {
    %c0_i32 = arith.constant 0 : i32
    %c0_i32_0 = arith.constant 0 : i32
    %c0_i32_1 = arith.constant 0 : i32
    return %c0_i32, %c0_i32_0 : i32, i32
  }
  func.func @transform_2(%arg0: i32) -> (i32, i32) {
    %c0_i32 = arith.constant 0 : i32
    %c0_i32_0 = arith.constant 0 : i32
    %c0_i32_1 = arith.constant 0 : i32
    return %c0_i32, %c0_i32_0 : i32, i32
  }
  func.func @transform_3(%arg0: i32) -> (i32, i32) {
    %c0_i32 = arith.constant 0 : i32
    %c0_i32_0 = arith.constant 0 : i32
    %c0_i32_1 = arith.constant 0 : i32
    return %c0_i32, %c0_i32_0 : i32, i32
  }
  func.func @transform_4(%arg0: i32) -> (i32, i32) {
    %c0_i32 = arith.constant 0 : i32
    %c0_i32_0 = arith.constant 0 : i32
    %c0_i32_1 = arith.constant 0 : i32
    return %c0_i32, %c0_i32_0 : i32, i32
  }
  func.func @transform_5(%arg0: i32) -> (i32, i32) {
    %c0_i32 = arith.constant 0 : i32
    %c0_i32_0 = arith.constant 0 : i32
    %c0_i32_1 = arith.constant 0 : i32
    return %c0_i32, %c0_i32_0 : i32, i32
  }
  func.func @transform_6(%arg0: i32) -> (i32, i32) {
    %c0_i32 = arith.constant 0 : i32
    %c0_i32_0 = arith.constant 0 : i32
    %c0_i32_1 = arith.constant 0 : i32
    return %c0_i32, %c0_i32_0 : i32, i32
  }
  func.func @transform_7(%arg0: i32) -> (i32, i32) {
    %c0_i32 = arith.constant 0 : i32
    %c0_i32_0 = arith.constant 0 : i32
    return %arg0, %c0_i32 : i32, i32
  }
}

</mosaic_0001>

<llo_original>
// kernel: _lambda_.21
$region0: #{_lambda_.21}
  #allocation0 [shape = 'u32[]', space=smem, size = 0x4, offset = 0x4, fixed_abs, tag = 'smem constant byte address 0x4 - core index']
  #allocation1 [shape = 'u32[72,128]{1,0:T(1,128)}', space=vmem, size = 0x9000, scoped, tag = 'internal scratch']
  %s0 = inlined_call_operand.vmem [shape: f32[1,2,18,8], index: 0, kind: input, shape index: {}]
  %s1 = inlined_call_operand.vmem [shape: bf16[1,3,8,10], index: 1, kind: input, shape index: {}]
  %s2 = inlined_call_operand.vmem [shape: f32[1,1,10], index: 2, kind: input, shape index: {}]
  %s3 = inlined_call_operand.vmem [shape: f32[1,2,16,10], index: 3, kind: output, shape index: {}]
  %s4 = sld [smem:[#allocation0]]
  $region45: #{_lambda_.21} parent=0
    _
  %s6 = ssub.s32 1, %s4
  %s7 = scalar_select 0, %s6, %s4
  loop: start=0, step=1, limit=4
  $region2: #{_lambda_.21} parent=0 // loop_pre_header
    _
  $region3: #{_lambda_.21} parent=0 // loop_header
    %s9 = sphi 0, %s13
    %p10 = scmp.ge.s32.totalorder %s9, 4
    %s16 = sphi 0, %s28
    %s17 = sphi 0, %s24
    %s18 = sphi 0, %s16
    %s19 = sphi 0, %s17
    %s20 = sphi 0, %s18
    %s21 = sphi 0, %s19
    %s33 = sphi 0, %s35
    %s36 = sphi 0, %s33
    %s37 = sphi 0, %s36
    %s53 = sphi 0, %s37
    %s59 = sphi 0, %s61
    %s62 = sphi 0, %s59
    %s63 = sphi 0, %s62
    %s79 = sphi 0, %s63
    %s85 = sphi 0, %s87
    %s88 = sphi 0, %s85
    %s89 = sphi 0, %s88
    %s105 = sphi 0, %s89
    %s113 = sphi 0, %s115
    %s116 = sphi 0, %s113
    %s117 = sphi 0, %s116
    %s133 = sphi 0, %s117
  $region4: #{_lambda_.21} parent=0 // loop_header_branch
    %12 = sbr.rel (%p10) target = $region8
  $region5: #{_lambda_.21} parent=0 // loop_body
    %s14 = ssub.s32 %s9, 1
    %s15 = ssub.s32 %s9, 2
    %s22 = sadd.s32 1, %s17
    %p23 = scmp.ge.s32.totalorder %s22, 2
    %s24 = scalar_select %p23, 0, %s22
    %s25 = sadd.s32 1, %s16
    %s26 = scalar_select %p23, %s25, %s16
    %p27 = scmp.ge.s32.totalorder %s26, 1
    %s28 = scalar_select %p27, 0, %s26
    %s29 = ssub.s32 %s16, %s28
    %s30 = ssub.s32 %s17, %s24
    %s31 = sor.u32 %s29, %s30
    %p32 = scmp.eq.s32.totalorder %s31, 0
    %s34 = sadd.s32 %s33, 1
    %s35 = scalar_select %p32, %s33, %s34
    %p38 = pneg %p32
    %p39 = scmp.eq.s32.totalorder %s9, 1
    %p40 = por %p38, %p39
    %p41 = scmp.ne.s32.totalorder %s33, %s36
    %p42 = scmp.eq.s32.totalorder %s9, 0
    %p43 = por %p41, %p42
    %p44 = scmp.ne.s32.totalorder %s33, %s36
    %p45 = scmp.eq.s32.totalorder %s14, 1
    %p46 = por %p44, %p45
    %p47 = scmp.ne.s32.totalorder %s36, %s37
    %p48 = scmp.eq.s32.totalorder %s14, 0
    %p49 = por %p47, %p48
    %p50 = scmp.ne.s32.totalorder %s36, %s37
    %p51 = scmp.eq.s32.totalorder %s15, 1
    %p52 = por %p50, %p51
    %p54 = scmp.ne.s32.totalorder %s37, %s53
    %p55 = scmp.eq.s32.totalorder %s15, 0
    %p56 = por %p54, %p55
    %s57 = ssub.s32 %s16, %s28
    %p58 = scmp.eq.s32.totalorder %s57, 0
    %s60 = sadd.s32 %s59, 1
    %s61 = scalar_select %p58, %s59, %s60
    %p64 = pneg %p58
    %p65 = scmp.eq.s32.totalorder %s9, 1
    %p66 = por %p64, %p65
    %p67 = scmp.ne.s32.totalorder %s59, %s62
    %p68 = scmp.eq.s32.totalorder %s9, 0
    %p69 = por %p67, %p68
    %p70 = scmp.ne.s32.totalorder %s59, %s62
    %p71 = scmp.eq.s32.totalorder %s14, 1
    %p72 = por %p70, %p71
    %p73 = scmp.ne.s32.totalorder %s62, %s63
    %p74 = scmp.eq.s32.totalorder %s14, 0
    %p75 = por %p73, %p74
    %p76 = scmp.ne.s32.totalorder %s62, %s63
    %p77 = scmp.eq.s32.totalorder %s15, 1
    %p78 = por %p76, %p77
    %p80 = scmp.ne.s32.totalorder %s63, %s79
    %p81 = scmp.eq.s32.totalorder %s15, 0
    %p82 = por %p80, %p81
    %s83 = ssub.s32 %s16, %s28
    %p84 = scmp.eq.s32.totalorder %s83, 0
    %s86 = sadd.s32 %s85, 1
    %s87 = scalar_select %p84, %s85, %s86
    %p90 = pneg %p84
    %p91 = scmp.eq.s32.totalorder %s9, 1
    %p92 = por %p90, %p91
    %p93 = scmp.ne.s32.totalorder %s85, %s88
    %p94 = scmp.eq.s32.totalorder %s9, 0
    %p95 = por %p93, %p94
    %p96 = scmp.ne.s32.totalorder %s85, %s88
    %p97 = scmp.eq.s32.totalorder %s14, 1
    %p98 = por %p96, %p97
    %p99 = scmp.ne.s32.totalorder %s88, %s89
    %p100 = scmp.eq.s32.totalorder %s14, 0
    %p101 = por %p99, %p100
    %p102 = scmp.ne.s32.totalorder %s88, %s89
    %p103 = scmp.eq.s32.totalorder %s15, 1
    %p104 = por %p102, %p103
    %p106 = scmp.ne.s32.totalorder %s89, %s105
    %p107 = scmp.eq.s32.totalorder %s15, 0
    %p108 = por %p106, %p107
    %s109 = ssub.s32 %s16, %s28
    %s110 = ssub.s32 %s17, %s24
    %s111 = sor.u32 %s109, %s110
    %p112 = scmp.eq.s32.totalorder %s111, 0
    %s114 = sadd.s32 %s113, 1
    %s115 = scalar_select %p112, %s113, %s114
    %p118 = pneg %p112
    %p119 = scmp.eq.s32.totalorder %s9, 1
    %p120 = por %p118, %p119
    %p121 = scmp.ne.s32.totalorder %s113, %s116
    %p122 = scmp.eq.s32.totalorder %s9, 0
    %p123 = por %p121, %p122
    %p124 = scmp.ne.s32.totalorder %s113, %s116
    %p125 = scmp.eq.s32.totalorder %s14, 1
    %p126 = por %p124, %p125
    %p127 = scmp.ne.s32.totalorder %s116, %s117
    %p128 = scmp.eq.s32.totalorder %s14, 0
    %p129 = por %p127, %p128
    %p130 = scmp.ne.s32.totalorder %s116, %s117
    %p131 = scmp.eq.s32.totalorder %s15, 1
    %p132 = por %p130, %p131
    %p134 = scmp.ne.s32.totalorder %s117, %s133
    %p135 = scmp.eq.s32.totalorder %s15, 0
    %p136 = por %p134, %p135
    %p137 = scmp.le.s32.totalorder 1, %s9
    %p138 = scmp.lt.s32.totalorder %s9, 3
    %p139 = pnand %p137, %p138
    %p140 = pneg %p139
    // Predicated region
    $region9: #{_lambda_.21} parent=5 // pred_check
      _
    $region10: #{_lambda_.21} parent=5 // pred_check_branch
      %142 = sbr.rel (%p139) target = $region12
    $region11: #{_lambda_.21} parent=5 // pred_region
      %s143 = ssub.s32 %s9, 1
      // Predicated region
      $region13: #{_lambda_.21} parent=11 // pred_check
        %p144 = pneg %p75
      $region14: #{_lambda_.21} parent=11 // pred_check_branch
        %146 = sbr.rel (%p144) target = $region16
      $region15: #{_lambda_.21} parent=11 // pred_region
        %p147 = scmp.lt.s32.totalorder %s18, 0
        %s148 = scalar_select %p147, %s18, 0
        %s149 = smul.addr %s148, 3
        %s150 = smul.addr %s149, 4
        %s151 = scalar_lea.vmem %s1, %s150
      $region16: #{_lambda_.21} parent=11 // pred_fallthru
        _
      // Predicated region
      $region17: #{_lambda_.21} parent=11 // pred_check
        %p152 = pneg %p101
      $region18: #{_lambda_.21} parent=11 // pred_check_branch
        %154 = sbr.rel (%p152) target = $region20
      $region19: #{_lambda_.21} parent=11 // pred_region
        %p155 = scmp.lt.s32.totalorder %s18, 0
        %s156 = scalar_select %p155, %s18, 0
        %s157 = scalar_lea.vmem %s2, %s156
      $region20: #{_lambda_.21} parent=11 // pred_fallthru
        _
    $region12: #{_lambda_.21} parent=5 // pred_fallthru
      _
    %p158 = scmp.lt.s32.totalorder %s9, 2
    // Predicated region
    $region21: #{_lambda_.21} parent=5 // pred_check
      %p159 = pneg %p158
    $region22: #{_lambda_.21} parent=5 // pred_check_branch
      %161 = sbr.rel (%p159) target = $region24
    $region23: #{_lambda_.21} parent=5 // pred_region
      // Predicated region
      $region25: #{_lambda_.21} parent=23 // pred_check
        %p162 = pneg %p43
      $region26: #{_lambda_.21} parent=23 // pred_check_branch
        %164 = sbr.rel (%p162) target = $region28
      $region27: #{_lambda_.21} parent=23 // pred_region
        %p165 = scmp.lt.s32.totalorder %s16, 0
        %s166 = scalar_select %p165, %s16, 0
        %p167 = scmp.lt.s32.totalorder %s17, 1
        %s168 = scalar_select %p167, %s17, 1
        %s169 = smul.addr %s168, 3
        %s170 = smul.addr %s166, 6
        %s171 = sadd.s32 %s169, %s170
        %s172 = smul.addr %s171, 8
        %s173 = scalar_lea.vmem %s0, %s172
      $region28: #{_lambda_.21} parent=23 // pred_fallthru
        _
    $region24: #{_lambda_.21} parent=5 // pred_fallthru
      _
    %p174 = scmp.le.s32.totalorder 1, %s9
    %p175 = scmp.lt.s32.totalorder %s9, 3
    %p176 = pnand %p174, %p175
    %p177 = pneg %p176
    // Predicated region
    $region29: #{_lambda_.21} parent=5 // pred_check
      _
    $region30: #{_lambda_.21} parent=5 // pred_check_branch
      %179 = sbr.rel (%p176) target = $region32
    $region31: #{_lambda_.21} parent=5 // pred_region
      %s180 = ssub.s32 %s9, 1
      %p181 = scmp.lt.s32.totalorder %s18, 0
      %s182 = scalar_select %p181, %s18, 0
      %p183 = scmp.lt.s32.totalorder %s19, 1
      %s184 = scalar_select %p183, %s19, 1
      %s185 = smul.addr %s184, 3
      %s186 = smul.addr %s182, 6
      %s187 = sadd.s32 %s185, %s186
      %s188 = smul.addr %s187, 8
      %s189 = scalar_lea.vmem %s0, %s188
      %p190 = pneg %p49
      %p191 = pneg %p46
      %p192 = scmp.lt.s32.totalorder %s18, 0
      %s193 = scalar_select %p192, %s18, 0
      %s194 = smul.addr %s193, 3
      %s195 = smul.addr %s194, 4
      %s196 = scalar_lea.vmem %s1, %s195
      %p197 = pneg %p75
      %p198 = pneg %p72
      %p199 = scmp.lt.s32.totalorder %s18, 0
      %s200 = scalar_select %p199, %s18, 0
      %s201 = scalar_lea.vmem %s2, %s200
      %p202 = pneg %p101
      %p203 = pneg %p98
      %p204 = pneg %p129
      %p205 = pneg %p126
      %p206 = scmp.lt.s32.totalorder %s18, 0
      %s207 = scalar_select %p206, %s18, 0
      %p208 = scmp.lt.s32.totalorder %s19, 1
      %s209 = scalar_select %p208, %s19, 1
      %s210 = smul.addr %s209, 2
      %s211 = smul.addr %s207, 4
      %s212 = sadd.s32 %s210, %s211
      %s213 = smul.addr %s212, 8
      %s214 = scalar_lea.vmem %s3, %s213
      %p215 = scmp.lt.s32.totalorder %s18, 0
      %s216 = scalar_select %p215, %s18, 0
      %p217 = scmp.lt.s32.totalorder %s19, 1
      %s218 = scalar_select %p217, %s19, 1
      %s219 = smul.addr %s218, 3
      %s220 = smul.addr %s216, 6
      %s221 = sadd.s32 %s219, %s220
      %s222 = smul.addr %s221, 8
      %s223 = scalar_lea.vmem %s0, %s222
      %p224 = scmp.lt.s32.totalorder %s18, 0
      %s225 = scalar_select %p224, %s18, 0
      %s226 = smul.addr %s225, 3
      %s227 = smul.addr %s226, 4
      %s228 = scalar_lea.vmem %s1, %s227
      %p229 = scmp.lt.s32.totalorder %s18, 0
      %s230 = scalar_select %p229, %s18, 0
      %s231 = scalar_lea.vmem %s2, %s230
      %p232 = scmp.lt.s32.totalorder %s18, 0
      %s233 = scalar_select %p232, %s18, 0
      %p234 = scmp.lt.s32.totalorder %s19, 1
      %s235 = scalar_select %p234, %s19, 1
      %s236 = smul.addr %s235, 2
      %s237 = smul.addr %s233, 4
      %s238 = sadd.s32 %s236, %s237
      %s239 = smul.addr %s238, 8
      %s240 = scalar_lea.vmem %s3, %s239
      %v242 = vld [vmem:[%s223] sm:$0xff]
      %v243 = vld [vmem:[%s223 + $0x8] sm:$0xff]
      %v244 = vpack.c.bf16 %v243, %v242
      %v245 = vld [vmem:[%s228] sm:$0xf]
      %v246 = vld [vmem:[%s223 + $0x1] sm:$0xff]
      %v247 = vld [vmem:[%s223 + $0x9] sm:$0xff]
      %v248 = vpack.c.bf16 %v247, %v246
      %s249 = scalar_lea.vmem %s228, 4
      %v250 = vld [vmem:[%s249] sm:$0xf]
      %vm251 = vcmask 64512
      %v253 = vsel %vm251, %v248, 0
      %vm255 = vcmask 1043456
      %v257 = vsel %vm255, %v250, 0
      %259 = vmatpush.bf16.msra.mxu0 0
      %260 = vmatpush.bf16.msra.mxu0 0
      %261 = vmatpush.bf16.msra.mxu0 0
      %262 = vmatpush.bf16.msra.mxu0 0
      %263 = vmatpush.bf16.msra.mxu0 0
      %264 = vmatpush.bf16.msra.mxu0 0
      %265 = vmatpush.bf16.msra.mxu0 0
      %266 = vmatpush.bf16.msra.mxu0 %v257
      %267 = vmatmul.bf16.gmra.mxu0 %v253
      %v268 = vpop.f32.mrf.mxu0
      %v269 = vadd.f32 0.0, %v268
      %v270 = vpop.f32.mrf.mxu0
      %v271 = vadd.f32 0.0, %v270
      %272 = vdwg.mxu0
      %v274 = vsel %vm251, %v244, 0
      %v277 = vsel %vm255, %v245, 0
      %279 = vmatpush.bf16.msra.mxu0 0
      %280 = vmatpush.bf16.msra.mxu0 0
      %281 = vmatpush.bf16.msra.mxu0 0
      %282 = vmatpush.bf16.msra.mxu0 0
      %283 = vmatpush.bf16.msra.mxu0 0
      %284 = vmatpush.bf16.msra.mxu0 0
      %285 = vmatpush.bf16.msra.mxu0 0
      %286 = vmatpush.bf16.msra.mxu0 %v277
      %287 = vmatmul.bf16.gmra.mxu0 %v274
      %v288 = vpop.f32.mrf.mxu0
      %v289 = vadd.f32 %v269, %v288
      %v290 = vpop.f32.mrf.mxu0
      %v291 = vadd.f32 %v271, %v290
      %292 = vdwg.mxu0
      %v293 = vld [vmem:[%s223 + $0x2] sm:$0xff]
      %v294 = vld [vmem:[%s223 + $0xa] sm:$0xff]
      %v295 = vpack.c.bf16 %v294, %v293
      %s296 = scalar_lea.vmem %s228, 8
      %v297 = vld [vmem:[%s296] sm:$0xf]
      %v299 = vsel %vm251, %v295, 0
      %v302 = vsel %vm255, %v297, 0
      %304 = vmatpush.bf16.msra.mxu0 0
      %305 = vmatpush.bf16.msra.mxu0 0
      %306 = vmatpush.bf16.msra.mxu0 0
      %307 = vmatpush.bf16.msra.mxu0 0
      %308 = vmatpush.bf16.msra.mxu0 0
      %309 = vmatpush.bf16.msra.mxu0 0
      %310 = vmatpush.bf16.msra.mxu0 0
      %311 = vmatpush.bf16.msra.mxu0 %v302
      %312 = vmatmul.bf16.gmra.mxu0 %v299
      %v313 = vpop.f32.mrf.mxu0
      %v314 = vadd.f32 0.0, %v313
      %v315 = vpop.f32.mrf.mxu0
      %v316 = vadd.f32 0.0, %v315
      %317 = vdwg.mxu0
      %v318 = vadd.f32 %v289, %v314
      %v319 = vadd.f32 %v291, %v316
      %v320 = vld [vmem:[%s231] sm:$0x1]
      %v322 = vperm.slane %v320, 0
      %v324 = vadd.f32 %v318, %v322
      %v325 = vadd.f32 %v319, %v322
      %vm326 = vcmp.ge.f32.partialorder %v324, 0.0
      %vm327 = vcmp.ge.f32.partialorder %v325, 0.0
      %v328 = vmul.f32 %v324, 0.01
      %v329 = vmul.f32 %v325, 0.01
      %v330 = vsel %vm326, %v324, %v328
      %v331 = vsel %vm327, %v325, %v329
      %vm332 = vcmask 80896
      %333 = vst.msk [vmem:[%s240] sm:$0xff] %vm332, %v330
      %334 = vst.msk [vmem:[%s240 + $0x8] sm:$0xff] %vm332, %v331
      %p335 = scmp.lt.s32.totalorder %s18, 0
      %s336 = scalar_select %p335, %s18, 0
      %p337 = scmp.lt.s32.totalorder %s19, 1
      %s338 = scalar_select %p337, %s19, 1
      %s339 = smul.addr %s338, 2
      %s340 = smul.addr %s336, 4
      %s341 = sadd.s32 %s339, %s340
      %s342 = smul.addr %s341, 8
      %s343 = scalar_lea.vmem %s3, %s342
      // Predicated region
      $region33: #{_lambda_.21} parent=31 // pred_check
        %p344 = pneg %p126
      $region34: #{_lambda_.21} parent=31 // pred_check_branch
        %346 = sbr.rel (%p344) target = $region36
      $region35: #{_lambda_.21} parent=31 // pred_region
        _
      $region36: #{_lambda_.21} parent=31 // pred_fallthru
        _
    $region32: #{_lambda_.21} parent=5 // pred_fallthru
      _
    %p347 = scmp.le.s32.totalorder 2, %s9
    // Predicated region
    $region37: #{_lambda_.21} parent=5 // pred_check
      %p348 = pneg %p347
    $region38: #{_lambda_.21} parent=5 // pred_check_branch
      %350 = sbr.rel (%p348) target = $region40
    $region39: #{_lambda_.21} parent=5 // pred_region
      %s351 = ssub.s32 %s9, 2
      // Predicated region
      $region41: #{_lambda_.21} parent=39 // pred_check
        %p352 = pneg %p132
      $region42: #{_lambda_.21} parent=39 // pred_check_branch
        %354 = sbr.rel (%p352) target = $region44
      $region43: #{_lambda_.21} parent=39 // pred_region
        %p355 = scmp.lt.s32.totalorder %s20, 0
        %s356 = scalar_select %p355, %s20, 0
        %p357 = scmp.lt.s32.totalorder %s21, 1
        %s358 = scalar_select %p357, %s21, 1
        %s359 = smul.addr %s358, 2
        %s360 = smul.addr %s356, 4
        %s361 = sadd.s32 %s359, %s360
        %s362 = smul.addr %s361, 8
        %s363 = scalar_lea.vmem %s3, %s362
      $region44: #{_lambda_.21} parent=39 // pred_fallthru
        _
    $region40: #{_lambda_.21} parent=5 // pred_fallthru
      _
  $region6: #{_lambda_.21} parent=0 // loop_footer
    %s13 = sadd.s32 1, %s9
  $region7: #{_lambda_.21} parent=0 // loop_footer_branch
    %8 = sbr.rel target = $region3
  $region8: #{_lambda_.21} parent=0 // loop_exit
    _

// kernel: _lambda_.22
$region0: #{_lambda_.22}
  #allocation0 [shape = 'u32[]', space=smem, size = 0x4, offset = 0x4, fixed_abs, tag = 'smem constant byte address 0x4 - core index']
  #allocation1 [shape = 'u32[72,128]{1,0:T(1,128)}', space=vmem, size = 0x9000, scoped, tag = 'internal scratch']
  %s0 = inlined_call_operand.vmem [shape: f32[1,2,18,16], index: 0, kind: input, shape index: {}]
  %s1 = inlined_call_operand.vmem [shape: bf16[1,3,16,16], index: 1, kind: input, shape index: {}]
  %s2 = inlined_call_operand.vmem [shape: f32[1,1,16], index: 2, kind: input, shape index: {}]
  %s3 = inlined_call_operand.vmem [shape: f32[1,2,16,16], index: 3, kind: output, shape index: {}]
  %s4 = sld [smem:[#allocation0]]
  $region45: #{_lambda_.22} parent=0
    _
  %s6 = ssub.s32 1, %s4
  %s7 = scalar_select 0, %s6, %s4
  loop: start=0, step=1, limit=4
  $region2: #{_lambda_.22} parent=0 // loop_pre_header
    _
  $region3: #{_lambda_.22} parent=0 // loop_header
    %s9 = sphi 0, %s13
    %p10 = scmp.ge.s32.totalorder %s9, 4
    %s16 = sphi 0, %s28
    %s17 = sphi 0, %s24
    %s18 = sphi 0, %s16
    %s19 = sphi 0, %s17
    %s20 = sphi 0, %s18
    %s21 = sphi 0, %s19
    %s33 = sphi 0, %s35
    %s36 = sphi 0, %s33
    %s37 = sphi 0, %s36
    %s53 = sphi 0, %s37
    %s59 = sphi 0, %s61
    %s62 = sphi 0, %s59
    %s63 = sphi 0, %s62
    %s79 = sphi 0, %s63
    %s85 = sphi 0, %s87
    %s88 = sphi 0, %s85
    %s89 = sphi 0, %s88
    %s105 = sphi 0, %s89
    %s113 = sphi 0, %s115
    %s116 = sphi 0, %s113
    %s117 = sphi 0, %s116
    %s133 = sphi 0, %s117
  $region4: #{_lambda_.22} parent=0 // loop_header_branch
    %12 = sbr.rel (%p10) target = $region8
  $region5: #{_lambda_.22} parent=0 // loop_body
    %s14 = ssub.s32 %s9, 1
    %s15 = ssub.s32 %s9, 2
    %s22 = sadd.s32 1, %s17
    %p23 = scmp.ge.s32.totalorder %s22, 2
    %s24 = scalar_select %p23, 0, %s22
    %s25 = sadd.s32 1, %s16
    %s26 = scalar_select %p23, %s25, %s16
    %p27 = scmp.ge.s32.totalorder %s26, 1
    %s28 = scalar_select %p27, 0, %s26
    %s29 = ssub.s32 %s16, %s28
    %s30 = ssub.s32 %s17, %s24
    %s31 = sor.u32 %s29, %s30
    %p32 = scmp.eq.s32.totalorder %s31, 0
    %s34 = sadd.s32 %s33, 1
    %s35 = scalar_select %p32, %s33, %s34
    %p38 = pneg %p32
    %p39 = scmp.eq.s32.totalorder %s9, 1
    %p40 = por %p38, %p39
    %p41 = scmp.ne.s32.totalorder %s33, %s36
    %p42 = scmp.eq.s32.totalorder %s9, 0
    %p43 = por %p41, %p42
    %p44 = scmp.ne.s32.totalorder %s33, %s36
    %p45 = scmp.eq.s32.totalorder %s14, 1
    %p46 = por %p44, %p45
    %p47 = scmp.ne.s32.totalorder %s36, %s37
    %p48 = scmp.eq.s32.totalorder %s14, 0
    %p49 = por %p47, %p48
    %p50 = scmp.ne.s32.totalorder %s36, %s37
    %p51 = scmp.eq.s32.totalorder %s15, 1
    %p52 = por %p50, %p51
    %p54 = scmp.ne.s32.totalorder %s37, %s53
    %p55 = scmp.eq.s32.totalorder %s15, 0
    %p56 = por %p54, %p55
    %s57 = ssub.s32 %s16, %s28
    %p58 = scmp.eq.s32.totalorder %s57, 0
    %s60 = sadd.s32 %s59, 1
    %s61 = scalar_select %p58, %s59, %s60
    %p64 = pneg %p58
    %p65 = scmp.eq.s32.totalorder %s9, 1
    %p66 = por %p64, %p65
    %p67 = scmp.ne.s32.totalorder %s59, %s62
    %p68 = scmp.eq.s32.totalorder %s9, 0
    %p69 = por %p67, %p68
    %p70 = scmp.ne.s32.totalorder %s59, %s62
    %p71 = scmp.eq.s32.totalorder %s14, 1
    %p72 = por %p70, %p71
    %p73 = scmp.ne.s32.totalorder %s62, %s63
    %p74 = scmp.eq.s32.totalorder %s14, 0
    %p75 = por %p73, %p74
    %p76 = scmp.ne.s32.totalorder %s62, %s63
    %p77 = scmp.eq.s32.totalorder %s15, 1
    %p78 = por %p76, %p77
    %p80 = scmp.ne.s32.totalorder %s63, %s79
    %p81 = scmp.eq.s32.totalorder %s15, 0
    %p82 = por %p80, %p81
    %s83 = ssub.s32 %s16, %s28
    %p84 = scmp.eq.s32.totalorder %s83, 0
    %s86 = sadd.s32 %s85, 1
    %s87 = scalar_select %p84, %s85, %s86
    %p90 = pneg %p84
    %p91 = scmp.eq.s32.totalorder %s9, 1
    %p92 = por %p90, %p91
    %p93 = scmp.ne.s32.totalorder %s85, %s88
    %p94 = scmp.eq.s32.totalorder %s9, 0
    %p95 = por %p93, %p94
    %p96 = scmp.ne.s32.totalorder %s85, %s88
    %p97 = scmp.eq.s32.totalorder %s14, 1
    %p98 = por %p96, %p97
    %p99 = scmp.ne.s32.totalorder %s88, %s89
    %p100 = scmp.eq.s32.totalorder %s14, 0
    %p101 = por %p99, %p100
    %p102 = scmp.ne.s32.totalorder %s88, %s89
    %p103 = scmp.eq.s32.totalorder %s15, 1
    %p104 = por %p102, %p103
    %p106 = scmp.ne.s32.totalorder %s89, %s105
    %p107 = scmp.eq.s32.totalorder %s15, 0
    %p108 = por %p106, %p107
    %s109 = ssub.s32 %s16, %s28
    %s110 = ssub.s32 %s17, %s24
    %s111 = sor.u32 %s109, %s110
    %p112 = scmp.eq.s32.totalorder %s111, 0
    %s114 = sadd.s32 %s113, 1
    %s115 = scalar_select %p112, %s113, %s114
    %p118 = pneg %p112
    %p119 = scmp.eq.s32.totalorder %s9, 1
    %p120 = por %p118, %p119
    %p121 = scmp.ne.s32.totalorder %s113, %s116
    %p122 = scmp.eq.s32.totalorder %s9, 0
    %p123 = por %p121, %p122
    %p124 = scmp.ne.s32.totalorder %s113, %s116
    %p125 = scmp.eq.s32.totalorder %s14, 1
    %p126 = por %p124, %p125
    %p127 = scmp.ne.s32.totalorder %s116, %s117
    %p128 = scmp.eq.s32.totalorder %s14, 0
    %p129 = por %p127, %p128
    %p130 = scmp.ne.s32.totalorder %s116, %s117
    %p131 = scmp.eq.s32.totalorder %s15, 1
    %p132 = por %p130, %p131
    %p134 = scmp.ne.s32.totalorder %s117, %s133
    %p135 = scmp.eq.s32.totalorder %s15, 0
    %p136 = por %p134, %p135
    %p137 = scmp.le.s32.totalorder 1, %s9
    %p138 = scmp.lt.s32.totalorder %s9, 3
    %p139 = pnand %p137, %p138
    %p140 = pneg %p139
    // Predicated region
    $region9: #{_lambda_.22} parent=5 // pred_check
      _
    $region10: #{_lambda_.22} parent=5 // pred_check_branch
      %142 = sbr.rel (%p139) target = $region12
    $region11: #{_lambda_.22} parent=5 // pred_region
      %s143 = ssub.s32 %s9, 1
      // Predicated region
      $region13: #{_lambda_.22} parent=11 // pred_check
        %p144 = pneg %p75
      $region14: #{_lambda_.22} parent=11 // pred_check_branch
        %146 = sbr.rel (%p144) target = $region16
      $region15: #{_lambda_.22} parent=11 // pred_region
        %p147 = scmp.lt.s32.totalorder %s18, 0
        %s148 = scalar_select %p147, %s18, 0
        %s149 = smul.addr %s148, 6
        %s150 = smul.addr %s149, 4
        %s151 = scalar_lea.vmem %s1, %s150
      $region16: #{_lambda_.22} parent=11 // pred_fallthru
        _
      // Predicated region
      $region17: #{_lambda_.22} parent=11 // pred_check
        %p152 = pneg %p101
      $region18: #{_lambda_.22} parent=11 // pred_check_branch
        %154 = sbr.rel (%p152) target = $region20
      $region19: #{_lambda_.22} parent=11 // pred_region
        %p155 = scmp.lt.s32.totalorder %s18, 0
        %s156 = scalar_select %p155, %s18, 0
        %s157 = scalar_lea.vmem %s2, %s156
      $region20: #{_lambda_.22} parent=11 // pred_fallthru
        _
    $region12: #{_lambda_.22} parent=5 // pred_fallthru
      _
    %p158 = scmp.lt.s32.totalorder %s9, 2
    // Predicated region
    $region21: #{_lambda_.22} parent=5 // pred_check
      %p159 = pneg %p158
    $region22: #{_lambda_.22} parent=5 // pred_check_branch
      %161 = sbr.rel (%p159) target = $region24
    $region23: #{_lambda_.22} parent=5 // pred_region
      // Predicated region
      $region25: #{_lambda_.22} parent=23 // pred_check
        %p162 = pneg %p43
      $region26: #{_lambda_.22} parent=23 // pred_check_branch
        %164 = sbr.rel (%p162) target = $region28
      $region27: #{_lambda_.22} parent=23 // pred_region
        %p165 = scmp.lt.s32.totalorder %s16, 0
        %s166 = scalar_select %p165, %s16, 0
        %p167 = scmp.lt.s32.totalorder %s17, 1
        %s168 = scalar_select %p167, %s17, 1
        %s169 = smul.addr %s168, 3
        %s170 = smul.addr %s166, 6
        %s171 = sadd.s32 %s169, %s170
        %s172 = smul.addr %s171, 8
        %s173 = scalar_lea.vmem %s0, %s172
      $region28: #{_lambda_.22} parent=23 // pred_fallthru
        _
    $region24: #{_lambda_.22} parent=5 // pred_fallthru
      _
    %p174 = scmp.le.s32.totalorder 1, %s9
    %p175 = scmp.lt.s32.totalorder %s9, 3
    %p176 = pnand %p174, %p175
    %p177 = pneg %p176
    // Predicated region
    $region29: #{_lambda_.22} parent=5 // pred_check
      _
    $region30: #{_lambda_.22} parent=5 // pred_check_branch
      %179 = sbr.rel (%p176) target = $region32
    $region31: #{_lambda_.22} parent=5 // pred_region
      %s180 = ssub.s32 %s9, 1
      %p181 = scmp.lt.s32.totalorder %s18, 0
      %s182 = scalar_select %p181, %s18, 0
      %p183 = scmp.lt.s32.totalorder %s19, 1
      %s184 = scalar_select %p183, %s19, 1
      %s185 = smul.addr %s184, 3
      %s186 = smul.addr %s182, 6
      %s187 = sadd.s32 %s185, %s186
      %s188 = smul.addr %s187, 8
      %s189 = scalar_lea.vmem %s0, %s188
      %p190 = pneg %p49
      %p191 = pneg %p46
      %p192 = scmp.lt.s32.totalorder %s18, 0
      %s193 = scalar_select %p192, %s18, 0
      %s194 = smul.addr %s193, 6
      %s195 = smul.addr %s194, 4
      %s196 = scalar_lea.vmem %s1, %s195
      %p197 = pneg %p75
      %p198 = pneg %p72
      %p199 = scmp.lt.s32.totalorder %s18, 0
      %s200 = scalar_select %p199, %s18, 0
      %s201 = scalar_lea.vmem %s2, %s200
      %p202 = pneg %p101
      %p203 = pneg %p98
      %p204 = pneg %p129
      %p205 = pneg %p126
      %p206 = scmp.lt.s32.totalorder %s18, 0
      %s207 = scalar_select %p206, %s18, 0
      %p208 = scmp.lt.s32.totalorder %s19, 1
      %s209 = scalar_select %p208, %s19, 1
      %s210 = smul.addr %s209, 2
      %s211 = smul.addr %s207, 4
      %s212 = sadd.s32 %s210, %s211
      %s213 = smul.addr %s212, 8
      %s214 = scalar_lea.vmem %s3, %s213
      %p215 = scmp.lt.s32.totalorder %s18, 0
      %s216 = scalar_select %p215, %s18, 0
      %p217 = scmp.lt.s32.totalorder %s19, 1
      %s218 = scalar_select %p217, %s19, 1
      %s219 = smul.addr %s218, 3
      %s220 = smul.addr %s216, 6
      %s221 = sadd.s32 %s219, %s220
      %s222 = smul.addr %s221, 8
      %s223 = scalar_lea.vmem %s0, %s222
      %p224 = scmp.lt.s32.totalorder %s18, 0
      %s225 = scalar_select %p224, %s18, 0
      %s226 = smul.addr %s225, 6
      %s227 = smul.addr %s226, 4
      %s228 = scalar_lea.vmem %s1, %s227
      %p229 = scmp.lt.s32.totalorder %s18, 0
      %s230 = scalar_select %p229, %s18, 0
      %s231 = scalar_lea.vmem %s2, %s230
      %p232 = scmp.lt.s32.totalorder %s18, 0
      %s233 = scalar_select %p232, %s18, 0
      %p234 = scmp.lt.s32.totalorder %s19, 1
      %s235 = scalar_select %p234, %s19, 1
      %s236 = smul.addr %s235, 2
      %s237 = smul.addr %s233, 4
      %s238 = sadd.s32 %s236, %s237
      %s239 = smul.addr %s238, 8
      %s240 = scalar_lea.vmem %s3, %s239
      %v242 = vld [vmem:[%s223] sm:$0xff]
      %v243 = vld [vmem:[%s223 + $0x8] sm:$0xff]
      %v244 = vpack.c.bf16 %v243, %v242
      %v245 = vld [vmem:[%s228] sm:$0xf]
      %v246 = vld [vmem:[%s228 + $0x4] sm:$0xf]
      %v247 = vld [vmem:[%s223 + $0x1] sm:$0xff]
      %v248 = vld [vmem:[%s223 + $0x9] sm:$0xff]
      %v249 = vpack.c.bf16 %v248, %v247
      %s250 = scalar_lea.vmem %s228, 8
      %v251 = vld [vmem:[%s250] sm:$0xf]
      %v252 = vld [vmem:[%s250 + $0x4] sm:$0xf]
      %v255 = vunpack.c.l.b16 %v251
      %v256 = vunpack.c.l.b16 %v252
      %v257 = vpack.c.b16 %v256, %v255
      %vm259 = vcmask 130048
      %v261 = vsel %vm259, %v249, 0
      %263 = vmatpush.bf16.msra.mxu0 0
      %264 = vmatpush.bf16.msra.mxu0 0
      %265 = vmatpush.bf16.msra.mxu0 0
      %266 = vmatpush.bf16.msra.mxu0 0
      %267 = vmatpush.bf16.msra.mxu0 0
      %268 = vmatpush.bf16.msra.mxu0 0
      %269 = vmatpush.bf16.msra.mxu0 0
      %270 = vmatpush.bf16.msra.mxu0 %v257
      %271 = vmatmul.bf16.gmra.mxu0 %v261
      %v272 = vpop.f32.mrf.mxu0
      %v273 = vadd.f32 0.0, %v272
      %v274 = vpop.f32.mrf.mxu0
      %v275 = vadd.f32 0.0, %v274
      %276 = vdwg.mxu0
      %v279 = vunpack.c.l.b16 %v245
      %v280 = vunpack.c.l.b16 %v246
      %v281 = vpack.c.b16 %v280, %v279
      %v284 = vsel %vm259, %v244, 0
      %286 = vmatpush.bf16.msra.mxu0 0
      %287 = vmatpush.bf16.msra.mxu0 0
      %288 = vmatpush.bf16.msra.mxu0 0
      %289 = vmatpush.bf16.msra.mxu0 0
      %290 = vmatpush.bf16.msra.mxu0 0
      %291 = vmatpush.bf16.msra.mxu0 0
      %292 = vmatpush.bf16.msra.mxu0 0
      %293 = vmatpush.bf16.msra.mxu0 %v281
      %294 = vmatmul.bf16.gmra.mxu0 %v284
      %v295 = vpop.f32.mrf.mxu0
      %v296 = vadd.f32 %v273, %v295
      %v297 = vpop.f32.mrf.mxu0
      %v298 = vadd.f32 %v275, %v297
      %299 = vdwg.mxu0
      %v300 = vld [vmem:[%s223 + $0x2] sm:$0xff]
      %v301 = vld [vmem:[%s223 + $0xa] sm:$0xff]
      %v302 = vpack.c.bf16 %v301, %v300
      %s303 = scalar_lea.vmem %s228, 16
      %v304 = vld [vmem:[%s303] sm:$0xf]
      %v305 = vld [vmem:[%s303 + $0x4] sm:$0xf]
      %v308 = vunpack.c.l.b16 %v304
      %v309 = vunpack.c.l.b16 %v305
      %v310 = vpack.c.b16 %v309, %v308
      %v313 = vsel %vm259, %v302, 0
      %315 = vmatpush.bf16.msra.mxu0 0
      %316 = vmatpush.bf16.msra.mxu0 0
      %317 = vmatpush.bf16.msra.mxu0 0
      %318 = vmatpush.bf16.msra.mxu0 0
      %319 = vmatpush.bf16.msra.mxu0 0
      %320 = vmatpush.bf16.msra.mxu0 0
      %321 = vmatpush.bf16.msra.mxu0 0
      %322 = vmatpush.bf16.msra.mxu0 %v310
      %323 = vmatmul.bf16.gmra.mxu0 %v313
      %v324 = vpop.f32.mrf.mxu0
      %v325 = vadd.f32 0.0, %v324
      %v326 = vpop.f32.mrf.mxu0
      %v327 = vadd.f32 0.0, %v326
      %328 = vdwg.mxu0
      %v329 = vadd.f32 %v296, %v325
      %v330 = vadd.f32 %v298, %v327
      %v331 = vld [vmem:[%s231] sm:$0x1]
      %v333 = vperm.slane %v331, 0
      %v335 = vadd.f32 %v329, %v333
      %v336 = vadd.f32 %v330, %v333
      %vm337 = vcmp.ge.f32.partialorder %v335, 0.0
      %vm338 = vcmp.ge.f32.partialorder %v336, 0.0
      %v339 = vmul.f32 %v335, 0.01
      %v340 = vmul.f32 %v336, 0.01
      %v341 = vsel %vm337, %v335, %v339
      %v342 = vsel %vm338, %v336, %v340
      %343 = vst.msk [vmem:[%s240] sm:$0xff] %vm259, %v341
      %344 = vst.msk [vmem:[%s240 + $0x8] sm:$0xff] %vm259, %v342
      %p345 = scmp.lt.s32.totalorder %s18, 0
      %s346 = scalar_select %p345, %s18, 0
      %p347 = scmp.lt.s32.totalorder %s19, 1
      %s348 = scalar_select %p347, %s19, 1
      %s349 = smul.addr %s348, 2
      %s350 = smul.addr %s346, 4
      %s351 = sadd.s32 %s349, %s350
      %s352 = smul.addr %s351, 8
      %s353 = scalar_lea.vmem %s3, %s352
      // Predicated region
      $region33: #{_lambda_.22} parent=31 // pred_check
        %p354 = pneg %p126
      $region34: #{_lambda_.22} parent=31 // pred_check_branch
        %356 = sbr.rel (%p354) target = $region36
      $region35: #{_lambda_.22} parent=31 // pred_region
        _
      $region36: #{_lambda_.22} parent=31 // pred_fallthru
        _
    $region32: #{_lambda_.22} parent=5 // pred_fallthru
      _
    %p357 = scmp.le.s32.totalorder 2, %s9
    // Predicated region
    $region37: #{_lambda_.22} parent=5 // pred_check
      %p358 = pneg %p357
    $region38: #{_lambda_.22} parent=5 // pred_check_branch
      %360 = sbr.rel (%p358) target = $region40
    $region39: #{_lambda_.22} parent=5 // pred_region
      %s361 = ssub.s32 %s9, 2
      // Predicated region
      $region41: #{_lambda_.22} parent=39 // pred_check
        %p362 = pneg %p132
      $region42: #{_lambda_.22} parent=39 // pred_check_branch
        %364 = sbr.rel (%p362) target = $region44
      $region43: #{_lambda_.22} parent=39 // pred_region
        %p365 = scmp.lt.s32.totalorder %s20, 0
        %s366 = scalar_select %p365, %s20, 0
        %p367 = scmp.lt.s32.totalorder %s21, 1
        %s368 = scalar_select %p367, %s21, 1
        %s369 = smul.addr %s368, 2
        %s370 = smul.addr %s366, 4
        %s371 = sadd.s32 %s369, %s370
        %s372 = smul.addr %s371, 8
        %s373 = scalar_lea.vmem %s3, %s372
      $region44: #{_lambda_.22} parent=39 // pred_fallthru
        _
    $region40: #{_lambda_.22} parent=5 // pred_fallthru
      _
  $region6: #{_lambda_.22} parent=0 // loop_footer
    %s13 = sadd.s32 1, %s9
  $region7: #{_lambda_.22} parent=0 // loop_footer_branch
    %8 = sbr.rel target = $region3
  $region8: #{_lambda_.22} parent=0 // loop_exit
    _

// kernel: squeeze.21
$region0: #{squeeze.21}
  %s0 = inlined_call_operand.vmem [shape: f32[1,2,16,48], index: 0, kind: input, shape index: {}]
  %s1 = inlined_call_operand.vmem [shape: f32[2,16,3,16], index: 1, kind: output, shape index: {}]
  $region1: #{squeeze.21} parent=0
    #allocation0 [shape = 'u8[131072]{0}', space=vmem, size = 0x20000, scoped, tag = 'scoped mem for output reshape']
    %v2 = vld [vmem:[%s0] sm:$0xff]
    %vm3 = vcmask 130048
    %4 = vst.msk [vmem:[#allocation0] ss:$8 sm:$0xf] %vm3, %v2
    %5 = vst.msk [vmem:[#allocation0] ss:$8 sm:$0xf0] %vm3, %v2
    %s6 = scalar_lea.vmem %s0, 8
    %v7 = vld [vmem:[%s6] sm:$0xff]
    %vm8 = vcmask 130048
    %s9 = scalar_lea.vmem [#allocation0], 64
    %10 = vst.msk [vmem:[%s9] ss:$8 sm:$0xf] %vm8, %v7
    %s11 = scalar_lea.vmem [#allocation0], 64
    %12 = vst.msk [vmem:[%s11] ss:$8 sm:$0xf0] %vm8, %v7
    %s13 = scalar_lea.vmem %s0, 16
    %v14 = vld [vmem:[%s13] sm:$0xff]
    %vm15 = vcmask 130048
    %s16 = scalar_lea.vmem [#allocation0], 128
    %17 = vst.msk [vmem:[%s16] ss:$8 sm:$0xf] %vm15, %v14
    %s18 = scalar_lea.vmem [#allocation0], 128
    %19 = vst.msk [vmem:[%s18] ss:$8 sm:$0xf0] %vm15, %v14
    %s20 = scalar_lea.vmem %s0, 24
    %v21 = vld [vmem:[%s20] sm:$0xff]
    %vm22 = vcmask 130048
    %s23 = scalar_lea.vmem [#allocation0], 192
    %24 = vst.msk [vmem:[%s23] ss:$8 sm:$0xf] %vm22, %v21
    %s25 = scalar_lea.vmem [#allocation0], 192
    %26 = vst.msk [vmem:[%s25] ss:$8 sm:$0xf0] %vm22, %v21
    %v27 = vld [vmem:[%s0] sm:$0xff]
    %28 = vrot.lane.b32.xlu0 %v27, 112
    %v29 = vpop.permute.xlu0 %28
    %vm30 = vcmask 130048
    %s31 = scalar_lea.vmem [#allocation0], 1
    %32 = vst.msk [vmem:[%s31] ss:$8 sm:$0xf] %vm30, %v29
    %s33 = scalar_lea.vmem [#allocation0], 1
    %34 = vst.msk [vmem:[%s33] ss:$8 sm:$0xf0] %vm30, %v29
    %s35 = scalar_lea.vmem %s0, 8
    %v36 = vld [vmem:[%s35] sm:$0xff]
    %37 = vrot.lane.b32.xlu0 %v36, 112
    %v38 = vpop.permute.xlu0 %37
    %vm39 = vcmask 130048
    %s40 = scalar_lea.vmem [#allocation0], 65
    %41 = vst.msk [vmem:[%s40] ss:$8 sm:$0xf] %vm39, %v38
    %s42 = scalar_lea.vmem [#allocation0], 65
    %43 = vst.msk [vmem:[%s42] ss:$8 sm:$0xf0] %vm39, %v38
    %s44 = scalar_lea.vmem %s0, 16
    %v45 = vld [vmem:[%s44] sm:$0xff]
    %46 = vrot.lane.b32.xlu0 %v45, 112
    %v47 = vpop.permute.xlu0 %46
    %vm48 = vcmask 130048
    %s49 = scalar_lea.vmem [#allocation0], 129
    %50 = vst.msk [vmem:[%s49] ss:$8 sm:$0xf] %vm48, %v47
    %s51 = scalar_lea.vmem [#allocation0], 129
    %52 = vst.msk [vmem:[%s51] ss:$8 sm:$0xf0] %vm48, %v47
    %s53 = scalar_lea.vmem %s0, 24
    %v54 = vld [vmem:[%s53] sm:$0xff]
    %55 = vrot.lane.b32.xlu0 %v54, 112
    %v56 = vpop.permute.xlu0 %55
    %vm57 = vcmask 130048
    %s58 = scalar_lea.vmem [#allocation0], 193
    %59 = vst.msk [vmem:[%s58] ss:$8 sm:$0xf] %vm57, %v56
    %s60 = scalar_lea.vmem [#allocation0], 193
    %61 = vst.msk [vmem:[%s60] ss:$8 sm:$0xf0] %vm57, %v56
    %v62 = vld [vmem:[%s0] sm:$0xff]
    %63 = vrot.lane.b32.xlu0 %v62, 96
    %v64 = vpop.permute.xlu0 %63
    %vm65 = vcmask 130048
    %s66 = scalar_lea.vmem [#allocation0], 2
    %67 = vst.msk [vmem:[%s66] ss:$8 sm:$0xf] %vm65, %v64
    %s68 = scalar_lea.vmem [#allocation0], 2
    %69 = vst.msk [vmem:[%s68] ss:$8 sm:$0xf0] %vm65, %v64
    %s70 = scalar_lea.vmem %s0, 8
    %v71 = vld [vmem:[%s70] sm:$0xff]
    %72 = vrot.lane.b32.xlu0 %v71, 96
    %v73 = vpop.permute.xlu0 %72
    %vm74 = vcmask 130048
    %s75 = scalar_lea.vmem [#allocation0], 66
    %76 = vst.msk [vmem:[%s75] ss:$8 sm:$0xf] %vm74, %v73
    %s77 = scalar_lea.vmem [#allocation0], 66
    %78 = vst.msk [vmem:[%s77] ss:$8 sm:$0xf0] %vm74, %v73
    %s79 = scalar_lea.vmem %s0, 16
    %v80 = vld [vmem:[%s79] sm:$0xff]
    %81 = vrot.lane.b32.xlu0 %v80, 96
    %v82 = vpop.permute.xlu0 %81
    %vm83 = vcmask 130048
    %s84 = scalar_lea.vmem [#allocation0], 130
    %85 = vst.msk [vmem:[%s84] ss:$8 sm:$0xf] %vm83, %v82
    %s86 = scalar_lea.vmem [#allocation0], 130
    %87 = vst.msk [vmem:[%s86] ss:$8 sm:$0xf0] %vm83, %v82
    %s88 = scalar_lea.vmem %s0, 24
    %v89 = vld [vmem:[%s88] sm:$0xff]
    %90 = vrot.lane.b32.xlu0 %v89, 96
    %v91 = vpop.permute.xlu0 %90
    %vm92 = vcmask 130048
    %s93 = scalar_lea.vmem [#allocation0], 194
    %94 = vst.msk [vmem:[%s93] ss:$8 sm:$0xf] %vm92, %v91
    %s95 = scalar_lea.vmem [#allocation0], 194
    %96 = vst.msk [vmem:[%s95] ss:$8 sm:$0xf0] %vm92, %v91
    %s98 = ssub.s32 16, 1
    %v99 = vld [vmem:[#allocation0] sm:%s98]
    %s101 = ssub.s32 16, 1
    %102 = vst [vmem:[%s1] sm:%s101] %v99
    %s103 = scalar_lea.vmem [#allocation0], 8
    %v104 = vld [vmem:[%s103] sm:%s98]
    %s106 = ssub.s32 16, 1
    %s107 = scalar_lea.vmem %s1, 4
    %108 = vst [vmem:[%s107] sm:%s106] %v104
    %s109 = scalar_lea.vmem [#allocation0], 16
    %v110 = vld [vmem:[%s109] sm:%s98]
    %s112 = ssub.s32 16, 1
    %s113 = scalar_lea.vmem %s1, 8
    %114 = vst [vmem:[%s113] sm:%s112] %v110
    %s115 = scalar_lea.vmem [#allocation0], 24
    %v116 = vld [vmem:[%s115] sm:%s98]
    %s118 = ssub.s32 16, 1
    %s119 = scalar_lea.vmem %s1, 12
    %120 = vst [vmem:[%s119] sm:%s118] %v116
    %s121 = scalar_lea.vmem [#allocation0], 32
    %v122 = vld [vmem:[%s121] sm:%s98]
    %s124 = ssub.s32 16, 1
    %s125 = scalar_lea.vmem %s1, 16
    %126 = vst [vmem:[%s125] sm:%s124] %v122
    %s127 = scalar_lea.vmem [#allocation0], 40
    %v128 = vld [vmem:[%s127] sm:%s98]
    %s130 = ssub.s32 16, 1
    %s131 = scalar_lea.vmem %s1, 20
    %132 = vst [vmem:[%s131] sm:%s130] %v128
    %s133 = scalar_lea.vmem [#allocation0], 48
    %v134 = vld [vmem:[%s133] sm:%s98]
    %s136 = ssub.s32 16, 1
    %s137 = scalar_lea.vmem %s1, 24
    %138 = vst [vmem:[%s137] sm:%s136] %v134
    %s139 = scalar_lea.vmem [#allocation0], 56
    %v140 = vld [vmem:[%s139] sm:%s98]
    %s142 = ssub.s32 16, 1
    %s143 = scalar_lea.vmem %s1, 28
    %144 = vst [vmem:[%s143] sm:%s142] %v140
    %s145 = scalar_lea.vmem [#allocation0], 64
    %v146 = vld [vmem:[%s145] sm:%s98]
    %s148 = ssub.s32 16, 1
    %s149 = scalar_lea.vmem %s1, 32
    %150 = vst [vmem:[%s149] sm:%s148] %v146
    %s151 = scalar_lea.vmem [#allocation0], 72
    %v152 = vld [vmem:[%s151] sm:%s98]
    %s154 = ssub.s32 16, 1
    %s155 = scalar_lea.vmem %s1, 36
    %156 = vst [vmem:[%s155] sm:%s154] %v152
    %s157 = scalar_lea.vmem [#allocation0], 80
    %v158 = vld [vmem:[%s157] sm:%s98]
    %s160 = ssub.s32 16, 1
    %s161 = scalar_lea.vmem %s1, 40
    %162 = vst [vmem:[%s161] sm:%s160] %v158
    %s163 = scalar_lea.vmem [#allocation0], 88
    %v164 = vld [vmem:[%s163] sm:%s98]
    %s166 = ssub.s32 16, 1
    %s167 = scalar_lea.vmem %s1, 44
    %168 = vst [vmem:[%s167] sm:%s166] %v164
    %s169 = scalar_lea.vmem [#allocation0], 96
    %v170 = vld [vmem:[%s169] sm:%s98]
    %s172 = ssub.s32 16, 1
    %s173 = scalar_lea.vmem %s1, 48
    %174 = vst [vmem:[%s173] sm:%s172] %v170
    %s175 = scalar_lea.vmem [#allocation0], 104
    %v176 = vld [vmem:[%s175] sm:%s98]
    %s178 = ssub.s32 16, 1
    %s179 = scalar_lea.vmem %s1, 52
    %180 = vst [vmem:[%s179] sm:%s178] %v176
    %s181 = scalar_lea.vmem [#allocation0], 112
    %v182 = vld [vmem:[%s181] sm:%s98]
    %s184 = ssub.s32 16, 1
    %s185 = scalar_lea.vmem %s1, 56
    %186 = vst [vmem:[%s185] sm:%s184] %v182
    %s187 = scalar_lea.vmem [#allocation0], 120
    %v188 = vld [vmem:[%s187] sm:%s98]
    %s190 = ssub.s32 16, 1
    %s191 = scalar_lea.vmem %s1, 60
    %192 = vst [vmem:[%s191] sm:%s190] %v188
    %s193 = scalar_lea.vmem [#allocation0], 128
    %v194 = vld [vmem:[%s193] sm:%s98]
    %s196 = ssub.s32 16, 1
    %s197 = scalar_lea.vmem %s1, 64
    %198 = vst [vmem:[%s197] sm:%s196] %v194
    %s199 = scalar_lea.vmem [#allocation0], 136
    %v200 = vld [vmem:[%s199] sm:%s98]
    %s202 = ssub.s32 16, 1
    %s203 = scalar_lea.vmem %s1, 68
    %204 = vst [vmem:[%s203] sm:%s202] %v200
    %s205 = scalar_lea.vmem [#allocation0], 144
    %v206 = vld [vmem:[%s205] sm:%s98]
    %s208 = ssub.s32 16, 1
    %s209 = scalar_lea.vmem %s1, 72
    %210 = vst [vmem:[%s209] sm:%s208] %v206
    %s211 = scalar_lea.vmem [#allocation0], 152
    %v212 = vld [vmem:[%s211] sm:%s98]
    %s214 = ssub.s32 16, 1
    %s215 = scalar_lea.vmem %s1, 76
    %216 = vst [vmem:[%s215] sm:%s214] %v212
    %s217 = scalar_lea.vmem [#allocation0], 160
    %v218 = vld [vmem:[%s217] sm:%s98]
    %s220 = ssub.s32 16, 1
    %s221 = scalar_lea.vmem %s1, 80
    %222 = vst [vmem:[%s221] sm:%s220] %v218
    %s223 = scalar_lea.vmem [#allocation0], 168
    %v224 = vld [vmem:[%s223] sm:%s98]
    %s226 = ssub.s32 16, 1
    %s227 = scalar_lea.vmem %s1, 84
    %228 = vst [vmem:[%s227] sm:%s226] %v224
    %s229 = scalar_lea.vmem [#allocation0], 176
    %v230 = vld [vmem:[%s229] sm:%s98]
    %s232 = ssub.s32 16, 1
    %s233 = scalar_lea.vmem %s1, 88
    %234 = vst [vmem:[%s233] sm:%s232] %v230
    %s235 = scalar_lea.vmem [#allocation0], 184
    %v236 = vld [vmem:[%s235] sm:%s98]
    %s238 = ssub.s32 16, 1
    %s239 = scalar_lea.vmem %s1, 92
    %240 = vst [vmem:[%s239] sm:%s238] %v236
    %s241 = scalar_lea.vmem [#allocation0], 192
    %v242 = vld [vmem:[%s241] sm:%s98]
    %s244 = ssub.s32 16, 1
    %s245 = scalar_lea.vmem %s1, 96
    %246 = vst [vmem:[%s245] sm:%s244] %v242
    %s247 = scalar_lea.vmem [#allocation0], 200
    %v248 = vld [vmem:[%s247] sm:%s98]
    %s250 = ssub.s32 16, 1
    %s251 = scalar_lea.vmem %s1, 100
    %252 = vst [vmem:[%s251] sm:%s250] %v248
    %s253 = scalar_lea.vmem [#allocation0], 208
    %v254 = vld [vmem:[%s253] sm:%s98]
    %s256 = ssub.s32 16, 1
    %s257 = scalar_lea.vmem %s1, 104
    %258 = vst [vmem:[%s257] sm:%s256] %v254
    %s259 = scalar_lea.vmem [#allocation0], 216
    %v260 = vld [vmem:[%s259] sm:%s98]
    %s262 = ssub.s32 16, 1
    %s263 = scalar_lea.vmem %s1, 108
    %264 = vst [vmem:[%s263] sm:%s262] %v260
    %s265 = scalar_lea.vmem [#allocation0], 224
    %v266 = vld [vmem:[%s265] sm:%s98]
    %s268 = ssub.s32 16, 1
    %s269 = scalar_lea.vmem %s1, 112
    %270 = vst [vmem:[%s269] sm:%s268] %v266
    %s271 = scalar_lea.vmem [#allocation0], 232
    %v272 = vld [vmem:[%s271] sm:%s98]
    %s274 = ssub.s32 16, 1
    %s275 = scalar_lea.vmem %s1, 116
    %276 = vst [vmem:[%s275] sm:%s274] %v272
    %s277 = scalar_lea.vmem [#allocation0], 240
    %v278 = vld [vmem:[%s277] sm:%s98]
    %s280 = ssub.s32 16, 1
    %s281 = scalar_lea.vmem %s1, 120
    %282 = vst [vmem:[%s281] sm:%s280] %v278
    %s283 = scalar_lea.vmem [#allocation0], 248
    %v284 = vld [vmem:[%s283] sm:%s98]
    %s286 = ssub.s32 16, 1
    %s287 = scalar_lea.vmem %s1, 124
    %288 = vst [vmem:[%s287] sm:%s286] %v284

// kernel: _lambda_.26
$region0: #{_lambda_.26}
  #allocation0 [shape = 'u32[]', space=smem, size = 0x4, offset = 0x4, fixed_abs, tag = 'smem constant byte address 0x4 - core index']
  #allocation1 [shape = 'u32[72,128]{1,0:T(1,128)}', space=vmem, size = 0x9000, scoped, tag = 'internal scratch']
  %s0 = inlined_call_operand.vmem [shape: f32[1,2,18,32], index: 0, kind: input, shape index: {}]
  %s1 = inlined_call_operand.vmem [shape: bf16[1,3,32,48], index: 1, kind: input, shape index: {}]
  %s2 = inlined_call_operand.vmem [shape: f32[1,1,48], index: 2, kind: input, shape index: {}]
  %s3 = inlined_call_operand.vmem [shape: f32[1,2,16,48], index: 3, kind: output, shape index: {}]
  %s4 = sld [smem:[#allocation0]]
  $region45: #{_lambda_.26} parent=0
    _
  %s6 = ssub.s32 1, %s4
  %s7 = scalar_select 0, %s6, %s4
  loop: start=0, step=1, limit=4
  $region2: #{_lambda_.26} parent=0 // loop_pre_header
    _
  $region3: #{_lambda_.26} parent=0 // loop_header
    %s9 = sphi 0, %s13
    %p10 = scmp.ge.s32.totalorder %s9, 4
    %s16 = sphi 0, %s28
    %s17 = sphi 0, %s24
    %s18 = sphi 0, %s16
    %s19 = sphi 0, %s17
    %s20 = sphi 0, %s18
    %s21 = sphi 0, %s19
    %s33 = sphi 0, %s35
    %s36 = sphi 0, %s33
    %s37 = sphi 0, %s36
    %s53 = sphi 0, %s37
    %s59 = sphi 0, %s61
    %s62 = sphi 0, %s59
    %s63 = sphi 0, %s62
    %s79 = sphi 0, %s63
    %s85 = sphi 0, %s87
    %s88 = sphi 0, %s85
    %s89 = sphi 0, %s88
    %s105 = sphi 0, %s89
    %s113 = sphi 0, %s115
    %s116 = sphi 0, %s113
    %s117 = sphi 0, %s116
    %s133 = sphi 0, %s117
  $region4: #{_lambda_.26} parent=0 // loop_header_branch
    %12 = sbr.rel (%p10) target = $region8
  $region5: #{_lambda_.26} parent=0 // loop_body
    %s14 = ssub.s32 %s9, 1
    %s15 = ssub.s32 %s9, 2
    %s22 = sadd.s32 1, %s17
    %p23 = scmp.ge.s32.totalorder %s22, 2
    %s24 = scalar_select %p23, 0, %s22
    %s25 = sadd.s32 1, %s16
    %s26 = scalar_select %p23, %s25, %s16
    %p27 = scmp.ge.s32.totalorder %s26, 1
    %s28 = scalar_select %p27, 0, %s26
    %s29 = ssub.s32 %s16, %s28
    %s30 = ssub.s32 %s17, %s24
    %s31 = sor.u32 %s29, %s30
    %p32 = scmp.eq.s32.totalorder %s31, 0
    %s34 = sadd.s32 %s33, 1
    %s35 = scalar_select %p32, %s33, %s34
    %p38 = pneg %p32
    %p39 = scmp.eq.s32.totalorder %s9, 1
    %p40 = por %p38, %p39
    %p41 = scmp.ne.s32.totalorder %s33, %s36
    %p42 = scmp.eq.s32.totalorder %s9, 0
    %p43 = por %p41, %p42
    %p44 = scmp.ne.s32.totalorder %s33, %s36
    %p45 = scmp.eq.s32.totalorder %s14, 1
    %p46 = por %p44, %p45
    %p47 = scmp.ne.s32.totalorder %s36, %s37
    %p48 = scmp.eq.s32.totalorder %s14, 0
    %p49 = por %p47, %p48
    %p50 = scmp.ne.s32.totalorder %s36, %s37
    %p51 = scmp.eq.s32.totalorder %s15, 1
    %p52 = por %p50, %p51
    %p54 = scmp.ne.s32.totalorder %s37, %s53
    %p55 = scmp.eq.s32.totalorder %s15, 0
    %p56 = por %p54, %p55
    %s57 = ssub.s32 %s16, %s28
    %p58 = scmp.eq.s32.totalorder %s57, 0
    %s60 = sadd.s32 %s59, 1
    %s61 = scalar_select %p58, %s59, %s60
    %p64 = pneg %p58
    %p65 = scmp.eq.s32.totalorder %s9, 1
    %p66 = por %p64, %p65
    %p67 = scmp.ne.s32.totalorder %s59, %s62
    %p68 = scmp.eq.s32.totalorder %s9, 0
    %p69 = por %p67, %p68
    %p70 = scmp.ne.s32.totalorder %s59, %s62
    %p71 = scmp.eq.s32.totalorder %s14, 1
    %p72 = por %p70, %p71
    %p73 = scmp.ne.s32.totalorder %s62, %s63
    %p74 = scmp.eq.s32.totalorder %s14, 0
    %p75 = por %p73, %p74
    %p76 = scmp.ne.s32.totalorder %s62, %s63
    %p77 = scmp.eq.s32.totalorder %s15, 1
    %p78 = por %p76, %p77
    %p80 = scmp.ne.s32.totalorder %s63, %s79
    %p81 = scmp.eq.s32.totalorder %s15, 0
    %p82 = por %p80, %p81
    %s83 = ssub.s32 %s16, %s28
    %p84 = scmp.eq.s32.totalorder %s83, 0
    %s86 = sadd.s32 %s85, 1
    %s87 = scalar_select %p84, %s85, %s86
    %p90 = pneg %p84
    %p91 = scmp.eq.s32.totalorder %s9, 1
    %p92 = por %p90, %p91
    %p93 = scmp.ne.s32.totalorder %s85, %s88
    %p94 = scmp.eq.s32.totalorder %s9, 0
    %p95 = por %p93, %p94
    %p96 = scmp.ne.s32.totalorder %s85, %s88
    %p97 = scmp.eq.s32.totalorder %s14, 1
    %p98 = por %p96, %p97
    %p99 = scmp.ne.s32.totalorder %s88, %s89
    %p100 = scmp.eq.s32.totalorder %s14, 0
    %p101 = por %p99, %p100
    %p102 = scmp.ne.s32.totalorder %s88, %s89
    %p103 = scmp.eq.s32.totalorder %s15, 1
    %p104 = por %p102, %p103
    %p106 = scmp.ne.s32.totalorder %s89, %s105
    %p107 = scmp.eq.s32.totalorder %s15, 0
    %p108 = por %p106, %p107
    %s109 = ssub.s32 %s16, %s28
    %s110 = ssub.s32 %s17, %s24
    %s111 = sor.u32 %s109, %s110
    %p112 = scmp.eq.s32.totalorder %s111, 0
    %s114 = sadd.s32 %s113, 1
    %s115 = scalar_select %p112, %s113, %s114
    %p118 = pneg %p112
    %p119 = scmp.eq.s32.totalorder %s9, 1
    %p120 = por %p118, %p119
    %p121 = scmp.ne.s32.totalorder %s113, %s116
    %p122 = scmp.eq.s32.totalorder %s9, 0
    %p123 = por %p121, %p122
    %p124 = scmp.ne.s32.totalorder %s113, %s116
    %p125 = scmp.eq.s32.totalorder %s14, 1
    %p126 = por %p124, %p125
    %p127 = scmp.ne.s32.totalorder %s116, %s117
    %p128 = scmp.eq.s32.totalorder %s14, 0
    %p129 = por %p127, %p128
    %p130 = scmp.ne.s32.totalorder %s116, %s117
    %p131 = scmp.eq.s32.totalorder %s15, 1
    %p132 = por %p130, %p131
    %p134 = scmp.ne.s32.totalorder %s117, %s133
    %p135 = scmp.eq.s32.totalorder %s15, 0
    %p136 = por %p134, %p135
    %p137 = scmp.le.s32.totalorder 1, %s9
    %p138 = scmp.lt.s32.totalorder %s9, 3
    %p139 = pnand %p137, %p138
    %p140 = pneg %p139
    // Predicated region
    $region9: #{_lambda_.26} parent=5 // pred_check
      _
    $region10: #{_lambda_.26} parent=5 // pred_check_branch
      %142 = sbr.rel (%p139) target = $region12
    $region11: #{_lambda_.26} parent=5 // pred_region
      %s143 = ssub.s32 %s9, 1
      // Predicated region
      $region13: #{_lambda_.26} parent=11 // pred_check
        %p144 = pneg %p75
      $region14: #{_lambda_.26} parent=11 // pred_check_branch
        %146 = sbr.rel (%p144) target = $region16
      $region15: #{_lambda_.26} parent=11 // pred_region
        %p147 = scmp.lt.s32.totalorder %s18, 0
        %s148 = scalar_select %p147, %s18, 0
        %s149 = smul.addr %s148, 12
        %s150 = smul.addr %s149, 4
        %s151 = scalar_lea.vmem %s1, %s150
      $region16: #{_lambda_.26} parent=11 // pred_fallthru
        _
      // Predicated region
      $region17: #{_lambda_.26} parent=11 // pred_check
        %p152 = pneg %p101
      $region18: #{_lambda_.26} parent=11 // pred_check_branch
        %154 = sbr.rel (%p152) target = $region20
      $region19: #{_lambda_.26} parent=11 // pred_region
        %p155 = scmp.lt.s32.totalorder %s18, 0
        %s156 = scalar_select %p155, %s18, 0
        %s157 = scalar_lea.vmem %s2, %s156
      $region20: #{_lambda_.26} parent=11 // pred_fallthru
        _
    $region12: #{_lambda_.26} parent=5 // pred_fallthru
      _
    %p158 = scmp.lt.s32.totalorder %s9, 2
    // Predicated region
    $region21: #{_lambda_.26} parent=5 // pred_check
      %p159 = pneg %p158
    $region22: #{_lambda_.26} parent=5 // pred_check_branch
      %161 = sbr.rel (%p159) target = $region24
    $region23: #{_lambda_.26} parent=5 // pred_region
      // Predicated region
      $region25: #{_lambda_.26} parent=23 // pred_check
        %p162 = pneg %p43
      $region26: #{_lambda_.26} parent=23 // pred_check_branch
        %164 = sbr.rel (%p162) target = $region28
      $region27: #{_lambda_.26} parent=23 // pred_region
        %p165 = scmp.lt.s32.totalorder %s16, 0
        %s166 = scalar_select %p165, %s16, 0
        %p167 = scmp.lt.s32.totalorder %s17, 1
        %s168 = scalar_select %p167, %s17, 1
        %s169 = smul.addr %s168, 3
        %s170 = smul.addr %s166, 6
        %s171 = sadd.s32 %s169, %s170
        %s172 = smul.addr %s171, 8
        %s173 = scalar_lea.vmem %s0, %s172
      $region28: #{_lambda_.26} parent=23 // pred_fallthru
        _
    $region24: #{_lambda_.26} parent=5 // pred_fallthru
      _
    %p174 = scmp.le.s32.totalorder 1, %s9
    %p175 = scmp.lt.s32.totalorder %s9, 3
    %p176 = pnand %p174, %p175
    %p177 = pneg %p176
    // Predicated region
    $region29: #{_lambda_.26} parent=5 // pred_check
      _
    $region30: #{_lambda_.26} parent=5 // pred_check_branch
      %179 = sbr.rel (%p176) target = $region32
    $region31: #{_lambda_.26} parent=5 // pred_region
      %s180 = ssub.s32 %s9, 1
      %p181 = scmp.lt.s32.totalorder %s18, 0
      %s182 = scalar_select %p181, %s18, 0
      %p183 = scmp.lt.s32.totalorder %s19, 1
      %s184 = scalar_select %p183, %s19, 1
      %s185 = smul.addr %s184, 3
      %s186 = smul.addr %s182, 6
      %s187 = sadd.s32 %s185, %s186
      %s188 = smul.addr %s187, 8
      %s189 = scalar_lea.vmem %s0, %s188
      %p190 = pneg %p49
      %p191 = pneg %p46
      %p192 = scmp.lt.s32.totalorder %s18, 0
      %s193 = scalar_select %p192, %s18, 0
      %s194 = smul.addr %s193, 12
      %s195 = smul.addr %s194, 4
      %s196 = scalar_lea.vmem %s1, %s195
      %p197 = pneg %p75
      %p198 = pneg %p72
      %p199 = scmp.lt.s32.totalorder %s18, 0
      %s200 = scalar_select %p199, %s18, 0
      %s201 = scalar_lea.vmem %s2, %s200
      %p202 = pneg %p101
      %p203 = pneg %p98
      %p204 = pneg %p129
      %p205 = pneg %p126
      %p206 = scmp.lt.s32.totalorder %s18, 0
      %s207 = scalar_select %p206, %s18, 0
      %p208 = scmp.lt.s32.totalorder %s19, 1
      %s209 = scalar_select %p208, %s19, 1
      %s210 = smul.addr %s209, 2
      %s211 = smul.addr %s207, 4
      %s212 = sadd.s32 %s210, %s211
      %s213 = smul.addr %s212, 8
      %s214 = scalar_lea.vmem %s3, %s213
      %p215 = scmp.lt.s32.totalorder %s18, 0
      %s216 = scalar_select %p215, %s18, 0
      %p217 = scmp.lt.s32.totalorder %s19, 1
      %s218 = scalar_select %p217, %s19, 1
      %s219 = smul.addr %s218, 3
      %s220 = smul.addr %s216, 6
      %s221 = sadd.s32 %s219, %s220
      %s222 = smul.addr %s221, 8
      %s223 = scalar_lea.vmem %s0, %s222
      %p224 = scmp.lt.s32.totalorder %s18, 0
      %s225 = scalar_select %p224, %s18, 0
      %s226 = smul.addr %s225, 12
      %s227 = smul.addr %s226, 4
      %s228 = scalar_lea.vmem %s1, %s227
      %p229 = scmp.lt.s32.totalorder %s18, 0
      %s230 = scalar_select %p229, %s18, 0
      %s231 = scalar_lea.vmem %s2, %s230
      %p232 = scmp.lt.s32.totalorder %s18, 0
      %s233 = scalar_select %p232, %s18, 0
      %p234 = scmp.lt.s32.totalorder %s19, 1
      %s235 = scalar_select %p234, %s19, 1
      %s236 = smul.addr %s235, 2
      %s237 = smul.addr %s233, 4
      %s238 = sadd.s32 %s236, %s237
      %s239 = smul.addr %s238, 8
      %s240 = scalar_lea.vmem %s3, %s239
      %v242 = vld [vmem:[%s223] sm:$0xff]
      %v243 = vld [vmem:[%s223 + $0x8] sm:$0xff]
      %v244 = vpack.c.bf16 %v243, %v242
      %v245 = vld [vmem:[%s228] sm:$0xf]
      %v246 = vld [vmem:[%s228 + $0x4] sm:$0xf]
      %v247 = vld [vmem:[%s228 + $0x8] sm:$0xf]
      %v248 = vld [vmem:[%s228 + $0xc] sm:$0xf]
      %v249 = vld [vmem:[%s223 + $0x1] sm:$0xff]
      %v250 = vld [vmem:[%s223 + $0x9] sm:$0xff]
      %v251 = vpack.c.bf16 %v250, %v249
      %s252 = scalar_lea.vmem %s228, 16
      %v253 = vld [vmem:[%s252] sm:$0xf]
      %v254 = vld [vmem:[%s252 + $0x4] sm:$0xf]
      %v255 = vld [vmem:[%s252 + $0x8] sm:$0xf]
      %v256 = vld [vmem:[%s252 + $0xc] sm:$0xf]
      %v261 = vunpack.c.l.b16 %v253
      %v262 = vunpack.c.l.b16 %v254
      %v263 = vunpack.c.l.b16 %v255
      %v264 = vunpack.c.l.b16 %v256
      %v265 = vpack.c.b16 %v262, %v261
      %v266 = vpack.c.b16 %v264, %v263
      %vm269 = vcmask 261120
      %v271 = vsel %vm269, %v251, 0
      %273 = vmatpush.bf16.msra.mxu0 0
      %274 = vmatpush.bf16.msra.mxu0 0
      %275 = vmatpush.bf16.msra.mxu0 0
      %276 = vmatpush.bf16.msra.mxu0 0
      %277 = vmatpush.bf16.msra.mxu0 0
      %278 = vmatpush.bf16.msra.mxu0 0
      %279 = vmatpush.bf16.msra.mxu0 %v266
      %280 = vmatpush.bf16.msra.mxu0 %v265
      %281 = vmatmul.bf16.gmra.mxu0 %v271
      %v282 = vpop.f32.mrf.mxu0
      %v283 = vadd.f32 0.0, %v282
      %v284 = vpop.f32.mrf.mxu0
      %v285 = vadd.f32 0.0, %v284
      %286 = vdwg.mxu0
      %v291 = vunpack.c.l.b16 %v245
      %v292 = vunpack.c.l.b16 %v246
      %v293 = vunpack.c.l.b16 %v247
      %v294 = vunpack.c.l.b16 %v248
      %v295 = vpack.c.b16 %v292, %v291
      %v296 = vpack.c.b16 %v294, %v293
      %v300 = vsel %vm269, %v244, 0
      %302 = vmatpush.bf16.msra.mxu0 0
      %303 = vmatpush.bf16.msra.mxu0 0
      %304 = vmatpush.bf16.msra.mxu0 0
      %305 = vmatpush.bf16.msra.mxu0 0
      %306 = vmatpush.bf16.msra.mxu0 0
      %307 = vmatpush.bf16.msra.mxu0 0
      %308 = vmatpush.bf16.msra.mxu0 %v296
      %309 = vmatpush.bf16.msra.mxu0 %v295
      %310 = vmatmul.bf16.gmra.mxu0 %v300
      %v311 = vpop.f32.mrf.mxu0
      %v312 = vadd.f32 %v283, %v311
      %v313 = vpop.f32.mrf.mxu0
      %v314 = vadd.f32 %v285, %v313
      %315 = vdwg.mxu0
      %v316 = vld [vmem:[%s223 + $0x2] sm:$0xff]
      %v317 = vld [vmem:[%s223 + $0xa] sm:$0xff]
      %v318 = vpack.c.bf16 %v317, %v316
      %s319 = scalar_lea.vmem %s228, 32
      %v320 = vld [vmem:[%s319] sm:$0xf]
      %v321 = vld [vmem:[%s319 + $0x4] sm:$0xf]
      %v322 = vld [vmem:[%s319 + $0x8] sm:$0xf]
      %v323 = vld [vmem:[%s319 + $0xc] sm:$0xf]
      %v328 = vunpack.c.l.b16 %v320
      %v329 = vunpack.c.l.b16 %v321
      %v330 = vunpack.c.l.b16 %v322
      %v331 = vunpack.c.l.b16 %v323
      %v332 = vpack.c.b16 %v329, %v328
      %v333 = vpack.c.b16 %v331, %v330
      %v337 = vsel %vm269, %v318, 0
      %339 = vmatpush.bf16.msra.mxu0 0
      %340 = vmatpush.bf16.msra.mxu0 0
      %341 = vmatpush.bf16.msra.mxu0 0
      %342 = vmatpush.bf16.msra.mxu0 0
      %343 = vmatpush.bf16.msra.mxu0 0
      %344 = vmatpush.bf16.msra.mxu0 0
      %345 = vmatpush.bf16.msra.mxu0 %v333
      %346 = vmatpush.bf16.msra.mxu0 %v332
      %347 = vmatmul.bf16.gmra.mxu0 %v337
      %v348 = vpop.f32.mrf.mxu0
      %v349 = vadd.f32 0.0, %v348
      %v350 = vpop.f32.mrf.mxu0
      %v351 = vadd.f32 0.0, %v350
      %352 = vdwg.mxu0
      %v353 = vadd.f32 %v312, %v349
      %v354 = vadd.f32 %v314, %v351
      %v355 = vld [vmem:[%s231] sm:$0x1]
      %v357 = vperm.slane %v355, 0
      %v359 = vadd.f32 %v353, %v357
      %v360 = vadd.f32 %v354, %v357
      %vm361 = vcmp.ge.f32.partialorder %v359, 0.0
      %vm362 = vcmp.ge.f32.partialorder %v360, 0.0
      %v363 = vmul.f32 %v359, 0.01
      %v364 = vmul.f32 %v360, 0.01
      %v365 = vsel %vm361, %v359, %v363
      %v366 = vsel %vm362, %v360, %v364
      %vm367 = vcmask 392192
      %368 = vst.msk [vmem:[%s240] sm:$0xff] %vm367, %v365
      %369 = vst.msk [vmem:[%s240 + $0x8] sm:$0xff] %vm367, %v366
      %p370 = scmp.lt.s32.totalorder %s18, 0
      %s371 = scalar_select %p370, %s18, 0
      %p372 = scmp.lt.s32.totalorder %s19, 1
      %s373 = scalar_select %p372, %s19, 1
      %s374 = smul.addr %s373, 2
      %s375 = smul.addr %s371, 4
      %s376 = sadd.s32 %s374, %s375
      %s377 = smul.addr %s376, 8
      %s378 = scalar_lea.vmem %s3, %s377
      // Predicated region
      $region33: #{_lambda_.26} parent=31 // pred_check
        %p379 = pneg %p126
      $region34: #{_lambda_.26} parent=31 // pred_check_branch
        %381 = sbr.rel (%p379) target = $region36
      $region35: #{_lambda_.26} parent=31 // pred_region
        _
      $region36: #{_lambda_.26} parent=31 // pred_fallthru
        _
    $region32: #{_lambda_.26} parent=5 // pred_fallthru
      _
    %p382 = scmp.le.s32.totalorder 2, %s9
    // Predicated region
    $region37: #{_lambda_.26} parent=5 // pred_check
      %p383 = pneg %p382
    $region38: #{_lambda_.26} parent=5 // pred_check_branch
      %385 = sbr.rel (%p383) target = $region40
    $region39: #{_lambda_.26} parent=5 // pred_region
      %s386 = ssub.s32 %s9, 2
      // Predicated region
      $region41: #{_lambda_.26} parent=39 // pred_check
        %p387 = pneg %p132
      $region42: #{_lambda_.26} parent=39 // pred_check_branch
        %389 = sbr.rel (%p387) target = $region44
      $region43: #{_lambda_.26} parent=39 // pred_region
        %p390 = scmp.lt.s32.totalorder %s20, 0
        %s391 = scalar_select %p390, %s20, 0
        %p392 = scmp.lt.s32.totalorder %s21, 1
        %s393 = scalar_select %p392, %s21, 1
        %s394 = smul.addr %s393, 2
        %s395 = smul.addr %s391, 4
        %s396 = sadd.s32 %s394, %s395
        %s397 = smul.addr %s396, 8
        %s398 = scalar_lea.vmem %s3, %s397
      $region44: #{_lambda_.26} parent=39 // pred_fallthru
        _
    $region40: #{_lambda_.26} parent=5 // pred_fallthru
      _
  $region6: #{_lambda_.26} parent=0 // loop_footer
    %s13 = sadd.s32 1, %s9
  $region7: #{_lambda_.26} parent=0 // loop_footer_branch
    %8 = sbr.rel target = $region3
  $region8: #{_lambda_.26} parent=0 // loop_exit
    _

// kernel: _lambda_.28
$region0: #{_lambda_.28}
  #allocation0 [shape = 'u32[]', space=smem, size = 0x4, offset = 0x4, fixed_abs, tag = 'smem constant byte address 0x4 - core index']
  #allocation1 [shape = 'u32[72,128]{1,0:T(1,128)}', space=vmem, size = 0x9000, scoped, tag = 'internal scratch']
  %s0 = inlined_call_operand.vmem [shape: bf16[1,32,32], index: 0, kind: input, shape index: {}]
  %s1 = inlined_call_operand.vmem [shape: bf16[1,32,6], index: 1, kind: input, shape index: {}]
  %s2 = inlined_call_operand.vmem [shape: f32[1,1,6], index: 2, kind: input, shape index: {}]
  %s3 = inlined_call_operand.vmem [shape: f32[1,32,6], index: 3, kind: output, shape index: {}]
  %s4 = sld [smem:[#allocation0]]
  $region22: #{_lambda_.28} parent=0
    _
  %s6 = ssub.s32 1, %s4
  %s7 = scalar_select 0, %s6, %s4
  // Predicated region
  $region2: #{_lambda_.28} parent=0 // pred_check
    _
  $region3: #{_lambda_.28} parent=0 // pred_check_branch
    %9 = sbr.rel (0) target = $region5
  $region4: #{_lambda_.28} parent=0 // pred_region
    _
  $region5: #{_lambda_.28} parent=0 // pred_fallthru
    _
  // Predicated region
  $region6: #{_lambda_.28} parent=0 // pred_check
    _
  $region7: #{_lambda_.28} parent=0 // pred_check_branch
    %11 = sbr.rel (0) target = $region9
  $region8: #{_lambda_.28} parent=0 // pred_region
    _
  $region9: #{_lambda_.28} parent=0 // pred_fallthru
    _
  // Predicated region
  $region10: #{_lambda_.28} parent=0 // pred_check
    _
  $region11: #{_lambda_.28} parent=0 // pred_check_branch
    %13 = sbr.rel (0) target = $region13
  $region12: #{_lambda_.28} parent=0 // pred_region
    _
  $region13: #{_lambda_.28} parent=0 // pred_fallthru
    _
  %v15 = vld [vmem:[%s0] sm:$0xf]
  %v16 = vld [vmem:[%s0 + $0x4] sm:$0xf]
  %v17 = vld [vmem:[%s0 + $0x8] sm:$0xf]
  %v18 = vld [vmem:[%s0 + $0xc] sm:$0xf]
  %v19 = vld [vmem:[%s1] sm:$0xf]
  %v20 = vld [vmem:[%s1 + $0x4] sm:$0xf]
  %v21 = vld [vmem:[%s1 + $0x8] sm:$0xf]
  %v22 = vld [vmem:[%s1 + $0xc] sm:$0xf]
  %v23 = vld [vmem:[%s2] sm:$0x1]
  %v25 = vperm.slane %v23, 0
  %v31 = vunpack.c.l.b16 %v15
  %v32 = vunpack.c.l.b16 %v16
  %v33 = vunpack.c.l.b16 %v17
  %v34 = vunpack.c.l.b16 %v18
  %v35 = vpack.c.b16 %v32, %v31
  %v36 = vpack.c.b16 %v34, %v33
  %v41 = vunpack.c.l.b16 %v19
  %v42 = vunpack.c.l.b16 %v20
  %v43 = vunpack.c.l.b16 %v21
  %v44 = vunpack.c.l.b16 %v22
  %v45 = vpack.c.b16 %v42, %v41
  %v46 = vpack.c.b16 %v44, %v43
  %vm49 = vcmask 261120
  %v51 = vsel %vm49, %v35, 0
  %v54 = vsel %vm49, %v36, 0
  %56 = vmatpush.bf16.msra.mxu0 0
  %57 = vmatpush.bf16.msra.mxu0 0
  %58 = vmatpush.bf16.msra.mxu0 0
  %59 = vmatpush.bf16.msra.mxu0 0
  %60 = vmatpush.bf16.msra.mxu0 0
  %61 = vmatpush.bf16.msra.mxu0 0
  %62 = vmatpush.bf16.msra.mxu0 %v46
  %63 = vmatpush.bf16.msra.mxu0 %v45
  %64 = vmatmul.bf16.gmra.mxu0 %v51
  %v65 = vpop.f32.mrf.mxu0
  %v66 = vadd.f32 %v25, %v65
  %v67 = vpop.f32.mrf.mxu0
  %v68 = vadd.f32 %v25, %v67
  %69 = vmatmul.bf16.gmra.mxu0 %v54
  %v70 = vpop.f32.mrf.mxu0
  %v71 = vadd.f32 %v25, %v70
  %v72 = vpop.f32.mrf.mxu0
  %v73 = vadd.f32 %v25, %v72
  %74 = vdwg.mxu0
  %vm75 = vcmask 48128
  %76 = vst.msk [vmem:[%s3] sm:$0xff] %vm75, %v66
  %77 = vst.msk [vmem:[%s3 + $0x8] sm:$0xff] %vm75, %v68
  %78 = vst.msk [vmem:[%s3 + $0x10] sm:$0xff] %vm75, %v71
  %79 = vst.msk [vmem:[%s3 + $0x18] sm:$0xff] %vm75, %v73
  // Predicated region
  $region14: #{_lambda_.28} parent=0 // pred_check
    _
  $region15: #{_lambda_.28} parent=0 // pred_check_branch
    %81 = sbr.rel (0) target = $region17
  $region16: #{_lambda_.28} parent=0 // pred_region
    _
  $region17: #{_lambda_.28} parent=0 // pred_fallthru
    _
  // Predicated region
  $region18: #{_lambda_.28} parent=0 // pred_check
    _
  $region19: #{_lambda_.28} parent=0 // pred_check_branch
    %83 = sbr.rel (0) target = $region21
  $region20: #{_lambda_.28} parent=0 // pred_region
    _
  $region21: #{_lambda_.28} parent=0 // pred_fallthru
    _

// kernel: _lambda_.29
$region0: #{_lambda_.29}
  #allocation0 [shape = 'u32[]', space=smem, size = 0x4, offset = 0x4, fixed_abs, tag = 'smem constant byte address 0x4 - core index']
  #allocation1 [shape = 'u32[72,128]{1,0:T(1,128)}', space=vmem, size = 0x9000, scoped, tag = 'internal scratch']
  %s0 = inlined_call_operand.vmem [shape: f32[3,32,16], index: 0, kind: input, shape index: {}]
  %s1 = inlined_call_operand.vmem [shape: f32[32,3], index: 1, kind: input, shape index: {}]
  %s2 = inlined_call_operand.vmem [shape: f32[32,3], index: 2, kind: input, shape index: {}]
  %s3 = inlined_call_operand.vmem [shape: f32[32,16], index: 3, kind: output, shape index: {0}]
  %s4 = inlined_call_operand.vmem [shape: f32[32,16], index: 4, kind: output, shape index: {1}]
  %5 = xla_tuple %s3, %s4
  %s6 = sld [smem:[#allocation0]]
  $region30: #{_lambda_.29} parent=0
    _
  %s8 = ssub.s32 1, %s6
  %s9 = scalar_select 0, %s8, %s6
  // Predicated region
  $region2: #{_lambda_.29} parent=0 // pred_check
    _
  $region3: #{_lambda_.29} parent=0 // pred_check_branch
    %11 = sbr.rel (0) target = $region5
  $region4: #{_lambda_.29} parent=0 // pred_region
    _
  $region5: #{_lambda_.29} parent=0 // pred_fallthru
    _
  // Predicated region
  $region6: #{_lambda_.29} parent=0 // pred_check
    _
  $region7: #{_lambda_.29} parent=0 // pred_check_branch
    %13 = sbr.rel (0) target = $region9
  $region8: #{_lambda_.29} parent=0 // pred_region
    _
  $region9: #{_lambda_.29} parent=0 // pred_fallthru
    _
  // Predicated region
  $region10: #{_lambda_.29} parent=0 // pred_check
    _
  $region11: #{_lambda_.29} parent=0 // pred_check_branch
    %15 = sbr.rel (0) target = $region13
  $region12: #{_lambda_.29} parent=0 // pred_region
    _
  $region13: #{_lambda_.29} parent=0 // pred_fallthru
    _
  %v16 = vld [vmem:[%s1] sm:$0xff]
  %v17 = vld [vmem:[%s1 + $0x8] sm:$0xff]
  %v18 = vld [vmem:[%s1 + $0x10] sm:$0xff]
  %v19 = vld [vmem:[%s1 + $0x18] sm:$0xff]
  %vm20 = vcmask 23552
  %v21 = vsel %vm20, %v16, -inf
  %22 = vmax.xlane.f32.xlu0 %v21
  %v23 = vpop.xlane.xlu0 %22
  %v24 = vsel %vm20, %v17, -inf
  %25 = vmax.xlane.f32.xlu0 %v24
  %v26 = vpop.xlane.xlu0 %25
  %v27 = vsel %vm20, %v18, -inf
  %28 = vmax.xlane.f32.xlu0 %v27
  %v29 = vpop.xlane.xlu0 %28
  %v30 = vsel %vm20, %v19, -inf
  %31 = vmax.xlane.f32.xlu0 %v30
  %v32 = vpop.xlane.xlu0 %31
  %v33 = vsub.f32 %v16, %v23
  %v34 = vsub.f32 %v17, %v26
  %v35 = vsub.f32 %v18, %v29
  %v36 = vsub.f32 %v19, %v32
  %v37 = vmul.f32 %v33, 1.442695
  %v38 = vpow.pop %v37
  %v39 = vmul.f32 %v34, 1.442695
  %v40 = vpow.pop %v39
  %v41 = vmul.f32 %v35, 1.442695
  %v42 = vpow.pop %v41
  %v43 = vmul.f32 %v36, 1.442695
  %v44 = vpow.pop %v43
  %v45 = vsel %vm20, %v38, 0.0
  %46 = vadd.xlane.f32.xlu0 %v45
  %v47 = vpop.xlane.xlu0 %46
  %v48 = vsel %vm20, %v40, 0.0
  %49 = vadd.xlane.f32.xlu0 %v48
  %v50 = vpop.xlane.xlu0 %49
  %v51 = vsel %vm20, %v42, 0.0
  %52 = vadd.xlane.f32.xlu0 %v51
  %v53 = vpop.xlane.xlu0 %52
  %v54 = vsel %vm20, %v44, 0.0
  %55 = vadd.xlane.f32.xlu0 %v54
  %v56 = vpop.xlane.xlu0 %55
  %v57 = vrcp.pop %v47
  %v58 = vrcp.pop %v50
  %v59 = vrcp.pop %v53
  %v60 = vrcp.pop %v56
  %v61 = vmul.f32 %v38, %v57
  %v62 = vmul.f32 %v40, %v58
  %v63 = vmul.f32 %v42, %v59
  %v64 = vmul.f32 %v44, %v60
  %v65 = vld [vmem:[%s0] sm:$0xff]
  %v66 = vld [vmem:[%s0 + $0x8] sm:$0xff]
  %v67 = vld [vmem:[%s0 + $0x10] sm:$0xff]
  %v68 = vld [vmem:[%s0 + $0x18] sm:$0xff]
  %70 = vset.pattern.permute.xlu0 0
  %71 = vperm.xlu0 %70, %v61
  %v72 = vpop.permute.xlu0 %71
  %75 = vset.pattern.permute.xlu0 0
  %76 = vperm.xlu0 %75, %v62
  %v77 = vpop.permute.xlu0 %76
  %80 = vset.pattern.permute.xlu0 0
  %81 = vperm.xlu0 %80, %v63
  %v82 = vpop.permute.xlu0 %81
  %85 = vset.pattern.permute.xlu0 0
  %86 = vperm.xlu0 %85, %v64
  %v87 = vpop.permute.xlu0 %86
  %v89 = vmul.f32 %v65, %v72
  %v90 = vmul.f32 %v66, %v77
  %v91 = vmul.f32 %v67, %v82
  %v92 = vmul.f32 %v68, %v87
  %s93 = scalar_lea.vmem %s0, 32
  %v94 = vld [vmem:[%s93] sm:$0xff]
  %v95 = vld [vmem:[%s93 + $0x8] sm:$0xff]
  %v96 = vld [vmem:[%s93 + $0x10] sm:$0xff]
  %v97 = vld [vmem:[%s93 + $0x18] sm:$0xff]
  %98 = vset.pattern.permute.xlu0 1
  %99 = vperm.xlu0 %98, %v61
  %v100 = vpop.permute.xlu0 %99
  %102 = vset.pattern.permute.xlu0 1
  %103 = vperm.xlu0 %102, %v62
  %v104 = vpop.permute.xlu0 %103
  %106 = vset.pattern.permute.xlu0 1
  %107 = vperm.xlu0 %106, %v63
  %v108 = vpop.permute.xlu0 %107
  %110 = vset.pattern.permute.xlu0 1
  %111 = vperm.xlu0 %110, %v64
  %v112 = vpop.permute.xlu0 %111
  %v114 = vmul.f32 %v94, %v100
  %v115 = vmul.f32 %v95, %v104
  %v116 = vmul.f32 %v96, %v108
  %v117 = vmul.f32 %v97, %v112
  %v118 = vadd.f32 %v89, %v114
  %v119 = vadd.f32 %v90, %v115
  %v120 = vadd.f32 %v91, %v116
  %v121 = vadd.f32 %v92, %v117
  %s122 = scalar_lea.vmem %s0, 64
  %v123 = vld [vmem:[%s122] sm:$0xff]
  %v124 = vld [vmem:[%s122 + $0x8] sm:$0xff]
  %v125 = vld [vmem:[%s122 + $0x10] sm:$0xff]
  %v126 = vld [vmem:[%s122 + $0x18] sm:$0xff]
  %127 = vset.pattern.permute.xlu0 2
  %128 = vperm.xlu0 %127, %v61
  %v129 = vpop.permute.xlu0 %128
  %131 = vset.pattern.permute.xlu0 2
  %132 = vperm.xlu0 %131, %v62
  %v133 = vpop.permute.xlu0 %132
  %135 = vset.pattern.permute.xlu0 2
  %136 = vperm.xlu0 %135, %v63
  %v137 = vpop.permute.xlu0 %136
  %139 = vset.pattern.permute.xlu0 2
  %140 = vperm.xlu0 %139, %v64
  %v141 = vpop.permute.xlu0 %140
  %v143 = vmul.f32 %v123, %v129
  %v144 = vmul.f32 %v124, %v133
  %v145 = vmul.f32 %v125, %v137
  %v146 = vmul.f32 %v126, %v141
  %v147 = vadd.f32 %v118, %v143
  %v148 = vadd.f32 %v119, %v144
  %v149 = vadd.f32 %v120, %v145
  %v150 = vadd.f32 %v121, %v146
  %vm151 = vcmask 130048
  %152 = vst.msk [vmem:[%s3] sm:$0xff] %vm151, %v147
  %153 = vst.msk [vmem:[%s3 + $0x8] sm:$0xff] %vm151, %v148
  %154 = vst.msk [vmem:[%s3 + $0x10] sm:$0xff] %vm151, %v149
  %155 = vst.msk [vmem:[%s3 + $0x18] sm:$0xff] %vm151, %v150
  %v156 = vld [vmem:[%s2] sm:$0xff]
  %v157 = vld [vmem:[%s2 + $0x8] sm:$0xff]
  %v158 = vld [vmem:[%s2 + $0x10] sm:$0xff]
  %v159 = vld [vmem:[%s2 + $0x18] sm:$0xff]
  %v160 = vsel %vm20, %v156, -inf
  %161 = vmax.xlane.f32.xlu0 %v160
  %v162 = vpop.xlane.xlu0 %161
  %v163 = vsel %vm20, %v157, -inf
  %164 = vmax.xlane.f32.xlu0 %v163
  %v165 = vpop.xlane.xlu0 %164
  %v166 = vsel %vm20, %v158, -inf
  %167 = vmax.xlane.f32.xlu0 %v166
  %v168 = vpop.xlane.xlu0 %167
  %v169 = vsel %vm20, %v159, -inf
  %170 = vmax.xlane.f32.xlu0 %v169
  %v171 = vpop.xlane.xlu0 %170
  %v172 = vsub.f32 %v156, %v162
  %v173 = vsub.f32 %v157, %v165
  %v174 = vsub.f32 %v158, %v168
  %v175 = vsub.f32 %v159, %v171
  %v176 = vmul.f32 %v172, 1.442695
  %v177 = vpow.pop %v176
  %v178 = vmul.f32 %v173, 1.442695
  %v179 = vpow.pop %v178
  %v180 = vmul.f32 %v174, 1.442695
  %v181 = vpow.pop %v180
  %v182 = vmul.f32 %v175, 1.442695
  %v183 = vpow.pop %v182
  %v184 = vsel %vm20, %v177, 0.0
  %185 = vadd.xlane.f32.xlu0 %v184
  %v186 = vpop.xlane.xlu0 %185
  %v187 = vsel %vm20, %v179, 0.0
  %188 = vadd.xlane.f32.xlu0 %v187
  %v189 = vpop.xlane.xlu0 %188
  %v190 = vsel %vm20, %v181, 0.0
  %191 = vadd.xlane.f32.xlu0 %v190
  %v192 = vpop.xlane.xlu0 %191
  %v193 = vsel %vm20, %v183, 0.0
  %194 = vadd.xlane.f32.xlu0 %v193
  %v195 = vpop.xlane.xlu0 %194
  %v196 = vrcp.pop %v186
  %v197 = vrcp.pop %v189
  %v198 = vrcp.pop %v192
  %v199 = vrcp.pop %v195
  %v200 = vmul.f32 %v177, %v196
  %v201 = vmul.f32 %v179, %v197
  %v202 = vmul.f32 %v181, %v198
  %v203 = vmul.f32 %v183, %v199
  %v204 = vld [vmem:[%s0] sm:$0xff]
  %v205 = vld [vmem:[%s0 + $0x8] sm:$0xff]
  %v206 = vld [vmem:[%s0 + $0x10] sm:$0xff]
  %v207 = vld [vmem:[%s0 + $0x18] sm:$0xff]
  %209 = vset.pattern.permute.xlu0 0
  %210 = vperm.xlu0 %209, %v200
  %v211 = vpop.permute.xlu0 %210
  %214 = vset.pattern.permute.xlu0 0
  %215 = vperm.xlu0 %214, %v201
  %v216 = vpop.permute.xlu0 %215
  %219 = vset.pattern.permute.xlu0 0
  %220 = vperm.xlu0 %219, %v202
  %v221 = vpop.permute.xlu0 %220
  %224 = vset.pattern.permute.xlu0 0
  %225 = vperm.xlu0 %224, %v203
  %v226 = vpop.permute.xlu0 %225
  %v228 = vmul.f32 %v204, %v211
  %v229 = vmul.f32 %v205, %v216
  %v230 = vmul.f32 %v206, %v221
  %v231 = vmul.f32 %v207, %v226
  %v232 = vld [vmem:[%s93] sm:$0xff]
  %v233 = vld [vmem:[%s93 + $0x8] sm:$0xff]
  %v234 = vld [vmem:[%s93 + $0x10] sm:$0xff]
  %v235 = vld [vmem:[%s93 + $0x18] sm:$0xff]
  %236 = vset.pattern.permute.xlu0 1
  %237 = vperm.xlu0 %236, %v200
  %v238 = vpop.permute.xlu0 %237
  %240 = vset.pattern.permute.xlu0 1
  %241 = vperm.xlu0 %240, %v201
  %v242 = vpop.permute.xlu0 %241
  %244 = vset.pattern.permute.xlu0 1
  %245 = vperm.xlu0 %244, %v202
  %v246 = vpop.permute.xlu0 %245
  %248 = vset.pattern.permute.xlu0 1
  %249 = vperm.xlu0 %248, %v203
  %v250 = vpop.permute.xlu0 %249
  %v252 = vmul.f32 %v232, %v238
  %v253 = vmul.f32 %v233, %v242
  %v254 = vmul.f32 %v234, %v246
  %v255 = vmul.f32 %v235, %v250
  %v256 = vadd.f32 %v228, %v252
  %v257 = vadd.f32 %v229, %v253
  %v258 = vadd.f32 %v230, %v254
  %v259 = vadd.f32 %v231, %v255
  %v260 = vld [vmem:[%s122] sm:$0xff]
  %v261 = vld [vmem:[%s122 + $0x8] sm:$0xff]
  %v262 = vld [vmem:[%s122 + $0x10] sm:$0xff]
  %v263 = vld [vmem:[%s122 + $0x18] sm:$0xff]
  %264 = vset.pattern.permute.xlu0 2
  %265 = vperm.xlu0 %264, %v200
  %v266 = vpop.permute.xlu0 %265
  %268 = vset.pattern.permute.xlu0 2
  %269 = vperm.xlu0 %268, %v201
  %v270 = vpop.permute.xlu0 %269
  %272 = vset.pattern.permute.xlu0 2
  %273 = vperm.xlu0 %272, %v202
  %v274 = vpop.permute.xlu0 %273
  %276 = vset.pattern.permute.xlu0 2
  %277 = vperm.xlu0 %276, %v203
  %v278 = vpop.permute.xlu0 %277
  %v280 = vmul.f32 %v260, %v266
  %v281 = vmul.f32 %v261, %v270
  %v282 = vmul.f32 %v262, %v274
  %v283 = vmul.f32 %v263, %v278
  %v284 = vadd.f32 %v256, %v280
  %v285 = vadd.f32 %v257, %v281
  %v286 = vadd.f32 %v258, %v282
  %v287 = vadd.f32 %v259, %v283
  %288 = vst.msk [vmem:[%s4] sm:$0xff] %vm151, %v284
  %289 = vst.msk [vmem:[%s4 + $0x8] sm:$0xff] %vm151, %v285
  %290 = vst.msk [vmem:[%s4 + $0x10] sm:$0xff] %vm151, %v286
  %291 = vst.msk [vmem:[%s4 + $0x18] sm:$0xff] %vm151, %v287
  // Predicated region
  $region14: #{_lambda_.29} parent=0 // pred_check
    _
  $region15: #{_lambda_.29} parent=0 // pred_check_branch
    %293 = sbr.rel (0) target = $region17
  $region16: #{_lambda_.29} parent=0 // pred_region
    _
  $region17: #{_lambda_.29} parent=0 // pred_fallthru
    _
  // Predicated region
  $region18: #{_lambda_.29} parent=0 // pred_check
    _
  $region19: #{_lambda_.29} parent=0 // pred_check_branch
    %295 = sbr.rel (0) target = $region21
  $region20: #{_lambda_.29} parent=0 // pred_region
    _
  $region21: #{_lambda_.29} parent=0 // pred_fallthru
    _
  // Predicated region
  $region22: #{_lambda_.29} parent=0 // pred_check
    _
  $region23: #{_lambda_.29} parent=0 // pred_check_branch
    %297 = sbr.rel (0) target = $region25
  $region24: #{_lambda_.29} parent=0 // pred_region
    _
  $region25: #{_lambda_.29} parent=0 // pred_fallthru
    _
  // Predicated region
  $region26: #{_lambda_.29} parent=0 // pred_check
    _
  $region27: #{_lambda_.29} parent=0 // pred_check_branch
    %299 = sbr.rel (0) target = $region29
  $region28: #{_lambda_.29} parent=0 // pred_region
    _
  $region29: #{_lambda_.29} parent=0 // pred_fallthru
    _

// kernel: _lambda_.34
$region0: #{_lambda_.34}
  #allocation0 [shape = 'u32[]', space=smem, size = 0x4, offset = 0x4, fixed_abs, tag = 'smem constant byte address 0x4 - core index']
  #allocation1 [shape = 'u32[72,128]{1,0:T(1,128)}', space=vmem, size = 0x9000, scoped, tag = 'internal scratch']
  %s0 = inlined_call_operand.vmem [shape: f32[1,2,18,16], index: 0, kind: input, shape index: {}]
  %s1 = inlined_call_operand.vmem [shape: bf16[1,3,16,16], index: 1, kind: input, shape index: {}]
  %s2 = inlined_call_operand.vmem [shape: f32[1,1,16], index: 2, kind: input, shape index: {}]
  %s3 = inlined_call_operand.vmem [shape: f32[1,2,16,16], index: 3, kind: output, shape index: {}]
  %s4 = sld [smem:[#allocation0]]
  $region45: #{_lambda_.34} parent=0
    _
  %s6 = ssub.s32 1, %s4
  %s7 = scalar_select 0, %s6, %s4
  loop: start=0, step=1, limit=4
  $region2: #{_lambda_.34} parent=0 // loop_pre_header
    _
  $region3: #{_lambda_.34} parent=0 // loop_header
    %s9 = sphi 0, %s13
    %p10 = scmp.ge.s32.totalorder %s9, 4
    %s16 = sphi 0, %s28
    %s17 = sphi 0, %s24
    %s18 = sphi 0, %s16
    %s19 = sphi 0, %s17
    %s20 = sphi 0, %s18
    %s21 = sphi 0, %s19
    %s33 = sphi 0, %s35
    %s36 = sphi 0, %s33
    %s37 = sphi 0, %s36
    %s53 = sphi 0, %s37
    %s59 = sphi 0, %s61
    %s62 = sphi 0, %s59
    %s63 = sphi 0, %s62
    %s79 = sphi 0, %s63
    %s85 = sphi 0, %s87
    %s88 = sphi 0, %s85
    %s89 = sphi 0, %s88
    %s105 = sphi 0, %s89
    %s113 = sphi 0, %s115
    %s116 = sphi 0, %s113
    %s117 = sphi 0, %s116
    %s133 = sphi 0, %s117
  $region4: #{_lambda_.34} parent=0 // loop_header_branch
    %12 = sbr.rel (%p10) target = $region8
  $region5: #{_lambda_.34} parent=0 // loop_body
    %s14 = ssub.s32 %s9, 1
    %s15 = ssub.s32 %s9, 2
    %s22 = sadd.s32 1, %s17
    %p23 = scmp.ge.s32.totalorder %s22, 2
    %s24 = scalar_select %p23, 0, %s22
    %s25 = sadd.s32 1, %s16
    %s26 = scalar_select %p23, %s25, %s16
    %p27 = scmp.ge.s32.totalorder %s26, 1
    %s28 = scalar_select %p27, 0, %s26
    %s29 = ssub.s32 %s16, %s28
    %s30 = ssub.s32 %s17, %s24
    %s31 = sor.u32 %s29, %s30
    %p32 = scmp.eq.s32.totalorder %s31, 0
    %s34 = sadd.s32 %s33, 1
    %s35 = scalar_select %p32, %s33, %s34
    %p38 = pneg %p32
    %p39 = scmp.eq.s32.totalorder %s9, 1
    %p40 = por %p38, %p39
    %p41 = scmp.ne.s32.totalorder %s33, %s36
    %p42 = scmp.eq.s32.totalorder %s9, 0
    %p43 = por %p41, %p42
    %p44 = scmp.ne.s32.totalorder %s33, %s36
    %p45 = scmp.eq.s32.totalorder %s14, 1
    %p46 = por %p44, %p45
    %p47 = scmp.ne.s32.totalorder %s36, %s37
    %p48 = scmp.eq.s32.totalorder %s14, 0
    %p49 = por %p47, %p48
    %p50 = scmp.ne.s32.totalorder %s36, %s37
    %p51 = scmp.eq.s32.totalorder %s15, 1
    %p52 = por %p50, %p51
    %p54 = scmp.ne.s32.totalorder %s37, %s53
    %p55 = scmp.eq.s32.totalorder %s15, 0
    %p56 = por %p54, %p55
    %s57 = ssub.s32 %s16, %s28
    %p58 = scmp.eq.s32.totalorder %s57, 0
    %s60 = sadd.s32 %s59, 1
    %s61 = scalar_select %p58, %s59, %s60
    %p64 = pneg %p58
    %p65 = scmp.eq.s32.totalorder %s9, 1
    %p66 = por %p64, %p65
    %p67 = scmp.ne.s32.totalorder %s59, %s62
    %p68 = scmp.eq.s32.totalorder %s9, 0
    %p69 = por %p67, %p68
    %p70 = scmp.ne.s32.totalorder %s59, %s62
    %p71 = scmp.eq.s32.totalorder %s14, 1
    %p72 = por %p70, %p71
    %p73 = scmp.ne.s32.totalorder %s62, %s63
    %p74 = scmp.eq.s32.totalorder %s14, 0
    %p75 = por %p73, %p74
    %p76 = scmp.ne.s32.totalorder %s62, %s63
    %p77 = scmp.eq.s32.totalorder %s15, 1
    %p78 = por %p76, %p77
    %p80 = scmp.ne.s32.totalorder %s63, %s79
    %p81 = scmp.eq.s32.totalorder %s15, 0
    %p82 = por %p80, %p81
    %s83 = ssub.s32 %s16, %s28
    %p84 = scmp.eq.s32.totalorder %s83, 0
    %s86 = sadd.s32 %s85, 1
    %s87 = scalar_select %p84, %s85, %s86
    %p90 = pneg %p84
    %p91 = scmp.eq.s32.totalorder %s9, 1
    %p92 = por %p90, %p91
    %p93 = scmp.ne.s32.totalorder %s85, %s88
    %p94 = scmp.eq.s32.totalorder %s9, 0
    %p95 = por %p93, %p94
    %p96 = scmp.ne.s32.totalorder %s85, %s88
    %p97 = scmp.eq.s32.totalorder %s14, 1
    %p98 = por %p96, %p97
    %p99 = scmp.ne.s32.totalorder %s88, %s89
    %p100 = scmp.eq.s32.totalorder %s14, 0
    %p101 = por %p99, %p100
    %p102 = scmp.ne.s32.totalorder %s88, %s89
    %p103 = scmp.eq.s32.totalorder %s15, 1
    %p104 = por %p102, %p103
    %p106 = scmp.ne.s32.totalorder %s89, %s105
    %p107 = scmp.eq.s32.totalorder %s15, 0
    %p108 = por %p106, %p107
    %s109 = ssub.s32 %s16, %s28
    %s110 = ssub.s32 %s17, %s24
    %s111 = sor.u32 %s109, %s110
    %p112 = scmp.eq.s32.totalorder %s111, 0
    %s114 = sadd.s32 %s113, 1
    %s115 = scalar_select %p112, %s113, %s114
    %p118 = pneg %p112
    %p119 = scmp.eq.s32.totalorder %s9, 1
    %p120 = por %p118, %p119
    %p121 = scmp.ne.s32.totalorder %s113, %s116
    %p122 = scmp.eq.s32.totalorder %s9, 0
    %p123 = por %p121, %p122
    %p124 = scmp.ne.s32.totalorder %s113, %s116
    %p125 = scmp.eq.s32.totalorder %s14, 1
    %p126 = por %p124, %p125
    %p127 = scmp.ne.s32.totalorder %s116, %s117
    %p128 = scmp.eq.s32.totalorder %s14, 0
    %p129 = por %p127, %p128
    %p130 = scmp.ne.s32.totalorder %s116, %s117
    %p131 = scmp.eq.s32.totalorder %s15, 1
    %p132 = por %p130, %p131
    %p134 = scmp.ne.s32.totalorder %s117, %s133
    %p135 = scmp.eq.s32.totalorder %s15, 0
    %p136 = por %p134, %p135
    %p137 = scmp.le.s32.totalorder 1, %s9
    %p138 = scmp.lt.s32.totalorder %s9, 3
    %p139 = pnand %p137, %p138
    %p140 = pneg %p139
    // Predicated region
    $region9: #{_lambda_.34} parent=5 // pred_check
      _
    $region10: #{_lambda_.34} parent=5 // pred_check_branch
      %142 = sbr.rel (%p139) target = $region12
    $region11: #{_lambda_.34} parent=5 // pred_region
      %s143 = ssub.s32 %s9, 1
      // Predicated region
      $region13: #{_lambda_.34} parent=11 // pred_check
        %p144 = pneg %p75
      $region14: #{_lambda_.34} parent=11 // pred_check_branch
        %146 = sbr.rel (%p144) target = $region16
      $region15: #{_lambda_.34} parent=11 // pred_region
        %p147 = scmp.lt.s32.totalorder %s18, 0
        %s148 = scalar_select %p147, %s18, 0
        %s149 = smul.addr %s148, 6
        %s150 = smul.addr %s149, 4
        %s151 = scalar_lea.vmem %s1, %s150
      $region16: #{_lambda_.34} parent=11 // pred_fallthru
        _
      // Predicated region
      $region17: #{_lambda_.34} parent=11 // pred_check
        %p152 = pneg %p101
      $region18: #{_lambda_.34} parent=11 // pred_check_branch
        %154 = sbr.rel (%p152) target = $region20
      $region19: #{_lambda_.34} parent=11 // pred_region
        %p155 = scmp.lt.s32.totalorder %s18, 0
        %s156 = scalar_select %p155, %s18, 0
        %s157 = scalar_lea.vmem %s2, %s156
      $region20: #{_lambda_.34} parent=11 // pred_fallthru
        _
    $region12: #{_lambda_.34} parent=5 // pred_fallthru
      _
    %p158 = scmp.lt.s32.totalorder %s9, 2
    // Predicated region
    $region21: #{_lambda_.34} parent=5 // pred_check
      %p159 = pneg %p158
    $region22: #{_lambda_.34} parent=5 // pred_check_branch
      %161 = sbr.rel (%p159) target = $region24
    $region23: #{_lambda_.34} parent=5 // pred_region
      // Predicated region
      $region25: #{_lambda_.34} parent=23 // pred_check
        %p162 = pneg %p43
      $region26: #{_lambda_.34} parent=23 // pred_check_branch
        %164 = sbr.rel (%p162) target = $region28
      $region27: #{_lambda_.34} parent=23 // pred_region
        %p165 = scmp.lt.s32.totalorder %s16, 0
        %s166 = scalar_select %p165, %s16, 0
        %p167 = scmp.lt.s32.totalorder %s17, 1
        %s168 = scalar_select %p167, %s17, 1
        %s169 = smul.addr %s168, 3
        %s170 = smul.addr %s166, 6
        %s171 = sadd.s32 %s169, %s170
        %s172 = smul.addr %s171, 8
        %s173 = scalar_lea.vmem %s0, %s172
      $region28: #{_lambda_.34} parent=23 // pred_fallthru
        _
    $region24: #{_lambda_.34} parent=5 // pred_fallthru
      _
    %p174 = scmp.le.s32.totalorder 1, %s9
    %p175 = scmp.lt.s32.totalorder %s9, 3
    %p176 = pnand %p174, %p175
    %p177 = pneg %p176
    // Predicated region
    $region29: #{_lambda_.34} parent=5 // pred_check
      _
    $region30: #{_lambda_.34} parent=5 // pred_check_branch
      %179 = sbr.rel (%p176) target = $region32
    $region31: #{_lambda_.34} parent=5 // pred_region
      %s180 = ssub.s32 %s9, 1
      %p181 = scmp.lt.s32.totalorder %s18, 0
      %s182 = scalar_select %p181, %s18, 0
      %p183 = scmp.lt.s32.totalorder %s19, 1
      %s184 = scalar_select %p183, %s19, 1
      %s185 = smul.addr %s184, 3
      %s186 = smul.addr %s182, 6
      %s187 = sadd.s32 %s185, %s186
      %s188 = smul.addr %s187, 8
      %s189 = scalar_lea.vmem %s0, %s188
      %p190 = pneg %p49
      %p191 = pneg %p46
      %p192 = scmp.lt.s32.totalorder %s18, 0
      %s193 = scalar_select %p192, %s18, 0
      %s194 = smul.addr %s193, 6
      %s195 = smul.addr %s194, 4
      %s196 = scalar_lea.vmem %s1, %s195
      %p197 = pneg %p75
      %p198 = pneg %p72
      %p199 = scmp.lt.s32.totalorder %s18, 0
      %s200 = scalar_select %p199, %s18, 0
      %s201 = scalar_lea.vmem %s2, %s200
      %p202 = pneg %p101
      %p203 = pneg %p98
      %p204 = pneg %p129
      %p205 = pneg %p126
      %p206 = scmp.lt.s32.totalorder %s18, 0
      %s207 = scalar_select %p206, %s18, 0
      %p208 = scmp.lt.s32.totalorder %s19, 1
      %s209 = scalar_select %p208, %s19, 1
      %s210 = smul.addr %s209, 2
      %s211 = smul.addr %s207, 4
      %s212 = sadd.s32 %s210, %s211
      %s213 = smul.addr %s212, 8
      %s214 = scalar_lea.vmem %s3, %s213
      %p215 = scmp.lt.s32.totalorder %s18, 0
      %s216 = scalar_select %p215, %s18, 0
      %p217 = scmp.lt.s32.totalorder %s19, 1
      %s218 = scalar_select %p217, %s19, 1
      %s219 = smul.addr %s218, 3
      %s220 = smul.addr %s216, 6
      %s221 = sadd.s32 %s219, %s220
      %s222 = smul.addr %s221, 8
      %s223 = scalar_lea.vmem %s0, %s222
      %p224 = scmp.lt.s32.totalorder %s18, 0
      %s225 = scalar_select %p224, %s18, 0
      %s226 = smul.addr %s225, 6
      %s227 = smul.addr %s226, 4
      %s228 = scalar_lea.vmem %s1, %s227
      %p229 = scmp.lt.s32.totalorder %s18, 0
      %s230 = scalar_select %p229, %s18, 0
      %s231 = scalar_lea.vmem %s2, %s230
      %p232 = scmp.lt.s32.totalorder %s18, 0
      %s233 = scalar_select %p232, %s18, 0
      %p234 = scmp.lt.s32.totalorder %s19, 1
      %s235 = scalar_select %p234, %s19, 1
      %s236 = smul.addr %s235, 2
      %s237 = smul.addr %s233, 4
      %s238 = sadd.s32 %s236, %s237
      %s239 = smul.addr %s238, 8
      %s240 = scalar_lea.vmem %s3, %s239
      %v242 = vld [vmem:[%s223] sm:$0xff]
      %v243 = vld [vmem:[%s223 + $0x8] sm:$0xff]
      %v244 = vpack.c.bf16 %v243, %v242
      %v245 = vld [vmem:[%s228] sm:$0xf]
      %v246 = vld [vmem:[%s228 + $0x4] sm:$0xf]
      %v247 = vld [vmem:[%s223 + $0x1] sm:$0xff]
      %v248 = vld [vmem:[%s223 + $0x9] sm:$0xff]
      %v249 = vpack.c.bf16 %v248, %v247
      %s250 = scalar_lea.vmem %s228, 8
      %v251 = vld [vmem:[%s250] sm:$0xf]
      %v252 = vld [vmem:[%s250 + $0x4] sm:$0xf]
      %v255 = vunpack.c.l.b16 %v251
      %v256 = vunpack.c.l.b16 %v252
      %v257 = vpack.c.b16 %v256, %v255
      %vm259 = vcmask 130048
      %v261 = vsel %vm259, %v249, 0
      %263 = vmatpush.bf16.msra.mxu0 0
      %264 = vmatpush.bf16.msra.mxu0 0
      %265 = vmatpush.bf16.msra.mxu0 0
      %266 = vmatpush.bf16.msra.mxu0 0
      %267 = vmatpush.bf16.msra.mxu0 0
      %268 = vmatpush.bf16.msra.mxu0 0
      %269 = vmatpush.bf16.msra.mxu0 0
      %270 = vmatpush.bf16.msra.mxu0 %v257
      %271 = vmatmul.bf16.gmra.mxu0 %v261
      %v272 = vpop.f32.mrf.mxu0
      %v273 = vadd.f32 0.0, %v272
      %v274 = vpop.f32.mrf.mxu0
      %v275 = vadd.f32 0.0, %v274
      %276 = vdwg.mxu0
      %v279 = vunpack.c.l.b16 %v245
      %v280 = vunpack.c.l.b16 %v246
      %v281 = vpack.c.b16 %v280, %v279
      %v284 = vsel %vm259, %v244, 0
      %286 = vmatpush.bf16.msra.mxu0 0
      %287 = vmatpush.bf16.msra.mxu0 0
      %288 = vmatpush.bf16.msra.mxu0 0
      %289 = vmatpush.bf16.msra.mxu0 0
      %290 = vmatpush.bf16.msra.mxu0 0
      %291 = vmatpush.bf16.msra.mxu0 0
      %292 = vmatpush.bf16.msra.mxu0 0
      %293 = vmatpush.bf16.msra.mxu0 %v281
      %294 = vmatmul.bf16.gmra.mxu0 %v284
      %v295 = vpop.f32.mrf.mxu0
      %v296 = vadd.f32 %v273, %v295
      %v297 = vpop.f32.mrf.mxu0
      %v298 = vadd.f32 %v275, %v297
      %299 = vdwg.mxu0
      %v300 = vld [vmem:[%s223 + $0x2] sm:$0xff]
      %v301 = vld [vmem:[%s223 + $0xa] sm:$0xff]
      %v302 = vpack.c.bf16 %v301, %v300
      %s303 = scalar_lea.vmem %s228, 16
      %v304 = vld [vmem:[%s303] sm:$0xf]
      %v305 = vld [vmem:[%s303 + $0x4] sm:$0xf]
      %v308 = vunpack.c.l.b16 %v304
      %v309 = vunpack.c.l.b16 %v305
      %v310 = vpack.c.b16 %v309, %v308
      %v313 = vsel %vm259, %v302, 0
      %315 = vmatpush.bf16.msra.mxu0 0
      %316 = vmatpush.bf16.msra.mxu0 0
      %317 = vmatpush.bf16.msra.mxu0 0
      %318 = vmatpush.bf16.msra.mxu0 0
      %319 = vmatpush.bf16.msra.mxu0 0
      %320 = vmatpush.bf16.msra.mxu0 0
      %321 = vmatpush.bf16.msra.mxu0 0
      %322 = vmatpush.bf16.msra.mxu0 %v310
      %323 = vmatmul.bf16.gmra.mxu0 %v313
      %v324 = vpop.f32.mrf.mxu0
      %v325 = vadd.f32 0.0, %v324
      %v326 = vpop.f32.mrf.mxu0
      %v327 = vadd.f32 0.0, %v326
      %328 = vdwg.mxu0
      %v329 = vadd.f32 %v296, %v325
      %v330 = vadd.f32 %v298, %v327
      %v331 = vld [vmem:[%s231] sm:$0x1]
      %v333 = vperm.slane %v331, 0
      %v335 = vadd.f32 %v329, %v333
      %v336 = vadd.f32 %v330, %v333
      %v337 = vmax.f32 %v335, 0.0
      %v338 = vmax.f32 %v336, 0.0
      %339 = vst.msk [vmem:[%s240] sm:$0xff] %vm259, %v337
      %340 = vst.msk [vmem:[%s240 + $0x8] sm:$0xff] %vm259, %v338
      %p341 = scmp.lt.s32.totalorder %s18, 0
      %s342 = scalar_select %p341, %s18, 0
      %p343 = scmp.lt.s32.totalorder %s19, 1
      %s344 = scalar_select %p343, %s19, 1
      %s345 = smul.addr %s344, 2
      %s346 = smul.addr %s342, 4
      %s347 = sadd.s32 %s345, %s346
      %s348 = smul.addr %s347, 8
      %s349 = scalar_lea.vmem %s3, %s348
      // Predicated region
      $region33: #{_lambda_.34} parent=31 // pred_check
        %p350 = pneg %p126
      $region34: #{_lambda_.34} parent=31 // pred_check_branch
        %352 = sbr.rel (%p350) target = $region36
      $region35: #{_lambda_.34} parent=31 // pred_region
        _
      $region36: #{_lambda_.34} parent=31 // pred_fallthru
        _
    $region32: #{_lambda_.34} parent=5 // pred_fallthru
      _
    %p353 = scmp.le.s32.totalorder 2, %s9
    // Predicated region
    $region37: #{_lambda_.34} parent=5 // pred_check
      %p354 = pneg %p353
    $region38: #{_lambda_.34} parent=5 // pred_check_branch
      %356 = sbr.rel (%p354) target = $region40
    $region39: #{_lambda_.34} parent=5 // pred_region
      %s357 = ssub.s32 %s9, 2
      // Predicated region
      $region41: #{_lambda_.34} parent=39 // pred_check
        %p358 = pneg %p132
      $region42: #{_lambda_.34} parent=39 // pred_check_branch
        %360 = sbr.rel (%p358) target = $region44
      $region43: #{_lambda_.34} parent=39 // pred_region
        %p361 = scmp.lt.s32.totalorder %s20, 0
        %s362 = scalar_select %p361, %s20, 0
        %p363 = scmp.lt.s32.totalorder %s21, 1
        %s364 = scalar_select %p363, %s21, 1
        %s365 = smul.addr %s364, 2
        %s366 = smul.addr %s362, 4
        %s367 = sadd.s32 %s365, %s366
        %s368 = smul.addr %s367, 8
        %s369 = scalar_lea.vmem %s3, %s368
      $region44: #{_lambda_.34} parent=39 // pred_fallthru
        _
    $region40: #{_lambda_.34} parent=5 // pred_fallthru
      _
  $region6: #{_lambda_.34} parent=0 // loop_footer
    %s13 = sadd.s32 1, %s9
  $region7: #{_lambda_.34} parent=0 // loop_footer_branch
    %8 = sbr.rel target = $region3
  $region8: #{_lambda_.34} parent=0 // loop_exit
    _

// kernel: _lambda_.27
$region0: #{_lambda_.27}
  #allocation0 [shape = 'u32[]', space=smem, size = 0x4, offset = 0x4, fixed_abs, tag = 'smem constant byte address 0x4 - core index']
  #allocation1 [shape = 'u32[72,128]{1,0:T(1,128)}', space=vmem, size = 0x9000, scoped, tag = 'internal scratch']
  %s0 = inlined_call_operand.vmem [shape: f32[3,2,18,16], index: 0, kind: input, shape index: {}]
  %s1 = inlined_call_operand.vmem [shape: bf16[3,3,16,16], index: 1, kind: input, shape index: {}]
  %s2 = inlined_call_operand.vmem [shape: f32[3,1,16], index: 2, kind: input, shape index: {}]
  %s3 = inlined_call_operand.vmem [shape: f32[3,2,16,16], index: 3, kind: output, shape index: {}]
  %s4 = sld [smem:[#allocation0]]
  $region45: #{_lambda_.27} parent=0
    _
  %s6 = ssub.s32 1, %s4
  %s7 = scalar_select 0, %s6, %s4
  loop: start=0, step=1, limit=8
  $region2: #{_lambda_.27} parent=0 // loop_pre_header
    _
  $region3: #{_lambda_.27} parent=0 // loop_header
    %s9 = sphi 0, %s13
    %p10 = scmp.ge.s32.totalorder %s9, 8
    %s16 = sphi 0, %s28
    %s17 = sphi 0, %s24
    %s18 = sphi 0, %s16
    %s19 = sphi 0, %s17
    %s20 = sphi 0, %s18
    %s21 = sphi 0, %s19
    %s33 = sphi 0, %s35
    %s36 = sphi 0, %s33
    %s37 = sphi 0, %s36
    %s53 = sphi 0, %s37
    %s59 = sphi 0, %s61
    %s62 = sphi 0, %s59
    %s63 = sphi 0, %s62
    %s79 = sphi 0, %s63
    %s85 = sphi 0, %s87
    %s88 = sphi 0, %s85
    %s89 = sphi 0, %s88
    %s105 = sphi 0, %s89
    %s113 = sphi 0, %s115
    %s116 = sphi 0, %s113
    %s117 = sphi 0, %s116
    %s133 = sphi 0, %s117
  $region4: #{_lambda_.27} parent=0 // loop_header_branch
    %12 = sbr.rel (%p10) target = $region8
  $region5: #{_lambda_.27} parent=0 // loop_body
    %s14 = ssub.s32 %s9, 1
    %s15 = ssub.s32 %s9, 2
    %s22 = sadd.s32 1, %s17
    %p23 = scmp.ge.s32.totalorder %s22, 2
    %s24 = scalar_select %p23, 0, %s22
    %s25 = sadd.s32 1, %s16
    %s26 = scalar_select %p23, %s25, %s16
    %p27 = scmp.ge.s32.totalorder %s26, 3
    %s28 = scalar_select %p27, 0, %s26
    %s29 = ssub.s32 %s16, %s28
    %s30 = ssub.s32 %s17, %s24
    %s31 = sor.u32 %s29, %s30
    %p32 = scmp.eq.s32.totalorder %s31, 0
    %s34 = sadd.s32 %s33, 1
    %s35 = scalar_select %p32, %s33, %s34
    %p38 = pneg %p32
    %p39 = scmp.eq.s32.totalorder %s9, 5
    %p40 = por %p38, %p39
    %p41 = scmp.ne.s32.totalorder %s33, %s36
    %p42 = scmp.eq.s32.totalorder %s9, 0
    %p43 = por %p41, %p42
    %p44 = scmp.ne.s32.totalorder %s33, %s36
    %p45 = scmp.eq.s32.totalorder %s14, 5
    %p46 = por %p44, %p45
    %p47 = scmp.ne.s32.totalorder %s36, %s37
    %p48 = scmp.eq.s32.totalorder %s14, 0
    %p49 = por %p47, %p48
    %p50 = scmp.ne.s32.totalorder %s36, %s37
    %p51 = scmp.eq.s32.totalorder %s15, 5
    %p52 = por %p50, %p51
    %p54 = scmp.ne.s32.totalorder %s37, %s53
    %p55 = scmp.eq.s32.totalorder %s15, 0
    %p56 = por %p54, %p55
    %s57 = ssub.s32 %s16, %s28
    %p58 = scmp.eq.s32.totalorder %s57, 0
    %s60 = sadd.s32 %s59, 1
    %s61 = scalar_select %p58, %s59, %s60
    %p64 = pneg %p58
    %p65 = scmp.eq.s32.totalorder %s9, 5
    %p66 = por %p64, %p65
    %p67 = scmp.ne.s32.totalorder %s59, %s62
    %p68 = scmp.eq.s32.totalorder %s9, 0
    %p69 = por %p67, %p68
    %p70 = scmp.ne.s32.totalorder %s59, %s62
    %p71 = scmp.eq.s32.totalorder %s14, 5
    %p72 = por %p70, %p71
    %p73 = scmp.ne.s32.totalorder %s62, %s63
    %p74 = scmp.eq.s32.totalorder %s14, 0
    %p75 = por %p73, %p74
    %p76 = scmp.ne.s32.totalorder %s62, %s63
    %p77 = scmp.eq.s32.totalorder %s15, 5
    %p78 = por %p76, %p77
    %p80 = scmp.ne.s32.totalorder %s63, %s79
    %p81 = scmp.eq.s32.totalorder %s15, 0
    %p82 = por %p80, %p81
    %s83 = ssub.s32 %s16, %s28
    %p84 = scmp.eq.s32.totalorder %s83, 0
    %s86 = sadd.s32 %s85, 1
    %s87 = scalar_select %p84, %s85, %s86
    %p90 = pneg %p84
    %p91 = scmp.eq.s32.totalorder %s9, 5
    %p92 = por %p90, %p91
    %p93 = scmp.ne.s32.totalorder %s85, %s88
    %p94 = scmp.eq.s32.totalorder %s9, 0
    %p95 = por %p93, %p94
    %p96 = scmp.ne.s32.totalorder %s85, %s88
    %p97 = scmp.eq.s32.totalorder %s14, 5
    %p98 = por %p96, %p97
    %p99 = scmp.ne.s32.totalorder %s88, %s89
    %p100 = scmp.eq.s32.totalorder %s14, 0
    %p101 = por %p99, %p100
    %p102 = scmp.ne.s32.totalorder %s88, %s89
    %p103 = scmp.eq.s32.totalorder %s15, 5
    %p104 = por %p102, %p103
    %p106 = scmp.ne.s32.totalorder %s89, %s105
    %p107 = scmp.eq.s32.totalorder %s15, 0
    %p108 = por %p106, %p107
    %s109 = ssub.s32 %s16, %s28
    %s110 = ssub.s32 %s17, %s24
    %s111 = sor.u32 %s109, %s110
    %p112 = scmp.eq.s32.totalorder %s111, 0
    %s114 = sadd.s32 %s113, 1
    %s115 = scalar_select %p112, %s113, %s114
    %p118 = pneg %p112
    %p119 = scmp.eq.s32.totalorder %s9, 5
    %p120 = por %p118, %p119
    %p121 = scmp.ne.s32.totalorder %s113, %s116
    %p122 = scmp.eq.s32.totalorder %s9, 0
    %p123 = por %p121, %p122
    %p124 = scmp.ne.s32.totalorder %s113, %s116
    %p125 = scmp.eq.s32.totalorder %s14, 5
    %p126 = por %p124, %p125
    %p127 = scmp.ne.s32.totalorder %s116, %s117
    %p128 = scmp.eq.s32.totalorder %s14, 0
    %p129 = por %p127, %p128
    %p130 = scmp.ne.s32.totalorder %s116, %s117
    %p131 = scmp.eq.s32.totalorder %s15, 5
    %p132 = por %p130, %p131
    %p134 = scmp.ne.s32.totalorder %s117, %s133
    %p135 = scmp.eq.s32.totalorder %s15, 0
    %p136 = por %p134, %p135
    %p137 = scmp.le.s32.totalorder 1, %s9
    %p138 = scmp.lt.s32.totalorder %s9, 7
    %p139 = pnand %p137, %p138
    %p140 = pneg %p139
    // Predicated region
    $region9: #{_lambda_.27} parent=5 // pred_check
      _
    $region10: #{_lambda_.27} parent=5 // pred_check_branch
      %142 = sbr.rel (%p139) target = $region12
    $region11: #{_lambda_.27} parent=5 // pred_region
      %s143 = ssub.s32 %s9, 1
    $region12: #{_lambda_.27} parent=5 // pred_fallthru
      _
    %p144 = scmp.lt.s32.totalorder %s9, 6
    // Predicated region
    $region13: #{_lambda_.27} parent=5 // pred_check
      %p145 = pneg %p144
    $region14: #{_lambda_.27} parent=5 // pred_check_branch
      %147 = sbr.rel (%p145) target = $region16
    $region15: #{_lambda_.27} parent=5 // pred_region
      // Predicated region
      $region17: #{_lambda_.27} parent=15 // pred_check
        %p148 = pneg %p43
      $region18: #{_lambda_.27} parent=15 // pred_check_branch
        %150 = sbr.rel (%p148) target = $region20
      $region19: #{_lambda_.27} parent=15 // pred_region
        %p151 = scmp.lt.s32.totalorder %s16, 2
        %s152 = scalar_select %p151, %s16, 2
        %p153 = scmp.lt.s32.totalorder %s17, 1
        %s154 = scalar_select %p153, %s17, 1
        %s155 = smul.addr %s154, 3
        %s156 = smul.addr %s152, 6
        %s157 = sadd.s32 %s155, %s156
        %s158 = smul.addr %s157, 8
        %s159 = scalar_lea.vmem %s0, %s158
      $region20: #{_lambda_.27} parent=15 // pred_fallthru
        _
      // Predicated region
      $region21: #{_lambda_.27} parent=15 // pred_check
        %p160 = pneg %p69
      $region22: #{_lambda_.27} parent=15 // pred_check_branch
        %162 = sbr.rel (%p160) target = $region24
      $region23: #{_lambda_.27} parent=15 // pred_region
        %p163 = scmp.lt.s32.totalorder %s16, 2
        %s164 = scalar_select %p163, %s16, 2
        %s165 = smul.addr %s164, 6
        %s166 = smul.addr %s165, 4
        %s167 = scalar_lea.vmem %s1, %s166
      $region24: #{_lambda_.27} parent=15 // pred_fallthru
        _
      // Predicated region
      $region25: #{_lambda_.27} parent=15 // pred_check
        %p168 = pneg %p95
      $region26: #{_lambda_.27} parent=15 // pred_check_branch
        %170 = sbr.rel (%p168) target = $region28
      $region27: #{_lambda_.27} parent=15 // pred_region
        %p171 = scmp.lt.s32.totalorder %s16, 2
        %s172 = scalar_select %p171, %s16, 2
        %s173 = scalar_lea.vmem %s2, %s172
      $region28: #{_lambda_.27} parent=15 // pred_fallthru
        _
    $region16: #{_lambda_.27} parent=5 // pred_fallthru
      _
    %p174 = scmp.le.s32.totalorder 1, %s9
    %p175 = scmp.lt.s32.totalorder %s9, 7
    %p176 = pnand %p174, %p175
    %p177 = pneg %p176
    // Predicated region
    $region29: #{_lambda_.27} parent=5 // pred_check
      _
    $region30: #{_lambda_.27} parent=5 // pred_check_branch
      %179 = sbr.rel (%p176) target = $region32
    $region31: #{_lambda_.27} parent=5 // pred_region
      %s180 = ssub.s32 %s9, 1
      %p181 = scmp.lt.s32.totalorder %s18, 2
      %s182 = scalar_select %p181, %s18, 2
      %p183 = scmp.lt.s32.totalorder %s19, 1
      %s184 = scalar_select %p183, %s19, 1
      %s185 = smul.addr %s184, 3
      %s186 = smul.addr %s182, 6
      %s187 = sadd.s32 %s185, %s186
      %s188 = smul.addr %s187, 8
      %s189 = scalar_lea.vmem %s0, %s188
      %p190 = pneg %p49
      %p191 = pneg %p46
      %p192 = scmp.lt.s32.totalorder %s18, 2
      %s193 = scalar_select %p192, %s18, 2
      %s194 = smul.addr %s193, 6
      %s195 = smul.addr %s194, 4
      %s196 = scalar_lea.vmem %s1, %s195
      %p197 = pneg %p75
      %p198 = pneg %p72
      %p199 = scmp.lt.s32.totalorder %s18, 2
      %s200 = scalar_select %p199, %s18, 2
      %s201 = scalar_lea.vmem %s2, %s200
      %p202 = pneg %p101
      %p203 = pneg %p98
      %p204 = pneg %p129
      %p205 = pneg %p126
      %p206 = scmp.lt.s32.totalorder %s18, 2
      %s207 = scalar_select %p206, %s18, 2
      %p208 = scmp.lt.s32.totalorder %s19, 1
      %s209 = scalar_select %p208, %s19, 1
      %s210 = smul.addr %s209, 2
      %s211 = smul.addr %s207, 4
      %s212 = sadd.s32 %s210, %s211
      %s213 = smul.addr %s212, 8
      %s214 = scalar_lea.vmem %s3, %s213
      %p215 = scmp.lt.s32.totalorder %s18, 2
      %s216 = scalar_select %p215, %s18, 2
      %p217 = scmp.lt.s32.totalorder %s19, 1
      %s218 = scalar_select %p217, %s19, 1
      %s219 = smul.addr %s218, 3
      %s220 = smul.addr %s216, 6
      %s221 = sadd.s32 %s219, %s220
      %s222 = smul.addr %s221, 8
      %s223 = scalar_lea.vmem %s0, %s222
      %p224 = scmp.lt.s32.totalorder %s18, 2
      %s225 = scalar_select %p224, %s18, 2
      %s226 = smul.addr %s225, 6
      %s227 = smul.addr %s226, 4
      %s228 = scalar_lea.vmem %s1, %s227
      %p229 = scmp.lt.s32.totalorder %s18, 2
      %s230 = scalar_select %p229, %s18, 2
      %s231 = scalar_lea.vmem %s2, %s230
      %p232 = scmp.lt.s32.totalorder %s18, 2
      %s233 = scalar_select %p232, %s18, 2
      %p234 = scmp.lt.s32.totalorder %s19, 1
      %s235 = scalar_select %p234, %s19, 1
      %s236 = smul.addr %s235, 2
      %s237 = smul.addr %s233, 4
      %s238 = sadd.s32 %s236, %s237
      %s239 = smul.addr %s238, 8
      %s240 = scalar_lea.vmem %s3, %s239
      %v242 = vld [vmem:[%s223] sm:$0xff]
      %v243 = vld [vmem:[%s223 + $0x8] sm:$0xff]
      %v244 = vpack.c.bf16 %v243, %v242
      %v245 = vld [vmem:[%s228] sm:$0xf]
      %v246 = vld [vmem:[%s228 + $0x4] sm:$0xf]
      %v247 = vld [vmem:[%s223 + $0x1] sm:$0xff]
      %v248 = vld [vmem:[%s223 + $0x9] sm:$0xff]
      %v249 = vpack.c.bf16 %v248, %v247
      %s250 = scalar_lea.vmem %s228, 8
      %v251 = vld [vmem:[%s250] sm:$0xf]
      %v252 = vld [vmem:[%s250 + $0x4] sm:$0xf]
      %v255 = vunpack.c.l.b16 %v251
      %v256 = vunpack.c.l.b16 %v252
      %v257 = vpack.c.b16 %v256, %v255
      %vm259 = vcmask 130048
      %v261 = vsel %vm259, %v249, 0
      %263 = vmatpush.bf16.msra.mxu0 0
      %264 = vmatpush.bf16.msra.mxu0 0
      %265 = vmatpush.bf16.msra.mxu0 0
      %266 = vmatpush.bf16.msra.mxu0 0
      %267 = vmatpush.bf16.msra.mxu0 0
      %268 = vmatpush.bf16.msra.mxu0 0
      %269 = vmatpush.bf16.msra.mxu0 0
      %270 = vmatpush.bf16.msra.mxu0 %v257
      %271 = vmatmul.bf16.gmra.mxu0 %v261
      %v272 = vpop.f32.mrf.mxu0
      %v273 = vadd.f32 0.0, %v272
      %v274 = vpop.f32.mrf.mxu0
      %v275 = vadd.f32 0.0, %v274
      %276 = vdwg.mxu0
      %v279 = vunpack.c.l.b16 %v245
      %v280 = vunpack.c.l.b16 %v246
      %v281 = vpack.c.b16 %v280, %v279
      %v284 = vsel %vm259, %v244, 0
      %286 = vmatpush.bf16.msra.mxu0 0
      %287 = vmatpush.bf16.msra.mxu0 0
      %288 = vmatpush.bf16.msra.mxu0 0
      %289 = vmatpush.bf16.msra.mxu0 0
      %290 = vmatpush.bf16.msra.mxu0 0
      %291 = vmatpush.bf16.msra.mxu0 0
      %292 = vmatpush.bf16.msra.mxu0 0
      %293 = vmatpush.bf16.msra.mxu0 %v281
      %294 = vmatmul.bf16.gmra.mxu0 %v284
      %v295 = vpop.f32.mrf.mxu0
      %v296 = vadd.f32 %v273, %v295
      %v297 = vpop.f32.mrf.mxu0
      %v298 = vadd.f32 %v275, %v297
      %299 = vdwg.mxu0
      %v300 = vld [vmem:[%s223 + $0x2] sm:$0xff]
      %v301 = vld [vmem:[%s223 + $0xa] sm:$0xff]
      %v302 = vpack.c.bf16 %v301, %v300
      %s303 = scalar_lea.vmem %s228, 16
      %v304 = vld [vmem:[%s303] sm:$0xf]
      %v305 = vld [vmem:[%s303 + $0x4] sm:$0xf]
      %v308 = vunpack.c.l.b16 %v304
      %v309 = vunpack.c.l.b16 %v305
      %v310 = vpack.c.b16 %v309, %v308
      %v313 = vsel %vm259, %v302, 0
      %315 = vmatpush.bf16.msra.mxu0 0
      %316 = vmatpush.bf16.msra.mxu0 0
      %317 = vmatpush.bf16.msra.mxu0 0
      %318 = vmatpush.bf16.msra.mxu0 0
      %319 = vmatpush.bf16.msra.mxu0 0
      %320 = vmatpush.bf16.msra.mxu0 0
      %321 = vmatpush.bf16.msra.mxu0 0
      %322 = vmatpush.bf16.msra.mxu0 %v310
      %323 = vmatmul.bf16.gmra.mxu0 %v313
      %v324 = vpop.f32.mrf.mxu0
      %v325 = vadd.f32 0.0, %v324
      %v326 = vpop.f32.mrf.mxu0
      %v327 = vadd.f32 0.0, %v326
      %328 = vdwg.mxu0
      %v329 = vadd.f32 %v296, %v325
      %v330 = vadd.f32 %v298, %v327
      %v331 = vld [vmem:[%s231] sm:$0x1]
      %v333 = vperm.slane %v331, 0
      %v335 = vadd.f32 %v329, %v333
      %v336 = vadd.f32 %v330, %v333
      %vm337 = vcmp.ge.f32.partialorder %v335, 0.0
      %vm338 = vcmp.ge.f32.partialorder %v336, 0.0
      %v339 = vmul.f32 %v335, 0.01
      %v340 = vmul.f32 %v336, 0.01
      %v341 = vsel %vm337, %v335, %v339
      %v342 = vsel %vm338, %v336, %v340
      %343 = vst.msk [vmem:[%s240] sm:$0xff] %vm259, %v341
      %344 = vst.msk [vmem:[%s240 + $0x8] sm:$0xff] %vm259, %v342
      %p345 = scmp.lt.s32.totalorder %s18, 2
      %s346 = scalar_select %p345, %s18, 2
      %p347 = scmp.lt.s32.totalorder %s19, 1
      %s348 = scalar_select %p347, %s19, 1
      %s349 = smul.addr %s348, 2
      %s350 = smul.addr %s346, 4
      %s351 = sadd.s32 %s349, %s350
      %s352 = smul.addr %s351, 8
      %s353 = scalar_lea.vmem %s3, %s352
      // Predicated region
      $region33: #{_lambda_.27} parent=31 // pred_check
        %p354 = pneg %p126
      $region34: #{_lambda_.27} parent=31 // pred_check_branch
        %356 = sbr.rel (%p354) target = $region36
      $region35: #{_lambda_.27} parent=31 // pred_region
        _
      $region36: #{_lambda_.27} parent=31 // pred_fallthru
        _
    $region32: #{_lambda_.27} parent=5 // pred_fallthru
      _
    %p357 = scmp.le.s32.totalorder 2, %s9
    // Predicated region
    $region37: #{_lambda_.27} parent=5 // pred_check
      %p358 = pneg %p357
    $region38: #{_lambda_.27} parent=5 // pred_check_branch
      %360 = sbr.rel (%p358) target = $region40
    $region39: #{_lambda_.27} parent=5 // pred_region
      %s361 = ssub.s32 %s9, 2
      // Predicated region
      $region41: #{_lambda_.27} parent=39 // pred_check
        %p362 = pneg %p132
      $region42: #{_lambda_.27} parent=39 // pred_check_branch
        %364 = sbr.rel (%p362) target = $region44
      $region43: #{_lambda_.27} parent=39 // pred_region
        %p365 = scmp.lt.s32.totalorder %s20, 2
        %s366 = scalar_select %p365, %s20, 2
        %p367 = scmp.lt.s32.totalorder %s21, 1
        %s368 = scalar_select %p367, %s21, 1
        %s369 = smul.addr %s368, 2
        %s370 = smul.addr %s366, 4
        %s371 = sadd.s32 %s369, %s370
        %s372 = smul.addr %s371, 8
        %s373 = scalar_lea.vmem %s3, %s372
      $region44: #{_lambda_.27} parent=39 // pred_fallthru
        _
    $region40: #{_lambda_.27} parent=5 // pred_fallthru
      _
  $region6: #{_lambda_.27} parent=0 // loop_footer
    %s13 = sadd.s32 1, %s9
  $region7: #{_lambda_.27} parent=0 // loop_footer_branch
    %8 = sbr.rel target = $region3
  $region8: #{_lambda_.27} parent=0 // loop_exit
    _

// kernel: _lambda_.36
$region0: #{_lambda_.36}
  #allocation0 [shape = 'u32[]', space=smem, size = 0x4, offset = 0x4, fixed_abs, tag = 'smem constant byte address 0x4 - core index']
  #allocation1 [shape = 'u32[72,128]{1,0:T(1,128)}', space=vmem, size = 0x9000, scoped, tag = 'internal scratch']
  %s0 = inlined_call_operand.vmem [shape: f32[1,2,20,16], index: 0, kind: input, shape index: {}]
  %s1 = inlined_call_operand.vmem [shape: bf16[1,3,16,16], index: 1, kind: input, shape index: {}]
  %s2 = inlined_call_operand.vmem [shape: f32[1,1,16], index: 2, kind: input, shape index: {}]
  %s3 = inlined_call_operand.vmem [shape: f32[1,2,16,16], index: 3, kind: output, shape index: {}]
  %s4 = sld [smem:[#allocation0]]
  $region45: #{_lambda_.36} parent=0
    _
  %s6 = ssub.s32 1, %s4
  %s7 = scalar_select 0, %s6, %s4
  loop: start=0, step=1, limit=4
  $region2: #{_lambda_.36} parent=0 // loop_pre_header
    _
  $region3: #{_lambda_.36} parent=0 // loop_header
    %s9 = sphi 0, %s13
    %p10 = scmp.ge.s32.totalorder %s9, 4
    %s16 = sphi 0, %s28
    %s17 = sphi 0, %s24
    %s18 = sphi 0, %s16
    %s19 = sphi 0, %s17
    %s20 = sphi 0, %s18
    %s21 = sphi 0, %s19
    %s33 = sphi 0, %s35
    %s36 = sphi 0, %s33
    %s37 = sphi 0, %s36
    %s53 = sphi 0, %s37
    %s59 = sphi 0, %s61
    %s62 = sphi 0, %s59
    %s63 = sphi 0, %s62
    %s79 = sphi 0, %s63
    %s85 = sphi 0, %s87
    %s88 = sphi 0, %s85
    %s89 = sphi 0, %s88
    %s105 = sphi 0, %s89
    %s113 = sphi 0, %s115
    %s116 = sphi 0, %s113
    %s117 = sphi 0, %s116
    %s133 = sphi 0, %s117
  $region4: #{_lambda_.36} parent=0 // loop_header_branch
    %12 = sbr.rel (%p10) target = $region8
  $region5: #{_lambda_.36} parent=0 // loop_body
    %s14 = ssub.s32 %s9, 1
    %s15 = ssub.s32 %s9, 2
    %s22 = sadd.s32 1, %s17
    %p23 = scmp.ge.s32.totalorder %s22, 2
    %s24 = scalar_select %p23, 0, %s22
    %s25 = sadd.s32 1, %s16
    %s26 = scalar_select %p23, %s25, %s16
    %p27 = scmp.ge.s32.totalorder %s26, 1
    %s28 = scalar_select %p27, 0, %s26
    %s29 = ssub.s32 %s16, %s28
    %s30 = ssub.s32 %s17, %s24
    %s31 = sor.u32 %s29, %s30
    %p32 = scmp.eq.s32.totalorder %s31, 0
    %s34 = sadd.s32 %s33, 1
    %s35 = scalar_select %p32, %s33, %s34
    %p38 = pneg %p32
    %p39 = scmp.eq.s32.totalorder %s9, 1
    %p40 = por %p38, %p39
    %p41 = scmp.ne.s32.totalorder %s33, %s36
    %p42 = scmp.eq.s32.totalorder %s9, 0
    %p43 = por %p41, %p42
    %p44 = scmp.ne.s32.totalorder %s33, %s36
    %p45 = scmp.eq.s32.totalorder %s14, 1
    %p46 = por %p44, %p45
    %p47 = scmp.ne.s32.totalorder %s36, %s37
    %p48 = scmp.eq.s32.totalorder %s14, 0
    %p49 = por %p47, %p48
    %p50 = scmp.ne.s32.totalorder %s36, %s37
    %p51 = scmp.eq.s32.totalorder %s15, 1
    %p52 = por %p50, %p51
    %p54 = scmp.ne.s32.totalorder %s37, %s53
    %p55 = scmp.eq.s32.totalorder %s15, 0
    %p56 = por %p54, %p55
    %s57 = ssub.s32 %s16, %s28
    %p58 = scmp.eq.s32.totalorder %s57, 0
    %s60 = sadd.s32 %s59, 1
    %s61 = scalar_select %p58, %s59, %s60
    %p64 = pneg %p58
    %p65 = scmp.eq.s32.totalorder %s9, 1
    %p66 = por %p64, %p65
    %p67 = scmp.ne.s32.totalorder %s59, %s62
    %p68 = scmp.eq.s32.totalorder %s9, 0
    %p69 = por %p67, %p68
    %p70 = scmp.ne.s32.totalorder %s59, %s62
    %p71 = scmp.eq.s32.totalorder %s14, 1
    %p72 = por %p70, %p71
    %p73 = scmp.ne.s32.totalorder %s62, %s63
    %p74 = scmp.eq.s32.totalorder %s14, 0
    %p75 = por %p73, %p74
    %p76 = scmp.ne.s32.totalorder %s62, %s63
    %p77 = scmp.eq.s32.totalorder %s15, 1
    %p78 = por %p76, %p77
    %p80 = scmp.ne.s32.totalorder %s63, %s79
    %p81 = scmp.eq.s32.totalorder %s15, 0
    %p82 = por %p80, %p81
    %s83 = ssub.s32 %s16, %s28
    %p84 = scmp.eq.s32.totalorder %s83, 0
    %s86 = sadd.s32 %s85, 1
    %s87 = scalar_select %p84, %s85, %s86
    %p90 = pneg %p84
    %p91 = scmp.eq.s32.totalorder %s9, 1
    %p92 = por %p90, %p91
    %p93 = scmp.ne.s32.totalorder %s85, %s88
    %p94 = scmp.eq.s32.totalorder %s9, 0
    %p95 = por %p93, %p94
    %p96 = scmp.ne.s32.totalorder %s85, %s88
    %p97 = scmp.eq.s32.totalorder %s14, 1
    %p98 = por %p96, %p97
    %p99 = scmp.ne.s32.totalorder %s88, %s89
    %p100 = scmp.eq.s32.totalorder %s14, 0
    %p101 = por %p99, %p100
    %p102 = scmp.ne.s32.totalorder %s88, %s89
    %p103 = scmp.eq.s32.totalorder %s15, 1
    %p104 = por %p102, %p103
    %p106 = scmp.ne.s32.totalorder %s89, %s105
    %p107 = scmp.eq.s32.totalorder %s15, 0
    %p108 = por %p106, %p107
    %s109 = ssub.s32 %s16, %s28
    %s110 = ssub.s32 %s17, %s24
    %s111 = sor.u32 %s109, %s110
    %p112 = scmp.eq.s32.totalorder %s111, 0
    %s114 = sadd.s32 %s113, 1
    %s115 = scalar_select %p112, %s113, %s114
    %p118 = pneg %p112
    %p119 = scmp.eq.s32.totalorder %s9, 1
    %p120 = por %p118, %p119
    %p121 = scmp.ne.s32.totalorder %s113, %s116
    %p122 = scmp.eq.s32.totalorder %s9, 0
    %p123 = por %p121, %p122
    %p124 = scmp.ne.s32.totalorder %s113, %s116
    %p125 = scmp.eq.s32.totalorder %s14, 1
    %p126 = por %p124, %p125
    %p127 = scmp.ne.s32.totalorder %s116, %s117
    %p128 = scmp.eq.s32.totalorder %s14, 0
    %p129 = por %p127, %p128
    %p130 = scmp.ne.s32.totalorder %s116, %s117
    %p131 = scmp.eq.s32.totalorder %s15, 1
    %p132 = por %p130, %p131
    %p134 = scmp.ne.s32.totalorder %s117, %s133
    %p135 = scmp.eq.s32.totalorder %s15, 0
    %p136 = por %p134, %p135
    %p137 = scmp.le.s32.totalorder 1, %s9
    %p138 = scmp.lt.s32.totalorder %s9, 3
    %p139 = pnand %p137, %p138
    %p140 = pneg %p139
    // Predicated region
    $region9: #{_lambda_.36} parent=5 // pred_check
      _
    $region10: #{_lambda_.36} parent=5 // pred_check_branch
      %142 = sbr.rel (%p139) target = $region12
    $region11: #{_lambda_.36} parent=5 // pred_region
      %s143 = ssub.s32 %s9, 1
      // Predicated region
      $region13: #{_lambda_.36} parent=11 // pred_check
        %p144 = pneg %p75
      $region14: #{_lambda_.36} parent=11 // pred_check_branch
        %146 = sbr.rel (%p144) target = $region16
      $region15: #{_lambda_.36} parent=11 // pred_region
        %p147 = scmp.lt.s32.totalorder %s18, 0
        %s148 = scalar_select %p147, %s18, 0
        %s149 = smul.addr %s148, 6
        %s150 = smul.addr %s149, 4
        %s151 = scalar_lea.vmem %s1, %s150
      $region16: #{_lambda_.36} parent=11 // pred_fallthru
        _
      // Predicated region
      $region17: #{_lambda_.36} parent=11 // pred_check
        %p152 = pneg %p101
      $region18: #{_lambda_.36} parent=11 // pred_check_branch
        %154 = sbr.rel (%p152) target = $region20
      $region19: #{_lambda_.36} parent=11 // pred_region
        %p155 = scmp.lt.s32.totalorder %s18, 0
        %s156 = scalar_select %p155, %s18, 0
        %s157 = scalar_lea.vmem %s2, %s156
      $region20: #{_lambda_.36} parent=11 // pred_fallthru
        _
    $region12: #{_lambda_.36} parent=5 // pred_fallthru
      _
    %p158 = scmp.lt.s32.totalorder %s9, 2
    // Predicated region
    $region21: #{_lambda_.36} parent=5 // pred_check
      %p159 = pneg %p158
    $region22: #{_lambda_.36} parent=5 // pred_check_branch
      %161 = sbr.rel (%p159) target = $region24
    $region23: #{_lambda_.36} parent=5 // pred_region
      // Predicated region
      $region25: #{_lambda_.36} parent=23 // pred_check
        %p162 = pneg %p43
      $region26: #{_lambda_.36} parent=23 // pred_check_branch
        %164 = sbr.rel (%p162) target = $region28
      $region27: #{_lambda_.36} parent=23 // pred_region
        %p165 = scmp.lt.s32.totalorder %s16, 0
        %s166 = scalar_select %p165, %s16, 0
        %p167 = scmp.lt.s32.totalorder %s17, 1
        %s168 = scalar_select %p167, %s17, 1
        %s169 = smul.addr %s168, 3
        %s170 = smul.addr %s166, 6
        %s171 = sadd.s32 %s169, %s170
        %s172 = smul.addr %s171, 8
        %s173 = scalar_lea.vmem %s0, %s172
      $region28: #{_lambda_.36} parent=23 // pred_fallthru
        _
    $region24: #{_lambda_.36} parent=5 // pred_fallthru
      _
    %p174 = scmp.le.s32.totalorder 1, %s9
    %p175 = scmp.lt.s32.totalorder %s9, 3
    %p176 = pnand %p174, %p175
    %p177 = pneg %p176
    // Predicated region
    $region29: #{_lambda_.36} parent=5 // pred_check
      _
    $region30: #{_lambda_.36} parent=5 // pred_check_branch
      %179 = sbr.rel (%p176) target = $region32
    $region31: #{_lambda_.36} parent=5 // pred_region
      %s180 = ssub.s32 %s9, 1
      %p181 = scmp.lt.s32.totalorder %s18, 0
      %s182 = scalar_select %p181, %s18, 0
      %p183 = scmp.lt.s32.totalorder %s19, 1
      %s184 = scalar_select %p183, %s19, 1
      %s185 = smul.addr %s184, 3
      %s186 = smul.addr %s182, 6
      %s187 = sadd.s32 %s185, %s186
      %s188 = smul.addr %s187, 8
      %s189 = scalar_lea.vmem %s0, %s188
      %p190 = pneg %p49
      %p191 = pneg %p46
      %p192 = scmp.lt.s32.totalorder %s18, 0
      %s193 = scalar_select %p192, %s18, 0
      %s194 = smul.addr %s193, 6
      %s195 = smul.addr %s194, 4
      %s196 = scalar_lea.vmem %s1, %s195
      %p197 = pneg %p75
      %p198 = pneg %p72
      %p199 = scmp.lt.s32.totalorder %s18, 0
      %s200 = scalar_select %p199, %s18, 0
      %s201 = scalar_lea.vmem %s2, %s200
      %p202 = pneg %p101
      %p203 = pneg %p98
      %p204 = pneg %p129
      %p205 = pneg %p126
      %p206 = scmp.lt.s32.totalorder %s18, 0
      %s207 = scalar_select %p206, %s18, 0
      %p208 = scmp.lt.s32.totalorder %s19, 1
      %s209 = scalar_select %p208, %s19, 1
      %s210 = smul.addr %s209, 2
      %s211 = smul.addr %s207, 4
      %s212 = sadd.s32 %s210, %s211
      %s213 = smul.addr %s212, 8
      %s214 = scalar_lea.vmem %s3, %s213
      %p215 = scmp.lt.s32.totalorder %s18, 0
      %s216 = scalar_select %p215, %s18, 0
      %p217 = scmp.lt.s32.totalorder %s19, 1
      %s218 = scalar_select %p217, %s19, 1
      %s219 = smul.addr %s218, 3
      %s220 = smul.addr %s216, 6
      %s221 = sadd.s32 %s219, %s220
      %s222 = smul.addr %s221, 8
      %s223 = scalar_lea.vmem %s0, %s222
      %p224 = scmp.lt.s32.totalorder %s18, 0
      %s225 = scalar_select %p224, %s18, 0
      %s226 = smul.addr %s225, 6
      %s227 = smul.addr %s226, 4
      %s228 = scalar_lea.vmem %s1, %s227
      %p229 = scmp.lt.s32.totalorder %s18, 0
      %s230 = scalar_select %p229, %s18, 0
      %s231 = scalar_lea.vmem %s2, %s230
      %p232 = scmp.lt.s32.totalorder %s18, 0
      %s233 = scalar_select %p232, %s18, 0
      %p234 = scmp.lt.s32.totalorder %s19, 1
      %s235 = scalar_select %p234, %s19, 1
      %s236 = smul.addr %s235, 2
      %s237 = smul.addr %s233, 4
      %s238 = sadd.s32 %s236, %s237
      %s239 = smul.addr %s238, 8
      %s240 = scalar_lea.vmem %s3, %s239
      %v242 = vld [vmem:[%s223] sm:$0xff]
      %v243 = vld [vmem:[%s223 + $0x8] sm:$0xff]
      %v244 = vpack.c.bf16 %v243, %v242
      %v245 = vld [vmem:[%s228] sm:$0xf]
      %v246 = vld [vmem:[%s228 + $0x4] sm:$0xf]
      %v247 = vld [vmem:[%s223 + $0x2] sm:$0xff]
      %v248 = vld [vmem:[%s223 + $0xa] sm:$0xff]
      %v249 = vpack.c.bf16 %v248, %v247
      %s250 = scalar_lea.vmem %s228, 8
      %v251 = vld [vmem:[%s250] sm:$0xf]
      %v252 = vld [vmem:[%s250 + $0x4] sm:$0xf]
      %v255 = vunpack.c.l.b16 %v251
      %v256 = vunpack.c.l.b16 %v252
      %v257 = vpack.c.b16 %v256, %v255
      %vm259 = vcmask 130048
      %v261 = vsel %vm259, %v249, 0
      %263 = vmatpush.bf16.msra.mxu0 0
      %264 = vmatpush.bf16.msra.mxu0 0
      %265 = vmatpush.bf16.msra.mxu0 0
      %266 = vmatpush.bf16.msra.mxu0 0
      %267 = vmatpush.bf16.msra.mxu0 0
      %268 = vmatpush.bf16.msra.mxu0 0
      %269 = vmatpush.bf16.msra.mxu0 0
      %270 = vmatpush.bf16.msra.mxu0 %v257
      %271 = vmatmul.bf16.gmra.mxu0 %v261
      %v272 = vpop.f32.mrf.mxu0
      %v273 = vadd.f32 0.0, %v272
      %v274 = vpop.f32.mrf.mxu0
      %v275 = vadd.f32 0.0, %v274
      %276 = vdwg.mxu0
      %v279 = vunpack.c.l.b16 %v245
      %v280 = vunpack.c.l.b16 %v246
      %v281 = vpack.c.b16 %v280, %v279
      %v284 = vsel %vm259, %v244, 0
      %286 = vmatpush.bf16.msra.mxu0 0
      %287 = vmatpush.bf16.msra.mxu0 0
      %288 = vmatpush.bf16.msra.mxu0 0
      %289 = vmatpush.bf16.msra.mxu0 0
      %290 = vmatpush.bf16.msra.mxu0 0
      %291 = vmatpush.bf16.msra.mxu0 0
      %292 = vmatpush.bf16.msra.mxu0 0
      %293 = vmatpush.bf16.msra.mxu0 %v281
      %294 = vmatmul.bf16.gmra.mxu0 %v284
      %v295 = vpop.f32.mrf.mxu0
      %v296 = vadd.f32 %v273, %v295
      %v297 = vpop.f32.mrf.mxu0
      %v298 = vadd.f32 %v275, %v297
      %299 = vdwg.mxu0
      %v300 = vld [vmem:[%s223 + $0x4] sm:$0xff]
      %v301 = vld [vmem:[%s223 + $0xc] sm:$0xff]
      %v302 = vpack.c.bf16 %v301, %v300
      %s303 = scalar_lea.vmem %s228, 16
      %v304 = vld [vmem:[%s303] sm:$0xf]
      %v305 = vld [vmem:[%s303 + $0x4] sm:$0xf]
      %v308 = vunpack.c.l.b16 %v304
      %v309 = vunpack.c.l.b16 %v305
      %v310 = vpack.c.b16 %v309, %v308
      %v313 = vsel %vm259, %v302, 0
      %315 = vmatpush.bf16.msra.mxu0 0
      %316 = vmatpush.bf16.msra.mxu0 0
      %317 = vmatpush.bf16.msra.mxu0 0
      %318 = vmatpush.bf16.msra.mxu0 0
      %319 = vmatpush.bf16.msra.mxu0 0
      %320 = vmatpush.bf16.msra.mxu0 0
      %321 = vmatpush.bf16.msra.mxu0 0
      %322 = vmatpush.bf16.msra.mxu0 %v310
      %323 = vmatmul.bf16.gmra.mxu0 %v313
      %v324 = vpop.f32.mrf.mxu0
      %v325 = vadd.f32 0.0, %v324
      %v326 = vpop.f32.mrf.mxu0
      %v327 = vadd.f32 0.0, %v326
      %328 = vdwg.mxu0
      %v329 = vadd.f32 %v296, %v325
      %v330 = vadd.f32 %v298, %v327
      %v331 = vld [vmem:[%s231] sm:$0x1]
      %v333 = vperm.slane %v331, 0
      %v335 = vadd.f32 %v329, %v333
      %v336 = vadd.f32 %v330, %v333
      %v337 = vmax.f32 %v335, 0.0
      %v338 = vmax.f32 %v336, 0.0
      %339 = vst.msk [vmem:[%s240] sm:$0xff] %vm259, %v337
      %340 = vst.msk [vmem:[%s240 + $0x8] sm:$0xff] %vm259, %v338
      %p341 = scmp.lt.s32.totalorder %s18, 0
      %s342 = scalar_select %p341, %s18, 0
      %p343 = scmp.lt.s32.totalorder %s19, 1
      %s344 = scalar_select %p343, %s19, 1
      %s345 = smul.addr %s344, 2
      %s346 = smul.addr %s342, 4
      %s347 = sadd.s32 %s345, %s346
      %s348 = smul.addr %s347, 8
      %s349 = scalar_lea.vmem %s3, %s348
      // Predicated region
      $region33: #{_lambda_.36} parent=31 // pred_check
        %p350 = pneg %p126
      $region34: #{_lambda_.36} parent=31 // pred_check_branch
        %352 = sbr.rel (%p350) target = $region36
      $region35: #{_lambda_.36} parent=31 // pred_region
        _
      $region36: #{_lambda_.36} parent=31 // pred_fallthru
        _
    $region32: #{_lambda_.36} parent=5 // pred_fallthru
      _
    %p353 = scmp.le.s32.totalorder 2, %s9
    // Predicated region
    $region37: #{_lambda_.36} parent=5 // pred_check
      %p354 = pneg %p353
    $region38: #{_lambda_.36} parent=5 // pred_check_branch
      %356 = sbr.rel (%p354) target = $region40
    $region39: #{_lambda_.36} parent=5 // pred_region
      %s357 = ssub.s32 %s9, 2
      // Predicated region
      $region41: #{_lambda_.36} parent=39 // pred_check
        %p358 = pneg %p132
      $region42: #{_lambda_.36} parent=39 // pred_check_branch
        %360 = sbr.rel (%p358) target = $region44
      $region43: #{_lambda_.36} parent=39 // pred_region
        %p361 = scmp.lt.s32.totalorder %s20, 0
        %s362 = scalar_select %p361, %s20, 0
        %p363 = scmp.lt.s32.totalorder %s21, 1
        %s364 = scalar_select %p363, %s21, 1
        %s365 = smul.addr %s364, 2
        %s366 = smul.addr %s362, 4
        %s367 = sadd.s32 %s365, %s366
        %s368 = smul.addr %s367, 8
        %s369 = scalar_lea.vmem %s3, %s368
      $region44: #{_lambda_.36} parent=39 // pred_fallthru
        _
    $region40: #{_lambda_.36} parent=5 // pred_fallthru
      _
  $region6: #{_lambda_.36} parent=0 // loop_footer
    %s13 = sadd.s32 1, %s9
  $region7: #{_lambda_.36} parent=0 // loop_footer_branch
    %8 = sbr.rel target = $region3
  $region8: #{_lambda_.36} parent=0 // loop_exit
    _

// kernel: reverse
$region0: #{reverse}
  %s0 = inlined_call_operand.vmem [shape: f32[1,2,16,1,3,16], index: 0, kind: input, shape index: {}]
  %s1 = inlined_call_operand.vmem [shape: f32[1,2,16,1,3,16], index: 1, kind: output, shape index: {}]
  %v2 = vlaneseq
  %v3 = vsub.s32 15, %v2
  %4 = vset.pattern.permute.xlu0 %v3
  $region1: #{reverse} parent=0
    #allocation0 [shape = 'u8[196608]{0}', space=vmem, size = 0x30000, scoped, tag = 'operand span for operand 0']
    #allocation1 [shape = 'u8[49152]{0}', space=vmem, size = 0xc000, scoped, tag = 'packed  for operand 0']
    #allocation2 [shape = 'u8[196608]{0}', space=vmem, size = 0x30000, scoped, tag = 'operand span for operand 1']
    #allocation3 [shape = 'u8[49152]{0}', space=vmem, size = 0xc000, scoped, tag = 'packed  for operand 1']
    // Predicated region
    $region2: #{reverse} parent=1 // pred_check
      _
    $region3: #{reverse} parent=1 // pred_check_branch
      %6 = sbr.rel (0) target = $region5
    $region4: #{reverse} parent=1 // pred_region
      // Predicated region
      $region6: #{reverse} parent=4 // pred_check
        _
      $region7: #{reverse} parent=4 // pred_check_branch
        %8 = sbr.rel target = $region9
      $region8: #{reverse} parent=4 // pred_region
        // Predicated region
        $region21: #{reverse} parent=8 // pred_check
          _
        $region22: #{reverse} parent=8 // pred_check_branch
          %118 = sbr.rel (0) target = $region24
        $region23: #{reverse} parent=8 // pred_region
          loop: start=0, step=1, limit=1
          $region25: #{reverse} parent=23 // loop_pre_header
            _
          $region26: #{reverse} parent=23 // loop_header
            %s120 = sphi 0, %s124
            %p121 = scmp.ge.s32.totalorder %s120, 1
            %s125 = sphi %s0, %s0
            %s126 = sphi [#allocation1], [#allocation1]
          $region27: #{reverse} parent=23 // loop_header_branch
            %123 = sbr.rel (%p121) target = $region31
          $region28: #{reverse} parent=23 // loop_body
            _
          $region29: #{reverse} parent=23 // loop_footer
            %s124 = sadd.s32 1, %s120
          $region30: #{reverse} parent=23 // loop_footer_branch
            %119 = sbr.rel target = $region26
          $region31: #{reverse} parent=23 // loop_exit
            _
          %s128 = ssub.s32 4, 1
          loop: start=0, step=1, limit=1
          $region32: #{reverse} parent=23 // loop_pre_header
            _
          $region33: #{reverse} parent=23 // loop_header
            %s130 = sphi 0, %s134
            %p131 = scmp.ge.s32.totalorder %s130, 1
            %s135 = sphi %s0, %s0
            %s136 = sphi [#allocation1], [#allocation1]
          $region34: #{reverse} parent=23 // loop_header_branch
            %133 = sbr.rel (%p131) target = $region38
          $region35: #{reverse} parent=23 // loop_body
            %v137 = vld [vmem:[%s135] sm:%s128]
            %138 = vst [vmem:[%s136] sm:%s128] %v137
            %v139 = vld [vmem:[%s135 + $0x2] sm:%s128]
            %140 = vst [vmem:[%s136 + $0x2] sm:%s128] %v139
            %v141 = vld [vmem:[%s135 + $0x4] sm:%s128]
            %142 = vst [vmem:[%s136 + $0x4] sm:%s128] %v141
            %v143 = vld [vmem:[%s135 + $0x6] sm:%s128]
            %144 = vst [vmem:[%s136 + $0x6] sm:%s128] %v143
            %v145 = vld [vmem:[%s135 + $0x8] sm:%s128]
            %146 = vst [vmem:[%s136 + $0x8] sm:%s128] %v145
            %v147 = vld [vmem:[%s135 + $0xa] sm:%s128]
            %148 = vst [vmem:[%s136 + $0xa] sm:%s128] %v147
            %v149 = vld [vmem:[%s135 + $0xc] sm:%s128]
            %150 = vst [vmem:[%s136 + $0xc] sm:%s128] %v149
            %v151 = vld [vmem:[%s135 + $0xe] sm:%s128]
            %152 = vst [vmem:[%s136 + $0xe] sm:%s128] %v151
            %v153 = vld [vmem:[%s135 + $0x10] sm:%s128]
            %154 = vst [vmem:[%s136 + $0x10] sm:%s128] %v153
            %v155 = vld [vmem:[%s135 + $0x12] sm:%s128]
            %156 = vst [vmem:[%s136 + $0x12] sm:%s128] %v155
            %v157 = vld [vmem:[%s135 + $0x14] sm:%s128]
            %158 = vst [vmem:[%s136 + $0x14] sm:%s128] %v157
            %v159 = vld [vmem:[%s135 + $0x16] sm:%s128]
            %160 = vst [vmem:[%s136 + $0x16] sm:%s128] %v159
            %v161 = vld [vmem:[%s135 + $0x18] sm:%s128]
            %162 = vst [vmem:[%s136 + $0x18] sm:%s128] %v161
            %v163 = vld [vmem:[%s135 + $0x1a] sm:%s128]
            %164 = vst [vmem:[%s136 + $0x1a] sm:%s128] %v163
            %v165 = vld [vmem:[%s135 + $0x1c] sm:%s128]
            %166 = vst [vmem:[%s136 + $0x1c] sm:%s128] %v165
            %v167 = vld [vmem:[%s135 + $0x1e] sm:%s128]
            %168 = vst [vmem:[%s136 + $0x1e] sm:%s128] %v167
            %v169 = vld [vmem:[%s135 + $0x20] sm:%s128]
            %170 = vst [vmem:[%s136 + $0x20] sm:%s128] %v169
            %v171 = vld [vmem:[%s135 + $0x22] sm:%s128]
            %172 = vst [vmem:[%s136 + $0x22] sm:%s128] %v171
            %v173 = vld [vmem:[%s135 + $0x24] sm:%s128]
            %174 = vst [vmem:[%s136 + $0x24] sm:%s128] %v173
            %v175 = vld [vmem:[%s135 + $0x26] sm:%s128]
            %176 = vst [vmem:[%s136 + $0x26] sm:%s128] %v175
            %v177 = vld [vmem:[%s135 + $0x28] sm:%s128]
            %178 = vst [vmem:[%s136 + $0x28] sm:%s128] %v177
            %v179 = vld [vmem:[%s135 + $0x2a] sm:%s128]
            %180 = vst [vmem:[%s136 + $0x2a] sm:%s128] %v179
            %v181 = vld [vmem:[%s135 + $0x2c] sm:%s128]
            %182 = vst [vmem:[%s136 + $0x2c] sm:%s128] %v181
            %v183 = vld [vmem:[%s135 + $0x2e] sm:%s128]
            %184 = vst [vmem:[%s136 + $0x2e] sm:%s128] %v183
            %v185 = vld [vmem:[%s135 + $0x30] sm:%s128]
            %186 = vst [vmem:[%s136 + $0x30] sm:%s128] %v185
            %v187 = vld [vmem:[%s135 + $0x32] sm:%s128]
            %188 = vst [vmem:[%s136 + $0x32] sm:%s128] %v187
            %v189 = vld [vmem:[%s135 + $0x34] sm:%s128]
            %190 = vst [vmem:[%s136 + $0x34] sm:%s128] %v189
            %v191 = vld [vmem:[%s135 + $0x36] sm:%s128]
            %192 = vst [vmem:[%s136 + $0x36] sm:%s128] %v191
            %v193 = vld [vmem:[%s135 + $0x38] sm:%s128]
            %194 = vst [vmem:[%s136 + $0x38] sm:%s128] %v193
            %v195 = vld [vmem:[%s135 + $0x3a] sm:%s128]
            %196 = vst [vmem:[%s136 + $0x3a] sm:%s128] %v195
            %v197 = vld [vmem:[%s135 + $0x3c] sm:%s128]
            %198 = vst [vmem:[%s136 + $0x3c] sm:%s128] %v197
            %v199 = vld [vmem:[%s135 + $0x3e] sm:%s128]
            %200 = vst [vmem:[%s136 + $0x3e] sm:%s128] %v199
            %v201 = vld [vmem:[%s135 + $0x40] sm:%s128]
            %202 = vst [vmem:[%s136 + $0x40] sm:%s128] %v201
            %v203 = vld [vmem:[%s135 + $0x42] sm:%s128]
            %204 = vst [vmem:[%s136 + $0x42] sm:%s128] %v203
            %v205 = vld [vmem:[%s135 + $0x44] sm:%s128]
            %206 = vst [vmem:[%s136 + $0x44] sm:%s128] %v205
            %v207 = vld [vmem:[%s135 + $0x46] sm:%s128]
            %208 = vst [vmem:[%s136 + $0x46] sm:%s128] %v207
            %v209 = vld [vmem:[%s135 + $0x48] sm:%s128]
            %210 = vst [vmem:[%s136 + $0x48] sm:%s128] %v209
            %v211 = vld [vmem:[%s135 + $0x4a] sm:%s128]
            %212 = vst [vmem:[%s136 + $0x4a] sm:%s128] %v211
            %v213 = vld [vmem:[%s135 + $0x4c] sm:%s128]
            %214 = vst [vmem:[%s136 + $0x4c] sm:%s128] %v213
            %v215 = vld [vmem:[%s135 + $0x4e] sm:%s128]
            %216 = vst [vmem:[%s136 + $0x4e] sm:%s128] %v215
            %v217 = vld [vmem:[%s135 + $0x50] sm:%s128]
            %218 = vst [vmem:[%s136 + $0x50] sm:%s128] %v217
            %v219 = vld [vmem:[%s135 + $0x52] sm:%s128]
            %220 = vst [vmem:[%s136 + $0x52] sm:%s128] %v219
            %v221 = vld [vmem:[%s135 + $0x54] sm:%s128]
            %222 = vst [vmem:[%s136 + $0x54] sm:%s128] %v221
            %v223 = vld [vmem:[%s135 + $0x56] sm:%s128]
            %224 = vst [vmem:[%s136 + $0x56] sm:%s128] %v223
            %v225 = vld [vmem:[%s135 + $0x58] sm:%s128]
            %226 = vst [vmem:[%s136 + $0x58] sm:%s128] %v225
            %v227 = vld [vmem:[%s135 + $0x5a] sm:%s128]
            %228 = vst [vmem:[%s136 + $0x5a] sm:%s128] %v227
            %v229 = vld [vmem:[%s135 + $0x5c] sm:%s128]
            %230 = vst [vmem:[%s136 + $0x5c] sm:%s128] %v229
            %v231 = vld [vmem:[%s135 + $0x5e] sm:%s128]
            %232 = vst [vmem:[%s136 + $0x5e] sm:%s128] %v231
          $region36: #{reverse} parent=23 // loop_footer
            %s134 = sadd.s32 1, %s130
          $region37: #{reverse} parent=23 // loop_footer_branch
            %129 = sbr.rel target = $region33
          $region38: #{reverse} parent=23 // loop_exit
            _
        $region24: #{reverse} parent=8 // pred_fallthru
          _
      $region9: #{reverse} parent=4 // pred_fallthru
        _
      // Predicated region
      $region10: #{reverse} parent=4 // pred_check
        _
      $region11: #{reverse} parent=4 // pred_check_branch
        %10 = sbr.rel (0) target = $region13
      $region12: #{reverse} parent=4 // pred_region
        %s12 = ssub.s32 4, 1
        loop: start=0, step=1, limit=1
        $region14: #{reverse} parent=12 // loop_pre_header
          _
        $region15: #{reverse} parent=12 // loop_header
          %s14 = sphi 0, %s18
          %p15 = scmp.ge.s32.totalorder %s14, 1
          %s19 = sphi %s0, %s0
          %s20 = sphi [#allocation1], [#allocation1]
        $region16: #{reverse} parent=12 // loop_header_branch
          %17 = sbr.rel (%p15) target = $region20
        $region17: #{reverse} parent=12 // loop_body
          %v21 = vld [vmem:[%s19] sm:%s12]
          %22 = vst [vmem:[%s20] sm:%s12] %v21
          %v23 = vld [vmem:[%s19 + $0x2] sm:%s12]
          %24 = vst [vmem:[%s20 + $0x2] sm:%s12] %v23
          %v25 = vld [vmem:[%s19 + $0x4] sm:%s12]
          %26 = vst [vmem:[%s20 + $0x4] sm:%s12] %v25
          %v27 = vld [vmem:[%s19 + $0x6] sm:%s12]
          %28 = vst [vmem:[%s20 + $0x6] sm:%s12] %v27
          %v29 = vld [vmem:[%s19 + $0x8] sm:%s12]
          %30 = vst [vmem:[%s20 + $0x8] sm:%s12] %v29
          %v31 = vld [vmem:[%s19 + $0xa] sm:%s12]
          %32 = vst [vmem:[%s20 + $0xa] sm:%s12] %v31
          %v33 = vld [vmem:[%s19 + $0xc] sm:%s12]
          %34 = vst [vmem:[%s20 + $0xc] sm:%s12] %v33
          %v35 = vld [vmem:[%s19 + $0xe] sm:%s12]
          %36 = vst [vmem:[%s20 + $0xe] sm:%s12] %v35
          %v37 = vld [vmem:[%s19 + $0x10] sm:%s12]
          %38 = vst [vmem:[%s20 + $0x10] sm:%s12] %v37
          %v39 = vld [vmem:[%s19 + $0x12] sm:%s12]
          %40 = vst [vmem:[%s20 + $0x12] sm:%s12] %v39
          %v41 = vld [vmem:[%s19 + $0x14] sm:%s12]
          %42 = vst [vmem:[%s20 + $0x14] sm:%s12] %v41
          %v43 = vld [vmem:[%s19 + $0x16] sm:%s12]
          %44 = vst [vmem:[%s20 + $0x16] sm:%s12] %v43
          %v45 = vld [vmem:[%s19 + $0x18] sm:%s12]
          %46 = vst [vmem:[%s20 + $0x18] sm:%s12] %v45
          %v47 = vld [vmem:[%s19 + $0x1a] sm:%s12]
          %48 = vst [vmem:[%s20 + $0x1a] sm:%s12] %v47
          %v49 = vld [vmem:[%s19 + $0x1c] sm:%s12]
          %50 = vst [vmem:[%s20 + $0x1c] sm:%s12] %v49
          %v51 = vld [vmem:[%s19 + $0x1e] sm:%s12]
          %52 = vst [vmem:[%s20 + $0x1e] sm:%s12] %v51
          %v53 = vld [vmem:[%s19 + $0x20] sm:%s12]
          %54 = vst [vmem:[%s20 + $0x20] sm:%s12] %v53
          %v55 = vld [vmem:[%s19 + $0x22] sm:%s12]
          %56 = vst [vmem:[%s20 + $0x22] sm:%s12] %v55
          %v57 = vld [vmem:[%s19 + $0x24] sm:%s12]
          %58 = vst [vmem:[%s20 + $0x24] sm:%s12] %v57
          %v59 = vld [vmem:[%s19 + $0x26] sm:%s12]
          %60 = vst [vmem:[%s20 + $0x26] sm:%s12] %v59
          %v61 = vld [vmem:[%s19 + $0x28] sm:%s12]
          %62 = vst [vmem:[%s20 + $0x28] sm:%s12] %v61
          %v63 = vld [vmem:[%s19 + $0x2a] sm:%s12]
          %64 = vst [vmem:[%s20 + $0x2a] sm:%s12] %v63
          %v65 = vld [vmem:[%s19 + $0x2c] sm:%s12]
          %66 = vst [vmem:[%s20 + $0x2c] sm:%s12] %v65
          %v67 = vld [vmem:[%s19 + $0x2e] sm:%s12]
          %68 = vst [vmem:[%s20 + $0x2e] sm:%s12] %v67
          %v69 = vld [vmem:[%s19 + $0x30] sm:%s12]
          %70 = vst [vmem:[%s20 + $0x30] sm:%s12] %v69
          %v71 = vld [vmem:[%s19 + $0x32] sm:%s12]
          %72 = vst [vmem:[%s20 + $0x32] sm:%s12] %v71
          %v73 = vld [vmem:[%s19 + $0x34] sm:%s12]
          %74 = vst [vmem:[%s20 + $0x34] sm:%s12] %v73
          %v75 = vld [vmem:[%s19 + $0x36] sm:%s12]
          %76 = vst [vmem:[%s20 + $0x36] sm:%s12] %v75
          %v77 = vld [vmem:[%s19 + $0x38] sm:%s12]
          %78 = vst [vmem:[%s20 + $0x38] sm:%s12] %v77
          %v79 = vld [vmem:[%s19 + $0x3a] sm:%s12]
          %80 = vst [vmem:[%s20 + $0x3a] sm:%s12] %v79
          %v81 = vld [vmem:[%s19 + $0x3c] sm:%s12]
          %82 = vst [vmem:[%s20 + $0x3c] sm:%s12] %v81
          %v83 = vld [vmem:[%s19 + $0x3e] sm:%s12]
          %84 = vst [vmem:[%s20 + $0x3e] sm:%s12] %v83
          %v85 = vld [vmem:[%s19 + $0x40] sm:%s12]
          %86 = vst [vmem:[%s20 + $0x40] sm:%s12] %v85
          %v87 = vld [vmem:[%s19 + $0x42] sm:%s12]
          %88 = vst [vmem:[%s20 + $0x42] sm:%s12] %v87
          %v89 = vld [vmem:[%s19 + $0x44] sm:%s12]
          %90 = vst [vmem:[%s20 + $0x44] sm:%s12] %v89
          %v91 = vld [vmem:[%s19 + $0x46] sm:%s12]
          %92 = vst [vmem:[%s20 + $0x46] sm:%s12] %v91
          %v93 = vld [vmem:[%s19 + $0x48] sm:%s12]
          %94 = vst [vmem:[%s20 + $0x48] sm:%s12] %v93
          %v95 = vld [vmem:[%s19 + $0x4a] sm:%s12]
          %96 = vst [vmem:[%s20 + $0x4a] sm:%s12] %v95
          %v97 = vld [vmem:[%s19 + $0x4c] sm:%s12]
          %98 = vst [vmem:[%s20 + $0x4c] sm:%s12] %v97
          %v99 = vld [vmem:[%s19 + $0x4e] sm:%s12]
          %100 = vst [vmem:[%s20 + $0x4e] sm:%s12] %v99
          %v101 = vld [vmem:[%s19 + $0x50] sm:%s12]
          %102 = vst [vmem:[%s20 + $0x50] sm:%s12] %v101
          %v103 = vld [vmem:[%s19 + $0x52] sm:%s12]
          %104 = vst [vmem:[%s20 + $0x52] sm:%s12] %v103
          %v105 = vld [vmem:[%s19 + $0x54] sm:%s12]
          %106 = vst [vmem:[%s20 + $0x54] sm:%s12] %v105
          %v107 = vld [vmem:[%s19 + $0x56] sm:%s12]
          %108 = vst [vmem:[%s20 + $0x56] sm:%s12] %v107
          %v109 = vld [vmem:[%s19 + $0x58] sm:%s12]
          %110 = vst [vmem:[%s20 + $0x58] sm:%s12] %v109
          %v111 = vld [vmem:[%s19 + $0x5a] sm:%s12]
          %112 = vst [vmem:[%s20 + $0x5a] sm:%s12] %v111
          %v113 = vld [vmem:[%s19 + $0x5c] sm:%s12]
          %114 = vst [vmem:[%s20 + $0x5c] sm:%s12] %v113
          %v115 = vld [vmem:[%s19 + $0x5e] sm:%s12]
          %116 = vst [vmem:[%s20 + $0x5e] sm:%s12] %v115
        $region18: #{reverse} parent=12 // loop_footer
          %s18 = sadd.s32 1, %s14
        $region19: #{reverse} parent=12 // loop_footer_branch
          %13 = sbr.rel target = $region15
        $region20: #{reverse} parent=12 // loop_exit
          _
      $region13: #{reverse} parent=4 // pred_fallthru
        _
    $region5: #{reverse} parent=1 // pred_fallthru
      _
    %233 = vnop
    %s235 = ssub.s32 4, 1
    %s236 = scalar_lea.vmem [#allocation1], 94
    %v237 = vld [vmem:[%s236] sm:%s235]
    %s238 = scalar_lea.vmem [#allocation0], 376
    %239 = vst [vmem:[%s238] sm:%s235] %v237
    %s240 = scalar_lea.vmem [#allocation1], 92
    %v241 = vld [vmem:[%s240] sm:%s235]
    %s242 = scalar_lea.vmem [#allocation0], 368
    %243 = vst [vmem:[%s242] sm:%s235] %v241
    %s244 = scalar_lea.vmem [#allocation1], 90
    %v245 = vld [vmem:[%s244] sm:%s235]
    %s246 = scalar_lea.vmem [#allocation0], 360
    %247 = vst [vmem:[%s246] sm:%s235] %v245
    %s248 = scalar_lea.vmem [#allocation1], 88
    %v249 = vld [vmem:[%s248] sm:%s235]
    %s250 = scalar_lea.vmem [#allocation0], 352
    %251 = vst [vmem:[%s250] sm:%s235] %v249
    %s252 = scalar_lea.vmem [#allocation1], 86
    %v253 = vld [vmem:[%s252] sm:%s235]
    %s254 = scalar_lea.vmem [#allocation0], 344
    %255 = vst [vmem:[%s254] sm:%s235] %v253
    %s256 = scalar_lea.vmem [#allocation1], 84
    %v257 = vld [vmem:[%s256] sm:%s235]
    %s258 = scalar_lea.vmem [#allocation0], 336
    %259 = vst [vmem:[%s258] sm:%s235] %v257
    %s260 = scalar_lea.vmem [#allocation1], 82
    %v261 = vld [vmem:[%s260] sm:%s235]
    %s262 = scalar_lea.vmem [#allocation0], 328
    %263 = vst [vmem:[%s262] sm:%s235] %v261
    %s264 = scalar_lea.vmem [#allocation1], 80
    %v265 = vld [vmem:[%s264] sm:%s235]
    %s266 = scalar_lea.vmem [#allocation0], 320
    %267 = vst [vmem:[%s266] sm:%s235] %v265
    %s268 = scalar_lea.vmem [#allocation1], 78
    %v269 = vld [vmem:[%s268] sm:%s235]
    %s270 = scalar_lea.vmem [#allocation0], 312
    %271 = vst [vmem:[%s270] sm:%s235] %v269
    %s272 = scalar_lea.vmem [#allocation1], 76
    %v273 = vld [vmem:[%s272] sm:%s235]
    %s274 = scalar_lea.vmem [#allocation0], 304
    %275 = vst [vmem:[%s274] sm:%s235] %v273
    %s276 = scalar_lea.vmem [#allocation1], 74
    %v277 = vld [vmem:[%s276] sm:%s235]
    %s278 = scalar_lea.vmem [#allocation0], 296
    %279 = vst [vmem:[%s278] sm:%s235] %v277
    %s280 = scalar_lea.vmem [#allocation1], 72
    %v281 = vld [vmem:[%s280] sm:%s235]
    %s282 = scalar_lea.vmem [#allocation0], 288
    %283 = vst [vmem:[%s282] sm:%s235] %v281
    %s284 = scalar_lea.vmem [#allocation1], 70
    %v285 = vld [vmem:[%s284] sm:%s235]
    %s286 = scalar_lea.vmem [#allocation0], 280
    %287 = vst [vmem:[%s286] sm:%s235] %v285
    %s288 = scalar_lea.vmem [#allocation1], 68
    %v289 = vld [vmem:[%s288] sm:%s235]
    %s290 = scalar_lea.vmem [#allocation0], 272
    %291 = vst [vmem:[%s290] sm:%s235] %v289
    %s292 = scalar_lea.vmem [#allocation1], 66
    %v293 = vld [vmem:[%s292] sm:%s235]
    %s294 = scalar_lea.vmem [#allocation0], 264
    %295 = vst [vmem:[%s294] sm:%s235] %v293
    %s296 = scalar_lea.vmem [#allocation1], 64
    %v297 = vld [vmem:[%s296] sm:%s235]
    %s298 = scalar_lea.vmem [#allocation0], 256
    %299 = vst [vmem:[%s298] sm:%s235] %v297
    %s300 = scalar_lea.vmem [#allocation1], 62
    %v301 = vld [vmem:[%s300] sm:%s235]
    %s302 = scalar_lea.vmem [#allocation0], 248
    %303 = vst [vmem:[%s302] sm:%s235] %v301
    %s304 = scalar_lea.vmem [#allocation1], 60
    %v305 = vld [vmem:[%s304] sm:%s235]
    %s306 = scalar_lea.vmem [#allocation0], 240
    %307 = vst [vmem:[%s306] sm:%s235] %v305
    %s308 = scalar_lea.vmem [#allocation1], 58
    %v309 = vld [vmem:[%s308] sm:%s235]
    %s310 = scalar_lea.vmem [#allocation0], 232
    %311 = vst [vmem:[%s310] sm:%s235] %v309
    %s312 = scalar_lea.vmem [#allocation1], 56
    %v313 = vld [vmem:[%s312] sm:%s235]
    %s314 = scalar_lea.vmem [#allocation0], 224
    %315 = vst [vmem:[%s314] sm:%s235] %v313
    %s316 = scalar_lea.vmem [#allocation1], 54
    %v317 = vld [vmem:[%s316] sm:%s235]
    %s318 = scalar_lea.vmem [#allocation0], 216
    %319 = vst [vmem:[%s318] sm:%s235] %v317
    %s320 = scalar_lea.vmem [#allocation1], 52
    %v321 = vld [vmem:[%s320] sm:%s235]
    %s322 = scalar_lea.vmem [#allocation0], 208
    %323 = vst [vmem:[%s322] sm:%s235] %v321
    %s324 = scalar_lea.vmem [#allocation1], 50
    %v325 = vld [vmem:[%s324] sm:%s235]
    %s326 = scalar_lea.vmem [#allocation0], 200
    %327 = vst [vmem:[%s326] sm:%s235] %v325
    %s328 = scalar_lea.vmem [#allocation1], 48
    %v329 = vld [vmem:[%s328] sm:%s235]
    %s330 = scalar_lea.vmem [#allocation0], 192
    %331 = vst [vmem:[%s330] sm:%s235] %v329
    %s332 = scalar_lea.vmem [#allocation1], 46
    %v333 = vld [vmem:[%s332] sm:%s235]
    %s334 = scalar_lea.vmem [#allocation0], 184
    %335 = vst [vmem:[%s334] sm:%s235] %v333
    %s336 = scalar_lea.vmem [#allocation1], 44
    %v337 = vld [vmem:[%s336] sm:%s235]
    %s338 = scalar_lea.vmem [#allocation0], 176
    %339 = vst [vmem:[%s338] sm:%s235] %v337
    %s340 = scalar_lea.vmem [#allocation1], 42
    %v341 = vld [vmem:[%s340] sm:%s235]
    %s342 = scalar_lea.vmem [#allocation0], 168
    %343 = vst [vmem:[%s342] sm:%s235] %v341
    %s344 = scalar_lea.vmem [#allocation1], 40
    %v345 = vld [vmem:[%s344] sm:%s235]
    %s346 = scalar_lea.vmem [#allocation0], 160
    %347 = vst [vmem:[%s346] sm:%s235] %v345
    %s348 = scalar_lea.vmem [#allocation1], 38
    %v349 = vld [vmem:[%s348] sm:%s235]
    %s350 = scalar_lea.vmem [#allocation0], 152
    %351 = vst [vmem:[%s350] sm:%s235] %v349
    %s352 = scalar_lea.vmem [#allocation1], 36
    %v353 = vld [vmem:[%s352] sm:%s235]
    %s354 = scalar_lea.vmem [#allocation0], 144
    %355 = vst [vmem:[%s354] sm:%s235] %v353
    %s356 = scalar_lea.vmem [#allocation1], 34
    %v357 = vld [vmem:[%s356] sm:%s235]
    %s358 = scalar_lea.vmem [#allocation0], 136
    %359 = vst [vmem:[%s358] sm:%s235] %v357
    %s360 = scalar_lea.vmem [#allocation1], 32
    %v361 = vld [vmem:[%s360] sm:%s235]
    %s362 = scalar_lea.vmem [#allocation0], 128
    %363 = vst [vmem:[%s362] sm:%s235] %v361
    %s364 = scalar_lea.vmem [#allocation1], 30
    %v365 = vld [vmem:[%s364] sm:%s235]
    %s366 = scalar_lea.vmem [#allocation0], 120
    %367 = vst [vmem:[%s366] sm:%s235] %v365
    %s368 = scalar_lea.vmem [#allocation1], 28
    %v369 = vld [vmem:[%s368] sm:%s235]
    %s370 = scalar_lea.vmem [#allocation0], 112
    %371 = vst [vmem:[%s370] sm:%s235] %v369
    %s372 = scalar_lea.vmem [#allocation1], 26
    %v373 = vld [vmem:[%s372] sm:%s235]
    %s374 = scalar_lea.vmem [#allocation0], 104
    %375 = vst [vmem:[%s374] sm:%s235] %v373
    %s376 = scalar_lea.vmem [#allocation1], 24
    %v377 = vld [vmem:[%s376] sm:%s235]
    %s378 = scalar_lea.vmem [#allocation0], 96
    %379 = vst [vmem:[%s378] sm:%s235] %v377
    %s380 = scalar_lea.vmem [#allocation1], 22
    %v381 = vld [vmem:[%s380] sm:%s235]
    %s382 = scalar_lea.vmem [#allocation0], 88
    %383 = vst [vmem:[%s382] sm:%s235] %v381
    %s384 = scalar_lea.vmem [#allocation1], 20
    %v385 = vld [vmem:[%s384] sm:%s235]
    %s386 = scalar_lea.vmem [#allocation0], 80
    %387 = vst [vmem:[%s386] sm:%s235] %v385
    %s388 = scalar_lea.vmem [#allocation1], 18
    %v389 = vld [vmem:[%s388] sm:%s235]
    %s390 = scalar_lea.vmem [#allocation0], 72
    %391 = vst [vmem:[%s390] sm:%s235] %v389
    %s392 = scalar_lea.vmem [#allocation1], 16
    %v393 = vld [vmem:[%s392] sm:%s235]
    %s394 = scalar_lea.vmem [#allocation0], 64
    %395 = vst [vmem:[%s394] sm:%s235] %v393
    %s396 = scalar_lea.vmem [#allocation1], 14
    %v397 = vld [vmem:[%s396] sm:%s235]
    %s398 = scalar_lea.vmem [#allocation0], 56
    %399 = vst [vmem:[%s398] sm:%s235] %v397
    %s400 = scalar_lea.vmem [#allocation1], 12
    %v401 = vld [vmem:[%s400] sm:%s235]
    %s402 = scalar_lea.vmem [#allocation0], 48
    %403 = vst [vmem:[%s402] sm:%s235] %v401
    %s404 = scalar_lea.vmem [#allocation1], 10
    %v405 = vld [vmem:[%s404] sm:%s235]
    %s406 = scalar_lea.vmem [#allocation0], 40
    %407 = vst [vmem:[%s406] sm:%s235] %v405
    %s408 = scalar_lea.vmem [#allocation1], 8
    %v409 = vld [vmem:[%s408] sm:%s235]
    %s410 = scalar_lea.vmem [#allocation0], 32
    %411 = vst [vmem:[%s410] sm:%s235] %v409
    %s412 = scalar_lea.vmem [#allocation1], 6
    %v413 = vld [vmem:[%s412] sm:%s235]
    %s414 = scalar_lea.vmem [#allocation0], 24
    %415 = vst [vmem:[%s414] sm:%s235] %v413
    %s416 = scalar_lea.vmem [#allocation1], 4
    %v417 = vld [vmem:[%s416] sm:%s235]
    %s418 = scalar_lea.vmem [#allocation0], 16
    %419 = vst [vmem:[%s418] sm:%s235] %v417
    %s420 = scalar_lea.vmem [#allocation1], 2
    %v421 = vld [vmem:[%s420] sm:%s235]
    %s422 = scalar_lea.vmem [#allocation0], 8
    %423 = vst [vmem:[%s422] sm:%s235] %v421
    %v424 = vld [vmem:[#allocation1] sm:%s235]
    %425 = vst [vmem:[#allocation0] sm:%s235] %v424
    %v426 = vld [vmem:[#allocation0] sm:$0xff]
    %427 = vperm.xlu0 %4, %v426
    %v428 = vpop.permute.xlu0 %427
    %429 = vst [vmem:[#allocation2] sm:$0xff] %v428
    %s430 = scalar_lea.vmem [#allocation2], 8
    %s431 = scalar_lea.vmem [#allocation0], 8
    %v432 = vld [vmem:[%s431] sm:$0xff]
    %433 = vperm.xlu0 %4, %v432
    %v434 = vpop.permute.xlu0 %433
    %435 = vst [vmem:[%s430] sm:$0xff] %v434
    %s436 = scalar_lea.vmem [#allocation2], 16
    %s437 = scalar_lea.vmem [#allocation0], 16
    %v438 = vld [vmem:[%s437] sm:$0xff]
    %439 = vperm.xlu0 %4, %v438
    %v440 = vpop.permute.xlu0 %439
    %441 = vst [vmem:[%s436] sm:$0xff] %v440
    %s442 = scalar_lea.vmem [#allocation2], 24
    %s443 = scalar_lea.vmem [#allocation0], 24
    %v444 = vld [vmem:[%s443] sm:$0xff]
    %445 = vperm.xlu0 %4, %v444
    %v446 = vpop.permute.xlu0 %445
    %447 = vst [vmem:[%s442] sm:$0xff] %v446
    %s448 = scalar_lea.vmem [#allocation2], 32
    %s449 = scalar_lea.vmem [#allocation0], 32
    %v450 = vld [vmem:[%s449] sm:$0xff]
    %451 = vperm.xlu0 %4, %v450
    %v452 = vpop.permute.xlu0 %451
    %453 = vst [vmem:[%s448] sm:$0xff] %v452
    %s454 = scalar_lea.vmem [#allocation2], 40
    %s455 = scalar_lea.vmem [#allocation0], 40
    %v456 = vld [vmem:[%s455] sm:$0xff]
    %457 = vperm.xlu0 %4, %v456
    %v458 = vpop.permute.xlu0 %457
    %459 = vst [vmem:[%s454] sm:$0xff] %v458
    %s460 = scalar_lea.vmem [#allocation2], 48
    %s461 = scalar_lea.vmem [#allocation0], 48
    %v462 = vld [vmem:[%s461] sm:$0xff]
    %463 = vperm.xlu0 %4, %v462
    %v464 = vpop.permute.xlu0 %463
    %465 = vst [vmem:[%s460] sm:$0xff] %v464
    %s466 = scalar_lea.vmem [#allocation2], 56
    %s467 = scalar_lea.vmem [#allocation0], 56
    %v468 = vld [vmem:[%s467] sm:$0xff]
    %469 = vperm.xlu0 %4, %v468
    %v470 = vpop.permute.xlu0 %469
    %471 = vst [vmem:[%s466] sm:$0xff] %v470
    %s472 = scalar_lea.vmem [#allocation2], 64
    %s473 = scalar_lea.vmem [#allocation0], 64
    %v474 = vld [vmem:[%s473] sm:$0xff]
    %475 = vperm.xlu0 %4, %v474
    %v476 = vpop.permute.xlu0 %475
    %477 = vst [vmem:[%s472] sm:$0xff] %v476
    %s478 = scalar_lea.vmem [#allocation2], 72
    %s479 = scalar_lea.vmem [#allocation0], 72
    %v480 = vld [vmem:[%s479] sm:$0xff]
    %481 = vperm.xlu0 %4, %v480
    %v482 = vpop.permute.xlu0 %481
    %483 = vst [vmem:[%s478] sm:$0xff] %v482
    %s484 = scalar_lea.vmem [#allocation2], 80
    %s485 = scalar_lea.vmem [#allocation0], 80
    %v486 = vld [vmem:[%s485] sm:$0xff]
    %487 = vperm.xlu0 %4, %v486
    %v488 = vpop.permute.xlu0 %487
    %489 = vst [vmem:[%s484] sm:$0xff] %v488
    %s490 = scalar_lea.vmem [#allocation2], 88
    %s491 = scalar_lea.vmem [#allocation0], 88
    %v492 = vld [vmem:[%s491] sm:$0xff]
    %493 = vperm.xlu0 %4, %v492
    %v494 = vpop.permute.xlu0 %493
    %495 = vst [vmem:[%s490] sm:$0xff] %v494
    %s496 = scalar_lea.vmem [#allocation2], 96
    %s497 = scalar_lea.vmem [#allocation0], 96
    %v498 = vld [vmem:[%s497] sm:$0xff]
    %499 = vperm.xlu0 %4, %v498
    %v500 = vpop.permute.xlu0 %499
    %501 = vst [vmem:[%s496] sm:$0xff] %v500
    %s502 = scalar_lea.vmem [#allocation2], 104
    %s503 = scalar_lea.vmem [#allocation0], 104
    %v504 = vld [vmem:[%s503] sm:$0xff]
    %505 = vperm.xlu0 %4, %v504
    %v506 = vpop.permute.xlu0 %505
    %507 = vst [vmem:[%s502] sm:$0xff] %v506
    %s508 = scalar_lea.vmem [#allocation2], 112
    %s509 = scalar_lea.vmem [#allocation0], 112
    %v510 = vld [vmem:[%s509] sm:$0xff]
    %511 = vperm.xlu0 %4, %v510
    %v512 = vpop.permute.xlu0 %511
    %513 = vst [vmem:[%s508] sm:$0xff] %v512
    %s514 = scalar_lea.vmem [#allocation2], 120
    %s515 = scalar_lea.vmem [#allocation0], 120
    %v516 = vld [vmem:[%s515] sm:$0xff]
    %517 = vperm.xlu0 %4, %v516
    %v518 = vpop.permute.xlu0 %517
    %519 = vst [vmem:[%s514] sm:$0xff] %v518
    %s520 = scalar_lea.vmem [#allocation2], 128
    %s521 = scalar_lea.vmem [#allocation0], 128
    %v522 = vld [vmem:[%s521] sm:$0xff]
    %523 = vperm.xlu0 %4, %v522
    %v524 = vpop.permute.xlu0 %523
    %525 = vst [vmem:[%s520] sm:$0xff] %v524
    %s526 = scalar_lea.vmem [#allocation2], 136
    %s527 = scalar_lea.vmem [#allocation0], 136
    %v528 = vld [vmem:[%s527] sm:$0xff]
    %529 = vperm.xlu0 %4, %v528
    %v530 = vpop.permute.xlu0 %529
    %531 = vst [vmem:[%s526] sm:$0xff] %v530
    %s532 = scalar_lea.vmem [#allocation2], 144
    %s533 = scalar_lea.vmem [#allocation0], 144
    %v534 = vld [vmem:[%s533] sm:$0xff]
    %535 = vperm.xlu0 %4, %v534
    %v536 = vpop.permute.xlu0 %535
    %537 = vst [vmem:[%s532] sm:$0xff] %v536
    %s538 = scalar_lea.vmem [#allocation2], 152
    %s539 = scalar_lea.vmem [#allocation0], 152
    %v540 = vld [vmem:[%s539] sm:$0xff]
    %541 = vperm.xlu0 %4, %v540
    %v542 = vpop.permute.xlu0 %541
    %543 = vst [vmem:[%s538] sm:$0xff] %v542
    %s544 = scalar_lea.vmem [#allocation2], 160
    %s545 = scalar_lea.vmem [#allocation0], 160
    %v546 = vld [vmem:[%s545] sm:$0xff]
    %547 = vperm.xlu0 %4, %v546
    %v548 = vpop.permute.xlu0 %547
    %549 = vst [vmem:[%s544] sm:$0xff] %v548
    %s550 = scalar_lea.vmem [#allocation2], 168
    %s551 = scalar_lea.vmem [#allocation0], 168
    %v552 = vld [vmem:[%s551] sm:$0xff]
    %553 = vperm.xlu0 %4, %v552
    %v554 = vpop.permute.xlu0 %553
    %555 = vst [vmem:[%s550] sm:$0xff] %v554
    %s556 = scalar_lea.vmem [#allocation2], 176
    %s557 = scalar_lea.vmem [#allocation0], 176
    %v558 = vld [vmem:[%s557] sm:$0xff]
    %559 = vperm.xlu0 %4, %v558
    %v560 = vpop.permute.xlu0 %559
    %561 = vst [vmem:[%s556] sm:$0xff] %v560
    %s562 = scalar_lea.vmem [#allocation2], 184
    %s563 = scalar_lea.vmem [#allocation0], 184
    %v564 = vld [vmem:[%s563] sm:$0xff]
    %565 = vperm.xlu0 %4, %v564
    %v566 = vpop.permute.xlu0 %565
    %567 = vst [vmem:[%s562] sm:$0xff] %v566
    %s568 = scalar_lea.vmem [#allocation2], 192
    %s569 = scalar_lea.vmem [#allocation0], 192
    %v570 = vld [vmem:[%s569] sm:$0xff]
    %571 = vperm.xlu0 %4, %v570
    %v572 = vpop.permute.xlu0 %571
    %573 = vst [vmem:[%s568] sm:$0xff] %v572
    %s574 = scalar_lea.vmem [#allocation2], 200
    %s575 = scalar_lea.vmem [#allocation0], 200
    %v576 = vld [vmem:[%s575] sm:$0xff]
    %577 = vperm.xlu0 %4, %v576
    %v578 = vpop.permute.xlu0 %577
    %579 = vst [vmem:[%s574] sm:$0xff] %v578
    %s580 = scalar_lea.vmem [#allocation2], 208
    %s581 = scalar_lea.vmem [#allocation0], 208
    %v582 = vld [vmem:[%s581] sm:$0xff]
    %583 = vperm.xlu0 %4, %v582
    %v584 = vpop.permute.xlu0 %583
    %585 = vst [vmem:[%s580] sm:$0xff] %v584
    %s586 = scalar_lea.vmem [#allocation2], 216
    %s587 = scalar_lea.vmem [#allocation0], 216
    %v588 = vld [vmem:[%s587] sm:$0xff]
    %589 = vperm.xlu0 %4, %v588
    %v590 = vpop.permute.xlu0 %589
    %591 = vst [vmem:[%s586] sm:$0xff] %v590
    %s592 = scalar_lea.vmem [#allocation2], 224
    %s593 = scalar_lea.vmem [#allocation0], 224
    %v594 = vld [vmem:[%s593] sm:$0xff]
    %595 = vperm.xlu0 %4, %v594
    %v596 = vpop.permute.xlu0 %595
    %597 = vst [vmem:[%s592] sm:$0xff] %v596
    %s598 = scalar_lea.vmem [#allocation2], 232
    %s599 = scalar_lea.vmem [#allocation0], 232
    %v600 = vld [vmem:[%s599] sm:$0xff]
    %601 = vperm.xlu0 %4, %v600
    %v602 = vpop.permute.xlu0 %601
    %603 = vst [vmem:[%s598] sm:$0xff] %v602
    %s604 = scalar_lea.vmem [#allocation2], 240
    %s605 = scalar_lea.vmem [#allocation0], 240
    %v606 = vld [vmem:[%s605] sm:$0xff]
    %607 = vperm.xlu0 %4, %v606
    %v608 = vpop.permute.xlu0 %607
    %609 = vst [vmem:[%s604] sm:$0xff] %v608
    %s610 = scalar_lea.vmem [#allocation2], 248
    %s611 = scalar_lea.vmem [#allocation0], 248
    %v612 = vld [vmem:[%s611] sm:$0xff]
    %613 = vperm.xlu0 %4, %v612
    %v614 = vpop.permute.xlu0 %613
    %615 = vst [vmem:[%s610] sm:$0xff] %v614
    %s616 = scalar_lea.vmem [#allocation2], 256
    %s617 = scalar_lea.vmem [#allocation0], 256
    %v618 = vld [vmem:[%s617] sm:$0xff]
    %619 = vperm.xlu0 %4, %v618
    %v620 = vpop.permute.xlu0 %619
    %621 = vst [vmem:[%s616] sm:$0xff] %v620
    %s622 = scalar_lea.vmem [#allocation2], 264
    %s623 = scalar_lea.vmem [#allocation0], 264
    %v624 = vld [vmem:[%s623] sm:$0xff]
    %625 = vperm.xlu0 %4, %v624
    %v626 = vpop.permute.xlu0 %625
    %627 = vst [vmem:[%s622] sm:$0xff] %v626
    %s628 = scalar_lea.vmem [#allocation2], 272
    %s629 = scalar_lea.vmem [#allocation0], 272
    %v630 = vld [vmem:[%s629] sm:$0xff]
    %631 = vperm.xlu0 %4, %v630
    %v632 = vpop.permute.xlu0 %631
    %633 = vst [vmem:[%s628] sm:$0xff] %v632
    %s634 = scalar_lea.vmem [#allocation2], 280
    %s635 = scalar_lea.vmem [#allocation0], 280
    %v636 = vld [vmem:[%s635] sm:$0xff]
    %637 = vperm.xlu0 %4, %v636
    %v638 = vpop.permute.xlu0 %637
    %639 = vst [vmem:[%s634] sm:$0xff] %v638
    %s640 = scalar_lea.vmem [#allocation2], 288
    %s641 = scalar_lea.vmem [#allocation0], 288
    %v642 = vld [vmem:[%s641] sm:$0xff]
    %643 = vperm.xlu0 %4, %v642
    %v644 = vpop.permute.xlu0 %643
    %645 = vst [vmem:[%s640] sm:$0xff] %v644
    %s646 = scalar_lea.vmem [#allocation2], 296
    %s647 = scalar_lea.vmem [#allocation0], 296
    %v648 = vld [vmem:[%s647] sm:$0xff]
    %649 = vperm.xlu0 %4, %v648
    %v650 = vpop.permute.xlu0 %649
    %651 = vst [vmem:[%s646] sm:$0xff] %v650
    %s652 = scalar_lea.vmem [#allocation2], 304
    %s653 = scalar_lea.vmem [#allocation0], 304
    %v654 = vld [vmem:[%s653] sm:$0xff]
    %655 = vperm.xlu0 %4, %v654
    %v656 = vpop.permute.xlu0 %655
    %657 = vst [vmem:[%s652] sm:$0xff] %v656
    %s658 = scalar_lea.vmem [#allocation2], 312
    %s659 = scalar_lea.vmem [#allocation0], 312
    %v660 = vld [vmem:[%s659] sm:$0xff]
    %661 = vperm.xlu0 %4, %v660
    %v662 = vpop.permute.xlu0 %661
    %663 = vst [vmem:[%s658] sm:$0xff] %v662
    %s664 = scalar_lea.vmem [#allocation2], 320
    %s665 = scalar_lea.vmem [#allocation0], 320
    %v666 = vld [vmem:[%s665] sm:$0xff]
    %667 = vperm.xlu0 %4, %v666
    %v668 = vpop.permute.xlu0 %667
    %669 = vst [vmem:[%s664] sm:$0xff] %v668
    %s670 = scalar_lea.vmem [#allocation2], 328
    %s671 = scalar_lea.vmem [#allocation0], 328
    %v672 = vld [vmem:[%s671] sm:$0xff]
    %673 = vperm.xlu0 %4, %v672
    %v674 = vpop.permute.xlu0 %673
    %675 = vst [vmem:[%s670] sm:$0xff] %v674
    %s676 = scalar_lea.vmem [#allocation2], 336
    %s677 = scalar_lea.vmem [#allocation0], 336
    %v678 = vld [vmem:[%s677] sm:$0xff]
    %679 = vperm.xlu0 %4, %v678
    %v680 = vpop.permute.xlu0 %679
    %681 = vst [vmem:[%s676] sm:$0xff] %v680
    %s682 = scalar_lea.vmem [#allocation2], 344
    %s683 = scalar_lea.vmem [#allocation0], 344
    %v684 = vld [vmem:[%s683] sm:$0xff]
    %685 = vperm.xlu0 %4, %v684
    %v686 = vpop.permute.xlu0 %685
    %687 = vst [vmem:[%s682] sm:$0xff] %v686
    %s688 = scalar_lea.vmem [#allocation2], 352
    %s689 = scalar_lea.vmem [#allocation0], 352
    %v690 = vld [vmem:[%s689] sm:$0xff]
    %691 = vperm.xlu0 %4, %v690
    %v692 = vpop.permute.xlu0 %691
    %693 = vst [vmem:[%s688] sm:$0xff] %v692
    %s694 = scalar_lea.vmem [#allocation2], 360
    %s695 = scalar_lea.vmem [#allocation0], 360
    %v696 = vld [vmem:[%s695] sm:$0xff]
    %697 = vperm.xlu0 %4, %v696
    %v698 = vpop.permute.xlu0 %697
    %699 = vst [vmem:[%s694] sm:$0xff] %v698
    %s700 = scalar_lea.vmem [#allocation2], 368
    %s701 = scalar_lea.vmem [#allocation0], 368
    %v702 = vld [vmem:[%s701] sm:$0xff]
    %703 = vperm.xlu0 %4, %v702
    %v704 = vpop.permute.xlu0 %703
    %705 = vst [vmem:[%s700] sm:$0xff] %v704
    %s706 = scalar_lea.vmem [#allocation2], 376
    %s707 = scalar_lea.vmem [#allocation0], 376
    %v708 = vld [vmem:[%s707] sm:$0xff]
    %709 = vperm.xlu0 %4, %v708
    %v710 = vpop.permute.xlu0 %709
    %711 = vst [vmem:[%s706] sm:$0xff] %v710
    %s713 = ssub.s32 4, 1
    %v714 = vld [vmem:[#allocation2] sm:%s713]
    %s716 = ssub.s32 4, 1
    %717 = vst [vmem:[#allocation3] sm:%s716] %v714
    %s718 = scalar_lea.vmem [#allocation2], 8
    %v719 = vld [vmem:[%s718] sm:%s713]
    %s721 = ssub.s32 4, 1
    %s722 = scalar_lea.vmem [#allocation3], 2
    %723 = vst [vmem:[%s722] sm:%s721] %v719
    %s724 = scalar_lea.vmem [#allocation2], 16
    %v725 = vld [vmem:[%s724] sm:%s713]
    %s727 = ssub.s32 4, 1
    %s728 = scalar_lea.vmem [#allocation3], 4
    %729 = vst [vmem:[%s728] sm:%s727] %v725
    %s730 = scalar_lea.vmem [#allocation2], 24
    %v731 = vld [vmem:[%s730] sm:%s713]
    %s733 = ssub.s32 4, 1
    %s734 = scalar_lea.vmem [#allocation3], 6
    %735 = vst [vmem:[%s734] sm:%s733] %v731
    %s736 = scalar_lea.vmem [#allocation2], 32
    %v737 = vld [vmem:[%s736] sm:%s713]
    %s739 = ssub.s32 4, 1
    %s740 = scalar_lea.vmem [#allocation3], 8
    %741 = vst [vmem:[%s740] sm:%s739] %v737
    %s742 = scalar_lea.vmem [#allocation2], 40
    %v743 = vld [vmem:[%s742] sm:%s713]
    %s745 = ssub.s32 4, 1
    %s746 = scalar_lea.vmem [#allocation3], 10
    %747 = vst [vmem:[%s746] sm:%s745] %v743
    %s748 = scalar_lea.vmem [#allocation2], 48
    %v749 = vld [vmem:[%s748] sm:%s713]
    %s751 = ssub.s32 4, 1
    %s752 = scalar_lea.vmem [#allocation3], 12
    %753 = vst [vmem:[%s752] sm:%s751] %v749
    %s754 = scalar_lea.vmem [#allocation2], 56
    %v755 = vld [vmem:[%s754] sm:%s713]
    %s757 = ssub.s32 4, 1
    %s758 = scalar_lea.vmem [#allocation3], 14
    %759 = vst [vmem:[%s758] sm:%s757] %v755
    %s760 = scalar_lea.vmem [#allocation2], 64
    %v761 = vld [vmem:[%s760] sm:%s713]
    %s763 = ssub.s32 4, 1
    %s764 = scalar_lea.vmem [#allocation3], 16
    %765 = vst [vmem:[%s764] sm:%s763] %v761
    %s766 = scalar_lea.vmem [#allocation2], 72
    %v767 = vld [vmem:[%s766] sm:%s713]
    %s769 = ssub.s32 4, 1
    %s770 = scalar_lea.vmem [#allocation3], 18
    %771 = vst [vmem:[%s770] sm:%s769] %v767
    %s772 = scalar_lea.vmem [#allocation2], 80
    %v773 = vld [vmem:[%s772] sm:%s713]
    %s775 = ssub.s32 4, 1
    %s776 = scalar_lea.vmem [#allocation3], 20
    %777 = vst [vmem:[%s776] sm:%s775] %v773
    %s778 = scalar_lea.vmem [#allocation2], 88
    %v779 = vld [vmem:[%s778] sm:%s713]
    %s781 = ssub.s32 4, 1
    %s782 = scalar_lea.vmem [#allocation3], 22
    %783 = vst [vmem:[%s782] sm:%s781] %v779
    %s784 = scalar_lea.vmem [#allocation2], 96
    %v785 = vld [vmem:[%s784] sm:%s713]
    %s787 = ssub.s32 4, 1
    %s788 = scalar_lea.vmem [#allocation3], 24
    %789 = vst [vmem:[%s788] sm:%s787] %v785
    %s790 = scalar_lea.vmem [#allocation2], 104
    %v791 = vld [vmem:[%s790] sm:%s713]
    %s793 = ssub.s32 4, 1
    %s794 = scalar_lea.vmem [#allocation3], 26
    %795 = vst [vmem:[%s794] sm:%s793] %v791
    %s796 = scalar_lea.vmem [#allocation2], 112
    %v797 = vld [vmem:[%s796] sm:%s713]
    %s799 = ssub.s32 4, 1
    %s800 = scalar_lea.vmem [#allocation3], 28
    %801 = vst [vmem:[%s800] sm:%s799] %v797
    %s802 = scalar_lea.vmem [#allocation2], 120
    %v803 = vld [vmem:[%s802] sm:%s713]
    %s805 = ssub.s32 4, 1
    %s806 = scalar_lea.vmem [#allocation3], 30
    %807 = vst [vmem:[%s806] sm:%s805] %v803
    %s808 = scalar_lea.vmem [#allocation2], 128
    %v809 = vld [vmem:[%s808] sm:%s713]
    %s811 = ssub.s32 4, 1
    %s812 = scalar_lea.vmem [#allocation3], 32
    %813 = vst [vmem:[%s812] sm:%s811] %v809
    %s814 = scalar_lea.vmem [#allocation2], 136
    %v815 = vld [vmem:[%s814] sm:%s713]
    %s817 = ssub.s32 4, 1
    %s818 = scalar_lea.vmem [#allocation3], 34
    %819 = vst [vmem:[%s818] sm:%s817] %v815
    %s820 = scalar_lea.vmem [#allocation2], 144
    %v821 = vld [vmem:[%s820] sm:%s713]
    %s823 = ssub.s32 4, 1
    %s824 = scalar_lea.vmem [#allocation3], 36
    %825 = vst [vmem:[%s824] sm:%s823] %v821
    %s826 = scalar_lea.vmem [#allocation2], 152
    %v827 = vld [vmem:[%s826] sm:%s713]
    %s829 = ssub.s32 4, 1
    %s830 = scalar_lea.vmem [#allocation3], 38
    %831 = vst [vmem:[%s830] sm:%s829] %v827
    %s832 = scalar_lea.vmem [#allocation2], 160
    %v833 = vld [vmem:[%s832] sm:%s713]
    %s835 = ssub.s32 4, 1
    %s836 = scalar_lea.vmem [#allocation3], 40
    %837 = vst [vmem:[%s836] sm:%s835] %v833
    %s838 = scalar_lea.vmem [#allocation2], 168
    %v839 = vld [vmem:[%s838] sm:%s713]
    %s841 = ssub.s32 4, 1
    %s842 = scalar_lea.vmem [#allocation3], 42
    %843 = vst [vmem:[%s842] sm:%s841] %v839
    %s844 = scalar_lea.vmem [#allocation2], 176
    %v845 = vld [vmem:[%s844] sm:%s713]
    %s847 = ssub.s32 4, 1
    %s848 = scalar_lea.vmem [#allocation3], 44
    %849 = vst [vmem:[%s848] sm:%s847] %v845
    %s850 = scalar_lea.vmem [#allocation2], 184
    %v851 = vld [vmem:[%s850] sm:%s713]
    %s853 = ssub.s32 4, 1
    %s854 = scalar_lea.vmem [#allocation3], 46
    %855 = vst [vmem:[%s854] sm:%s853] %v851
    %s856 = scalar_lea.vmem [#allocation2], 192
    %v857 = vld [vmem:[%s856] sm:%s713]
    %s859 = ssub.s32 4, 1
    %s860 = scalar_lea.vmem [#allocation3], 48
    %861 = vst [vmem:[%s860] sm:%s859] %v857
    %s862 = scalar_lea.vmem [#allocation2], 200
    %v863 = vld [vmem:[%s862] sm:%s713]
    %s865 = ssub.s32 4, 1
    %s866 = scalar_lea.vmem [#allocation3], 50
    %867 = vst [vmem:[%s866] sm:%s865] %v863
    %s868 = scalar_lea.vmem [#allocation2], 208
    %v869 = vld [vmem:[%s868] sm:%s713]
    %s871 = ssub.s32 4, 1
    %s872 = scalar_lea.vmem [#allocation3], 52
    %873 = vst [vmem:[%s872] sm:%s871] %v869
    %s874 = scalar_lea.vmem [#allocation2], 216
    %v875 = vld [vmem:[%s874] sm:%s713]
    %s877 = ssub.s32 4, 1
    %s878 = scalar_lea.vmem [#allocation3], 54
    %879 = vst [vmem:[%s878] sm:%s877] %v875
    %s880 = scalar_lea.vmem [#allocation2], 224
    %v881 = vld [vmem:[%s880] sm:%s713]
    %s883 = ssub.s32 4, 1
    %s884 = scalar_lea.vmem [#allocation3], 56
    %885 = vst [vmem:[%s884] sm:%s883] %v881
    %s886 = scalar_lea.vmem [#allocation2], 232
    %v887 = vld [vmem:[%s886] sm:%s713]
    %s889 = ssub.s32 4, 1
    %s890 = scalar_lea.vmem [#allocation3], 58
    %891 = vst [vmem:[%s890] sm:%s889] %v887
    %s892 = scalar_lea.vmem [#allocation2], 240
    %v893 = vld [vmem:[%s892] sm:%s713]
    %s895 = ssub.s32 4, 1
    %s896 = scalar_lea.vmem [#allocation3], 60
    %897 = vst [vmem:[%s896] sm:%s895] %v893
    %s898 = scalar_lea.vmem [#allocation2], 248
    %v899 = vld [vmem:[%s898] sm:%s713]
    %s901 = ssub.s32 4, 1
    %s902 = scalar_lea.vmem [#allocation3], 62
    %903 = vst [vmem:[%s902] sm:%s901] %v899
    %s904 = scalar_lea.vmem [#allocation2], 256
    %v905 = vld [vmem:[%s904] sm:%s713]
    %s907 = ssub.s32 4, 1
    %s908 = scalar_lea.vmem [#allocation3], 64
    %909 = vst [vmem:[%s908] sm:%s907] %v905
    %s910 = scalar_lea.vmem [#allocation2], 264
    %v911 = vld [vmem:[%s910] sm:%s713]
    %s913 = ssub.s32 4, 1
    %s914 = scalar_lea.vmem [#allocation3], 66
    %915 = vst [vmem:[%s914] sm:%s913] %v911
    %s916 = scalar_lea.vmem [#allocation2], 272
    %v917 = vld [vmem:[%s916] sm:%s713]
    %s919 = ssub.s32 4, 1
    %s920 = scalar_lea.vmem [#allocation3], 68
    %921 = vst [vmem:[%s920] sm:%s919] %v917
    %s922 = scalar_lea.vmem [#allocation2], 280
    %v923 = vld [vmem:[%s922] sm:%s713]
    %s925 = ssub.s32 4, 1
    %s926 = scalar_lea.vmem [#allocation3], 70
    %927 = vst [vmem:[%s926] sm:%s925] %v923
    %s928 = scalar_lea.vmem [#allocation2], 288
    %v929 = vld [vmem:[%s928] sm:%s713]
    %s931 = ssub.s32 4, 1
    %s932 = scalar_lea.vmem [#allocation3], 72
    %933 = vst [vmem:[%s932] sm:%s931] %v929
    %s934 = scalar_lea.vmem [#allocation2], 296
    %v935 = vld [vmem:[%s934] sm:%s713]
    %s937 = ssub.s32 4, 1
    %s938 = scalar_lea.vmem [#allocation3], 74
    %939 = vst [vmem:[%s938] sm:%s937] %v935
    %s940 = scalar_lea.vmem [#allocation2], 304
    %v941 = vld [vmem:[%s940] sm:%s713]
    %s943 = ssub.s32 4, 1
    %s944 = scalar_lea.vmem [#allocation3], 76
    %945 = vst [vmem:[%s944] sm:%s943] %v941
    %s946 = scalar_lea.vmem [#allocation2], 312
    %v947 = vld [vmem:[%s946] sm:%s713]
    %s949 = ssub.s32 4, 1
    %s950 = scalar_lea.vmem [#allocation3], 78
    %951 = vst [vmem:[%s950] sm:%s949] %v947
    %s952 = scalar_lea.vmem [#allocation2], 320
    %v953 = vld [vmem:[%s952] sm:%s713]
    %s955 = ssub.s32 4, 1
    %s956 = scalar_lea.vmem [#allocation3], 80
    %957 = vst [vmem:[%s956] sm:%s955] %v953
    %s958 = scalar_lea.vmem [#allocation2], 328
    %v959 = vld [vmem:[%s958] sm:%s713]
    %s961 = ssub.s32 4, 1
    %s962 = scalar_lea.vmem [#allocation3], 82
    %963 = vst [vmem:[%s962] sm:%s961] %v959
    %s964 = scalar_lea.vmem [#allocation2], 336
    %v965 = vld [vmem:[%s964] sm:%s713]
    %s967 = ssub.s32 4, 1
    %s968 = scalar_lea.vmem [#allocation3], 84
    %969 = vst [vmem:[%s968] sm:%s967] %v965
    %s970 = scalar_lea.vmem [#allocation2], 344
    %v971 = vld [vmem:[%s970] sm:%s713]
    %s973 = ssub.s32 4, 1
    %s974 = scalar_lea.vmem [#allocation3], 86
    %975 = vst [vmem:[%s974] sm:%s973] %v971
    %s976 = scalar_lea.vmem [#allocation2], 352
    %v977 = vld [vmem:[%s976] sm:%s713]
    %s979 = ssub.s32 4, 1
    %s980 = scalar_lea.vmem [#allocation3], 88
    %981 = vst [vmem:[%s980] sm:%s979] %v977
    %s982 = scalar_lea.vmem [#allocation2], 360
    %v983 = vld [vmem:[%s982] sm:%s713]
    %s985 = ssub.s32 4, 1
    %s986 = scalar_lea.vmem [#allocation3], 90
    %987 = vst [vmem:[%s986] sm:%s985] %v983
    %s988 = scalar_lea.vmem [#allocation2], 368
    %v989 = vld [vmem:[%s988] sm:%s713]
    %s991 = ssub.s32 4, 1
    %s992 = scalar_lea.vmem [#allocation3], 92
    %993 = vst [vmem:[%s992] sm:%s991] %v989
    %s994 = scalar_lea.vmem [#allocation2], 376
    %v995 = vld [vmem:[%s994] sm:%s713]
    %s997 = ssub.s32 4, 1
    %s998 = scalar_lea.vmem [#allocation3], 94
    %999 = vst [vmem:[%s998] sm:%s997] %v995
    // Predicated region
    $region39: #{reverse} parent=1 // pred_check
      _
    $region40: #{reverse} parent=1 // pred_check_branch
      %1001 = sbr.rel (0) target = $region42
    $region41: #{reverse} parent=1 // pred_region
      // Predicated region
      $region43: #{reverse} parent=41 // pred_check
        _
      $region44: #{reverse} parent=41 // pred_check_branch
        %1003 = sbr.rel target = $region46
      $region45: #{reverse} parent=41 // pred_region
        // Predicated region
        $region58: #{reverse} parent=45 // pred_check
          _
        $region59: #{reverse} parent=45 // pred_check_branch
          %1113 = sbr.rel (0) target = $region61
        $region60: #{reverse} parent=45 // pred_region
          loop: start=0, step=1, limit=1
          $region62: #{reverse} parent=60 // loop_pre_header
            _
          $region63: #{reverse} parent=60 // loop_header
            %s1115 = sphi 0, %s1119
            %p1116 = scmp.ge.s32.totalorder %s1115, 1
            %s1120 = sphi [#allocation3], [#allocation3]
            %s1121 = sphi %s1, %s1
          $region64: #{reverse} parent=60 // loop_header_branch
            %1118 = sbr.rel (%p1116) target = $region68
          $region65: #{reverse} parent=60 // loop_body
            _
          $region66: #{reverse} parent=60 // loop_footer
            %s1119 = sadd.s32 1, %s1115
          $region67: #{reverse} parent=60 // loop_footer_branch
            %1114 = sbr.rel target = $region63
          $region68: #{reverse} parent=60 // loop_exit
            _
          %s1123 = ssub.s32 4, 1
          loop: start=0, step=1, limit=1
          $region69: #{reverse} parent=60 // loop_pre_header
            _
          $region70: #{reverse} parent=60 // loop_header
            %s1125 = sphi 0, %s1129
            %p1126 = scmp.ge.s32.totalorder %s1125, 1
            %s1130 = sphi [#allocation3], [#allocation3]
            %s1131 = sphi %s1, %s1
          $region71: #{reverse} parent=60 // loop_header_branch
            %1128 = sbr.rel (%p1126) target = $region75
          $region72: #{reverse} parent=60 // loop_body
            %v1132 = vld [vmem:[%s1130] sm:%s1123]
            %1133 = vst [vmem:[%s1131] sm:%s1123] %v1132
            %v1134 = vld [vmem:[%s1130 + $0x2] sm:%s1123]
            %1135 = vst [vmem:[%s1131 + $0x2] sm:%s1123] %v1134
            %v1136 = vld [vmem:[%s1130 + $0x4] sm:%s1123]
            %1137 = vst [vmem:[%s1131 + $0x4] sm:%s1123] %v1136
            %v1138 = vld [vmem:[%s1130 + $0x6] sm:%s1123]
            %1139 = vst [vmem:[%s1131 + $0x6] sm:%s1123] %v1138
            %v1140 = vld [vmem:[%s1130 + $0x8] sm:%s1123]
            %1141 = vst [vmem:[%s1131 + $0x8] sm:%s1123] %v1140
            %v1142 = vld [vmem:[%s1130 + $0xa] sm:%s1123]
            %1143 = vst [vmem:[%s1131 + $0xa] sm:%s1123] %v1142
            %v1144 = vld [vmem:[%s1130 + $0xc] sm:%s1123]
            %1145 = vst [vmem:[%s1131 + $0xc] sm:%s1123] %v1144
            %v1146 = vld [vmem:[%s1130 + $0xe] sm:%s1123]
            %1147 = vst [vmem:[%s1131 + $0xe] sm:%s1123] %v1146
            %v1148 = vld [vmem:[%s1130 + $0x10] sm:%s1123]
            %1149 = vst [vmem:[%s1131 + $0x10] sm:%s1123] %v1148
            %v1150 = vld [vmem:[%s1130 + $0x12] sm:%s1123]
            %1151 = vst [vmem:[%s1131 + $0x12] sm:%s1123] %v1150
            %v1152 = vld [vmem:[%s1130 + $0x14] sm:%s1123]
            %1153 = vst [vmem:[%s1131 + $0x14] sm:%s1123] %v1152
            %v1154 = vld [vmem:[%s1130 + $0x16] sm:%s1123]
            %1155 = vst [vmem:[%s1131 + $0x16] sm:%s1123] %v1154
            %v1156 = vld [vmem:[%s1130 + $0x18] sm:%s1123]
            %1157 = vst [vmem:[%s1131 + $0x18] sm:%s1123] %v1156
            %v1158 = vld [vmem:[%s1130 + $0x1a] sm:%s1123]
            %1159 = vst [vmem:[%s1131 + $0x1a] sm:%s1123] %v1158
            %v1160 = vld [vmem:[%s1130 + $0x1c] sm:%s1123]
            %1161 = vst [vmem:[%s1131 + $0x1c] sm:%s1123] %v1160
            %v1162 = vld [vmem:[%s1130 + $0x1e] sm:%s1123]
            %1163 = vst [vmem:[%s1131 + $0x1e] sm:%s1123] %v1162
            %v1164 = vld [vmem:[%s1130 + $0x20] sm:%s1123]
            %1165 = vst [vmem:[%s1131 + $0x20] sm:%s1123] %v1164
            %v1166 = vld [vmem:[%s1130 + $0x22] sm:%s1123]
            %1167 = vst [vmem:[%s1131 + $0x22] sm:%s1123] %v1166
            %v1168 = vld [vmem:[%s1130 + $0x24] sm:%s1123]
            %1169 = vst [vmem:[%s1131 + $0x24] sm:%s1123] %v1168
            %v1170 = vld [vmem:[%s1130 + $0x26] sm:%s1123]
            %1171 = vst [vmem:[%s1131 + $0x26] sm:%s1123] %v1170
            %v1172 = vld [vmem:[%s1130 + $0x28] sm:%s1123]
            %1173 = vst [vmem:[%s1131 + $0x28] sm:%s1123] %v1172
            %v1174 = vld [vmem:[%s1130 + $0x2a] sm:%s1123]
            %1175 = vst [vmem:[%s1131 + $0x2a] sm:%s1123] %v1174
            %v1176 = vld [vmem:[%s1130 + $0x2c] sm:%s1123]
            %1177 = vst [vmem:[%s1131 + $0x2c] sm:%s1123] %v1176
            %v1178 = vld [vmem:[%s1130 + $0x2e] sm:%s1123]
            %1179 = vst [vmem:[%s1131 + $0x2e] sm:%s1123] %v1178
            %v1180 = vld [vmem:[%s1130 + $0x30] sm:%s1123]
            %1181 = vst [vmem:[%s1131 + $0x30] sm:%s1123] %v1180
            %v1182 = vld [vmem:[%s1130 + $0x32] sm:%s1123]
            %1183 = vst [vmem:[%s1131 + $0x32] sm:%s1123] %v1182
            %v1184 = vld [vmem:[%s1130 + $0x34] sm:%s1123]
            %1185 = vst [vmem:[%s1131 + $0x34] sm:%s1123] %v1184
            %v1186 = vld [vmem:[%s1130 + $0x36] sm:%s1123]
            %1187 = vst [vmem:[%s1131 + $0x36] sm:%s1123] %v1186
            %v1188 = vld [vmem:[%s1130 + $0x38] sm:%s1123]
            %1189 = vst [vmem:[%s1131 + $0x38] sm:%s1123] %v1188
            %v1190 = vld [vmem:[%s1130 + $0x3a] sm:%s1123]
            %1191 = vst [vmem:[%s1131 + $0x3a] sm:%s1123] %v1190
            %v1192 = vld [vmem:[%s1130 + $0x3c] sm:%s1123]
            %1193 = vst [vmem:[%s1131 + $0x3c] sm:%s1123] %v1192
            %v1194 = vld [vmem:[%s1130 + $0x3e] sm:%s1123]
            %1195 = vst [vmem:[%s1131 + $0x3e] sm:%s1123] %v1194
            %v1196 = vld [vmem:[%s1130 + $0x40] sm:%s1123]
            %1197 = vst [vmem:[%s1131 + $0x40] sm:%s1123] %v1196
            %v1198 = vld [vmem:[%s1130 + $0x42] sm:%s1123]
            %1199 = vst [vmem:[%s1131 + $0x42] sm:%s1123] %v1198
            %v1200 = vld [vmem:[%s1130 + $0x44] sm:%s1123]
            %1201 = vst [vmem:[%s1131 + $0x44] sm:%s1123] %v1200
            %v1202 = vld [vmem:[%s1130 + $0x46] sm:%s1123]
            %1203 = vst [vmem:[%s1131 + $0x46] sm:%s1123] %v1202
            %v1204 = vld [vmem:[%s1130 + $0x48] sm:%s1123]
            %1205 = vst [vmem:[%s1131 + $0x48] sm:%s1123] %v1204
            %v1206 = vld [vmem:[%s1130 + $0x4a] sm:%s1123]
            %1207 = vst [vmem:[%s1131 + $0x4a] sm:%s1123] %v1206
            %v1208 = vld [vmem:[%s1130 + $0x4c] sm:%s1123]
            %1209 = vst [vmem:[%s1131 + $0x4c] sm:%s1123] %v1208
            %v1210 = vld [vmem:[%s1130 + $0x4e] sm:%s1123]
            %1211 = vst [vmem:[%s1131 + $0x4e] sm:%s1123] %v1210
            %v1212 = vld [vmem:[%s1130 + $0x50] sm:%s1123]
            %1213 = vst [vmem:[%s1131 + $0x50] sm:%s1123] %v1212
            %v1214 = vld [vmem:[%s1130 + $0x52] sm:%s1123]
            %1215 = vst [vmem:[%s1131 + $0x52] sm:%s1123] %v1214
            %v1216 = vld [vmem:[%s1130 + $0x54] sm:%s1123]
            %1217 = vst [vmem:[%s1131 + $0x54] sm:%s1123] %v1216
            %v1218 = vld [vmem:[%s1130 + $0x56] sm:%s1123]
            %1219 = vst [vmem:[%s1131 + $0x56] sm:%s1123] %v1218
            %v1220 = vld [vmem:[%s1130 + $0x58] sm:%s1123]
            %1221 = vst [vmem:[%s1131 + $0x58] sm:%s1123] %v1220
            %v1222 = vld [vmem:[%s1130 + $0x5a] sm:%s1123]
            %1223 = vst [vmem:[%s1131 + $0x5a] sm:%s1123] %v1222
            %v1224 = vld [vmem:[%s1130 + $0x5c] sm:%s1123]
            %1225 = vst [vmem:[%s1131 + $0x5c] sm:%s1123] %v1224
            %v1226 = vld [vmem:[%s1130 + $0x5e] sm:%s1123]
            %1227 = vst [vmem:[%s1131 + $0x5e] sm:%s1123] %v1226
          $region73: #{reverse} parent=60 // loop_footer
            %s1129 = sadd.s32 1, %s1125
          $region74: #{reverse} parent=60 // loop_footer_branch
            %1124 = sbr.rel target = $region70
          $region75: #{reverse} parent=60 // loop_exit
            _
        $region61: #{reverse} parent=45 // pred_fallthru
          _
      $region46: #{reverse} parent=41 // pred_fallthru
        _
      // Predicated region
      $region47: #{reverse} parent=41 // pred_check
        _
      $region48: #{reverse} parent=41 // pred_check_branch
        %1005 = sbr.rel (0) target = $region50
      $region49: #{reverse} parent=41 // pred_region
        %s1007 = ssub.s32 4, 1
        loop: start=0, step=1, limit=1
        $region51: #{reverse} parent=49 // loop_pre_header
          _
        $region52: #{reverse} parent=49 // loop_header
          %s1009 = sphi 0, %s1013
          %p1010 = scmp.ge.s32.totalorder %s1009, 1
          %s1014 = sphi [#allocation3], [#allocation3]
          %s1015 = sphi %s1, %s1
        $region53: #{reverse} parent=49 // loop_header_branch
          %1012 = sbr.rel (%p1010) target = $region57
        $region54: #{reverse} parent=49 // loop_body
          %v1016 = vld [vmem:[%s1014] sm:%s1007]
          %1017 = vst [vmem:[%s1015] sm:%s1007] %v1016
          %v1018 = vld [vmem:[%s1014 + $0x2] sm:%s1007]
          %1019 = vst [vmem:[%s1015 + $0x2] sm:%s1007] %v1018
          %v1020 = vld [vmem:[%s1014 + $0x4] sm:%s1007]
          %1021 = vst [vmem:[%s1015 + $0x4] sm:%s1007] %v1020
          %v1022 = vld [vmem:[%s1014 + $0x6] sm:%s1007]
          %1023 = vst [vmem:[%s1015 + $0x6] sm:%s1007] %v1022
          %v1024 = vld [vmem:[%s1014 + $0x8] sm:%s1007]
          %1025 = vst [vmem:[%s1015 + $0x8] sm:%s1007] %v1024
          %v1026 = vld [vmem:[%s1014 + $0xa] sm:%s1007]
          %1027 = vst [vmem:[%s1015 + $0xa] sm:%s1007] %v1026
          %v1028 = vld [vmem:[%s1014 + $0xc] sm:%s1007]
          %1029 = vst [vmem:[%s1015 + $0xc] sm:%s1007] %v1028
          %v1030 = vld [vmem:[%s1014 + $0xe] sm:%s1007]
          %1031 = vst [vmem:[%s1015 + $0xe] sm:%s1007] %v1030
          %v1032 = vld [vmem:[%s1014 + $0x10] sm:%s1007]
          %1033 = vst [vmem:[%s1015 + $0x10] sm:%s1007] %v1032
          %v1034 = vld [vmem:[%s1014 + $0x12] sm:%s1007]
          %1035 = vst [vmem:[%s1015 + $0x12] sm:%s1007] %v1034
          %v1036 = vld [vmem:[%s1014 + $0x14] sm:%s1007]
          %1037 = vst [vmem:[%s1015 + $0x14] sm:%s1007] %v1036
          %v1038 = vld [vmem:[%s1014 + $0x16] sm:%s1007]
          %1039 = vst [vmem:[%s1015 + $0x16] sm:%s1007] %v1038
          %v1040 = vld [vmem:[%s1014 + $0x18] sm:%s1007]
          %1041 = vst [vmem:[%s1015 + $0x18] sm:%s1007] %v1040
          %v1042 = vld [vmem:[%s1014 + $0x1a] sm:%s1007]
          %1043 = vst [vmem:[%s1015 + $0x1a] sm:%s1007] %v1042
          %v1044 = vld [vmem:[%s1014 + $0x1c] sm:%s1007]
          %1045 = vst [vmem:[%s1015 + $0x1c] sm:%s1007] %v1044
          %v1046 = vld [vmem:[%s1014 + $0x1e] sm:%s1007]
          %1047 = vst [vmem:[%s1015 + $0x1e] sm:%s1007] %v1046
          %v1048 = vld [vmem:[%s1014 + $0x20] sm:%s1007]
          %1049 = vst [vmem:[%s1015 + $0x20] sm:%s1007] %v1048
          %v1050 = vld [vmem:[%s1014 + $0x22] sm:%s1007]
          %1051 = vst [vmem:[%s1015 + $0x22] sm:%s1007] %v1050
          %v1052 = vld [vmem:[%s1014 + $0x24] sm:%s1007]
          %1053 = vst [vmem:[%s1015 + $0x24] sm:%s1007] %v1052
          %v1054 = vld [vmem:[%s1014 + $0x26] sm:%s1007]
          %1055 = vst [vmem:[%s1015 + $0x26] sm:%s1007] %v1054
          %v1056 = vld [vmem:[%s1014 + $0x28] sm:%s1007]
          %1057 = vst [vmem:[%s1015 + $0x28] sm:%s1007] %v1056
          %v1058 = vld [vmem:[%s1014 + $0x2a] sm:%s1007]
          %1059 = vst [vmem:[%s1015 + $0x2a] sm:%s1007] %v1058
          %v1060 = vld [vmem:[%s1014 + $0x2c] sm:%s1007]
          %1061 = vst [vmem:[%s1015 + $0x2c] sm:%s1007] %v1060
          %v1062 = vld [vmem:[%s1014 + $0x2e] sm:%s1007]
          %1063 = vst [vmem:[%s1015 + $0x2e] sm:%s1007] %v1062
          %v1064 = vld [vmem:[%s1014 + $0x30] sm:%s1007]
          %1065 = vst [vmem:[%s1015 + $0x30] sm:%s1007] %v1064
          %v1066 = vld [vmem:[%s1014 + $0x32] sm:%s1007]
          %1067 = vst [vmem:[%s1015 + $0x32] sm:%s1007] %v1066
          %v1068 = vld [vmem:[%s1014 + $0x34] sm:%s1007]
          %1069 = vst [vmem:[%s1015 + $0x34] sm:%s1007] %v1068
          %v1070 = vld [vmem:[%s1014 + $0x36] sm:%s1007]
          %1071 = vst [vmem:[%s1015 + $0x36] sm:%s1007] %v1070
          %v1072 = vld [vmem:[%s1014 + $0x38] sm:%s1007]
          %1073 = vst [vmem:[%s1015 + $0x38] sm:%s1007] %v1072
          %v1074 = vld [vmem:[%s1014 + $0x3a] sm:%s1007]
          %1075 = vst [vmem:[%s1015 + $0x3a] sm:%s1007] %v1074
          %v1076 = vld [vmem:[%s1014 + $0x3c] sm:%s1007]
          %1077 = vst [vmem:[%s1015 + $0x3c] sm:%s1007] %v1076
          %v1078 = vld [vmem:[%s1014 + $0x3e] sm:%s1007]
          %1079 = vst [vmem:[%s1015 + $0x3e] sm:%s1007] %v1078
          %v1080 = vld [vmem:[%s1014 + $0x40] sm:%s1007]
          %1081 = vst [vmem:[%s1015 + $0x40] sm:%s1007] %v1080
          %v1082 = vld [vmem:[%s1014 + $0x42] sm:%s1007]
          %1083 = vst [vmem:[%s1015 + $0x42] sm:%s1007] %v1082
          %v1084 = vld [vmem:[%s1014 + $0x44] sm:%s1007]
          %1085 = vst [vmem:[%s1015 + $0x44] sm:%s1007] %v1084
          %v1086 = vld [vmem:[%s1014 + $0x46] sm:%s1007]
          %1087 = vst [vmem:[%s1015 + $0x46] sm:%s1007] %v1086
          %v1088 = vld [vmem:[%s1014 + $0x48] sm:%s1007]
          %1089 = vst [vmem:[%s1015 + $0x48] sm:%s1007] %v1088
          %v1090 = vld [vmem:[%s1014 + $0x4a] sm:%s1007]
          %1091 = vst [vmem:[%s1015 + $0x4a] sm:%s1007] %v1090
          %v1092 = vld [vmem:[%s1014 + $0x4c] sm:%s1007]
          %1093 = vst [vmem:[%s1015 + $0x4c] sm:%s1007] %v1092
          %v1094 = vld [vmem:[%s1014 + $0x4e] sm:%s1007]
          %1095 = vst [vmem:[%s1015 + $0x4e] sm:%s1007] %v1094
          %v1096 = vld [vmem:[%s1014 + $0x50] sm:%s1007]
          %1097 = vst [vmem:[%s1015 + $0x50] sm:%s1007] %v1096
          %v1098 = vld [vmem:[%s1014 + $0x52] sm:%s1007]
          %1099 = vst [vmem:[%s1015 + $0x52] sm:%s1007] %v1098
          %v1100 = vld [vmem:[%s1014 + $0x54] sm:%s1007]
          %1101 = vst [vmem:[%s1015 + $0x54] sm:%s1007] %v1100
          %v1102 = vld [vmem:[%s1014 + $0x56] sm:%s1007]
          %1103 = vst [vmem:[%s1015 + $0x56] sm:%s1007] %v1102
          %v1104 = vld [vmem:[%s1014 + $0x58] sm:%s1007]
          %1105 = vst [vmem:[%s1015 + $0x58] sm:%s1007] %v1104
          %v1106 = vld [vmem:[%s1014 + $0x5a] sm:%s1007]
          %1107 = vst [vmem:[%s1015 + $0x5a] sm:%s1007] %v1106
          %v1108 = vld [vmem:[%s1014 + $0x5c] sm:%s1007]
          %1109 = vst [vmem:[%s1015 + $0x5c] sm:%s1007] %v1108
          %v1110 = vld [vmem:[%s1014 + $0x5e] sm:%s1007]
          %1111 = vst [vmem:[%s1015 + $0x5e] sm:%s1007] %v1110
        $region55: #{reverse} parent=49 // loop_footer
          %s1013 = sadd.s32 1, %s1009
        $region56: #{reverse} parent=49 // loop_footer_branch
          %1008 = sbr.rel target = $region52
        $region57: #{reverse} parent=49 // loop_exit
          _
      $region50: #{reverse} parent=41 // pred_fallthru
        _
    $region42: #{reverse} parent=1 // pred_fallthru
      _
    %1228 = vnop

// kernel: _lambda_.38
$region0: #{_lambda_.38}
  #allocation0 [shape = 'u32[]', space=smem, size = 0x4, offset = 0x4, fixed_abs, tag = 'smem constant byte address 0x4 - core index']
  #allocation1 [shape = 'u32[72,128]{1,0:T(1,128)}', space=vmem, size = 0x9000, scoped, tag = 'internal scratch']
  %s0 = inlined_call_operand.vmem [shape: bf16[2,32,16], index: 0, kind: input, shape index: {}]
  %s1 = inlined_call_operand.vmem [shape: bf16[2,16,96], index: 1, kind: input, shape index: {}]
  %s2 = inlined_call_operand.vmem [shape: f32[2,1,96], index: 2, kind: input, shape index: {}]
  %s3 = inlined_call_operand.vmem [shape: f32[2,32,96], index: 3, kind: output, shape index: {}]
  %s4 = sld [smem:[#allocation0]]
  $region45: #{_lambda_.38} parent=0
    _
  %s6 = ssub.s32 1, %s4
  %s7 = scalar_select 0, %s6, %s4
  loop: start=0, step=1, limit=4
  $region2: #{_lambda_.38} parent=0 // loop_pre_header
    _
  $region3: #{_lambda_.38} parent=0 // loop_header
    %s9 = sphi 0, %s13
    %p10 = scmp.ge.s32.totalorder %s9, 4
    %s16 = sphi 0, %s28
    %s17 = sphi 0, %s24
    %s18 = sphi 0, %s16
    %s19 = sphi 0, %s17
    %s20 = sphi 0, %s18
    %s21 = sphi 0, %s19
    %s33 = sphi 0, %s35
    %s36 = sphi 0, %s33
    %s37 = sphi 0, %s36
    %s53 = sphi 0, %s37
    %s59 = sphi 0, %s61
    %s62 = sphi 0, %s59
    %s63 = sphi 0, %s62
    %s79 = sphi 0, %s63
    %s85 = sphi 0, %s87
    %s88 = sphi 0, %s85
    %s89 = sphi 0, %s88
    %s105 = sphi 0, %s89
    %s113 = sphi 0, %s115
    %s116 = sphi 0, %s113
    %s117 = sphi 0, %s116
    %s133 = sphi 0, %s117
  $region4: #{_lambda_.38} parent=0 // loop_header_branch
    %12 = sbr.rel (%p10) target = $region8
  $region5: #{_lambda_.38} parent=0 // loop_body
    %s14 = ssub.s32 %s9, 1
    %s15 = ssub.s32 %s9, 2
    %s22 = sadd.s32 1, %s17
    %p23 = scmp.ge.s32.totalorder %s22, 1
    %s24 = scalar_select %p23, 0, %s22
    %s25 = sadd.s32 1, %s16
    %s26 = scalar_select %p23, %s25, %s16
    %p27 = scmp.ge.s32.totalorder %s26, 2
    %s28 = scalar_select %p27, 0, %s26
    %s29 = ssub.s32 %s16, %s28
    %s30 = ssub.s32 %s17, %s24
    %s31 = sor.u32 %s29, %s30
    %p32 = scmp.eq.s32.totalorder %s31, 0
    %s34 = sadd.s32 %s33, 1
    %s35 = scalar_select %p32, %s33, %s34
    %p38 = pneg %p32
    %p39 = scmp.eq.s32.totalorder %s9, 1
    %p40 = por %p38, %p39
    %p41 = scmp.ne.s32.totalorder %s33, %s36
    %p42 = scmp.eq.s32.totalorder %s9, 0
    %p43 = por %p41, %p42
    %p44 = scmp.ne.s32.totalorder %s33, %s36
    %p45 = scmp.eq.s32.totalorder %s14, 1
    %p46 = por %p44, %p45
    %p47 = scmp.ne.s32.totalorder %s36, %s37
    %p48 = scmp.eq.s32.totalorder %s14, 0
    %p49 = por %p47, %p48
    %p50 = scmp.ne.s32.totalorder %s36, %s37
    %p51 = scmp.eq.s32.totalorder %s15, 1
    %p52 = por %p50, %p51
    %p54 = scmp.ne.s32.totalorder %s37, %s53
    %p55 = scmp.eq.s32.totalorder %s15, 0
    %p56 = por %p54, %p55
    %s57 = ssub.s32 %s16, %s28
    %p58 = scmp.eq.s32.totalorder %s57, 0
    %s60 = sadd.s32 %s59, 1
    %s61 = scalar_select %p58, %s59, %s60
    %p64 = pneg %p58
    %p65 = scmp.eq.s32.totalorder %s9, 1
    %p66 = por %p64, %p65
    %p67 = scmp.ne.s32.totalorder %s59, %s62
    %p68 = scmp.eq.s32.totalorder %s9, 0
    %p69 = por %p67, %p68
    %p70 = scmp.ne.s32.totalorder %s59, %s62
    %p71 = scmp.eq.s32.totalorder %s14, 1
    %p72 = por %p70, %p71
    %p73 = scmp.ne.s32.totalorder %s62, %s63
    %p74 = scmp.eq.s32.totalorder %s14, 0
    %p75 = por %p73, %p74
    %p76 = scmp.ne.s32.totalorder %s62, %s63
    %p77 = scmp.eq.s32.totalorder %s15, 1
    %p78 = por %p76, %p77
    %p80 = scmp.ne.s32.totalorder %s63, %s79
    %p81 = scmp.eq.s32.totalorder %s15, 0
    %p82 = por %p80, %p81
    %s83 = ssub.s32 %s16, %s28
    %p84 = scmp.eq.s32.totalorder %s83, 0
    %s86 = sadd.s32 %s85, 1
    %s87 = scalar_select %p84, %s85, %s86
    %p90 = pneg %p84
    %p91 = scmp.eq.s32.totalorder %s9, 1
    %p92 = por %p90, %p91
    %p93 = scmp.ne.s32.totalorder %s85, %s88
    %p94 = scmp.eq.s32.totalorder %s9, 0
    %p95 = por %p93, %p94
    %p96 = scmp.ne.s32.totalorder %s85, %s88
    %p97 = scmp.eq.s32.totalorder %s14, 1
    %p98 = por %p96, %p97
    %p99 = scmp.ne.s32.totalorder %s88, %s89
    %p100 = scmp.eq.s32.totalorder %s14, 0
    %p101 = por %p99, %p100
    %p102 = scmp.ne.s32.totalorder %s88, %s89
    %p103 = scmp.eq.s32.totalorder %s15, 1
    %p104 = por %p102, %p103
    %p106 = scmp.ne.s32.totalorder %s89, %s105
    %p107 = scmp.eq.s32.totalorder %s15, 0
    %p108 = por %p106, %p107
    %s109 = ssub.s32 %s16, %s28
    %s110 = ssub.s32 %s17, %s24
    %s111 = sor.u32 %s109, %s110
    %p112 = scmp.eq.s32.totalorder %s111, 0
    %s114 = sadd.s32 %s113, 1
    %s115 = scalar_select %p112, %s113, %s114
    %p118 = pneg %p112
    %p119 = scmp.eq.s32.totalorder %s9, 1
    %p120 = por %p118, %p119
    %p121 = scmp.ne.s32.totalorder %s113, %s116
    %p122 = scmp.eq.s32.totalorder %s9, 0
    %p123 = por %p121, %p122
    %p124 = scmp.ne.s32.totalorder %s113, %s116
    %p125 = scmp.eq.s32.totalorder %s14, 1
    %p126 = por %p124, %p125
    %p127 = scmp.ne.s32.totalorder %s116, %s117
    %p128 = scmp.eq.s32.totalorder %s14, 0
    %p129 = por %p127, %p128
    %p130 = scmp.ne.s32.totalorder %s116, %s117
    %p131 = scmp.eq.s32.totalorder %s15, 1
    %p132 = por %p130, %p131
    %p134 = scmp.ne.s32.totalorder %s117, %s133
    %p135 = scmp.eq.s32.totalorder %s15, 0
    %p136 = por %p134, %p135
    %p137 = scmp.le.s32.totalorder 1, %s9
    %p138 = scmp.lt.s32.totalorder %s9, 3
    %p139 = pnand %p137, %p138
    %p140 = pneg %p139
    // Predicated region
    $region9: #{_lambda_.38} parent=5 // pred_check
      _
    $region10: #{_lambda_.38} parent=5 // pred_check_branch
      %142 = sbr.rel (%p139) target = $region12
    $region11: #{_lambda_.38} parent=5 // pred_region
      %s143 = ssub.s32 %s9, 1
    $region12: #{_lambda_.38} parent=5 // pred_fallthru
      _
    %p144 = scmp.lt.s32.totalorder %s9, 2
    // Predicated region
    $region13: #{_lambda_.38} parent=5 // pred_check
      %p145 = pneg %p144
    $region14: #{_lambda_.38} parent=5 // pred_check_branch
      %147 = sbr.rel (%p145) target = $region16
    $region15: #{_lambda_.38} parent=5 // pred_region
      // Predicated region
      $region17: #{_lambda_.38} parent=15 // pred_check
        %p148 = pneg %p43
      $region18: #{_lambda_.38} parent=15 // pred_check_branch
        %150 = sbr.rel (%p148) target = $region20
      $region19: #{_lambda_.38} parent=15 // pred_region
        %s151 = smul.u32 4, %s17
        %p152 = scmp.lt.s32.totalorder %s16, 1
        %s153 = scalar_select %p152, %s16, 1
        %p154 = scmp.lt.s32.totalorder %s151, 3
        %s155 = scalar_select %p154, %s151, 3
        %s156 = smul.addr %s153, 4
        %s157 = sadd.s32 %s155, %s156
        %s158 = smul.addr %s157, 4
        %s159 = scalar_lea.vmem %s0, %s158
        %s160 = smul.u32 4, %s17
      $region20: #{_lambda_.38} parent=15 // pred_fallthru
        _
      // Predicated region
      $region21: #{_lambda_.38} parent=15 // pred_check
        %p161 = pneg %p69
      $region22: #{_lambda_.38} parent=15 // pred_check_branch
        %163 = sbr.rel (%p161) target = $region24
      $region23: #{_lambda_.38} parent=15 // pred_region
        %p164 = scmp.lt.s32.totalorder %s16, 1
        %s165 = scalar_select %p164, %s16, 1
        %s166 = smul.addr %s165, 2
        %s167 = smul.addr %s166, 4
        %s168 = scalar_lea.vmem %s1, %s167
      $region24: #{_lambda_.38} parent=15 // pred_fallthru
        _
      // Predicated region
      $region25: #{_lambda_.38} parent=15 // pred_check
        %p169 = pneg %p95
      $region26: #{_lambda_.38} parent=15 // pred_check_branch
        %171 = sbr.rel (%p169) target = $region28
      $region27: #{_lambda_.38} parent=15 // pred_region
        %p172 = scmp.lt.s32.totalorder %s16, 1
        %s173 = scalar_select %p172, %s16, 1
        %s174 = scalar_lea.vmem %s2, %s173
      $region28: #{_lambda_.38} parent=15 // pred_fallthru
        _
    $region16: #{_lambda_.38} parent=5 // pred_fallthru
      _
    %p175 = scmp.le.s32.totalorder 1, %s9
    %p176 = scmp.lt.s32.totalorder %s9, 3
    %p177 = pnand %p175, %p176
    %p178 = pneg %p177
    // Predicated region
    $region29: #{_lambda_.38} parent=5 // pred_check
      _
    $region30: #{_lambda_.38} parent=5 // pred_check_branch
      %180 = sbr.rel (%p177) target = $region32
    $region31: #{_lambda_.38} parent=5 // pred_region
      %s181 = ssub.s32 %s9, 1
      %s182 = smul.u32 4, %s19
      %p183 = scmp.lt.s32.totalorder %s18, 1
      %s184 = scalar_select %p183, %s18, 1
      %p185 = scmp.lt.s32.totalorder %s182, 3
      %s186 = scalar_select %p185, %s182, 3
      %s187 = smul.addr %s184, 4
      %s188 = sadd.s32 %s186, %s187
      %s189 = smul.addr %s188, 4
      %s190 = scalar_lea.vmem %s0, %s189
      %p191 = pneg %p49
      %p192 = pneg %p46
      %p193 = scmp.lt.s32.totalorder %s18, 1
      %s194 = scalar_select %p193, %s18, 1
      %s195 = smul.addr %s194, 2
      %s196 = smul.addr %s195, 4
      %s197 = scalar_lea.vmem %s1, %s196
      %p198 = pneg %p75
      %p199 = pneg %p72
      %p200 = scmp.lt.s32.totalorder %s18, 1
      %s201 = scalar_select %p200, %s18, 1
      %s202 = scalar_lea.vmem %s2, %s201
      %p203 = pneg %p101
      %p204 = pneg %p98
      %p205 = pneg %p129
      %p206 = pneg %p126
      %s207 = smul.u32 4, %s19
      %p208 = scmp.lt.s32.totalorder %s18, 1
      %s209 = scalar_select %p208, %s18, 1
      %p210 = scmp.lt.s32.totalorder %s207, 3
      %s211 = scalar_select %p210, %s207, 3
      %s212 = smul.addr %s209, 4
      %s213 = sadd.s32 %s211, %s212
      %s214 = smul.addr %s213, 8
      %s215 = scalar_lea.vmem %s3, %s214
      %s216 = smul.u32 4, %s19
      %p217 = scmp.lt.s32.totalorder %s18, 1
      %s218 = scalar_select %p217, %s18, 1
      %p219 = scmp.lt.s32.totalorder %s216, 3
      %s220 = scalar_select %p219, %s216, 3
      %s221 = smul.addr %s218, 4
      %s222 = sadd.s32 %s220, %s221
      %s223 = smul.addr %s222, 4
      %s224 = scalar_lea.vmem %s0, %s223
      %s225 = smul.u32 4, %s19
      %p226 = scmp.lt.s32.totalorder %s18, 1
      %s227 = scalar_select %p226, %s18, 1
      %s228 = smul.addr %s227, 2
      %s229 = smul.addr %s228, 4
      %s230 = scalar_lea.vmem %s1, %s229
      %p231 = scmp.lt.s32.totalorder %s18, 1
      %s232 = scalar_select %p231, %s18, 1
      %s233 = scalar_lea.vmem %s2, %s232
      %s234 = smul.u32 4, %s19
      %p235 = scmp.lt.s32.totalorder %s18, 1
      %s236 = scalar_select %p235, %s18, 1
      %p237 = scmp.lt.s32.totalorder %s234, 3
      %s238 = scalar_select %p237, %s234, 3
      %s239 = smul.addr %s236, 4
      %s240 = sadd.s32 %s238, %s239
      %s241 = smul.addr %s240, 8
      %s242 = scalar_lea.vmem %s3, %s241
      %s243 = smul.u32 4, %s19
      %v245 = vld [vmem:[%s224] sm:$0xf]
      %v246 = vld [vmem:[%s224 + $0x4] sm:$0xf]
      %v247 = vld [vmem:[%s224 + $0x8] sm:$0xf]
      %v248 = vld [vmem:[%s224 + $0xc] sm:$0xf]
      %v249 = vld [vmem:[%s230] sm:$0xf]
      %v250 = vld [vmem:[%s230 + $0x4] sm:$0xf]
      %v251 = vld [vmem:[%s233] sm:$0x1]
      %v253 = vperm.slane %v251, 0
      %v259 = vunpack.c.l.b16 %v245
      %v260 = vunpack.c.l.b16 %v246
      %v261 = vunpack.c.l.b16 %v247
      %v262 = vunpack.c.l.b16 %v248
      %v263 = vpack.c.b16 %v260, %v259
      %v264 = vpack.c.b16 %v262, %v261
      %v267 = vunpack.c.l.b16 %v249
      %v268 = vunpack.c.l.b16 %v250
      %v269 = vpack.c.b16 %v268, %v267
      %vm271 = vcmask 130048
      %v273 = vsel %vm271, %v263, 0
      %v276 = vsel %vm271, %v264, 0
      %278 = vmatpush.bf16.msra.mxu0 0
      %279 = vmatpush.bf16.msra.mxu0 0
      %280 = vmatpush.bf16.msra.mxu0 0
      %281 = vmatpush.bf16.msra.mxu0 0
      %282 = vmatpush.bf16.msra.mxu0 0
      %283 = vmatpush.bf16.msra.mxu0 0
      %284 = vmatpush.bf16.msra.mxu0 0
      %285 = vmatpush.bf16.msra.mxu0 %v269
      %286 = vmatmul.bf16.gmra.mxu0 %v273
      %v287 = vpop.f32.mrf.mxu0
      %v288 = vadd.f32 %v253, %v287
      %v289 = vpop.f32.mrf.mxu0
      %v290 = vadd.f32 %v253, %v289
      %291 = vmatmul.bf16.gmra.mxu0 %v276
      %v292 = vpop.f32.mrf.mxu0
      %v293 = vadd.f32 %v253, %v292
      %v294 = vpop.f32.mrf.mxu0
      %v295 = vadd.f32 %v253, %v294
      %296 = vdwg.mxu0
      %vm297 = vcmask 785408
      %298 = vst.msk [vmem:[%s242] sm:$0xff] %vm297, %v288
      %299 = vst.msk [vmem:[%s242 + $0x8] sm:$0xff] %vm297, %v290
      %300 = vst.msk [vmem:[%s242 + $0x10] sm:$0xff] %vm297, %v293
      %301 = vst.msk [vmem:[%s242 + $0x18] sm:$0xff] %vm297, %v295
      %s302 = smul.u32 4, %s19
      %p303 = scmp.lt.s32.totalorder %s18, 1
      %s304 = scalar_select %p303, %s18, 1
      %p305 = scmp.lt.s32.totalorder %s302, 3
      %s306 = scalar_select %p305, %s302, 3
      %s307 = smul.addr %s304, 4
      %s308 = sadd.s32 %s306, %s307
      %s309 = smul.addr %s308, 8
      %s310 = scalar_lea.vmem %s3, %s309
      // Predicated region
      $region33: #{_lambda_.38} parent=31 // pred_check
        %p311 = pneg %p126
      $region34: #{_lambda_.38} parent=31 // pred_check_branch
        %313 = sbr.rel (%p311) target = $region36
      $region35: #{_lambda_.38} parent=31 // pred_region
        %s314 = smul.u32 4, %s19
      $region36: #{_lambda_.38} parent=31 // pred_fallthru
        _
    $region32: #{_lambda_.38} parent=5 // pred_fallthru
      _
    %p315 = scmp.le.s32.totalorder 2, %s9
    // Predicated region
    $region37: #{_lambda_.38} parent=5 // pred_check
      %p316 = pneg %p315
    $region38: #{_lambda_.38} parent=5 // pred_check_branch
      %318 = sbr.rel (%p316) target = $region40
    $region39: #{_lambda_.38} parent=5 // pred_region
      %s319 = ssub.s32 %s9, 2
      // Predicated region
      $region41: #{_lambda_.38} parent=39 // pred_check
        %p320 = pneg %p132
      $region42: #{_lambda_.38} parent=39 // pred_check_branch
        %322 = sbr.rel (%p320) target = $region44
      $region43: #{_lambda_.38} parent=39 // pred_region
        %s323 = smul.u32 4, %s21
        %p324 = scmp.lt.s32.totalorder %s20, 1
        %s325 = scalar_select %p324, %s20, 1
        %p326 = scmp.lt.s32.totalorder %s323, 3
        %s327 = scalar_select %p326, %s323, 3
        %s328 = smul.addr %s325, 4
        %s329 = sadd.s32 %s327, %s328
        %s330 = smul.addr %s329, 8
        %s331 = scalar_lea.vmem %s3, %s330
      $region44: #{_lambda_.38} parent=39 // pred_fallthru
        _
    $region40: #{_lambda_.38} parent=5 // pred_fallthru
      _
  $region6: #{_lambda_.38} parent=0 // loop_footer
    %s13 = sadd.s32 1, %s9
  $region7: #{_lambda_.38} parent=0 // loop_footer_branch
    %8 = sbr.rel target = $region3
  $region8: #{_lambda_.38} parent=0 // loop_exit
    _

// kernel: _lambda_.40
$region0: #{_lambda_.40}
  #allocation0 [shape = 'u32[]', space=smem, size = 0x4, offset = 0x4, fixed_abs, tag = 'smem constant byte address 0x4 - core index']
  #allocation1 [shape = 'u32[72,128]{1,0:T(1,128)}', space=vmem, size = 0x9000, scoped, tag = 'internal scratch']
  %s0 = inlined_call_operand.vmem [shape: bf16[32,32], index: 0, kind: input, shape index: {}]
  %s1 = inlined_call_operand.vmem [shape: bf16[32,16], index: 1, kind: input, shape index: {}]
  %s2 = inlined_call_operand.vmem [shape: f32[1,16], index: 2, kind: input, shape index: {}]
  %s3 = inlined_call_operand.vmem [shape: bf16[16,16], index: 3, kind: input, shape index: {}]
  %s4 = inlined_call_operand.vmem [shape: f32[1,16], index: 4, kind: input, shape index: {}]
  %s5 = inlined_call_operand.vmem [shape: bf16[16,8], index: 5, kind: input, shape index: {}]
  %s6 = inlined_call_operand.vmem [shape: f32[1,8], index: 6, kind: input, shape index: {}]
  %s7 = inlined_call_operand.vmem [shape: f32[32,8], index: 7, kind: output, shape index: {}]
  %s8 = sld [smem:[#allocation0]]
  $region38: #{_lambda_.40} parent=0
    _
  %s10 = ssub.s32 1, %s8
  %s11 = scalar_select 0, %s10, %s8
  // Predicated region
  $region2: #{_lambda_.40} parent=0 // pred_check
    _
  $region3: #{_lambda_.40} parent=0 // pred_check_branch
    %13 = sbr.rel (0) target = $region5
  $region4: #{_lambda_.40} parent=0 // pred_region
    _
  $region5: #{_lambda_.40} parent=0 // pred_fallthru
    _
  // Predicated region
  $region6: #{_lambda_.40} parent=0 // pred_check
    _
  $region7: #{_lambda_.40} parent=0 // pred_check_branch
    %15 = sbr.rel (0) target = $region9
  $region8: #{_lambda_.40} parent=0 // pred_region
    _
  $region9: #{_lambda_.40} parent=0 // pred_fallthru
    _
  // Predicated region
  $region10: #{_lambda_.40} parent=0 // pred_check
    _
  $region11: #{_lambda_.40} parent=0 // pred_check_branch
    %17 = sbr.rel (0) target = $region13
  $region12: #{_lambda_.40} parent=0 // pred_region
    _
  $region13: #{_lambda_.40} parent=0 // pred_fallthru
    _
  // Predicated region
  $region14: #{_lambda_.40} parent=0 // pred_check
    _
  $region15: #{_lambda_.40} parent=0 // pred_check_branch
    %19 = sbr.rel (0) target = $region17
  $region16: #{_lambda_.40} parent=0 // pred_region
    _
  $region17: #{_lambda_.40} parent=0 // pred_fallthru
    _
  // Predicated region
  $region18: #{_lambda_.40} parent=0 // pred_check
    _
  $region19: #{_lambda_.40} parent=0 // pred_check_branch
    %21 = sbr.rel (0) target = $region21
  $region20: #{_lambda_.40} parent=0 // pred_region
    _
  $region21: #{_lambda_.40} parent=0 // pred_fallthru
    _
  // Predicated region
  $region22: #{_lambda_.40} parent=0 // pred_check
    _
  $region23: #{_lambda_.40} parent=0 // pred_check_branch
    %23 = sbr.rel (0) target = $region25
  $region24: #{_lambda_.40} parent=0 // pred_region
    _
  $region25: #{_lambda_.40} parent=0 // pred_fallthru
    _
  // Predicated region
  $region26: #{_lambda_.40} parent=0 // pred_check
    _
  $region27: #{_lambda_.40} parent=0 // pred_check_branch
    %25 = sbr.rel (0) target = $region29
  $region28: #{_lambda_.40} parent=0 // pred_region
    _
  $region29: #{_lambda_.40} parent=0 // pred_fallthru
    _
  %v27 = vld [vmem:[%s0] sm:$0xf]
  %v28 = vld [vmem:[%s0 + $0x4] sm:$0xf]
  %v29 = vld [vmem:[%s0 + $0x8] sm:$0xf]
  %v30 = vld [vmem:[%s0 + $0xc] sm:$0xf]
  %v31 = vld [vmem:[%s1] sm:$0xf]
  %v32 = vld [vmem:[%s1 + $0x4] sm:$0xf]
  %v33 = vld [vmem:[%s1 + $0x8] sm:$0xf]
  %v34 = vld [vmem:[%s1 + $0xc] sm:$0xf]
  %v35 = vld [vmem:[%s2] sm:$0x1]
  %v37 = vperm.slane %v35, 0
  %v43 = vunpack.c.l.b16 %v27
  %v44 = vunpack.c.l.b16 %v28
  %v45 = vunpack.c.l.b16 %v29
  %v46 = vunpack.c.l.b16 %v30
  %v47 = vpack.c.b16 %v44, %v43
  %v48 = vpack.c.b16 %v46, %v45
  %v53 = vunpack.c.l.b16 %v31
  %v54 = vunpack.c.l.b16 %v32
  %v55 = vunpack.c.l.b16 %v33
  %v56 = vunpack.c.l.b16 %v34
  %v57 = vpack.c.b16 %v54, %v53
  %v58 = vpack.c.b16 %v56, %v55
  %vm61 = vcmask 261120
  %v63 = vsel %vm61, %v47, 0
  %v66 = vsel %vm61, %v48, 0
  %68 = vmatpush.bf16.msra.mxu0 0
  %69 = vmatpush.bf16.msra.mxu0 0
  %70 = vmatpush.bf16.msra.mxu0 0
  %71 = vmatpush.bf16.msra.mxu0 0
  %72 = vmatpush.bf16.msra.mxu0 0
  %73 = vmatpush.bf16.msra.mxu0 0
  %74 = vmatpush.bf16.msra.mxu0 %v58
  %75 = vmatpush.bf16.msra.mxu0 %v57
  %76 = vmatmul.bf16.gmra.mxu0 %v63
  %v77 = vpop.f32.mrf.mxu0
  %v78 = vadd.f32 %v37, %v77
  %v79 = vpop.f32.mrf.mxu0
  %v80 = vadd.f32 %v37, %v79
  %81 = vmatmul.bf16.gmra.mxu0 %v66
  %v82 = vpop.f32.mrf.mxu0
  %v83 = vadd.f32 %v37, %v82
  %v84 = vpop.f32.mrf.mxu0
  %v85 = vadd.f32 %v37, %v84
  %86 = vdwg.mxu0
  %vm87 = vcmp.ge.f32.partialorder %v78, 0.0
  %vm88 = vcmp.ge.f32.partialorder %v80, 0.0
  %vm89 = vcmp.ge.f32.partialorder %v83, 0.0
  %vm90 = vcmp.ge.f32.partialorder %v85, 0.0
  %v91 = vmul.f32 %v78, 0.01
  %v92 = vmul.f32 %v80, 0.01
  %v93 = vmul.f32 %v83, 0.01
  %v94 = vmul.f32 %v85, 0.01
  %v95 = vsel %vm87, %v78, %v91
  %v96 = vsel %vm88, %v80, %v92
  %v97 = vsel %vm89, %v83, %v93
  %v98 = vsel %vm90, %v85, %v94
  %v99 = vpack.c.bf16 %v96, %v95
  %v100 = vpack.c.bf16 %v98, %v97
  %v101 = vld [vmem:[%s3] sm:$0xf]
  %v102 = vld [vmem:[%s3 + $0x4] sm:$0xf]
  %v103 = vld [vmem:[%s4] sm:$0x1]
  %v105 = vperm.slane %v103, 0
  %v109 = vunpack.c.l.b16 %v101
  %v110 = vunpack.c.l.b16 %v102
  %v111 = vpack.c.b16 %v110, %v109
  %vm113 = vcmask 130048
  %v115 = vsel %vm113, %v99, 0
  %v118 = vsel %vm113, %v100, 0
  %120 = vmatpush.bf16.msra.mxu0 0
  %121 = vmatpush.bf16.msra.mxu0 0
  %122 = vmatpush.bf16.msra.mxu0 0
  %123 = vmatpush.bf16.msra.mxu0 0
  %124 = vmatpush.bf16.msra.mxu0 0
  %125 = vmatpush.bf16.msra.mxu0 0
  %126 = vmatpush.bf16.msra.mxu0 0
  %127 = vmatpush.bf16.msra.mxu0 %v111
  %128 = vmatmul.bf16.gmra.mxu0 %v115
  %v129 = vpop.f32.mrf.mxu0
  %v130 = vadd.f32 %v105, %v129
  %v131 = vpop.f32.mrf.mxu0
  %v132 = vadd.f32 %v105, %v131
  %133 = vmatmul.bf16.gmra.mxu0 %v118
  %v134 = vpop.f32.mrf.mxu0
  %v135 = vadd.f32 %v105, %v134
  %v136 = vpop.f32.mrf.mxu0
  %v137 = vadd.f32 %v105, %v136
  %138 = vdwg.mxu0
  %v139 = vpack.c.bf16 %v132, %v130
  %v140 = vpack.c.bf16 %v137, %v135
  %v141 = vld [vmem:[%s5] sm:$0xf]
  %v142 = vld [vmem:[%s5 + $0x4] sm:$0xf]
  %v143 = vld [vmem:[%s6] sm:$0x1]
  %v145 = vperm.slane %v143, 0
  %v149 = vunpack.c.l.b16 %v141
  %v150 = vunpack.c.l.b16 %v142
  %v151 = vpack.c.b16 %v150, %v149
  %v154 = vsel %vm113, %v139, 0
  %v157 = vsel %vm113, %v140, 0
  %159 = vmatpush.bf16.msra.mxu0 0
  %160 = vmatpush.bf16.msra.mxu0 0
  %161 = vmatpush.bf16.msra.mxu0 0
  %162 = vmatpush.bf16.msra.mxu0 0
  %163 = vmatpush.bf16.msra.mxu0 0
  %164 = vmatpush.bf16.msra.mxu0 0
  %165 = vmatpush.bf16.msra.mxu0 0
  %166 = vmatpush.bf16.msra.mxu0 %v151
  %167 = vmatmul.bf16.gmra.mxu0 %v154
  %v168 = vpop.f32.mrf.mxu0
  %v169 = vadd.f32 %v145, %v168
  %v170 = vpop.f32.mrf.mxu0
  %v171 = vadd.f32 %v145, %v170
  %172 = vmatmul.bf16.gmra.mxu0 %v157
  %v173 = vpop.f32.mrf.mxu0
  %v174 = vadd.f32 %v145, %v173
  %v175 = vpop.f32.mrf.mxu0
  %v176 = vadd.f32 %v145, %v175
  %177 = vdwg.mxu0
  %vm178 = vcmp.ge.f32.partialorder %v169, 0.0
  %vm179 = vcmp.ge.f32.partialorder %v171, 0.0
  %vm180 = vcmp.ge.f32.partialorder %v174, 0.0
  %vm181 = vcmp.ge.f32.partialorder %v176, 0.0
  %v182 = vmul.f32 %v169, 0.01
  %v183 = vmul.f32 %v171, 0.01
  %v184 = vmul.f32 %v174, 0.01
  %v185 = vmul.f32 %v176, 0.01
  %v186 = vsel %vm178, %v169, %v182
  %v187 = vsel %vm179, %v171, %v183
  %v188 = vsel %vm180, %v174, %v184
  %v189 = vsel %vm181, %v176, %v185
  %vm190 = vcmask 64512
  %191 = vst.msk [vmem:[%s7] sm:$0xff] %vm190, %v186
  %192 = vst.msk [vmem:[%s7 + $0x8] sm:$0xff] %vm190, %v187
  %193 = vst.msk [vmem:[%s7 + $0x10] sm:$0xff] %vm190, %v188
  %194 = vst.msk [vmem:[%s7 + $0x18] sm:$0xff] %vm190, %v189
  // Predicated region
  $region30: #{_lambda_.40} parent=0 // pred_check
    _
  $region31: #{_lambda_.40} parent=0 // pred_check_branch
    %196 = sbr.rel (0) target = $region33
  $region32: #{_lambda_.40} parent=0 // pred_region
    _
  $region33: #{_lambda_.40} parent=0 // pred_fallthru
    _
  // Predicated region
  $region34: #{_lambda_.40} parent=0 // pred_check
    _
  $region35: #{_lambda_.40} parent=0 // pred_check_branch
    %198 = sbr.rel (0) target = $region37
  $region36: #{_lambda_.40} parent=0 // pred_region
    _
  $region37: #{_lambda_.40} parent=0 // pred_fallthru
    _

// kernel: _lambda_.41
$region0: #{_lambda_.41}
  #allocation0 [shape = 'u32[]', space=smem, size = 0x4, offset = 0x4, fixed_abs, tag = 'smem constant byte address 0x4 - core index']
  #allocation1 [shape = 'u32[72,128]{1,0:T(1,128)}', space=vmem, size = 0x9000, scoped, tag = 'internal scratch']
  %s0 = inlined_call_operand.vmem [shape: bf16[32,32], index: 0, kind: input, shape index: {}]
  %s1 = inlined_call_operand.vmem [shape: bf16[32,16], index: 1, kind: input, shape index: {}]
  %s2 = inlined_call_operand.vmem [shape: f32[1,16], index: 2, kind: input, shape index: {}]
  %s3 = inlined_call_operand.vmem [shape: bf16[16,16], index: 3, kind: input, shape index: {}]
  %s4 = inlined_call_operand.vmem [shape: f32[1,16], index: 4, kind: input, shape index: {}]
  %s5 = inlined_call_operand.vmem [shape: bf16[16,2], index: 5, kind: input, shape index: {}]
  %s6 = inlined_call_operand.vmem [shape: f32[1,2], index: 6, kind: input, shape index: {}]
  %s7 = inlined_call_operand.vmem [shape: f32[32,2], index: 7, kind: output, shape index: {}]
  %s8 = sld [smem:[#allocation0]]
  $region38: #{_lambda_.41} parent=0
    _
  %s10 = ssub.s32 1, %s8
  %s11 = scalar_select 0, %s10, %s8
  // Predicated region
  $region2: #{_lambda_.41} parent=0 // pred_check
    _
  $region3: #{_lambda_.41} parent=0 // pred_check_branch
    %13 = sbr.rel (0) target = $region5
  $region4: #{_lambda_.41} parent=0 // pred_region
    _
  $region5: #{_lambda_.41} parent=0 // pred_fallthru
    _
  // Predicated region
  $region6: #{_lambda_.41} parent=0 // pred_check
    _
  $region7: #{_lambda_.41} parent=0 // pred_check_branch
    %15 = sbr.rel (0) target = $region9
  $region8: #{_lambda_.41} parent=0 // pred_region
    _
  $region9: #{_lambda_.41} parent=0 // pred_fallthru
    _
  // Predicated region
  $region10: #{_lambda_.41} parent=0 // pred_check
    _
  $region11: #{_lambda_.41} parent=0 // pred_check_branch
    %17 = sbr.rel (0) target = $region13
  $region12: #{_lambda_.41} parent=0 // pred_region
    _
  $region13: #{_lambda_.41} parent=0 // pred_fallthru
    _
  // Predicated region
  $region14: #{_lambda_.41} parent=0 // pred_check
    _
  $region15: #{_lambda_.41} parent=0 // pred_check_branch
    %19 = sbr.rel (0) target = $region17
  $region16: #{_lambda_.41} parent=0 // pred_region
    _
  $region17: #{_lambda_.41} parent=0 // pred_fallthru
    _
  // Predicated region
  $region18: #{_lambda_.41} parent=0 // pred_check
    _
  $region19: #{_lambda_.41} parent=0 // pred_check_branch
    %21 = sbr.rel (0) target = $region21
  $region20: #{_lambda_.41} parent=0 // pred_region
    _
  $region21: #{_lambda_.41} parent=0 // pred_fallthru
    _
  // Predicated region
  $region22: #{_lambda_.41} parent=0 // pred_check
    _
  $region23: #{_lambda_.41} parent=0 // pred_check_branch
    %23 = sbr.rel (0) target = $region25
  $region24: #{_lambda_.41} parent=0 // pred_region
    _
  $region25: #{_lambda_.41} parent=0 // pred_fallthru
    _
  // Predicated region
  $region26: #{_lambda_.41} parent=0 // pred_check
    _
  $region27: #{_lambda_.41} parent=0 // pred_check_branch
    %25 = sbr.rel (0) target = $region29
  $region28: #{_lambda_.41} parent=0 // pred_region
    _
  $region29: #{_lambda_.41} parent=0 // pred_fallthru
    _
  %v27 = vld [vmem:[%s0] sm:$0xf]
  %v28 = vld [vmem:[%s0 + $0x4] sm:$0xf]
  %v29 = vld [vmem:[%s0 + $0x8] sm:$0xf]
  %v30 = vld [vmem:[%s0 + $0xc] sm:$0xf]
  %v31 = vld [vmem:[%s1] sm:$0xf]
  %v32 = vld [vmem:[%s1 + $0x4] sm:$0xf]
  %v33 = vld [vmem:[%s1 + $0x8] sm:$0xf]
  %v34 = vld [vmem:[%s1 + $0xc] sm:$0xf]
  %v35 = vld [vmem:[%s2] sm:$0x1]
  %v37 = vperm.slane %v35, 0
  %v43 = vunpack.c.l.b16 %v27
  %v44 = vunpack.c.l.b16 %v28
  %v45 = vunpack.c.l.b16 %v29
  %v46 = vunpack.c.l.b16 %v30
  %v47 = vpack.c.b16 %v44, %v43
  %v48 = vpack.c.b16 %v46, %v45
  %v53 = vunpack.c.l.b16 %v31
  %v54 = vunpack.c.l.b16 %v32
  %v55 = vunpack.c.l.b16 %v33
  %v56 = vunpack.c.l.b16 %v34
  %v57 = vpack.c.b16 %v54, %v53
  %v58 = vpack.c.b16 %v56, %v55
  %vm61 = vcmask 261120
  %v63 = vsel %vm61, %v47, 0
  %v66 = vsel %vm61, %v48, 0
  %68 = vmatpush.bf16.msra.mxu0 0
  %69 = vmatpush.bf16.msra.mxu0 0
  %70 = vmatpush.bf16.msra.mxu0 0
  %71 = vmatpush.bf16.msra.mxu0 0
  %72 = vmatpush.bf16.msra.mxu0 0
  %73 = vmatpush.bf16.msra.mxu0 0
  %74 = vmatpush.bf16.msra.mxu0 %v58
  %75 = vmatpush.bf16.msra.mxu0 %v57
  %76 = vmatmul.bf16.gmra.mxu0 %v63
  %v77 = vpop.f32.mrf.mxu0
  %v78 = vadd.f32 %v37, %v77
  %v79 = vpop.f32.mrf.mxu0
  %v80 = vadd.f32 %v37, %v79
  %81 = vmatmul.bf16.gmra.mxu0 %v66
  %v82 = vpop.f32.mrf.mxu0
  %v83 = vadd.f32 %v37, %v82
  %v84 = vpop.f32.mrf.mxu0
  %v85 = vadd.f32 %v37, %v84
  %86 = vdwg.mxu0
  %vm87 = vcmp.ge.f32.partialorder %v78, 0.0
  %vm88 = vcmp.ge.f32.partialorder %v80, 0.0
  %vm89 = vcmp.ge.f32.partialorder %v83, 0.0
  %vm90 = vcmp.ge.f32.partialorder %v85, 0.0
  %v91 = vmul.f32 %v78, 0.01
  %v92 = vmul.f32 %v80, 0.01
  %v93 = vmul.f32 %v83, 0.01
  %v94 = vmul.f32 %v85, 0.01
  %v95 = vsel %vm87, %v78, %v91
  %v96 = vsel %vm88, %v80, %v92
  %v97 = vsel %vm89, %v83, %v93
  %v98 = vsel %vm90, %v85, %v94
  %v99 = vpack.c.bf16 %v96, %v95
  %v100 = vpack.c.bf16 %v98, %v97
  %v101 = vld [vmem:[%s3] sm:$0xf]
  %v102 = vld [vmem:[%s3 + $0x4] sm:$0xf]
  %v103 = vld [vmem:[%s4] sm:$0x1]
  %v105 = vperm.slane %v103, 0
  %v109 = vunpack.c.l.b16 %v101
  %v110 = vunpack.c.l.b16 %v102
  %v111 = vpack.c.b16 %v110, %v109
  %vm113 = vcmask 130048
  %v115 = vsel %vm113, %v99, 0
  %v118 = vsel %vm113, %v100, 0
  %120 = vmatpush.bf16.msra.mxu0 0
  %121 = vmatpush.bf16.msra.mxu0 0
  %122 = vmatpush.bf16.msra.mxu0 0
  %123 = vmatpush.bf16.msra.mxu0 0
  %124 = vmatpush.bf16.msra.mxu0 0
  %125 = vmatpush.bf16.msra.mxu0 0
  %126 = vmatpush.bf16.msra.mxu0 0
  %127 = vmatpush.bf16.msra.mxu0 %v111
  %128 = vmatmul.bf16.gmra.mxu0 %v115
  %v129 = vpop.f32.mrf.mxu0
  %v130 = vadd.f32 %v105, %v129
  %v131 = vpop.f32.mrf.mxu0
  %v132 = vadd.f32 %v105, %v131
  %133 = vmatmul.bf16.gmra.mxu0 %v118
  %v134 = vpop.f32.mrf.mxu0
  %v135 = vadd.f32 %v105, %v134
  %v136 = vpop.f32.mrf.mxu0
  %v137 = vadd.f32 %v105, %v136
  %138 = vdwg.mxu0
  %v139 = vpack.c.bf16 %v132, %v130
  %v140 = vpack.c.bf16 %v137, %v135
  %v141 = vld [vmem:[%s5] sm:$0xf]
  %v142 = vld [vmem:[%s5 + $0x4] sm:$0xf]
  %v143 = vld [vmem:[%s6] sm:$0x1]
  %v145 = vperm.slane %v143, 0
  %v149 = vunpack.c.l.b16 %v141
  %v150 = vunpack.c.l.b16 %v142
  %v151 = vpack.c.b16 %v150, %v149
  %v154 = vsel %vm113, %v139, 0
  %v157 = vsel %vm113, %v140, 0
  %159 = vmatpush.bf16.msra.mxu0 0
  %160 = vmatpush.bf16.msra.mxu0 0
  %161 = vmatpush.bf16.msra.mxu0 0
  %162 = vmatpush.bf16.msra.mxu0 0
  %163 = vmatpush.bf16.msra.mxu0 0
  %164 = vmatpush.bf16.msra.mxu0 0
  %165 = vmatpush.bf16.msra.mxu0 0
  %166 = vmatpush.bf16.msra.mxu0 %v151
  %167 = vmatmul.bf16.gmra.mxu0 %v154
  %v168 = vpop.f32.mrf.mxu0
  %v169 = vadd.f32 %v145, %v168
  %v170 = vpop.f32.mrf.mxu0
  %v171 = vadd.f32 %v145, %v170
  %172 = vmatmul.bf16.gmra.mxu0 %v157
  %v173 = vpop.f32.mrf.mxu0
  %v174 = vadd.f32 %v145, %v173
  %v175 = vpop.f32.mrf.mxu0
  %v176 = vadd.f32 %v145, %v175
  %177 = vdwg.mxu0
  %vm178 = vcmp.ge.f32.partialorder %v169, 0.0
  %vm179 = vcmp.ge.f32.partialorder %v171, 0.0
  %vm180 = vcmp.ge.f32.partialorder %v174, 0.0
  %vm181 = vcmp.ge.f32.partialorder %v176, 0.0
  %v182 = vmul.f32 %v169, 0.01
  %v183 = vmul.f32 %v171, 0.01
  %v184 = vmul.f32 %v174, 0.01
  %v185 = vmul.f32 %v176, 0.01
  %v186 = vsel %vm178, %v169, %v182
  %v187 = vsel %vm179, %v171, %v183
  %v188 = vsel %vm180, %v174, %v184
  %v189 = vsel %vm181, %v176, %v185
  %vm190 = vcmask 15360
  %191 = vst.msk [vmem:[%s7] sm:$0xff] %vm190, %v186
  %192 = vst.msk [vmem:[%s7 + $0x8] sm:$0xff] %vm190, %v187
  %193 = vst.msk [vmem:[%s7 + $0x10] sm:$0xff] %vm190, %v188
  %194 = vst.msk [vmem:[%s7 + $0x18] sm:$0xff] %vm190, %v189
  // Predicated region
  $region30: #{_lambda_.41} parent=0 // pred_check
    _
  $region31: #{_lambda_.41} parent=0 // pred_check_branch
    %196 = sbr.rel (0) target = $region33
  $region32: #{_lambda_.41} parent=0 // pred_region
    _
  $region33: #{_lambda_.41} parent=0 // pred_fallthru
    _
  // Predicated region
  $region34: #{_lambda_.41} parent=0 // pred_check
    _
  $region35: #{_lambda_.41} parent=0 // pred_check_branch
    %198 = sbr.rel (0) target = $region37
  $region36: #{_lambda_.41} parent=0 // pred_region
    _
  $region37: #{_lambda_.41} parent=0 // pred_fallthru
    _

// kernel: _lambda_.39
$region0: #{_lambda_.39}
  #allocation0 [shape = 'u32[]', space=smem, size = 0x4, offset = 0x4, fixed_abs, tag = 'smem constant byte address 0x4 - core index']
  #allocation1 [shape = 'u32[72,128]{1,0:T(1,128)}', space=vmem, size = 0x9000, scoped, tag = 'internal scratch']
  #allocation2 [shape = 'f32[2,64]{1,0:T(2,128)}', space=vmem, size = 0x400, scoped, tag = 'scratch operand']
  %s0 = inlined_call_operand.vmem [shape: f32[16,2,64], index: 0, kind: input, shape index: {}]
  %s1 = inlined_call_operand.vmem [shape: f32[16,2,64], index: 1, kind: input, shape index: {}]
  %s2 = inlined_call_operand.vmem [shape: f32[16,2,64], index: 2, kind: input, shape index: {}]
  %s3 = inlined_call_operand.vmem [shape: f32[64,64], index: 3, kind: input, shape index: {}]
  %s4 = inlined_call_operand.vmem [shape: f32[64,64], index: 4, kind: input, shape index: {}]
  %s5 = inlined_call_operand.vmem [shape: f32[64,64], index: 5, kind: input, shape index: {}]
  %s6 = inlined_call_operand.vmem [shape: f32[1,64], index: 6, kind: input, shape index: {}]
  %s7 = inlined_call_operand.vmem [shape: f32[1,64], index: 7, kind: input, shape index: {}]
  %s8 = inlined_call_operand.vmem [shape: f32[1,64], index: 8, kind: input, shape index: {}]
  %s9 = inlined_call_operand.vmem [shape: f32[16,2,64], index: 9, kind: output, shape index: {}]
  %s10 = sld [smem:[#allocation0]]
  $region46: #{_lambda_.39} parent=0
    _
  %s12 = ssub.s32 1, %s10
  %s13 = scalar_select 0, %s12, %s10
  // Predicated region
  $region2: #{_lambda_.39} parent=0 // pred_check
    _
  $region3: #{_lambda_.39} parent=0 // pred_check_branch
    %15 = sbr.rel (0) target = $region5
  $region4: #{_lambda_.39} parent=0 // pred_region
    _
  $region5: #{_lambda_.39} parent=0 // pred_fallthru
    _
  // Predicated region
  $region6: #{_lambda_.39} parent=0 // pred_check
    _
  $region7: #{_lambda_.39} parent=0 // pred_check_branch
    %17 = sbr.rel (0) target = $region9
  $region8: #{_lambda_.39} parent=0 // pred_region
    _
  $region9: #{_lambda_.39} parent=0 // pred_fallthru
    _
  // Predicated region
  $region10: #{_lambda_.39} parent=0 // pred_check
    _
  $region11: #{_lambda_.39} parent=0 // pred_check_branch
    %19 = sbr.rel (0) target = $region13
  $region12: #{_lambda_.39} parent=0 // pred_region
    _
  $region13: #{_lambda_.39} parent=0 // pred_fallthru
    _
  // Predicated region
  $region14: #{_lambda_.39} parent=0 // pred_check
    _
  $region15: #{_lambda_.39} parent=0 // pred_check_branch
    %21 = sbr.rel (0) target = $region17
  $region16: #{_lambda_.39} parent=0 // pred_region
    _
  $region17: #{_lambda_.39} parent=0 // pred_fallthru
    _
  // Predicated region
  $region18: #{_lambda_.39} parent=0 // pred_check
    _
  $region19: #{_lambda_.39} parent=0 // pred_check_branch
    %23 = sbr.rel (0) target = $region21
  $region20: #{_lambda_.39} parent=0 // pred_region
    _
  $region21: #{_lambda_.39} parent=0 // pred_fallthru
    _
  // Predicated region
  $region22: #{_lambda_.39} parent=0 // pred_check
    _
  $region23: #{_lambda_.39} parent=0 // pred_check_branch
    %25 = sbr.rel (0) target = $region25
  $region24: #{_lambda_.39} parent=0 // pred_region
    _
  $region25: #{_lambda_.39} parent=0 // pred_fallthru
    _
  // Predicated region
  $region26: #{_lambda_.39} parent=0 // pred_check
    _
  $region27: #{_lambda_.39} parent=0 // pred_check_branch
    %27 = sbr.rel (0) target = $region29
  $region28: #{_lambda_.39} parent=0 // pred_region
    _
  $region29: #{_lambda_.39} parent=0 // pred_fallthru
    _
  // Predicated region
  $region30: #{_lambda_.39} parent=0 // pred_check
    _
  $region31: #{_lambda_.39} parent=0 // pred_check_branch
    %29 = sbr.rel (0) target = $region33
  $region32: #{_lambda_.39} parent=0 // pred_region
    _
  $region33: #{_lambda_.39} parent=0 // pred_fallthru
    _
  // Predicated region
  $region34: #{_lambda_.39} parent=0 // pred_check
    _
  $region35: #{_lambda_.39} parent=0 // pred_check_branch
    %31 = sbr.rel (0) target = $region37
  $region36: #{_lambda_.39} parent=0 // pred_region
    _
  $region37: #{_lambda_.39} parent=0 // pred_fallthru
    _
  %vm32 = vcmask 517120
  %33 = vst.msk [vmem:[#allocation2] sm:$0x3] %vm32, 0.0
  %v34 = vld [vmem:[%s3] sm:$0xff]
  %v35 = vld [vmem:[%s3 + $0x8] sm:$0xff]
  %v36 = vld [vmem:[%s3 + $0x10] sm:$0xff]
  %v37 = vld [vmem:[%s3 + $0x18] sm:$0xff]
  %v38 = vld [vmem:[%s3 + $0x20] sm:$0xff]
  %v39 = vld [vmem:[%s3 + $0x28] sm:$0xff]
  %v40 = vld [vmem:[%s3 + $0x30] sm:$0xff]
  %v41 = vld [vmem:[%s3 + $0x38] sm:$0xff]
  %v42 = vld [vmem:[%s4] sm:$0xff]
  %v43 = vld [vmem:[%s4 + $0x8] sm:$0xff]
  %v44 = vld [vmem:[%s4 + $0x10] sm:$0xff]
  %v45 = vld [vmem:[%s4 + $0x18] sm:$0xff]
  %v46 = vld [vmem:[%s4 + $0x20] sm:$0xff]
  %v47 = vld [vmem:[%s4 + $0x28] sm:$0xff]
  %v48 = vld [vmem:[%s4 + $0x30] sm:$0xff]
  %v49 = vld [vmem:[%s4 + $0x38] sm:$0xff]
  %v50 = vld [vmem:[%s5] sm:$0xff]
  %v51 = vld [vmem:[%s5 + $0x8] sm:$0xff]
  %v52 = vld [vmem:[%s5 + $0x10] sm:$0xff]
  %v53 = vld [vmem:[%s5 + $0x18] sm:$0xff]
  %v54 = vld [vmem:[%s5 + $0x20] sm:$0xff]
  %v55 = vld [vmem:[%s5 + $0x28] sm:$0xff]
  %v56 = vld [vmem:[%s5 + $0x30] sm:$0xff]
  %v57 = vld [vmem:[%s5 + $0x38] sm:$0xff]
  %v58 = vld [vmem:[%s6] sm:$0x1]
  %v59 = vld [vmem:[%s7] sm:$0x1]
  %v60 = vld [vmem:[%s8] sm:$0x1]
  %v61 = vld [vmem:[#allocation2] sm:$0x3]
  %v63 = vperm.slane %v58, 0
  %vm65 = vcmask 523264
  %v67 = vsel %vm65, %v61, 0
  %69 = vmatpush.msra.mxu0 0.0
  %70 = vmatpush.msra.mxu0 0.0
  %71 = vmatpush.msra.mxu0 0.0
  %72 = vmatpush.msra.mxu0 0.0
  %73 = vmatpush.msra.mxu0 0.0
  %74 = vmatpush.msra.mxu0 0.0
  %75 = vmatpush.msra.mxu0 0.0
  %76 = vmatpush.msra.mxu0 0.0
  %77 = vmatpush.msra.mxu0 %v41
  %78 = vmatpush.msra.mxu0 %v40
  %79 = vmatpush.msra.mxu0 %v39
  %80 = vmatpush.msra.mxu0 %v38
  %81 = vmatpush.msra.mxu0 %v37
  %82 = vmatpush.msra.mxu0 %v36
  %83 = vmatpush.msra.mxu0 %v35
  %84 = vmatpush.msra.mxu0 %v34
  %85 = vmatmul.f32.gmra.mxu0 %v67
  %v86 = vpop.f32.mrf.mxu0
  %v87 = vadd.f32 %v63, %v86
  %88 = vdwg.mxu0
  %v90 = vperm.slane %v59, 0
  %92 = vmatpush.msra.mxu0 0.0
  %93 = vmatpush.msra.mxu0 0.0
  %94 = vmatpush.msra.mxu0 0.0
  %95 = vmatpush.msra.mxu0 0.0
  %96 = vmatpush.msra.mxu0 0.0
  %97 = vmatpush.msra.mxu0 0.0
  %98 = vmatpush.msra.mxu0 0.0
  %99 = vmatpush.msra.mxu0 0.0
  %100 = vmatpush.msra.mxu0 %v49
  %101 = vmatpush.msra.mxu0 %v48
  %102 = vmatpush.msra.mxu0 %v47
  %103 = vmatpush.msra.mxu0 %v46
  %104 = vmatpush.msra.mxu0 %v45
  %105 = vmatpush.msra.mxu0 %v44
  %106 = vmatpush.msra.mxu0 %v43
  %107 = vmatpush.msra.mxu0 %v42
  %108 = vmatmul.f32.gmra.mxu0 %v67
  %v109 = vpop.f32.mrf.mxu0
  %v110 = vadd.f32 %v90, %v109
  %111 = vdwg.mxu0
  %v113 = vperm.slane %v60, 0
  %115 = vmatpush.msra.mxu0 0.0
  %116 = vmatpush.msra.mxu0 0.0
  %117 = vmatpush.msra.mxu0 0.0
  %118 = vmatpush.msra.mxu0 0.0
  %119 = vmatpush.msra.mxu0 0.0
  %120 = vmatpush.msra.mxu0 0.0
  %121 = vmatpush.msra.mxu0 0.0
  %122 = vmatpush.msra.mxu0 0.0
  %123 = vmatpush.msra.mxu0 %v57
  %124 = vmatpush.msra.mxu0 %v56
  %125 = vmatpush.msra.mxu0 %v55
  %126 = vmatpush.msra.mxu0 %v54
  %127 = vmatpush.msra.mxu0 %v53
  %128 = vmatpush.msra.mxu0 %v52
  %129 = vmatpush.msra.mxu0 %v51
  %130 = vmatpush.msra.mxu0 %v50
  %131 = vmatmul.f32.gmra.mxu0 %v67
  %v132 = vpop.f32.mrf.mxu0
  %v133 = vadd.f32 %v113, %v132
  %134 = vdwg.mxu0
  %v135 = vld [vmem:[%s0] sm:$0x3]
  %v136 = vadd.f32 %v135, %v87
  %v137 = vxor.u32 %v136, 2147483648
  %v138 = vmul.f32 %v137, 1.442695
  %v139 = vpow.pop %v138
  %v140 = vadd.f32 %v139, 1.0
  %v141 = vrcp.pop %v140
  %v142 = vmul.f32 %v140, %v141
  %v143 = vsub.f32 1.0, %v142
  %v144 = vmul.f32 %v141, %v143
  %v145 = vadd.f32 %v141, %v144
  %vm146 = vweird.f32 %v140
  %vm147 = vweird.f32 %v141
  %vm148 = vmor %vm146, %vm147
  %v149 = vsel %vm148, %v141, %v145
  %v150 = vand.u32 2147483647, %v140
  %vm151 = vcmp.eq.f32.partialorder %v150, 8.507059e+37
  %v152 = vand.u32 %v140, 2147483648
  %v153 = vor.u32 1.1754944e-38, %v152
  %v154 = vsel %vm151, %v153, %v149
  %v155 = vmul.f32 1.0, %v154
  %v156 = vld [vmem:[%s1] sm:$0x3]
  %v157 = vadd.f32 %v156, %v110
  %v158 = vxor.u32 %v157, 2147483648
  %v159 = vmul.f32 %v158, 1.442695
  %v160 = vpow.pop %v159
  %v161 = vadd.f32 %v160, 1.0
  %v162 = vrcp.pop %v161
  %v163 = vmul.f32 %v161, %v162
  %v164 = vsub.f32 1.0, %v163
  %v165 = vmul.f32 %v162, %v164
  %v166 = vadd.f32 %v162, %v165
  %vm167 = vweird.f32 %v161
  %vm168 = vweird.f32 %v162
  %vm169 = vmor %vm167, %vm168
  %v170 = vsel %vm169, %v162, %v166
  %v171 = vand.u32 2147483647, %v161
  %vm172 = vcmp.eq.f32.partialorder %v171, 8.507059e+37
  %v173 = vand.u32 %v161, 2147483648
  %v174 = vor.u32 1.1754944e-38, %v173
  %v175 = vsel %vm172, %v174, %v170
  %v176 = vmul.f32 1.0, %v175
  %v177 = vld [vmem:[%s2] sm:$0x3]
  %v178 = vmul.f32 %v155, %v133
  %v179 = vadd.f32 %v177, %v178
  %v180 = vtanh.pop %v179
  %v181 = vsub.f32 1.0, %v176
  %v182 = vmul.f32 %v181, %v180
  %v183 = vmul.f32 %v176, %v61
  %v184 = vadd.f32 %v182, %v183
  %185 = vst.msk [vmem:[#allocation2] sm:$0x3] %vm32, %v184
  %186 = vst.msk [vmem:[%s9] sm:$0x3] %vm32, %v184
  %v187 = vld [vmem:[#allocation2] sm:$0x3]
  %v189 = vsel %vm65, %v187, 0
  %191 = vmatpush.msra.mxu0 0.0
  %192 = vmatpush.msra.mxu0 0.0
  %193 = vmatpush.msra.mxu0 0.0
  %194 = vmatpush.msra.mxu0 0.0
  %195 = vmatpush.msra.mxu0 0.0
  %196 = vmatpush.msra.mxu0 0.0
  %197 = vmatpush.msra.mxu0 0.0
  %198 = vmatpush.msra.mxu0 0.0
  %199 = vmatpush.msra.mxu0 %v41
  %200 = vmatpush.msra.mxu0 %v40
  %201 = vmatpush.msra.mxu0 %v39
  %202 = vmatpush.msra.mxu0 %v38
  %203 = vmatpush.msra.mxu0 %v37
  %204 = vmatpush.msra.mxu0 %v36
  %205 = vmatpush.msra.mxu0 %v35
  %206 = vmatpush.msra.mxu0 %v34
  %207 = vmatmul.f32.gmra.mxu0 %v189
  %v208 = vpop.f32.mrf.mxu0
  %v209 = vadd.f32 %v63, %v208
  %210 = vdwg.mxu0
  %211 = vmatpush.msra.mxu0 0.0
  %212 = vmatpush.msra.mxu0 0.0
  %213 = vmatpush.msra.mxu0 0.0
  %214 = vmatpush.msra.mxu0 0.0
  %215 = vmatpush.msra.mxu0 0.0
  %216 = vmatpush.msra.mxu0 0.0
  %217 = vmatpush.msra.mxu0 0.0
  %218 = vmatpush.msra.mxu0 0.0
  %219 = vmatpush.msra.mxu0 %v49
  %220 = vmatpush.msra.mxu0 %v48
  %221 = vmatpush.msra.mxu0 %v47
  %222 = vmatpush.msra.mxu0 %v46
  %223 = vmatpush.msra.mxu0 %v45
  %224 = vmatpush.msra.mxu0 %v44
  %225 = vmatpush.msra.mxu0 %v43
  %226 = vmatpush.msra.mxu0 %v42
  %227 = vmatmul.f32.gmra.mxu0 %v189
  %v228 = vpop.f32.mrf.mxu0
  %v229 = vadd.f32 %v90, %v228
  %230 = vdwg.mxu0
  %231 = vmatpush.msra.mxu0 0.0
  %232 = vmatpush.msra.mxu0 0.0
  %233 = vmatpush.msra.mxu0 0.0
  %234 = vmatpush.msra.mxu0 0.0
  %235 = vmatpush.msra.mxu0 0.0
  %236 = vmatpush.msra.mxu0 0.0
  %237 = vmatpush.msra.mxu0 0.0
  %238 = vmatpush.msra.mxu0 0.0
  %239 = vmatpush.msra.mxu0 %v57
  %240 = vmatpush.msra.mxu0 %v56
  %241 = vmatpush.msra.mxu0 %v55
  %242 = vmatpush.msra.mxu0 %v54
  %243 = vmatpush.msra.mxu0 %v53
  %244 = vmatpush.msra.mxu0 %v52
  %245 = vmatpush.msra.mxu0 %v51
  %246 = vmatpush.msra.mxu0 %v50
  %247 = vmatmul.f32.gmra.mxu0 %v189
  %v248 = vpop.f32.mrf.mxu0
  %v249 = vadd.f32 %v113, %v248
  %250 = vdwg.mxu0
  %s251 = scalar_lea.vmem %s0, 2
  %v252 = vld [vmem:[%s251] sm:$0x3]
  %v253 = vadd.f32 %v252, %v209
  %v254 = vxor.u32 %v253, 2147483648
  %v255 = vmul.f32 %v254, 1.442695
  %v256 = vpow.pop %v255
  %v257 = vadd.f32 %v256, 1.0
  %v258 = vrcp.pop %v257
  %v259 = vmul.f32 %v257, %v258
  %v260 = vsub.f32 1.0, %v259
  %v261 = vmul.f32 %v258, %v260
  %v262 = vadd.f32 %v258, %v261
  %vm263 = vweird.f32 %v257
  %vm264 = vweird.f32 %v258
  %vm265 = vmor %vm263, %vm264
  %v266 = vsel %vm265, %v258, %v262
  %v267 = vand.u32 2147483647, %v257
  %vm268 = vcmp.eq.f32.partialorder %v267, 8.507059e+37
  %v269 = vand.u32 %v257, 2147483648
  %v270 = vor.u32 1.1754944e-38, %v269
  %v271 = vsel %vm268, %v270, %v266
  %v272 = vmul.f32 1.0, %v271
  %s273 = scalar_lea.vmem %s1, 2
  %v274 = vld [vmem:[%s273] sm:$0x3]
  %v275 = vadd.f32 %v274, %v229
  %v276 = vxor.u32 %v275, 2147483648
  %v277 = vmul.f32 %v276, 1.442695
  %v278 = vpow.pop %v277
  %v279 = vadd.f32 %v278, 1.0
  %v280 = vrcp.pop %v279
  %v281 = vmul.f32 %v279, %v280
  %v282 = vsub.f32 1.0, %v281
  %v283 = vmul.f32 %v280, %v282
  %v284 = vadd.f32 %v280, %v283
  %vm285 = vweird.f32 %v279
  %vm286 = vweird.f32 %v280
  %vm287 = vmor %vm285, %vm286
  %v288 = vsel %vm287, %v280, %v284
  %v289 = vand.u32 2147483647, %v279
  %vm290 = vcmp.eq.f32.partialorder %v289, 8.507059e+37
  %v291 = vand.u32 %v279, 2147483648
  %v292 = vor.u32 1.1754944e-38, %v291
  %v293 = vsel %vm290, %v292, %v288
  %v294 = vmul.f32 1.0, %v293
  %s295 = scalar_lea.vmem %s2, 2
  %v296 = vld [vmem:[%s295] sm:$0x3]
  %v297 = vmul.f32 %v272, %v249
  %v298 = vadd.f32 %v296, %v297
  %v299 = vtanh.pop %v298
  %v300 = vsub.f32 1.0, %v294
  %v301 = vmul.f32 %v300, %v299
  %v302 = vmul.f32 %v294, %v187
  %v303 = vadd.f32 %v301, %v302
  %304 = vst.msk [vmem:[#allocation2] sm:$0x3] %vm32, %v303
  %s305 = scalar_lea.vmem %s9, 2
  %306 = vst.msk [vmem:[%s305] sm:$0x3] %vm32, %v303
  %v307 = vld [vmem:[#allocation2] sm:$0x3]
  %v309 = vsel %vm65, %v307, 0
  %311 = vmatpush.msra.mxu0 0.0
  %312 = vmatpush.msra.mxu0 0.0
  %313 = vmatpush.msra.mxu0 0.0
  %314 = vmatpush.msra.mxu0 0.0
  %315 = vmatpush.msra.mxu0 0.0
  %316 = vmatpush.msra.mxu0 0.0
  %317 = vmatpush.msra.mxu0 0.0
  %318 = vmatpush.msra.mxu0 0.0
  %319 = vmatpush.msra.mxu0 %v41
  %320 = vmatpush.msra.mxu0 %v40
  %321 = vmatpush.msra.mxu0 %v39
  %322 = vmatpush.msra.mxu0 %v38
  %323 = vmatpush.msra.mxu0 %v37
  %324 = vmatpush.msra.mxu0 %v36
  %325 = vmatpush.msra.mxu0 %v35
  %326 = vmatpush.msra.mxu0 %v34
  %327 = vmatmul.f32.gmra.mxu0 %v309
  %v328 = vpop.f32.mrf.mxu0
  %v329 = vadd.f32 %v63, %v328
  %330 = vdwg.mxu0
  %331 = vmatpush.msra.mxu0 0.0
  %332 = vmatpush.msra.mxu0 0.0
  %333 = vmatpush.msra.mxu0 0.0
  %334 = vmatpush.msra.mxu0 0.0
  %335 = vmatpush.msra.mxu0 0.0
  %336 = vmatpush.msra.mxu0 0.0
  %337 = vmatpush.msra.mxu0 0.0
  %338 = vmatpush.msra.mxu0 0.0
  %339 = vmatpush.msra.mxu0 %v49
  %340 = vmatpush.msra.mxu0 %v48
  %341 = vmatpush.msra.mxu0 %v47
  %342 = vmatpush.msra.mxu0 %v46
  %343 = vmatpush.msra.mxu0 %v45
  %344 = vmatpush.msra.mxu0 %v44
  %345 = vmatpush.msra.mxu0 %v43
  %346 = vmatpush.msra.mxu0 %v42
  %347 = vmatmul.f32.gmra.mxu0 %v309
  %v348 = vpop.f32.mrf.mxu0
  %v349 = vadd.f32 %v90, %v348
  %350 = vdwg.mxu0
  %351 = vmatpush.msra.mxu0 0.0
  %352 = vmatpush.msra.mxu0 0.0
  %353 = vmatpush.msra.mxu0 0.0
  %354 = vmatpush.msra.mxu0 0.0
  %355 = vmatpush.msra.mxu0 0.0
  %356 = vmatpush.msra.mxu0 0.0
  %357 = vmatpush.msra.mxu0 0.0
  %358 = vmatpush.msra.mxu0 0.0
  %359 = vmatpush.msra.mxu0 %v57
  %360 = vmatpush.msra.mxu0 %v56
  %361 = vmatpush.msra.mxu0 %v55
  %362 = vmatpush.msra.mxu0 %v54
  %363 = vmatpush.msra.mxu0 %v53
  %364 = vmatpush.msra.mxu0 %v52
  %365 = vmatpush.msra.mxu0 %v51
  %366 = vmatpush.msra.mxu0 %v50
  %367 = vmatmul.f32.gmra.mxu0 %v309
  %v368 = vpop.f32.mrf.mxu0
  %v369 = vadd.f32 %v113, %v368
  %370 = vdwg.mxu0
  %s371 = scalar_lea.vmem %s0, 4
  %v372 = vld [vmem:[%s371] sm:$0x3]
  %v373 = vadd.f32 %v372, %v329
  %v374 = vxor.u32 %v373, 2147483648
  %v375 = vmul.f32 %v374, 1.442695
  %v376 = vpow.pop %v375
  %v377 = vadd.f32 %v376, 1.0
  %v378 = vrcp.pop %v377
  %v379 = vmul.f32 %v377, %v378
  %v380 = vsub.f32 1.0, %v379
  %v381 = vmul.f32 %v378, %v380
  %v382 = vadd.f32 %v378, %v381
  %vm383 = vweird.f32 %v377
  %vm384 = vweird.f32 %v378
  %vm385 = vmor %vm383, %vm384
  %v386 = vsel %vm385, %v378, %v382
  %v387 = vand.u32 2147483647, %v377
  %vm388 = vcmp.eq.f32.partialorder %v387, 8.507059e+37
  %v389 = vand.u32 %v377, 2147483648
  %v390 = vor.u32 1.1754944e-38, %v389
  %v391 = vsel %vm388, %v390, %v386
  %v392 = vmul.f32 1.0, %v391
  %s393 = scalar_lea.vmem %s1, 4
  %v394 = vld [vmem:[%s393] sm:$0x3]
  %v395 = vadd.f32 %v394, %v349
  %v396 = vxor.u32 %v395, 2147483648
  %v397 = vmul.f32 %v396, 1.442695
  %v398 = vpow.pop %v397
  %v399 = vadd.f32 %v398, 1.0
  %v400 = vrcp.pop %v399
  %v401 = vmul.f32 %v399, %v400
  %v402 = vsub.f32 1.0, %v401
  %v403 = vmul.f32 %v400, %v402
  %v404 = vadd.f32 %v400, %v403
  %vm405 = vweird.f32 %v399
  %vm406 = vweird.f32 %v400
  %vm407 = vmor %vm405, %vm406
  %v408 = vsel %vm407, %v400, %v404
  %v409 = vand.u32 2147483647, %v399
  %vm410 = vcmp.eq.f32.partialorder %v409, 8.507059e+37
  %v411 = vand.u32 %v399, 2147483648
  %v412 = vor.u32 1.1754944e-38, %v411
  %v413 = vsel %vm410, %v412, %v408
  %v414 = vmul.f32 1.0, %v413
  %s415 = scalar_lea.vmem %s2, 4
  %v416 = vld [vmem:[%s415] sm:$0x3]
  %v417 = vmul.f32 %v392, %v369
  %v418 = vadd.f32 %v416, %v417
  %v419 = vtanh.pop %v418
  %v420 = vsub.f32 1.0, %v414
  %v421 = vmul.f32 %v420, %v419
  %v422 = vmul.f32 %v414, %v307
  %v423 = vadd.f32 %v421, %v422
  %424 = vst.msk [vmem:[#allocation2] sm:$0x3] %vm32, %v423
  %s425 = scalar_lea.vmem %s9, 4
  %426 = vst.msk [vmem:[%s425] sm:$0x3] %vm32, %v423
  %v427 = vld [vmem:[#allocation2] sm:$0x3]
  %v429 = vsel %vm65, %v427, 0
  %431 = vmatpush.msra.mxu0 0.0
  %432 = vmatpush.msra.mxu0 0.0
  %433 = vmatpush.msra.mxu0 0.0
  %434 = vmatpush.msra.mxu0 0.0
  %435 = vmatpush.msra.mxu0 0.0
  %436 = vmatpush.msra.mxu0 0.0
  %437 = vmatpush.msra.mxu0 0.0
  %438 = vmatpush.msra.mxu0 0.0
  %439 = vmatpush.msra.mxu0 %v41
  %440 = vmatpush.msra.mxu0 %v40
  %441 = vmatpush.msra.mxu0 %v39
  %442 = vmatpush.msra.mxu0 %v38
  %443 = vmatpush.msra.mxu0 %v37
  %444 = vmatpush.msra.mxu0 %v36
  %445 = vmatpush.msra.mxu0 %v35
  %446 = vmatpush.msra.mxu0 %v34
  %447 = vmatmul.f32.gmra.mxu0 %v429
  %v448 = vpop.f32.mrf.mxu0
  %v449 = vadd.f32 %v63, %v448
  %450 = vdwg.mxu0
  %451 = vmatpush.msra.mxu0 0.0
  %452 = vmatpush.msra.mxu0 0.0
  %453 = vmatpush.msra.mxu0 0.0
  %454 = vmatpush.msra.mxu0 0.0
  %455 = vmatpush.msra.mxu0 0.0
  %456 = vmatpush.msra.mxu0 0.0
  %457 = vmatpush.msra.mxu0 0.0
  %458 = vmatpush.msra.mxu0 0.0
  %459 = vmatpush.msra.mxu0 %v49
  %460 = vmatpush.msra.mxu0 %v48
  %461 = vmatpush.msra.mxu0 %v47
  %462 = vmatpush.msra.mxu0 %v46
  %463 = vmatpush.msra.mxu0 %v45
  %464 = vmatpush.msra.mxu0 %v44
  %465 = vmatpush.msra.mxu0 %v43
  %466 = vmatpush.msra.mxu0 %v42
  %467 = vmatmul.f32.gmra.mxu0 %v429
  %v468 = vpop.f32.mrf.mxu0
  %v469 = vadd.f32 %v90, %v468
  %470 = vdwg.mxu0
  %471 = vmatpush.msra.mxu0 0.0
  %472 = vmatpush.msra.mxu0 0.0
  %473 = vmatpush.msra.mxu0 0.0
  %474 = vmatpush.msra.mxu0 0.0
  %475 = vmatpush.msra.mxu0 0.0
  %476 = vmatpush.msra.mxu0 0.0
  %477 = vmatpush.msra.mxu0 0.0
  %478 = vmatpush.msra.mxu0 0.0
  %479 = vmatpush.msra.mxu0 %v57
  %480 = vmatpush.msra.mxu0 %v56
  %481 = vmatpush.msra.mxu0 %v55
  %482 = vmatpush.msra.mxu0 %v54
  %483 = vmatpush.msra.mxu0 %v53
  %484 = vmatpush.msra.mxu0 %v52
  %485 = vmatpush.msra.mxu0 %v51
  %486 = vmatpush.msra.mxu0 %v50
  %487 = vmatmul.f32.gmra.mxu0 %v429
  %v488 = vpop.f32.mrf.mxu0
  %v489 = vadd.f32 %v113, %v488
  %490 = vdwg.mxu0
  %s491 = scalar_lea.vmem %s0, 6
  %v492 = vld [vmem:[%s491] sm:$0x3]
  %v493 = vadd.f32 %v492, %v449
  %v494 = vxor.u32 %v493, 2147483648
  %v495 = vmul.f32 %v494, 1.442695
  %v496 = vpow.pop %v495
  %v497 = vadd.f32 %v496, 1.0
  %v498 = vrcp.pop %v497
  %v499 = vmul.f32 %v497, %v498
  %v500 = vsub.f32 1.0, %v499
  %v501 = vmul.f32 %v498, %v500
  %v502 = vadd.f32 %v498, %v501
  %vm503 = vweird.f32 %v497
  %vm504 = vweird.f32 %v498
  %vm505 = vmor %vm503, %vm504
  %v506 = vsel %vm505, %v498, %v502
  %v507 = vand.u32 2147483647, %v497
  %vm508 = vcmp.eq.f32.partialorder %v507, 8.507059e+37
  %v509 = vand.u32 %v497, 2147483648
  %v510 = vor.u32 1.1754944e-38, %v509
  %v511 = vsel %vm508, %v510, %v506
  %v512 = vmul.f32 1.0, %v511
  %s513 = scalar_lea.vmem %s1, 6
  %v514 = vld [vmem:[%s513] sm:$0x3]
  %v515 = vadd.f32 %v514, %v469
  %v516 = vxor.u32 %v515, 2147483648
  %v517 = vmul.f32 %v516, 1.442695
  %v518 = vpow.pop %v517
  %v519 = vadd.f32 %v518, 1.0
  %v520 = vrcp.pop %v519
  %v521 = vmul.f32 %v519, %v520
  %v522 = vsub.f32 1.0, %v521
  %v523 = vmul.f32 %v520, %v522
  %v524 = vadd.f32 %v520, %v523
  %vm525 = vweird.f32 %v519
  %vm526 = vweird.f32 %v520
  %vm527 = vmor %vm525, %vm526
  %v528 = vsel %vm527, %v520, %v524
  %v529 = vand.u32 2147483647, %v519
  %vm530 = vcmp.eq.f32.partialorder %v529, 8.507059e+37
  %v531 = vand.u32 %v519, 2147483648
  %v532 = vor.u32 1.1754944e-38, %v531
  %v533 = vsel %vm530, %v532, %v528
  %v534 = vmul.f32 1.0, %v533
  %s535 = scalar_lea.vmem %s2, 6
  %v536 = vld [vmem:[%s535] sm:$0x3]
  %v537 = vmul.f32 %v512, %v489
  %v538 = vadd.f32 %v536, %v537
  %v539 = vtanh.pop %v538
  %v540 = vsub.f32 1.0, %v534
  %v541 = vmul.f32 %v540, %v539
  %v542 = vmul.f32 %v534, %v427
  %v543 = vadd.f32 %v541, %v542
  %544 = vst.msk [vmem:[#allocation2] sm:$0x3] %vm32, %v543
  %s545 = scalar_lea.vmem %s9, 6
  %546 = vst.msk [vmem:[%s545] sm:$0x3] %vm32, %v543
  %v547 = vld [vmem:[#allocation2] sm:$0x3]
  %v549 = vsel %vm65, %v547, 0
  %551 = vmatpush.msra.mxu0 0.0
  %552 = vmatpush.msra.mxu0 0.0
  %553 = vmatpush.msra.mxu0 0.0
  %554 = vmatpush.msra.mxu0 0.0
  %555 = vmatpush.msra.mxu0 0.0
  %556 = vmatpush.msra.mxu0 0.0
  %557 = vmatpush.msra.mxu0 0.0
  %558 = vmatpush.msra.mxu0 0.0
  %559 = vmatpush.msra.mxu0 %v41
  %560 = vmatpush.msra.mxu0 %v40
  %561 = vmatpush.msra.mxu0 %v39
  %562 = vmatpush.msra.mxu0 %v38
  %563 = vmatpush.msra.mxu0 %v37
  %564 = vmatpush.msra.mxu0 %v36
  %565 = vmatpush.msra.mxu0 %v35
  %566 = vmatpush.msra.mxu0 %v34
  %567 = vmatmul.f32.gmra.mxu0 %v549
  %v568 = vpop.f32.mrf.mxu0
  %v569 = vadd.f32 %v63, %v568
  %570 = vdwg.mxu0
  %571 = vmatpush.msra.mxu0 0.0
  %572 = vmatpush.msra.mxu0 0.0
  %573 = vmatpush.msra.mxu0 0.0
  %574 = vmatpush.msra.mxu0 0.0
  %575 = vmatpush.msra.mxu0 0.0
  %576 = vmatpush.msra.mxu0 0.0
  %577 = vmatpush.msra.mxu0 0.0
  %578 = vmatpush.msra.mxu0 0.0
  %579 = vmatpush.msra.mxu0 %v49
  %580 = vmatpush.msra.mxu0 %v48
  %581 = vmatpush.msra.mxu0 %v47
  %582 = vmatpush.msra.mxu0 %v46
  %583 = vmatpush.msra.mxu0 %v45
  %584 = vmatpush.msra.mxu0 %v44
  %585 = vmatpush.msra.mxu0 %v43
  %586 = vmatpush.msra.mxu0 %v42
  %587 = vmatmul.f32.gmra.mxu0 %v549
  %v588 = vpop.f32.mrf.mxu0
  %v589 = vadd.f32 %v90, %v588
  %590 = vdwg.mxu0
  %591 = vmatpush.msra.mxu0 0.0
  %592 = vmatpush.msra.mxu0 0.0
  %593 = vmatpush.msra.mxu0 0.0
  %594 = vmatpush.msra.mxu0 0.0
  %595 = vmatpush.msra.mxu0 0.0
  %596 = vmatpush.msra.mxu0 0.0
  %597 = vmatpush.msra.mxu0 0.0
  %598 = vmatpush.msra.mxu0 0.0
  %599 = vmatpush.msra.mxu0 %v57
  %600 = vmatpush.msra.mxu0 %v56
  %601 = vmatpush.msra.mxu0 %v55
  %602 = vmatpush.msra.mxu0 %v54
  %603 = vmatpush.msra.mxu0 %v53
  %604 = vmatpush.msra.mxu0 %v52
  %605 = vmatpush.msra.mxu0 %v51
  %606 = vmatpush.msra.mxu0 %v50
  %607 = vmatmul.f32.gmra.mxu0 %v549
  %v608 = vpop.f32.mrf.mxu0
  %v609 = vadd.f32 %v113, %v608
  %610 = vdwg.mxu0
  %s611 = scalar_lea.vmem %s0, 8
  %v612 = vld [vmem:[%s611] sm:$0x3]
  %v613 = vadd.f32 %v612, %v569
  %v614 = vxor.u32 %v613, 2147483648
  %v615 = vmul.f32 %v614, 1.442695
  %v616 = vpow.pop %v615
  %v617 = vadd.f32 %v616, 1.0
  %v618 = vrcp.pop %v617
  %v619 = vmul.f32 %v617, %v618
  %v620 = vsub.f32 1.0, %v619
  %v621 = vmul.f32 %v618, %v620
  %v622 = vadd.f32 %v618, %v621
  %vm623 = vweird.f32 %v617
  %vm624 = vweird.f32 %v618
  %vm625 = vmor %vm623, %vm624
  %v626 = vsel %vm625, %v618, %v622
  %v627 = vand.u32 2147483647, %v617
  %vm628 = vcmp.eq.f32.partialorder %v627, 8.507059e+37
  %v629 = vand.u32 %v617, 2147483648
  %v630 = vor.u32 1.1754944e-38, %v629
  %v631 = vsel %vm628, %v630, %v626
  %v632 = vmul.f32 1.0, %v631
  %s633 = scalar_lea.vmem %s1, 8
  %v634 = vld [vmem:[%s633] sm:$0x3]
  %v635 = vadd.f32 %v634, %v589
  %v636 = vxor.u32 %v635, 2147483648
  %v637 = vmul.f32 %v636, 1.442695
  %v638 = vpow.pop %v637
  %v639 = vadd.f32 %v638, 1.0
  %v640 = vrcp.pop %v639
  %v641 = vmul.f32 %v639, %v640
  %v642 = vsub.f32 1.0, %v641
  %v643 = vmul.f32 %v640, %v642
  %v644 = vadd.f32 %v640, %v643
  %vm645 = vweird.f32 %v639
  %vm646 = vweird.f32 %v640
  %vm647 = vmor %vm645, %vm646
  %v648 = vsel %vm647, %v640, %v644
  %v649 = vand.u32 2147483647, %v639
  %vm650 = vcmp.eq.f32.partialorder %v649, 8.507059e+37
  %v651 = vand.u32 %v639, 2147483648
  %v652 = vor.u32 1.1754944e-38, %v651
  %v653 = vsel %vm650, %v652, %v648
  %v654 = vmul.f32 1.0, %v653
  %s655 = scalar_lea.vmem %s2, 8
  %v656 = vld [vmem:[%s655] sm:$0x3]
  %v657 = vmul.f32 %v632, %v609
  %v658 = vadd.f32 %v656, %v657
  %v659 = vtanh.pop %v658
  %v660 = vsub.f32 1.0, %v654
  %v661 = vmul.f32 %v660, %v659
  %v662 = vmul.f32 %v654, %v547
  %v663 = vadd.f32 %v661, %v662
  %664 = vst.msk [vmem:[#allocation2] sm:$0x3] %vm32, %v663
  %s665 = scalar_lea.vmem %s9, 8
  %666 = vst.msk [vmem:[%s665] sm:$0x3] %vm32, %v663
  %v667 = vld [vmem:[#allocation2] sm:$0x3]
  %v669 = vsel %vm65, %v667, 0
  %671 = vmatpush.msra.mxu0 0.0
  %672 = vmatpush.msra.mxu0 0.0
  %673 = vmatpush.msra.mxu0 0.0
  %674 = vmatpush.msra.mxu0 0.0
  %675 = vmatpush.msra.mxu0 0.0
  %676 = vmatpush.msra.mxu0 0.0
  %677 = vmatpush.msra.mxu0 0.0
  %678 = vmatpush.msra.mxu0 0.0
  %679 = vmatpush.msra.mxu0 %v41
  %680 = vmatpush.msra.mxu0 %v40
  %681 = vmatpush.msra.mxu0 %v39
  %682 = vmatpush.msra.mxu0 %v38
  %683 = vmatpush.msra.mxu0 %v37
  %684 = vmatpush.msra.mxu0 %v36
  %685 = vmatpush.msra.mxu0 %v35
  %686 = vmatpush.msra.mxu0 %v34
  %687 = vmatmul.f32.gmra.mxu0 %v669
  %v688 = vpop.f32.mrf.mxu0
  %v689 = vadd.f32 %v63, %v688
  %690 = vdwg.mxu0
  %691 = vmatpush.msra.mxu0 0.0
  %692 = vmatpush.msra.mxu0 0.0
  %693 = vmatpush.msra.mxu0 0.0
  %694 = vmatpush.msra.mxu0 0.0
  %695 = vmatpush.msra.mxu0 0.0
  %696 = vmatpush.msra.mxu0 0.0
  %697 = vmatpush.msra.mxu0 0.0
  %698 = vmatpush.msra.mxu0 0.0
  %699 = vmatpush.msra.mxu0 %v49
  %700 = vmatpush.msra.mxu0 %v48
  %701 = vmatpush.msra.mxu0 %v47
  %702 = vmatpush.msra.mxu0 %v46
  %703 = vmatpush.msra.mxu0 %v45
  %704 = vmatpush.msra.mxu0 %v44
  %705 = vmatpush.msra.mxu0 %v43
  %706 = vmatpush.msra.mxu0 %v42
  %707 = vmatmul.f32.gmra.mxu0 %v669
  %v708 = vpop.f32.mrf.mxu0
  %v709 = vadd.f32 %v90, %v708
  %710 = vdwg.mxu0
  %711 = vmatpush.msra.mxu0 0.0
  %712 = vmatpush.msra.mxu0 0.0
  %713 = vmatpush.msra.mxu0 0.0
  %714 = vmatpush.msra.mxu0 0.0
  %715 = vmatpush.msra.mxu0 0.0
  %716 = vmatpush.msra.mxu0 0.0
  %717 = vmatpush.msra.mxu0 0.0
  %718 = vmatpush.msra.mxu0 0.0
  %719 = vmatpush.msra.mxu0 %v57
  %720 = vmatpush.msra.mxu0 %v56
  %721 = vmatpush.msra.mxu0 %v55
  %722 = vmatpush.msra.mxu0 %v54
  %723 = vmatpush.msra.mxu0 %v53
  %724 = vmatpush.msra.mxu0 %v52
  %725 = vmatpush.msra.mxu0 %v51
  %726 = vmatpush.msra.mxu0 %v50
  %727 = vmatmul.f32.gmra.mxu0 %v669
  %v728 = vpop.f32.mrf.mxu0
  %v729 = vadd.f32 %v113, %v728
  %730 = vdwg.mxu0
  %s731 = scalar_lea.vmem %s0, 10
  %v732 = vld [vmem:[%s731] sm:$0x3]
  %v733 = vadd.f32 %v732, %v689
  %v734 = vxor.u32 %v733, 2147483648
  %v735 = vmul.f32 %v734, 1.442695
  %v736 = vpow.pop %v735
  %v737 = vadd.f32 %v736, 1.0
  %v738 = vrcp.pop %v737
  %v739 = vmul.f32 %v737, %v738
  %v740 = vsub.f32 1.0, %v739
  %v741 = vmul.f32 %v738, %v740
  %v742 = vadd.f32 %v738, %v741
  %vm743 = vweird.f32 %v737
  %vm744 = vweird.f32 %v738
  %vm745 = vmor %vm743, %vm744
  %v746 = vsel %vm745, %v738, %v742
  %v747 = vand.u32 2147483647, %v737
  %vm748 = vcmp.eq.f32.partialorder %v747, 8.507059e+37
  %v749 = vand.u32 %v737, 2147483648
  %v750 = vor.u32 1.1754944e-38, %v749
  %v751 = vsel %vm748, %v750, %v746
  %v752 = vmul.f32 1.0, %v751
  %s753 = scalar_lea.vmem %s1, 10
  %v754 = vld [vmem:[%s753] sm:$0x3]
  %v755 = vadd.f32 %v754, %v709
  %v756 = vxor.u32 %v755, 2147483648
  %v757 = vmul.f32 %v756, 1.442695
  %v758 = vpow.pop %v757
  %v759 = vadd.f32 %v758, 1.0
  %v760 = vrcp.pop %v759
  %v761 = vmul.f32 %v759, %v760
  %v762 = vsub.f32 1.0, %v761
  %v763 = vmul.f32 %v760, %v762
  %v764 = vadd.f32 %v760, %v763
  %vm765 = vweird.f32 %v759
  %vm766 = vweird.f32 %v760
  %vm767 = vmor %vm765, %vm766
  %v768 = vsel %vm767, %v760, %v764
  %v769 = vand.u32 2147483647, %v759
  %vm770 = vcmp.eq.f32.partialorder %v769, 8.507059e+37
  %v771 = vand.u32 %v759, 2147483648
  %v772 = vor.u32 1.1754944e-38, %v771
  %v773 = vsel %vm770, %v772, %v768
  %v774 = vmul.f32 1.0, %v773
  %s775 = scalar_lea.vmem %s2, 10
  %v776 = vld [vmem:[%s775] sm:$0x3]
  %v777 = vmul.f32 %v752, %v729
  %v778 = vadd.f32 %v776, %v777
  %v779 = vtanh.pop %v778
  %v780 = vsub.f32 1.0, %v774
  %v781 = vmul.f32 %v780, %v779
  %v782 = vmul.f32 %v774, %v667
  %v783 = vadd.f32 %v781, %v782
  %784 = vst.msk [vmem:[#allocation2] sm:$0x3] %vm32, %v783
  %s785 = scalar_lea.vmem %s9, 10
  %786 = vst.msk [vmem:[%s785] sm:$0x3] %vm32, %v783
  %v787 = vld [vmem:[#allocation2] sm:$0x3]
  %v789 = vsel %vm65, %v787, 0
  %791 = vmatpush.msra.mxu0 0.0
  %792 = vmatpush.msra.mxu0 0.0
  %793 = vmatpush.msra.mxu0 0.0
  %794 = vmatpush.msra.mxu0 0.0
  %795 = vmatpush.msra.mxu0 0.0
  %796 = vmatpush.msra.mxu0 0.0
  %797 = vmatpush.msra.mxu0 0.0
  %798 = vmatpush.msra.mxu0 0.0
  %799 = vmatpush.msra.mxu0 %v41
  %800 = vmatpush.msra.mxu0 %v40
  %801 = vmatpush.msra.mxu0 %v39
  %802 = vmatpush.msra.mxu0 %v38
  %803 = vmatpush.msra.mxu0 %v37
  %804 = vmatpush.msra.mxu0 %v36
  %805 = vmatpush.msra.mxu0 %v35
  %806 = vmatpush.msra.mxu0 %v34
  %807 = vmatmul.f32.gmra.mxu0 %v789
  %v808 = vpop.f32.mrf.mxu0
  %v809 = vadd.f32 %v63, %v808
  %810 = vdwg.mxu0
  %811 = vmatpush.msra.mxu0 0.0
  %812 = vmatpush.msra.mxu0 0.0
  %813 = vmatpush.msra.mxu0 0.0
  %814 = vmatpush.msra.mxu0 0.0
  %815 = vmatpush.msra.mxu0 0.0
  %816 = vmatpush.msra.mxu0 0.0
  %817 = vmatpush.msra.mxu0 0.0
  %818 = vmatpush.msra.mxu0 0.0
  %819 = vmatpush.msra.mxu0 %v49
  %820 = vmatpush.msra.mxu0 %v48
  %821 = vmatpush.msra.mxu0 %v47
  %822 = vmatpush.msra.mxu0 %v46
  %823 = vmatpush.msra.mxu0 %v45
  %824 = vmatpush.msra.mxu0 %v44
  %825 = vmatpush.msra.mxu0 %v43
  %826 = vmatpush.msra.mxu0 %v42
  %827 = vmatmul.f32.gmra.mxu0 %v789
  %v828 = vpop.f32.mrf.mxu0
  %v829 = vadd.f32 %v90, %v828
  %830 = vdwg.mxu0
  %831 = vmatpush.msra.mxu0 0.0
  %832 = vmatpush.msra.mxu0 0.0
  %833 = vmatpush.msra.mxu0 0.0
  %834 = vmatpush.msra.mxu0 0.0
  %835 = vmatpush.msra.mxu0 0.0
  %836 = vmatpush.msra.mxu0 0.0
  %837 = vmatpush.msra.mxu0 0.0
  %838 = vmatpush.msra.mxu0 0.0
  %839 = vmatpush.msra.mxu0 %v57
  %840 = vmatpush.msra.mxu0 %v56
  %841 = vmatpush.msra.mxu0 %v55
  %842 = vmatpush.msra.mxu0 %v54
  %843 = vmatpush.msra.mxu0 %v53
  %844 = vmatpush.msra.mxu0 %v52
  %845 = vmatpush.msra.mxu0 %v51
  %846 = vmatpush.msra.mxu0 %v50
  %847 = vmatmul.f32.gmra.mxu0 %v789
  %v848 = vpop.f32.mrf.mxu0
  %v849 = vadd.f32 %v113, %v848
  %850 = vdwg.mxu0
  %s851 = scalar_lea.vmem %s0, 12
  %v852 = vld [vmem:[%s851] sm:$0x3]
  %v853 = vadd.f32 %v852, %v809
  %v854 = vxor.u32 %v853, 2147483648
  %v855 = vmul.f32 %v854, 1.442695
  %v856 = vpow.pop %v855
  %v857 = vadd.f32 %v856, 1.0
  %v858 = vrcp.pop %v857
  %v859 = vmul.f32 %v857, %v858
  %v860 = vsub.f32 1.0, %v859
  %v861 = vmul.f32 %v858, %v860
  %v862 = vadd.f32 %v858, %v861
  %vm863 = vweird.f32 %v857
  %vm864 = vweird.f32 %v858
  %vm865 = vmor %vm863, %vm864
  %v866 = vsel %vm865, %v858, %v862
  %v867 = vand.u32 2147483647, %v857
  %vm868 = vcmp.eq.f32.partialorder %v867, 8.507059e+37
  %v869 = vand.u32 %v857, 2147483648
  %v870 = vor.u32 1.1754944e-38, %v869
  %v871 = vsel %vm868, %v870, %v866
  %v872 = vmul.f32 1.0, %v871
  %s873 = scalar_lea.vmem %s1, 12
  %v874 = vld [vmem:[%s873] sm:$0x3]
  %v875 = vadd.f32 %v874, %v829
  %v876 = vxor.u32 %v875, 2147483648
  %v877 = vmul.f32 %v876, 1.442695
  %v878 = vpow.pop %v877
  %v879 = vadd.f32 %v878, 1.0
  %v880 = vrcp.pop %v879
  %v881 = vmul.f32 %v879, %v880
  %v882 = vsub.f32 1.0, %v881
  %v883 = vmul.f32 %v880, %v882
  %v884 = vadd.f32 %v880, %v883
  %vm885 = vweird.f32 %v879
  %vm886 = vweird.f32 %v880
  %vm887 = vmor %vm885, %vm886
  %v888 = vsel %vm887, %v880, %v884
  %v889 = vand.u32 2147483647, %v879
  %vm890 = vcmp.eq.f32.partialorder %v889, 8.507059e+37
  %v891 = vand.u32 %v879, 2147483648
  %v892 = vor.u32 1.1754944e-38, %v891
  %v893 = vsel %vm890, %v892, %v888
  %v894 = vmul.f32 1.0, %v893
  %s895 = scalar_lea.vmem %s2, 12
  %v896 = vld [vmem:[%s895] sm:$0x3]
  %v897 = vmul.f32 %v872, %v849
  %v898 = vadd.f32 %v896, %v897
  %v899 = vtanh.pop %v898
  %v900 = vsub.f32 1.0, %v894
  %v901 = vmul.f32 %v900, %v899
  %v902 = vmul.f32 %v894, %v787
  %v903 = vadd.f32 %v901, %v902
  %904 = vst.msk [vmem:[#allocation2] sm:$0x3] %vm32, %v903
  %s905 = scalar_lea.vmem %s9, 12
  %906 = vst.msk [vmem:[%s905] sm:$0x3] %vm32, %v903
  %v907 = vld [vmem:[#allocation2] sm:$0x3]
  %v909 = vsel %vm65, %v907, 0
  %911 = vmatpush.msra.mxu0 0.0
  %912 = vmatpush.msra.mxu0 0.0
  %913 = vmatpush.msra.mxu0 0.0
  %914 = vmatpush.msra.mxu0 0.0
  %915 = vmatpush.msra.mxu0 0.0
  %916 = vmatpush.msra.mxu0 0.0
  %917 = vmatpush.msra.mxu0 0.0
  %918 = vmatpush.msra.mxu0 0.0
  %919 = vmatpush.msra.mxu0 %v41
  %920 = vmatpush.msra.mxu0 %v40
  %921 = vmatpush.msra.mxu0 %v39
  %922 = vmatpush.msra.mxu0 %v38
  %923 = vmatpush.msra.mxu0 %v37
  %924 = vmatpush.msra.mxu0 %v36
  %925 = vmatpush.msra.mxu0 %v35
  %926 = vmatpush.msra.mxu0 %v34
  %927 = vmatmul.f32.gmra.mxu0 %v909
  %v928 = vpop.f32.mrf.mxu0
  %v929 = vadd.f32 %v63, %v928
  %930 = vdwg.mxu0
  %931 = vmatpush.msra.mxu0 0.0
  %932 = vmatpush.msra.mxu0 0.0
  %933 = vmatpush.msra.mxu0 0.0
  %934 = vmatpush.msra.mxu0 0.0
  %935 = vmatpush.msra.mxu0 0.0
  %936 = vmatpush.msra.mxu0 0.0
  %937 = vmatpush.msra.mxu0 0.0
  %938 = vmatpush.msra.mxu0 0.0
  %939 = vmatpush.msra.mxu0 %v49
  %940 = vmatpush.msra.mxu0 %v48
  %941 = vmatpush.msra.mxu0 %v47
  %942 = vmatpush.msra.mxu0 %v46
  %943 = vmatpush.msra.mxu0 %v45
  %944 = vmatpush.msra.mxu0 %v44
  %945 = vmatpush.msra.mxu0 %v43
  %946 = vmatpush.msra.mxu0 %v42
  %947 = vmatmul.f32.gmra.mxu0 %v909
  %v948 = vpop.f32.mrf.mxu0
  %v949 = vadd.f32 %v90, %v948
  %950 = vdwg.mxu0
  %951 = vmatpush.msra.mxu0 0.0
  %952 = vmatpush.msra.mxu0 0.0
  %953 = vmatpush.msra.mxu0 0.0
  %954 = vmatpush.msra.mxu0 0.0
  %955 = vmatpush.msra.mxu0 0.0
  %956 = vmatpush.msra.mxu0 0.0
  %957 = vmatpush.msra.mxu0 0.0
  %958 = vmatpush.msra.mxu0 0.0
  %959 = vmatpush.msra.mxu0 %v57
  %960 = vmatpush.msra.mxu0 %v56
  %961 = vmatpush.msra.mxu0 %v55
  %962 = vmatpush.msra.mxu0 %v54
  %963 = vmatpush.msra.mxu0 %v53
  %964 = vmatpush.msra.mxu0 %v52
  %965 = vmatpush.msra.mxu0 %v51
  %966 = vmatpush.msra.mxu0 %v50
  %967 = vmatmul.f32.gmra.mxu0 %v909
  %v968 = vpop.f32.mrf.mxu0
  %v969 = vadd.f32 %v113, %v968
  %970 = vdwg.mxu0
  %s971 = scalar_lea.vmem %s0, 14
  %v972 = vld [vmem:[%s971] sm:$0x3]
  %v973 = vadd.f32 %v972, %v929
  %v974 = vxor.u32 %v973, 2147483648
  %v975 = vmul.f32 %v974, 1.442695
  %v976 = vpow.pop %v975
  %v977 = vadd.f32 %v976, 1.0
  %v978 = vrcp.pop %v977
  %v979 = vmul.f32 %v977, %v978
  %v980 = vsub.f32 1.0, %v979
  %v981 = vmul.f32 %v978, %v980
  %v982 = vadd.f32 %v978, %v981
  %vm983 = vweird.f32 %v977
  %vm984 = vweird.f32 %v978
  %vm985 = vmor %vm983, %vm984
  %v986 = vsel %vm985, %v978, %v982
  %v987 = vand.u32 2147483647, %v977
  %vm988 = vcmp.eq.f32.partialorder %v987, 8.507059e+37
  %v989 = vand.u32 %v977, 2147483648
  %v990 = vor.u32 1.1754944e-38, %v989
  %v991 = vsel %vm988, %v990, %v986
  %v992 = vmul.f32 1.0, %v991
  %s993 = scalar_lea.vmem %s1, 14
  %v994 = vld [vmem:[%s993] sm:$0x3]
  %v995 = vadd.f32 %v994, %v949
  %v996 = vxor.u32 %v995, 2147483648
  %v997 = vmul.f32 %v996, 1.442695
  %v998 = vpow.pop %v997
  %v999 = vadd.f32 %v998, 1.0
  %v1000 = vrcp.pop %v999
  %v1001 = vmul.f32 %v999, %v1000
  %v1002 = vsub.f32 1.0, %v1001
  %v1003 = vmul.f32 %v1000, %v1002
  %v1004 = vadd.f32 %v1000, %v1003
  %vm1005 = vweird.f32 %v999
  %vm1006 = vweird.f32 %v1000
  %vm1007 = vmor %vm1005, %vm1006
  %v1008 = vsel %vm1007, %v1000, %v1004
  %v1009 = vand.u32 2147483647, %v999
  %vm1010 = vcmp.eq.f32.partialorder %v1009, 8.507059e+37
  %v1011 = vand.u32 %v999, 2147483648
  %v1012 = vor.u32 1.1754944e-38, %v1011
  %v1013 = vsel %vm1010, %v1012, %v1008
  %v1014 = vmul.f32 1.0, %v1013
  %s1015 = scalar_lea.vmem %s2, 14
  %v1016 = vld [vmem:[%s1015] sm:$0x3]
  %v1017 = vmul.f32 %v992, %v969
  %v1018 = vadd.f32 %v1016, %v1017
  %v1019 = vtanh.pop %v1018
  %v1020 = vsub.f32 1.0, %v1014
  %v1021 = vmul.f32 %v1020, %v1019
  %v1022 = vmul.f32 %v1014, %v907
  %v1023 = vadd.f32 %v1021, %v1022
  %1024 = vst.msk [vmem:[#allocation2] sm:$0x3] %vm32, %v1023
  %s1025 = scalar_lea.vmem %s9, 14
  %1026 = vst.msk [vmem:[%s1025] sm:$0x3] %vm32, %v1023
  %v1027 = vld [vmem:[#allocation2] sm:$0x3]
  %v1029 = vsel %vm65, %v1027, 0
  %1031 = vmatpush.msra.mxu0 0.0
  %1032 = vmatpush.msra.mxu0 0.0
  %1033 = vmatpush.msra.mxu0 0.0
  %1034 = vmatpush.msra.mxu0 0.0
  %1035 = vmatpush.msra.mxu0 0.0
  %1036 = vmatpush.msra.mxu0 0.0
  %1037 = vmatpush.msra.mxu0 0.0
  %1038 = vmatpush.msra.mxu0 0.0
  %1039 = vmatpush.msra.mxu0 %v41
  %1040 = vmatpush.msra.mxu0 %v40
  %1041 = vmatpush.msra.mxu0 %v39
  %1042 = vmatpush.msra.mxu0 %v38
  %1043 = vmatpush.msra.mxu0 %v37
  %1044 = vmatpush.msra.mxu0 %v36
  %1045 = vmatpush.msra.mxu0 %v35
  %1046 = vmatpush.msra.mxu0 %v34
  %1047 = vmatmul.f32.gmra.mxu0 %v1029
  %v1048 = vpop.f32.mrf.mxu0
  %v1049 = vadd.f32 %v63, %v1048
  %1050 = vdwg.mxu0
  %1051 = vmatpush.msra.mxu0 0.0
  %1052 = vmatpush.msra.mxu0 0.0
  %1053 = vmatpush.msra.mxu0 0.0
  %1054 = vmatpush.msra.mxu0 0.0
  %1055 = vmatpush.msra.mxu0 0.0
  %1056 = vmatpush.msra.mxu0 0.0
  %1057 = vmatpush.msra.mxu0 0.0
  %1058 = vmatpush.msra.mxu0 0.0
  %1059 = vmatpush.msra.mxu0 %v49
  %1060 = vmatpush.msra.mxu0 %v48
  %1061 = vmatpush.msra.mxu0 %v47
  %1062 = vmatpush.msra.mxu0 %v46
  %1063 = vmatpush.msra.mxu0 %v45
  %1064 = vmatpush.msra.mxu0 %v44
  %1065 = vmatpush.msra.mxu0 %v43
  %1066 = vmatpush.msra.mxu0 %v42
  %1067 = vmatmul.f32.gmra.mxu0 %v1029
  %v1068 = vpop.f32.mrf.mxu0
  %v1069 = vadd.f32 %v90, %v1068
  %1070 = vdwg.mxu0
  %1071 = vmatpush.msra.mxu0 0.0
  %1072 = vmatpush.msra.mxu0 0.0
  %1073 = vmatpush.msra.mxu0 0.0
  %1074 = vmatpush.msra.mxu0 0.0
  %1075 = vmatpush.msra.mxu0 0.0
  %1076 = vmatpush.msra.mxu0 0.0
  %1077 = vmatpush.msra.mxu0 0.0
  %1078 = vmatpush.msra.mxu0 0.0
  %1079 = vmatpush.msra.mxu0 %v57
  %1080 = vmatpush.msra.mxu0 %v56
  %1081 = vmatpush.msra.mxu0 %v55
  %1082 = vmatpush.msra.mxu0 %v54
  %1083 = vmatpush.msra.mxu0 %v53
  %1084 = vmatpush.msra.mxu0 %v52
  %1085 = vmatpush.msra.mxu0 %v51
  %1086 = vmatpush.msra.mxu0 %v50
  %1087 = vmatmul.f32.gmra.mxu0 %v1029
  %v1088 = vpop.f32.mrf.mxu0
  %v1089 = vadd.f32 %v113, %v1088
  %1090 = vdwg.mxu0
  %s1091 = scalar_lea.vmem %s0, 16
  %v1092 = vld [vmem:[%s1091] sm:$0x3]
  %v1093 = vadd.f32 %v1092, %v1049
  %v1094 = vxor.u32 %v1093, 2147483648
  %v1095 = vmul.f32 %v1094, 1.442695
  %v1096 = vpow.pop %v1095
  %v1097 = vadd.f32 %v1096, 1.0
  %v1098 = vrcp.pop %v1097
  %v1099 = vmul.f32 %v1097, %v1098
  %v1100 = vsub.f32 1.0, %v1099
  %v1101 = vmul.f32 %v1098, %v1100
  %v1102 = vadd.f32 %v1098, %v1101
  %vm1103 = vweird.f32 %v1097
  %vm1104 = vweird.f32 %v1098
  %vm1105 = vmor %vm1103, %vm1104
  %v1106 = vsel %vm1105, %v1098, %v1102
  %v1107 = vand.u32 2147483647, %v1097
  %vm1108 = vcmp.eq.f32.partialorder %v1107, 8.507059e+37
  %v1109 = vand.u32 %v1097, 2147483648
  %v1110 = vor.u32 1.1754944e-38, %v1109
  %v1111 = vsel %vm1108, %v1110, %v1106
  %v1112 = vmul.f32 1.0, %v1111
  %s1113 = scalar_lea.vmem %s1, 16
  %v1114 = vld [vmem:[%s1113] sm:$0x3]
  %v1115 = vadd.f32 %v1114, %v1069
  %v1116 = vxor.u32 %v1115, 2147483648
  %v1117 = vmul.f32 %v1116, 1.442695
  %v1118 = vpow.pop %v1117
  %v1119 = vadd.f32 %v1118, 1.0
  %v1120 = vrcp.pop %v1119
  %v1121 = vmul.f32 %v1119, %v1120
  %v1122 = vsub.f32 1.0, %v1121
  %v1123 = vmul.f32 %v1120, %v1122
  %v1124 = vadd.f32 %v1120, %v1123
  %vm1125 = vweird.f32 %v1119
  %vm1126 = vweird.f32 %v1120
  %vm1127 = vmor %vm1125, %vm1126
  %v1128 = vsel %vm1127, %v1120, %v1124
  %v1129 = vand.u32 2147483647, %v1119
  %vm1130 = vcmp.eq.f32.partialorder %v1129, 8.507059e+37
  %v1131 = vand.u32 %v1119, 2147483648
  %v1132 = vor.u32 1.1754944e-38, %v1131
  %v1133 = vsel %vm1130, %v1132, %v1128
  %v1134 = vmul.f32 1.0, %v1133
  %s1135 = scalar_lea.vmem %s2, 16
  %v1136 = vld [vmem:[%s1135] sm:$0x3]
  %v1137 = vmul.f32 %v1112, %v1089
  %v1138 = vadd.f32 %v1136, %v1137
  %v1139 = vtanh.pop %v1138
  %v1140 = vsub.f32 1.0, %v1134
  %v1141 = vmul.f32 %v1140, %v1139
  %v1142 = vmul.f32 %v1134, %v1027
  %v1143 = vadd.f32 %v1141, %v1142
  %1144 = vst.msk [vmem:[#allocation2] sm:$0x3] %vm32, %v1143
  %s1145 = scalar_lea.vmem %s9, 16
  %1146 = vst.msk [vmem:[%s1145] sm:$0x3] %vm32, %v1143
  %v1147 = vld [vmem:[#allocation2] sm:$0x3]
  %v1149 = vsel %vm65, %v1147, 0
  %1151 = vmatpush.msra.mxu0 0.0
  %1152 = vmatpush.msra.mxu0 0.0
  %1153 = vmatpush.msra.mxu0 0.0
  %1154 = vmatpush.msra.mxu0 0.0
  %1155 = vmatpush.msra.mxu0 0.0
  %1156 = vmatpush.msra.mxu0 0.0
  %1157 = vmatpush.msra.mxu0 0.0
  %1158 = vmatpush.msra.mxu0 0.0
  %1159 = vmatpush.msra.mxu0 %v41
  %1160 = vmatpush.msra.mxu0 %v40
  %1161 = vmatpush.msra.mxu0 %v39
  %1162 = vmatpush.msra.mxu0 %v38
  %1163 = vmatpush.msra.mxu0 %v37
  %1164 = vmatpush.msra.mxu0 %v36
  %1165 = vmatpush.msra.mxu0 %v35
  %1166 = vmatpush.msra.mxu0 %v34
  %1167 = vmatmul.f32.gmra.mxu0 %v1149
  %v1168 = vpop.f32.mrf.mxu0
  %v1169 = vadd.f32 %v63, %v1168
  %1170 = vdwg.mxu0
  %1171 = vmatpush.msra.mxu0 0.0
  %1172 = vmatpush.msra.mxu0 0.0
  %1173 = vmatpush.msra.mxu0 0.0
  %1174 = vmatpush.msra.mxu0 0.0
  %1175 = vmatpush.msra.mxu0 0.0
  %1176 = vmatpush.msra.mxu0 0.0
  %1177 = vmatpush.msra.mxu0 0.0
  %1178 = vmatpush.msra.mxu0 0.0
  %1179 = vmatpush.msra.mxu0 %v49
  %1180 = vmatpush.msra.mxu0 %v48
  %1181 = vmatpush.msra.mxu0 %v47
  %1182 = vmatpush.msra.mxu0 %v46
  %1183 = vmatpush.msra.mxu0 %v45
  %1184 = vmatpush.msra.mxu0 %v44
  %1185 = vmatpush.msra.mxu0 %v43
  %1186 = vmatpush.msra.mxu0 %v42
  %1187 = vmatmul.f32.gmra.mxu0 %v1149
  %v1188 = vpop.f32.mrf.mxu0
  %v1189 = vadd.f32 %v90, %v1188
  %1190 = vdwg.mxu0
  %1191 = vmatpush.msra.mxu0 0.0
  %1192 = vmatpush.msra.mxu0 0.0
  %1193 = vmatpush.msra.mxu0 0.0
  %1194 = vmatpush.msra.mxu0 0.0
  %1195 = vmatpush.msra.mxu0 0.0
  %1196 = vmatpush.msra.mxu0 0.0
  %1197 = vmatpush.msra.mxu0 0.0
  %1198 = vmatpush.msra.mxu0 0.0
  %1199 = vmatpush.msra.mxu0 %v57
  %1200 = vmatpush.msra.mxu0 %v56
  %1201 = vmatpush.msra.mxu0 %v55
  %1202 = vmatpush.msra.mxu0 %v54
  %1203 = vmatpush.msra.mxu0 %v53
  %1204 = vmatpush.msra.mxu0 %v52
  %1205 = vmatpush.msra.mxu0 %v51
  %1206 = vmatpush.msra.mxu0 %v50
  %1207 = vmatmul.f32.gmra.mxu0 %v1149
  %v1208 = vpop.f32.mrf.mxu0
  %v1209 = vadd.f32 %v113, %v1208
  %1210 = vdwg.mxu0
  %s1211 = scalar_lea.vmem %s0, 18
  %v1212 = vld [vmem:[%s1211] sm:$0x3]
  %v1213 = vadd.f32 %v1212, %v1169
  %v1214 = vxor.u32 %v1213, 2147483648
  %v1215 = vmul.f32 %v1214, 1.442695
  %v1216 = vpow.pop %v1215
  %v1217 = vadd.f32 %v1216, 1.0
  %v1218 = vrcp.pop %v1217
  %v1219 = vmul.f32 %v1217, %v1218
  %v1220 = vsub.f32 1.0, %v1219
  %v1221 = vmul.f32 %v1218, %v1220
  %v1222 = vadd.f32 %v1218, %v1221
  %vm1223 = vweird.f32 %v1217
  %vm1224 = vweird.f32 %v1218
  %vm1225 = vmor %vm1223, %vm1224
  %v1226 = vsel %vm1225, %v1218, %v1222
  %v1227 = vand.u32 2147483647, %v1217
  %vm1228 = vcmp.eq.f32.partialorder %v1227, 8.507059e+37
  %v1229 = vand.u32 %v1217, 2147483648
  %v1230 = vor.u32 1.1754944e-38, %v1229
  %v1231 = vsel %vm1228, %v1230, %v1226
  %v1232 = vmul.f32 1.0, %v1231
  %s1233 = scalar_lea.vmem %s1, 18
  %v1234 = vld [vmem:[%s1233] sm:$0x3]
  %v1235 = vadd.f32 %v1234, %v1189
  %v1236 = vxor.u32 %v1235, 2147483648
  %v1237 = vmul.f32 %v1236, 1.442695
  %v1238 = vpow.pop %v1237
  %v1239 = vadd.f32 %v1238, 1.0
  %v1240 = vrcp.pop %v1239
  %v1241 = vmul.f32 %v1239, %v1240
  %v1242 = vsub.f32 1.0, %v1241
  %v1243 = vmul.f32 %v1240, %v1242
  %v1244 = vadd.f32 %v1240, %v1243
  %vm1245 = vweird.f32 %v1239
  %vm1246 = vweird.f32 %v1240
  %vm1247 = vmor %vm1245, %vm1246
  %v1248 = vsel %vm1247, %v1240, %v1244
  %v1249 = vand.u32 2147483647, %v1239
  %vm1250 = vcmp.eq.f32.partialorder %v1249, 8.507059e+37
  %v1251 = vand.u32 %v1239, 2147483648
  %v1252 = vor.u32 1.1754944e-38, %v1251
  %v1253 = vsel %vm1250, %v1252, %v1248
  %v1254 = vmul.f32 1.0, %v1253
  %s1255 = scalar_lea.vmem %s2, 18
  %v1256 = vld [vmem:[%s1255] sm:$0x3]
  %v1257 = vmul.f32 %v1232, %v1209
  %v1258 = vadd.f32 %v1256, %v1257
  %v1259 = vtanh.pop %v1258
  %v1260 = vsub.f32 1.0, %v1254
  %v1261 = vmul.f32 %v1260, %v1259
  %v1262 = vmul.f32 %v1254, %v1147
  %v1263 = vadd.f32 %v1261, %v1262
  %1264 = vst.msk [vmem:[#allocation2] sm:$0x3] %vm32, %v1263
  %s1265 = scalar_lea.vmem %s9, 18
  %1266 = vst.msk [vmem:[%s1265] sm:$0x3] %vm32, %v1263
  %v1267 = vld [vmem:[#allocation2] sm:$0x3]
  %v1269 = vsel %vm65, %v1267, 0
  %1271 = vmatpush.msra.mxu0 0.0
  %1272 = vmatpush.msra.mxu0 0.0
  %1273 = vmatpush.msra.mxu0 0.0
  %1274 = vmatpush.msra.mxu0 0.0
  %1275 = vmatpush.msra.mxu0 0.0
  %1276 = vmatpush.msra.mxu0 0.0
  %1277 = vmatpush.msra.mxu0 0.0
  %1278 = vmatpush.msra.mxu0 0.0
  %1279 = vmatpush.msra.mxu0 %v41
  %1280 = vmatpush.msra.mxu0 %v40
  %1281 = vmatpush.msra.mxu0 %v39
  %1282 = vmatpush.msra.mxu0 %v38
  %1283 = vmatpush.msra.mxu0 %v37
  %1284 = vmatpush.msra.mxu0 %v36
  %1285 = vmatpush.msra.mxu0 %v35
  %1286 = vmatpush.msra.mxu0 %v34
  %1287 = vmatmul.f32.gmra.mxu0 %v1269
  %v1288 = vpop.f32.mrf.mxu0
  %v1289 = vadd.f32 %v63, %v1288
  %1290 = vdwg.mxu0
  %1291 = vmatpush.msra.mxu0 0.0
  %1292 = vmatpush.msra.mxu0 0.0
  %1293 = vmatpush.msra.mxu0 0.0
  %1294 = vmatpush.msra.mxu0 0.0
  %1295 = vmatpush.msra.mxu0 0.0
  %1296 = vmatpush.msra.mxu0 0.0
  %1297 = vmatpush.msra.mxu0 0.0
  %1298 = vmatpush.msra.mxu0 0.0
  %1299 = vmatpush.msra.mxu0 %v49
  %1300 = vmatpush.msra.mxu0 %v48
  %1301 = vmatpush.msra.mxu0 %v47
  %1302 = vmatpush.msra.mxu0 %v46
  %1303 = vmatpush.msra.mxu0 %v45
  %1304 = vmatpush.msra.mxu0 %v44
  %1305 = vmatpush.msra.mxu0 %v43
  %1306 = vmatpush.msra.mxu0 %v42
  %1307 = vmatmul.f32.gmra.mxu0 %v1269
  %v1308 = vpop.f32.mrf.mxu0
  %v1309 = vadd.f32 %v90, %v1308
  %1310 = vdwg.mxu0
  %1311 = vmatpush.msra.mxu0 0.0
  %1312 = vmatpush.msra.mxu0 0.0
  %1313 = vmatpush.msra.mxu0 0.0
  %1314 = vmatpush.msra.mxu0 0.0
  %1315 = vmatpush.msra.mxu0 0.0
  %1316 = vmatpush.msra.mxu0 0.0
  %1317 = vmatpush.msra.mxu0 0.0
  %1318 = vmatpush.msra.mxu0 0.0
  %1319 = vmatpush.msra.mxu0 %v57
  %1320 = vmatpush.msra.mxu0 %v56
  %1321 = vmatpush.msra.mxu0 %v55
  %1322 = vmatpush.msra.mxu0 %v54
  %1323 = vmatpush.msra.mxu0 %v53
  %1324 = vmatpush.msra.mxu0 %v52
  %1325 = vmatpush.msra.mxu0 %v51
  %1326 = vmatpush.msra.mxu0 %v50
  %1327 = vmatmul.f32.gmra.mxu0 %v1269
  %v1328 = vpop.f32.mrf.mxu0
  %v1329 = vadd.f32 %v113, %v1328
  %1330 = vdwg.mxu0
  %s1331 = scalar_lea.vmem %s0, 20
  %v1332 = vld [vmem:[%s1331] sm:$0x3]
  %v1333 = vadd.f32 %v1332, %v1289
  %v1334 = vxor.u32 %v1333, 2147483648
  %v1335 = vmul.f32 %v1334, 1.442695
  %v1336 = vpow.pop %v1335
  %v1337 = vadd.f32 %v1336, 1.0
  %v1338 = vrcp.pop %v1337
  %v1339 = vmul.f32 %v1337, %v1338
  %v1340 = vsub.f32 1.0, %v1339
  %v1341 = vmul.f32 %v1338, %v1340
  %v1342 = vadd.f32 %v1338, %v1341
  %vm1343 = vweird.f32 %v1337
  %vm1344 = vweird.f32 %v1338
  %vm1345 = vmor %vm1343, %vm1344
  %v1346 = vsel %vm1345, %v1338, %v1342
  %v1347 = vand.u32 2147483647, %v1337
  %vm1348 = vcmp.eq.f32.partialorder %v1347, 8.507059e+37
  %v1349 = vand.u32 %v1337, 2147483648
  %v1350 = vor.u32 1.1754944e-38, %v1349
  %v1351 = vsel %vm1348, %v1350, %v1346
  %v1352 = vmul.f32 1.0, %v1351
  %s1353 = scalar_lea.vmem %s1, 20
  %v1354 = vld [vmem:[%s1353] sm:$0x3]
  %v1355 = vadd.f32 %v1354, %v1309
  %v1356 = vxor.u32 %v1355, 2147483648
  %v1357 = vmul.f32 %v1356, 1.442695
  %v1358 = vpow.pop %v1357
  %v1359 = vadd.f32 %v1358, 1.0
  %v1360 = vrcp.pop %v1359
  %v1361 = vmul.f32 %v1359, %v1360
  %v1362 = vsub.f32 1.0, %v1361
  %v1363 = vmul.f32 %v1360, %v1362
  %v1364 = vadd.f32 %v1360, %v1363
  %vm1365 = vweird.f32 %v1359
  %vm1366 = vweird.f32 %v1360
  %vm1367 = vmor %vm1365, %vm1366
  %v1368 = vsel %vm1367, %v1360, %v1364
  %v1369 = vand.u32 2147483647, %v1359
  %vm1370 = vcmp.eq.f32.partialorder %v1369, 8.507059e+37
  %v1371 = vand.u32 %v1359, 2147483648
  %v1372 = vor.u32 1.1754944e-38, %v1371
  %v1373 = vsel %vm1370, %v1372, %v1368
  %v1374 = vmul.f32 1.0, %v1373
  %s1375 = scalar_lea.vmem %s2, 20
  %v1376 = vld [vmem:[%s1375] sm:$0x3]
  %v1377 = vmul.f32 %v1352, %v1329
  %v1378 = vadd.f32 %v1376, %v1377
  %v1379 = vtanh.pop %v1378
  %v1380 = vsub.f32 1.0, %v1374
  %v1381 = vmul.f32 %v1380, %v1379
  %v1382 = vmul.f32 %v1374, %v1267
  %v1383 = vadd.f32 %v1381, %v1382
  %1384 = vst.msk [vmem:[#allocation2] sm:$0x3] %vm32, %v1383
  %s1385 = scalar_lea.vmem %s9, 20
  %1386 = vst.msk [vmem:[%s1385] sm:$0x3] %vm32, %v1383
  %v1387 = vld [vmem:[#allocation2] sm:$0x3]
  %v1389 = vsel %vm65, %v1387, 0
  %1391 = vmatpush.msra.mxu0 0.0
  %1392 = vmatpush.msra.mxu0 0.0
  %1393 = vmatpush.msra.mxu0 0.0
  %1394 = vmatpush.msra.mxu0 0.0
  %1395 = vmatpush.msra.mxu0 0.0
  %1396 = vmatpush.msra.mxu0 0.0
  %1397 = vmatpush.msra.mxu0 0.0
  %1398 = vmatpush.msra.mxu0 0.0
  %1399 = vmatpush.msra.mxu0 %v41
  %1400 = vmatpush.msra.mxu0 %v40
  %1401 = vmatpush.msra.mxu0 %v39
  %1402 = vmatpush.msra.mxu0 %v38
  %1403 = vmatpush.msra.mxu0 %v37
  %1404 = vmatpush.msra.mxu0 %v36
  %1405 = vmatpush.msra.mxu0 %v35
  %1406 = vmatpush.msra.mxu0 %v34
  %1407 = vmatmul.f32.gmra.mxu0 %v1389
  %v1408 = vpop.f32.mrf.mxu0
  %v1409 = vadd.f32 %v63, %v1408
  %1410 = vdwg.mxu0
  %1411 = vmatpush.msra.mxu0 0.0
  %1412 = vmatpush.msra.mxu0 0.0
  %1413 = vmatpush.msra.mxu0 0.0
  %1414 = vmatpush.msra.mxu0 0.0
  %1415 = vmatpush.msra.mxu0 0.0
  %1416 = vmatpush.msra.mxu0 0.0
  %1417 = vmatpush.msra.mxu0 0.0
  %1418 = vmatpush.msra.mxu0 0.0
  %1419 = vmatpush.msra.mxu0 %v49
  %1420 = vmatpush.msra.mxu0 %v48
  %1421 = vmatpush.msra.mxu0 %v47
  %1422 = vmatpush.msra.mxu0 %v46
  %1423 = vmatpush.msra.mxu0 %v45
  %1424 = vmatpush.msra.mxu0 %v44
  %1425 = vmatpush.msra.mxu0 %v43
  %1426 = vmatpush.msra.mxu0 %v42
  %1427 = vmatmul.f32.gmra.mxu0 %v1389
  %v1428 = vpop.f32.mrf.mxu0
  %v1429 = vadd.f32 %v90, %v1428
  %1430 = vdwg.mxu0
  %1431 = vmatpush.msra.mxu0 0.0
  %1432 = vmatpush.msra.mxu0 0.0
  %1433 = vmatpush.msra.mxu0 0.0
  %1434 = vmatpush.msra.mxu0 0.0
  %1435 = vmatpush.msra.mxu0 0.0
  %1436 = vmatpush.msra.mxu0 0.0
  %1437 = vmatpush.msra.mxu0 0.0
  %1438 = vmatpush.msra.mxu0 0.0
  %1439 = vmatpush.msra.mxu0 %v57
  %1440 = vmatpush.msra.mxu0 %v56
  %1441 = vmatpush.msra.mxu0 %v55
  %1442 = vmatpush.msra.mxu0 %v54
  %1443 = vmatpush.msra.mxu0 %v53
  %1444 = vmatpush.msra.mxu0 %v52
  %1445 = vmatpush.msra.mxu0 %v51
  %1446 = vmatpush.msra.mxu0 %v50
  %1447 = vmatmul.f32.gmra.mxu0 %v1389
  %v1448 = vpop.f32.mrf.mxu0
  %v1449 = vadd.f32 %v113, %v1448
  %1450 = vdwg.mxu0
  %s1451 = scalar_lea.vmem %s0, 22
  %v1452 = vld [vmem:[%s1451] sm:$0x3]
  %v1453 = vadd.f32 %v1452, %v1409
  %v1454 = vxor.u32 %v1453, 2147483648
  %v1455 = vmul.f32 %v1454, 1.442695
  %v1456 = vpow.pop %v1455
  %v1457 = vadd.f32 %v1456, 1.0
  %v1458 = vrcp.pop %v1457
  %v1459 = vmul.f32 %v1457, %v1458
  %v1460 = vsub.f32 1.0, %v1459
  %v1461 = vmul.f32 %v1458, %v1460
  %v1462 = vadd.f32 %v1458, %v1461
  %vm1463 = vweird.f32 %v1457
  %vm1464 = vweird.f32 %v1458
  %vm1465 = vmor %vm1463, %vm1464
  %v1466 = vsel %vm1465, %v1458, %v1462
  %v1467 = vand.u32 2147483647, %v1457
  %vm1468 = vcmp.eq.f32.partialorder %v1467, 8.507059e+37
  %v1469 = vand.u32 %v1457, 2147483648
  %v1470 = vor.u32 1.1754944e-38, %v1469
  %v1471 = vsel %vm1468, %v1470, %v1466
  %v1472 = vmul.f32 1.0, %v1471
  %s1473 = scalar_lea.vmem %s1, 22
  %v1474 = vld [vmem:[%s1473] sm:$0x3]
  %v1475 = vadd.f32 %v1474, %v1429
  %v1476 = vxor.u32 %v1475, 2147483648
  %v1477 = vmul.f32 %v1476, 1.442695
  %v1478 = vpow.pop %v1477
  %v1479 = vadd.f32 %v1478, 1.0
  %v1480 = vrcp.pop %v1479
  %v1481 = vmul.f32 %v1479, %v1480
  %v1482 = vsub.f32 1.0, %v1481
  %v1483 = vmul.f32 %v1480, %v1482
  %v1484 = vadd.f32 %v1480, %v1483
  %vm1485 = vweird.f32 %v1479
  %vm1486 = vweird.f32 %v1480
  %vm1487 = vmor %vm1485, %vm1486
  %v1488 = vsel %vm1487, %v1480, %v1484
  %v1489 = vand.u32 2147483647, %v1479
  %vm1490 = vcmp.eq.f32.partialorder %v1489, 8.507059e+37
  %v1491 = vand.u32 %v1479, 2147483648
  %v1492 = vor.u32 1.1754944e-38, %v1491
  %v1493 = vsel %vm1490, %v1492, %v1488
  %v1494 = vmul.f32 1.0, %v1493
  %s1495 = scalar_lea.vmem %s2, 22
  %v1496 = vld [vmem:[%s1495] sm:$0x3]
  %v1497 = vmul.f32 %v1472, %v1449
  %v1498 = vadd.f32 %v1496, %v1497
  %v1499 = vtanh.pop %v1498
  %v1500 = vsub.f32 1.0, %v1494
  %v1501 = vmul.f32 %v1500, %v1499
  %v1502 = vmul.f32 %v1494, %v1387
  %v1503 = vadd.f32 %v1501, %v1502
  %1504 = vst.msk [vmem:[#allocation2] sm:$0x3] %vm32, %v1503
  %s1505 = scalar_lea.vmem %s9, 22
  %1506 = vst.msk [vmem:[%s1505] sm:$0x3] %vm32, %v1503
  %v1507 = vld [vmem:[#allocation2] sm:$0x3]
  %v1509 = vsel %vm65, %v1507, 0
  %1511 = vmatpush.msra.mxu0 0.0
  %1512 = vmatpush.msra.mxu0 0.0
  %1513 = vmatpush.msra.mxu0 0.0
  %1514 = vmatpush.msra.mxu0 0.0
  %1515 = vmatpush.msra.mxu0 0.0
  %1516 = vmatpush.msra.mxu0 0.0
  %1517 = vmatpush.msra.mxu0 0.0
  %1518 = vmatpush.msra.mxu0 0.0
  %1519 = vmatpush.msra.mxu0 %v41
  %1520 = vmatpush.msra.mxu0 %v40
  %1521 = vmatpush.msra.mxu0 %v39
  %1522 = vmatpush.msra.mxu0 %v38
  %1523 = vmatpush.msra.mxu0 %v37
  %1524 = vmatpush.msra.mxu0 %v36
  %1525 = vmatpush.msra.mxu0 %v35
  %1526 = vmatpush.msra.mxu0 %v34
  %1527 = vmatmul.f32.gmra.mxu0 %v1509
  %v1528 = vpop.f32.mrf.mxu0
  %v1529 = vadd.f32 %v63, %v1528
  %1530 = vdwg.mxu0
  %1531 = vmatpush.msra.mxu0 0.0
  %1532 = vmatpush.msra.mxu0 0.0
  %1533 = vmatpush.msra.mxu0 0.0
  %1534 = vmatpush.msra.mxu0 0.0
  %1535 = vmatpush.msra.mxu0 0.0
  %1536 = vmatpush.msra.mxu0 0.0
  %1537 = vmatpush.msra.mxu0 0.0
  %1538 = vmatpush.msra.mxu0 0.0
  %1539 = vmatpush.msra.mxu0 %v49
  %1540 = vmatpush.msra.mxu0 %v48
  %1541 = vmatpush.msra.mxu0 %v47
  %1542 = vmatpush.msra.mxu0 %v46
  %1543 = vmatpush.msra.mxu0 %v45
  %1544 = vmatpush.msra.mxu0 %v44
  %1545 = vmatpush.msra.mxu0 %v43
  %1546 = vmatpush.msra.mxu0 %v42
  %1547 = vmatmul.f32.gmra.mxu0 %v1509
  %v1548 = vpop.f32.mrf.mxu0
  %v1549 = vadd.f32 %v90, %v1548
  %1550 = vdwg.mxu0
  %1551 = vmatpush.msra.mxu0 0.0
  %1552 = vmatpush.msra.mxu0 0.0
  %1553 = vmatpush.msra.mxu0 0.0
  %1554 = vmatpush.msra.mxu0 0.0
  %1555 = vmatpush.msra.mxu0 0.0
  %1556 = vmatpush.msra.mxu0 0.0
  %1557 = vmatpush.msra.mxu0 0.0
  %1558 = vmatpush.msra.mxu0 0.0
  %1559 = vmatpush.msra.mxu0 %v57
  %1560 = vmatpush.msra.mxu0 %v56
  %1561 = vmatpush.msra.mxu0 %v55
  %1562 = vmatpush.msra.mxu0 %v54
  %1563 = vmatpush.msra.mxu0 %v53
  %1564 = vmatpush.msra.mxu0 %v52
  %1565 = vmatpush.msra.mxu0 %v51
  %1566 = vmatpush.msra.mxu0 %v50
  %1567 = vmatmul.f32.gmra.mxu0 %v1509
  %v1568 = vpop.f32.mrf.mxu0
  %v1569 = vadd.f32 %v113, %v1568
  %1570 = vdwg.mxu0
  %s1571 = scalar_lea.vmem %s0, 24
  %v1572 = vld [vmem:[%s1571] sm:$0x3]
  %v1573 = vadd.f32 %v1572, %v1529
  %v1574 = vxor.u32 %v1573, 2147483648
  %v1575 = vmul.f32 %v1574, 1.442695
  %v1576 = vpow.pop %v1575
  %v1577 = vadd.f32 %v1576, 1.0
  %v1578 = vrcp.pop %v1577
  %v1579 = vmul.f32 %v1577, %v1578
  %v1580 = vsub.f32 1.0, %v1579
  %v1581 = vmul.f32 %v1578, %v1580
  %v1582 = vadd.f32 %v1578, %v1581
  %vm1583 = vweird.f32 %v1577
  %vm1584 = vweird.f32 %v1578
  %vm1585 = vmor %vm1583, %vm1584
  %v1586 = vsel %vm1585, %v1578, %v1582
  %v1587 = vand.u32 2147483647, %v1577
  %vm1588 = vcmp.eq.f32.partialorder %v1587, 8.507059e+37
  %v1589 = vand.u32 %v1577, 2147483648
  %v1590 = vor.u32 1.1754944e-38, %v1589
  %v1591 = vsel %vm1588, %v1590, %v1586
  %v1592 = vmul.f32 1.0, %v1591
  %s1593 = scalar_lea.vmem %s1, 24
  %v1594 = vld [vmem:[%s1593] sm:$0x3]
  %v1595 = vadd.f32 %v1594, %v1549
  %v1596 = vxor.u32 %v1595, 2147483648
  %v1597 = vmul.f32 %v1596, 1.442695
  %v1598 = vpow.pop %v1597
  %v1599 = vadd.f32 %v1598, 1.0
  %v1600 = vrcp.pop %v1599
  %v1601 = vmul.f32 %v1599, %v1600
  %v1602 = vsub.f32 1.0, %v1601
  %v1603 = vmul.f32 %v1600, %v1602
  %v1604 = vadd.f32 %v1600, %v1603
  %vm1605 = vweird.f32 %v1599
  %vm1606 = vweird.f32 %v1600
  %vm1607 = vmor %vm1605, %vm1606
  %v1608 = vsel %vm1607, %v1600, %v1604
  %v1609 = vand.u32 2147483647, %v1599
  %vm1610 = vcmp.eq.f32.partialorder %v1609, 8.507059e+37
  %v1611 = vand.u32 %v1599, 2147483648
  %v1612 = vor.u32 1.1754944e-38, %v1611
  %v1613 = vsel %vm1610, %v1612, %v1608
  %v1614 = vmul.f32 1.0, %v1613
  %s1615 = scalar_lea.vmem %s2, 24
  %v1616 = vld [vmem:[%s1615] sm:$0x3]
  %v1617 = vmul.f32 %v1592, %v1569
  %v1618 = vadd.f32 %v1616, %v1617
  %v1619 = vtanh.pop %v1618
  %v1620 = vsub.f32 1.0, %v1614
  %v1621 = vmul.f32 %v1620, %v1619
  %v1622 = vmul.f32 %v1614, %v1507
  %v1623 = vadd.f32 %v1621, %v1622
  %1624 = vst.msk [vmem:[#allocation2] sm:$0x3] %vm32, %v1623
  %s1625 = scalar_lea.vmem %s9, 24
  %1626 = vst.msk [vmem:[%s1625] sm:$0x3] %vm32, %v1623
  %v1627 = vld [vmem:[#allocation2] sm:$0x3]
  %v1629 = vsel %vm65, %v1627, 0
  %1631 = vmatpush.msra.mxu0 0.0
  %1632 = vmatpush.msra.mxu0 0.0
  %1633 = vmatpush.msra.mxu0 0.0
  %1634 = vmatpush.msra.mxu0 0.0
  %1635 = vmatpush.msra.mxu0 0.0
  %1636 = vmatpush.msra.mxu0 0.0
  %1637 = vmatpush.msra.mxu0 0.0
  %1638 = vmatpush.msra.mxu0 0.0
  %1639 = vmatpush.msra.mxu0 %v41
  %1640 = vmatpush.msra.mxu0 %v40
  %1641 = vmatpush.msra.mxu0 %v39
  %1642 = vmatpush.msra.mxu0 %v38
  %1643 = vmatpush.msra.mxu0 %v37
  %1644 = vmatpush.msra.mxu0 %v36
  %1645 = vmatpush.msra.mxu0 %v35
  %1646 = vmatpush.msra.mxu0 %v34
  %1647 = vmatmul.f32.gmra.mxu0 %v1629
  %v1648 = vpop.f32.mrf.mxu0
  %v1649 = vadd.f32 %v63, %v1648
  %1650 = vdwg.mxu0
  %1651 = vmatpush.msra.mxu0 0.0
  %1652 = vmatpush.msra.mxu0 0.0
  %1653 = vmatpush.msra.mxu0 0.0
  %1654 = vmatpush.msra.mxu0 0.0
  %1655 = vmatpush.msra.mxu0 0.0
  %1656 = vmatpush.msra.mxu0 0.0
  %1657 = vmatpush.msra.mxu0 0.0
  %1658 = vmatpush.msra.mxu0 0.0
  %1659 = vmatpush.msra.mxu0 %v49
  %1660 = vmatpush.msra.mxu0 %v48
  %1661 = vmatpush.msra.mxu0 %v47
  %1662 = vmatpush.msra.mxu0 %v46
  %1663 = vmatpush.msra.mxu0 %v45
  %1664 = vmatpush.msra.mxu0 %v44
  %1665 = vmatpush.msra.mxu0 %v43
  %1666 = vmatpush.msra.mxu0 %v42
  %1667 = vmatmul.f32.gmra.mxu0 %v1629
  %v1668 = vpop.f32.mrf.mxu0
  %v1669 = vadd.f32 %v90, %v1668
  %1670 = vdwg.mxu0
  %1671 = vmatpush.msra.mxu0 0.0
  %1672 = vmatpush.msra.mxu0 0.0
  %1673 = vmatpush.msra.mxu0 0.0
  %1674 = vmatpush.msra.mxu0 0.0
  %1675 = vmatpush.msra.mxu0 0.0
  %1676 = vmatpush.msra.mxu0 0.0
  %1677 = vmatpush.msra.mxu0 0.0
  %1678 = vmatpush.msra.mxu0 0.0
  %1679 = vmatpush.msra.mxu0 %v57
  %1680 = vmatpush.msra.mxu0 %v56
  %1681 = vmatpush.msra.mxu0 %v55
  %1682 = vmatpush.msra.mxu0 %v54
  %1683 = vmatpush.msra.mxu0 %v53
  %1684 = vmatpush.msra.mxu0 %v52
  %1685 = vmatpush.msra.mxu0 %v51
  %1686 = vmatpush.msra.mxu0 %v50
  %1687 = vmatmul.f32.gmra.mxu0 %v1629
  %v1688 = vpop.f32.mrf.mxu0
  %v1689 = vadd.f32 %v113, %v1688
  %1690 = vdwg.mxu0
  %s1691 = scalar_lea.vmem %s0, 26
  %v1692 = vld [vmem:[%s1691] sm:$0x3]
  %v1693 = vadd.f32 %v1692, %v1649
  %v1694 = vxor.u32 %v1693, 2147483648
  %v1695 = vmul.f32 %v1694, 1.442695
  %v1696 = vpow.pop %v1695
  %v1697 = vadd.f32 %v1696, 1.0
  %v1698 = vrcp.pop %v1697
  %v1699 = vmul.f32 %v1697, %v1698
  %v1700 = vsub.f32 1.0, %v1699
  %v1701 = vmul.f32 %v1698, %v1700
  %v1702 = vadd.f32 %v1698, %v1701
  %vm1703 = vweird.f32 %v1697
  %vm1704 = vweird.f32 %v1698
  %vm1705 = vmor %vm1703, %vm1704
  %v1706 = vsel %vm1705, %v1698, %v1702
  %v1707 = vand.u32 2147483647, %v1697
  %vm1708 = vcmp.eq.f32.partialorder %v1707, 8.507059e+37
  %v1709 = vand.u32 %v1697, 2147483648
  %v1710 = vor.u32 1.1754944e-38, %v1709
  %v1711 = vsel %vm1708, %v1710, %v1706
  %v1712 = vmul.f32 1.0, %v1711
  %s1713 = scalar_lea.vmem %s1, 26
  %v1714 = vld [vmem:[%s1713] sm:$0x3]
  %v1715 = vadd.f32 %v1714, %v1669
  %v1716 = vxor.u32 %v1715, 2147483648
  %v1717 = vmul.f32 %v1716, 1.442695
  %v1718 = vpow.pop %v1717
  %v1719 = vadd.f32 %v1718, 1.0
  %v1720 = vrcp.pop %v1719
  %v1721 = vmul.f32 %v1719, %v1720
  %v1722 = vsub.f32 1.0, %v1721
  %v1723 = vmul.f32 %v1720, %v1722
  %v1724 = vadd.f32 %v1720, %v1723
  %vm1725 = vweird.f32 %v1719
  %vm1726 = vweird.f32 %v1720
  %vm1727 = vmor %vm1725, %vm1726
  %v1728 = vsel %vm1727, %v1720, %v1724
  %v1729 = vand.u32 2147483647, %v1719
  %vm1730 = vcmp.eq.f32.partialorder %v1729, 8.507059e+37
  %v1731 = vand.u32 %v1719, 2147483648
  %v1732 = vor.u32 1.1754944e-38, %v1731
  %v1733 = vsel %vm1730, %v1732, %v1728
  %v1734 = vmul.f32 1.0, %v1733
  %s1735 = scalar_lea.vmem %s2, 26
  %v1736 = vld [vmem:[%s1735] sm:$0x3]
  %v1737 = vmul.f32 %v1712, %v1689
  %v1738 = vadd.f32 %v1736, %v1737
  %v1739 = vtanh.pop %v1738
  %v1740 = vsub.f32 1.0, %v1734
  %v1741 = vmul.f32 %v1740, %v1739
  %v1742 = vmul.f32 %v1734, %v1627
  %v1743 = vadd.f32 %v1741, %v1742
  %1744 = vst.msk [vmem:[#allocation2] sm:$0x3] %vm32, %v1743
  %s1745 = scalar_lea.vmem %s9, 26
  %1746 = vst.msk [vmem:[%s1745] sm:$0x3] %vm32, %v1743
  %v1747 = vld [vmem:[#allocation2] sm:$0x3]
  %v1749 = vsel %vm65, %v1747, 0
  %1751 = vmatpush.msra.mxu0 0.0
  %1752 = vmatpush.msra.mxu0 0.0
  %1753 = vmatpush.msra.mxu0 0.0
  %1754 = vmatpush.msra.mxu0 0.0
  %1755 = vmatpush.msra.mxu0 0.0
  %1756 = vmatpush.msra.mxu0 0.0
  %1757 = vmatpush.msra.mxu0 0.0
  %1758 = vmatpush.msra.mxu0 0.0
  %1759 = vmatpush.msra.mxu0 %v41
  %1760 = vmatpush.msra.mxu0 %v40
  %1761 = vmatpush.msra.mxu0 %v39
  %1762 = vmatpush.msra.mxu0 %v38
  %1763 = vmatpush.msra.mxu0 %v37
  %1764 = vmatpush.msra.mxu0 %v36
  %1765 = vmatpush.msra.mxu0 %v35
  %1766 = vmatpush.msra.mxu0 %v34
  %1767 = vmatmul.f32.gmra.mxu0 %v1749
  %v1768 = vpop.f32.mrf.mxu0
  %v1769 = vadd.f32 %v63, %v1768
  %1770 = vdwg.mxu0
  %1771 = vmatpush.msra.mxu0 0.0
  %1772 = vmatpush.msra.mxu0 0.0
  %1773 = vmatpush.msra.mxu0 0.0
  %1774 = vmatpush.msra.mxu0 0.0
  %1775 = vmatpush.msra.mxu0 0.0
  %1776 = vmatpush.msra.mxu0 0.0
  %1777 = vmatpush.msra.mxu0 0.0
  %1778 = vmatpush.msra.mxu0 0.0
  %1779 = vmatpush.msra.mxu0 %v49
  %1780 = vmatpush.msra.mxu0 %v48
  %1781 = vmatpush.msra.mxu0 %v47
  %1782 = vmatpush.msra.mxu0 %v46
  %1783 = vmatpush.msra.mxu0 %v45
  %1784 = vmatpush.msra.mxu0 %v44
  %1785 = vmatpush.msra.mxu0 %v43
  %1786 = vmatpush.msra.mxu0 %v42
  %1787 = vmatmul.f32.gmra.mxu0 %v1749
  %v1788 = vpop.f32.mrf.mxu0
  %v1789 = vadd.f32 %v90, %v1788
  %1790 = vdwg.mxu0
  %1791 = vmatpush.msra.mxu0 0.0
  %1792 = vmatpush.msra.mxu0 0.0
  %1793 = vmatpush.msra.mxu0 0.0
  %1794 = vmatpush.msra.mxu0 0.0
  %1795 = vmatpush.msra.mxu0 0.0
  %1796 = vmatpush.msra.mxu0 0.0
  %1797 = vmatpush.msra.mxu0 0.0
  %1798 = vmatpush.msra.mxu0 0.0
  %1799 = vmatpush.msra.mxu0 %v57
  %1800 = vmatpush.msra.mxu0 %v56
  %1801 = vmatpush.msra.mxu0 %v55
  %1802 = vmatpush.msra.mxu0 %v54
  %1803 = vmatpush.msra.mxu0 %v53
  %1804 = vmatpush.msra.mxu0 %v52
  %1805 = vmatpush.msra.mxu0 %v51
  %1806 = vmatpush.msra.mxu0 %v50
  %1807 = vmatmul.f32.gmra.mxu0 %v1749
  %v1808 = vpop.f32.mrf.mxu0
  %v1809 = vadd.f32 %v113, %v1808
  %1810 = vdwg.mxu0
  %s1811 = scalar_lea.vmem %s0, 28
  %v1812 = vld [vmem:[%s1811] sm:$0x3]
  %v1813 = vadd.f32 %v1812, %v1769
  %v1814 = vxor.u32 %v1813, 2147483648
  %v1815 = vmul.f32 %v1814, 1.442695
  %v1816 = vpow.pop %v1815
  %v1817 = vadd.f32 %v1816, 1.0
  %v1818 = vrcp.pop %v1817
  %v1819 = vmul.f32 %v1817, %v1818
  %v1820 = vsub.f32 1.0, %v1819
  %v1821 = vmul.f32 %v1818, %v1820
  %v1822 = vadd.f32 %v1818, %v1821
  %vm1823 = vweird.f32 %v1817
  %vm1824 = vweird.f32 %v1818
  %vm1825 = vmor %vm1823, %vm1824
  %v1826 = vsel %vm1825, %v1818, %v1822
  %v1827 = vand.u32 2147483647, %v1817
  %vm1828 = vcmp.eq.f32.partialorder %v1827, 8.507059e+37
  %v1829 = vand.u32 %v1817, 2147483648
  %v1830 = vor.u32 1.1754944e-38, %v1829
  %v1831 = vsel %vm1828, %v1830, %v1826
  %v1832 = vmul.f32 1.0, %v1831
  %s1833 = scalar_lea.vmem %s1, 28
  %v1834 = vld [vmem:[%s1833] sm:$0x3]
  %v1835 = vadd.f32 %v1834, %v1789
  %v1836 = vxor.u32 %v1835, 2147483648
  %v1837 = vmul.f32 %v1836, 1.442695
  %v1838 = vpow.pop %v1837
  %v1839 = vadd.f32 %v1838, 1.0
  %v1840 = vrcp.pop %v1839
  %v1841 = vmul.f32 %v1839, %v1840
  %v1842 = vsub.f32 1.0, %v1841
  %v1843 = vmul.f32 %v1840, %v1842
  %v1844 = vadd.f32 %v1840, %v1843
  %vm1845 = vweird.f32 %v1839
  %vm1846 = vweird.f32 %v1840
  %vm1847 = vmor %vm1845, %vm1846
  %v1848 = vsel %vm1847, %v1840, %v1844
  %v1849 = vand.u32 2147483647, %v1839
  %vm1850 = vcmp.eq.f32.partialorder %v1849, 8.507059e+37
  %v1851 = vand.u32 %v1839, 2147483648
  %v1852 = vor.u32 1.1754944e-38, %v1851
  %v1853 = vsel %vm1850, %v1852, %v1848
  %v1854 = vmul.f32 1.0, %v1853
  %s1855 = scalar_lea.vmem %s2, 28
  %v1856 = vld [vmem:[%s1855] sm:$0x3]
  %v1857 = vmul.f32 %v1832, %v1809
  %v1858 = vadd.f32 %v1856, %v1857
  %v1859 = vtanh.pop %v1858
  %v1860 = vsub.f32 1.0, %v1854
  %v1861 = vmul.f32 %v1860, %v1859
  %v1862 = vmul.f32 %v1854, %v1747
  %v1863 = vadd.f32 %v1861, %v1862
  %1864 = vst.msk [vmem:[#allocation2] sm:$0x3] %vm32, %v1863
  %s1865 = scalar_lea.vmem %s9, 28
  %1866 = vst.msk [vmem:[%s1865] sm:$0x3] %vm32, %v1863
  %v1867 = vld [vmem:[#allocation2] sm:$0x3]
  %v1869 = vsel %vm65, %v1867, 0
  %1871 = vmatpush.msra.mxu0 0.0
  %1872 = vmatpush.msra.mxu0 0.0
  %1873 = vmatpush.msra.mxu0 0.0
  %1874 = vmatpush.msra.mxu0 0.0
  %1875 = vmatpush.msra.mxu0 0.0
  %1876 = vmatpush.msra.mxu0 0.0
  %1877 = vmatpush.msra.mxu0 0.0
  %1878 = vmatpush.msra.mxu0 0.0
  %1879 = vmatpush.msra.mxu0 %v41
  %1880 = vmatpush.msra.mxu0 %v40
  %1881 = vmatpush.msra.mxu0 %v39
  %1882 = vmatpush.msra.mxu0 %v38
  %1883 = vmatpush.msra.mxu0 %v37
  %1884 = vmatpush.msra.mxu0 %v36
  %1885 = vmatpush.msra.mxu0 %v35
  %1886 = vmatpush.msra.mxu0 %v34
  %1887 = vmatmul.f32.gmra.mxu0 %v1869
  %v1888 = vpop.f32.mrf.mxu0
  %v1889 = vadd.f32 %v63, %v1888
  %1890 = vdwg.mxu0
  %1891 = vmatpush.msra.mxu0 0.0
  %1892 = vmatpush.msra.mxu0 0.0
  %1893 = vmatpush.msra.mxu0 0.0
  %1894 = vmatpush.msra.mxu0 0.0
  %1895 = vmatpush.msra.mxu0 0.0
  %1896 = vmatpush.msra.mxu0 0.0
  %1897 = vmatpush.msra.mxu0 0.0
  %1898 = vmatpush.msra.mxu0 0.0
  %1899 = vmatpush.msra.mxu0 %v49
  %1900 = vmatpush.msra.mxu0 %v48
  %1901 = vmatpush.msra.mxu0 %v47
  %1902 = vmatpush.msra.mxu0 %v46
  %1903 = vmatpush.msra.mxu0 %v45
  %1904 = vmatpush.msra.mxu0 %v44
  %1905 = vmatpush.msra.mxu0 %v43
  %1906 = vmatpush.msra.mxu0 %v42
  %1907 = vmatmul.f32.gmra.mxu0 %v1869
  %v1908 = vpop.f32.mrf.mxu0
  %v1909 = vadd.f32 %v90, %v1908
  %1910 = vdwg.mxu0
  %1911 = vmatpush.msra.mxu0 0.0
  %1912 = vmatpush.msra.mxu0 0.0
  %1913 = vmatpush.msra.mxu0 0.0
  %1914 = vmatpush.msra.mxu0 0.0
  %1915 = vmatpush.msra.mxu0 0.0
  %1916 = vmatpush.msra.mxu0 0.0
  %1917 = vmatpush.msra.mxu0 0.0
  %1918 = vmatpush.msra.mxu0 0.0
  %1919 = vmatpush.msra.mxu0 %v57
  %1920 = vmatpush.msra.mxu0 %v56
  %1921 = vmatpush.msra.mxu0 %v55
  %1922 = vmatpush.msra.mxu0 %v54
  %1923 = vmatpush.msra.mxu0 %v53
  %1924 = vmatpush.msra.mxu0 %v52
  %1925 = vmatpush.msra.mxu0 %v51
  %1926 = vmatpush.msra.mxu0 %v50
  %1927 = vmatmul.f32.gmra.mxu0 %v1869
  %v1928 = vpop.f32.mrf.mxu0
  %v1929 = vadd.f32 %v113, %v1928
  %1930 = vdwg.mxu0
  %s1931 = scalar_lea.vmem %s0, 30
  %v1932 = vld [vmem:[%s1931] sm:$0x3]
  %v1933 = vadd.f32 %v1932, %v1889
  %v1934 = vxor.u32 %v1933, 2147483648
  %v1935 = vmul.f32 %v1934, 1.442695
  %v1936 = vpow.pop %v1935
  %v1937 = vadd.f32 %v1936, 1.0
  %v1938 = vrcp.pop %v1937
  %v1939 = vmul.f32 %v1937, %v1938
  %v1940 = vsub.f32 1.0, %v1939
  %v1941 = vmul.f32 %v1938, %v1940
  %v1942 = vadd.f32 %v1938, %v1941
  %vm1943 = vweird.f32 %v1937
  %vm1944 = vweird.f32 %v1938
  %vm1945 = vmor %vm1943, %vm1944
  %v1946 = vsel %vm1945, %v1938, %v1942
  %v1947 = vand.u32 2147483647, %v1937
  %vm1948 = vcmp.eq.f32.partialorder %v1947, 8.507059e+37
  %v1949 = vand.u32 %v1937, 2147483648
  %v1950 = vor.u32 1.1754944e-38, %v1949
  %v1951 = vsel %vm1948, %v1950, %v1946
  %v1952 = vmul.f32 1.0, %v1951
  %s1953 = scalar_lea.vmem %s1, 30
  %v1954 = vld [vmem:[%s1953] sm:$0x3]
  %v1955 = vadd.f32 %v1954, %v1909
  %v1956 = vxor.u32 %v1955, 2147483648
  %v1957 = vmul.f32 %v1956, 1.442695
  %v1958 = vpow.pop %v1957
  %v1959 = vadd.f32 %v1958, 1.0
  %v1960 = vrcp.pop %v1959
  %v1961 = vmul.f32 %v1959, %v1960
  %v1962 = vsub.f32 1.0, %v1961
  %v1963 = vmul.f32 %v1960, %v1962
  %v1964 = vadd.f32 %v1960, %v1963
  %vm1965 = vweird.f32 %v1959
  %vm1966 = vweird.f32 %v1960
  %vm1967 = vmor %vm1965, %vm1966
  %v1968 = vsel %vm1967, %v1960, %v1964
  %v1969 = vand.u32 2147483647, %v1959
  %vm1970 = vcmp.eq.f32.partialorder %v1969, 8.507059e+37
  %v1971 = vand.u32 %v1959, 2147483648
  %v1972 = vor.u32 1.1754944e-38, %v1971
  %v1973 = vsel %vm1970, %v1972, %v1968
  %v1974 = vmul.f32 1.0, %v1973
  %s1975 = scalar_lea.vmem %s2, 30
  %v1976 = vld [vmem:[%s1975] sm:$0x3]
  %v1977 = vmul.f32 %v1952, %v1929
  %v1978 = vadd.f32 %v1976, %v1977
  %v1979 = vtanh.pop %v1978
  %v1980 = vsub.f32 1.0, %v1974
  %v1981 = vmul.f32 %v1980, %v1979
  %v1982 = vmul.f32 %v1974, %v1867
  %v1983 = vadd.f32 %v1981, %v1982
  %1984 = vst.msk [vmem:[#allocation2] sm:$0x3] %vm32, %v1983
  %s1985 = scalar_lea.vmem %s9, 30
  %1986 = vst.msk [vmem:[%s1985] sm:$0x3] %vm32, %v1983
  // Predicated region
  $region38: #{_lambda_.39} parent=0 // pred_check
    _
  $region39: #{_lambda_.39} parent=0 // pred_check_branch
    %1988 = sbr.rel (0) target = $region41
  $region40: #{_lambda_.39} parent=0 // pred_region
    _
  $region41: #{_lambda_.39} parent=0 // pred_fallthru
    _
  // Predicated region
  $region42: #{_lambda_.39} parent=0 // pred_check
    _
  $region43: #{_lambda_.39} parent=0 // pred_check_branch
    %1990 = sbr.rel (0) target = $region45
  $region44: #{_lambda_.39} parent=0 // pred_region
    _
  $region45: #{_lambda_.39} parent=0 // pred_fallthru
    _

</llo_original>
